<compile_context>
chip_gen: v6e
topology: v6e:2x2x1
jax: 0.10.0
libtpu: 0.0.40
codegen_flags: <defaults>
</compile_context>

<pallas_src>
import jax
import jax.numpy as jnp
import numpy as np
from jax.experimental import pallas as pl
from jax.experimental.pallas import tpu as pltpu

EPS = 1e-5                       # PyTorch BatchNorm default eps
_VMEM_LIMIT = 48 * 1024 * 1024   # safe on v5e/v6e (128 MiB) and v7x (64 MiB)


# ---------------------------------------------------------------------------
# tile-size helpers
# ---------------------------------------------------------------------------
def _pick_tile_m(m, target=512):
    if m <= target:
        return m
    for t in (target, 256, 128, 64, 32, 16, 8):
        if m % t == 0:
            return t
    return m


def _pick_tile_n(n, target=512):
    if n <= target:
        return n
    for t in (512, 384, 256, 128):
        if n % t == 0:
            return t
    return n


# ---------------------------------------------------------------------------
# Kernel 1: fused Linear + BatchNorm1d (batch stats) + ReLU, tiled over N.
#           Batch statistics are per output feature, so every N tile is
#           self-contained -> single pass, fully "parallel" grid.
# ---------------------------------------------------------------------------
def _fc_bn_relu_kernel(x_ref, w_ref, g_ref, b_ref, o_ref):
    y = jnp.dot(x_ref[...], w_ref[...], preferred_element_type=jnp.float32)
    m = jnp.mean(y, axis=0, keepdims=True)
    v = jnp.maximum(jnp.mean(y * y, axis=0, keepdims=True) - m * m, 0.0)
    inv = jax.lax.rsqrt(v + EPS)
    o_ref[...] = jnp.maximum((y - m) * inv * g_ref[...] + b_ref[...], 0.0
                             ).astype(o_ref.dtype)


def fc_bn_relu(x, w, g, beta):
    B, K = x.shape
    N = w.shape[-1]
    tn = _pick_tile_n(N)
    return pl.pallas_call(
        _fc_bn_relu_kernel,
        out_shape=jax.ShapeDtypeStruct((B, N), jnp.bfloat16),
        grid=(N // tn,),
        in_specs=[pl.BlockSpec((B, K), lambda j: (0, 0)),
                  pl.BlockSpec((K, tn), lambda j: (0, j)),
                  pl.BlockSpec((1, tn), lambda j: (0, j)),
                  pl.BlockSpec((1, tn), lambda j: (0, j))],
        out_specs=pl.BlockSpec((B, tn), lambda j: (0, j)),
        compiler_params=pltpu.CompilerParams(
            dimension_semantics=("parallel",),
            vmem_limit_bytes=_VMEM_LIMIT),
    )(x.astype(jnp.bfloat16), w.astype(jnp.bfloat16),
      g.reshape(1, N).astype(jnp.float32),
      beta.reshape(1, N).astype(jnp.float32))


# ---------------------------------------------------------------------------
# Kernel 2 (pass 1 of deconv BN layers): tiled matmul + per-channel stats.
#   grid = (parity P, m-tiles).  The stats outputs are revisited along the m
#   axis ("arbitrary"); the parity axis is "parallel" (megacore on v7x).
# ---------------------------------------------------------------------------
def _mm_stats_kernel(x_ref, w_ref, y_ref, sum_ref, sq_ref):
    @pl.when(pl.program_id(1) == 0)
    def _():
        sum_ref[...] = jnp.zeros_like(sum_ref)
        sq_ref[...] = jnp.zeros_like(sq_ref)

    y = jnp.dot(x_ref[0], w_ref[0], preferred_element_type=jnp.float32)
    y_ref[0] = y
    sum_ref[0] = sum_ref[0] + jnp.sum(y, axis=0, keepdims=True)
    sq_ref[0] = sq_ref[0] + jnp.sum(y * y, axis=0, keepdims=True)


def deconv_matmul_stats(patches, wmats, tm):
    P, M, K = patches.shape
    N = wmats.shape[-1]
    return pl.pallas_call(
        _mm_stats_kernel,
        out_shape=(jax.ShapeDtypeStruct((P, M, N), jnp.float32),
                   jax.ShapeDtypeStruct((P, 1, N), jnp.float32),
                   jax.ShapeDtypeStruct((P, 1, N), jnp.float32)),
        grid=(P, M // tm),
        in_specs=[pl.BlockSpec((1, tm, K), lambda p, m: (p, m, 0)),
                  pl.BlockSpec((1, K, N), lambda p, m: (p, 0, 0))],
        out_specs=(pl.BlockSpec((1, tm, N), lambda p, m: (p, m, 0)),
                   pl.BlockSpec((1, 1, N), lambda p, m: (p, 0, 0)),
                   pl.BlockSpec((1, 1, N), lambda p, m: (p, 0, 0))),
        compiler_params=pltpu.CompilerParams(
            dimension_semantics=("parallel", "arbitrary"),
            vmem_limit_bytes=_VMEM_LIMIT),
    )(patches, wmats)


# ---------------------------------------------------------------------------
# Kernel 3 (pass 2 of deconv BN layers): y * scale + shift, ReLU, bf16 out.
# ---------------------------------------------------------------------------
def _scale_shift_relu_kernel(y_ref, sc_ref, sh_ref, o_ref):
    o_ref[0] = jnp.maximum(y_ref[0] * sc_ref[...] + sh_ref[...], 0.0
                           ).astype(o_ref.dtype)


def scale_shift_relu(y, scale, shift, tm):
    P, M, N = y.shape
    return pl.pallas_call(
        _scale_shift_relu_kernel,
        out_shape=jax.ShapeDtypeStruct((P, M, N), jnp.bfloat16),
        grid=(P, M // tm),
        in_specs=[pl.BlockSpec((1, tm, N), lambda p, m: (p, m, 0)),
                  pl.BlockSpec((1, N), lambda p, m: (0, 0)),
                  pl.BlockSpec((1, N), lambda p, m: (0, 0))],
        out_specs=pl.BlockSpec((1, tm, N), lambda p, m: (p, m, 0)),
        compiler_params=pltpu.CompilerParams(
            dimension_semantics=("parallel", "parallel")),
    )(y, scale, shift)


# ---------------------------------------------------------------------------
# Kernel 4: final layer — matmul + bias + tanh, tiled over M (lane-fused
#           parities: N = 4*Cout instead of Cout).
# ---------------------------------------------------------------------------
def _mm_bias_tanh_kernel(x_ref, w_ref, b_ref, o_ref):
    y = jnp.dot(x_ref[...], w_ref[...], preferred_element_type=jnp.float32)
    o_ref[...] = jnp.tanh(y + b_ref[...])


def matmul_bias_tanh(x, w, b, tm):
    M, K = x.shape
    N = w.shape[-1]
    return pl.pallas_call(
        _mm_bias_tanh_kernel,
        out_shape=jax.ShapeDtypeStruct((M, N), jnp.float32),
        grid=(M // tm,),
        in_specs=[pl.BlockSpec((tm, K), lambda i: (i, 0)),
                  pl.BlockSpec((K, N), lambda i: (0, 0)),
                  pl.BlockSpec((1, N), lambda i: (0, 0))],
        out_specs=pl.BlockSpec((tm, N), lambda i: (i, 0)),
        compiler_params=pltpu.CompilerParams(
            dimension_semantics=("parallel",)),
    )(x, w, b)


# ---------------------------------------------------------------------------
# ConvTranspose2d(k=4, s=2, p=1) glue (NHWC activations, bf16):
#   out[b, 2y+py, 2x+px, co] =
#     sum_{ci,dy,dx} w[ci, co, 3-py-2dy, 3-px-2dx] * xp[b, y+py+dy, x+px+dx, ci]
# ---------------------------------------------------------------------------
def _deconv_patches_nhwc(x, w):
    """x: (B,H,W,Cin) bf16, w: (Cin,Cout,4,4) f32 -> (4,M,4Cin) bf16, (4,4Cin,Cout) bf16."""
    B, H, W, Cin = x.shape
    xp = jnp.pad(x, ((0, 0), (1, 1), (1, 1), (0, 0)))
    patches, wmats = [], []
    for py in (0, 1):
        for px in (0, 1):
            feats, cols = [], []
            for dy in (0, 1):
                for dx in (0, 1):
                    feats.append(xp[:, py + dy:py + dy + H, px + dx:px + dx + W, :])
                    cols.append(w[:, :, 3 - py - 2 * dy, 3 - px - 2 * dx])
            patches.append(jnp.concatenate(feats, axis=-1).reshape(B * H * W, 4 * Cin))
            wmats.append(jnp.concatenate(cols, axis=0))          # (4Cin, Cout)
    return jnp.stack(patches), jnp.stack(wmats).astype(jnp.bfloat16)


def _interleave_nhwc(y, B, H, W, C):
    # y: (4, B*H*W, C), parity p = 2*py + px  ->  (B, 2H, 2W, C)
    y = y.reshape(2, 2, B, H, W, C)
    y = y.transpose(2, 3, 0, 4, 1, 5)         # (B, H, py, W, px, C)
    return y.reshape(B, 2 * H, 2 * W, C)


def _last_layer_inputs(x, w, b):
    """Shared-9-window form: xs (M, 9Cin) bf16, wbig (9Cin, 4Cout) bf16, bias (1,4Cout)."""
    B, H, W, Cin = x.shape
    Cout = w.shape[1]
    xp = jnp.pad(x, ((0, 0), (1, 1), (1, 1), (0, 0)))
    wins = [xp[:, a:a + H, c:c + W, :] for a in range(3) for c in range(3)]
    xs = jnp.concatenate(wins, axis=-1).reshape(B * H * W, 9 * Cin)
    wbig = jnp.zeros((9 * Cin, 4 * Cout), jnp.float32)
    for py in (0, 1):
        for px in (0, 1):
            for dy in (0, 1):
                for dx in (0, 1):
                    a, c = py + dy, px + dx
                    wbig = wbig.at[(3 * a + c) * Cin:(3 * a + c + 1) * Cin,
                                   (2 * py + px) * Cout:(2 * py + px + 1) * Cout].set(
                                       w[:, :, 3 - py - 2 * dy, 3 - px - 2 * dx])
    bias = jnp.tile(b, 4).reshape(1, 4 * Cout).astype(jnp.float32)
    return xs, wbig.astype(jnp.bfloat16), bias


def _assemble_tanh_output(y, B, H, W, Cout):
    # y: (B*H*W, 4*Cout), column = (2*py+px)*Cout + co  ->  NCHW (B, Cout, 2H, 2W)
    y = y.reshape(B, H, W, 2, 2, Cout)
    y = y.transpose(0, 1, 3, 2, 4, 5).reshape(B, 2 * H, 2 * W, Cout)
    return y.transpose(0, 3, 1, 2)


# ---------------------------------------------------------------------------
# Stage1Generator parameters + forward
# ---------------------------------------------------------------------------
def init_params(key, z_dim, text_dim, ngf):
    ks = jax.random.split(key, 8)

    def nrm(k, shape, s=0.05):
        return (s * jax.random.normal(k, shape)).astype(jnp.float32)

    c0 = ngf * 8
    fc_out = c0 * 4 * 4
    params = {
        "fc_w": nrm(ks[0], (z_dim + text_dim, fc_out)),
        "fc_b": nrm(ks[1], (fc_out,)),
        "fc_g": jnp.ones((fc_out,), jnp.float32) + nrm(ks[2], (fc_out,), 0.02),
        "fc_beta": nrm(ks[3], (fc_out,), 0.02),
        "deconv": [],
    }
    chans = [c0, ngf * 4, ngf * 2, ngf, 3]
    for i in range(4):
        cin, cout = chans[i], chans[i + 1]
        kk = jax.random.split(ks[4 + i], 4)
        layer = {"w": nrm(kk[0], (cin, cout, 4, 4)), "b": nrm(kk[1], (cout,))}
        if i < 3:
            layer["g"] = jnp.ones((cout,), jnp.float32) + nrm(kk[2], (cout,), 0.02)
            layer["beta"] = nrm(kk[3], (cout,), 0.02)
        params["deconv"].append(layer)
    return params


def stage1_generator_forward(params, z, text_embedding):
    B = z.shape[0]
    x = jnp.concatenate([z, text_embedding], axis=1)
    # fc: Linear + BatchNorm1d (batch stats) + ReLU — fused, N-tiled.
    # (Linear bias is dropped: it is exactly cancelled by the BN mean.)
    h = fc_bn_relu(x, params["fc_w"], params["fc_g"], params["fc_beta"])
    c0 = params["deconv"][0]["w"].shape[0]
    act = h.reshape(B, c0, 4, 4).transpose(0, 2, 3, 1)       # NHWC, bf16

    # three ConvTranspose + BatchNorm2d + ReLU blocks (two-pass BN)
    for d in params["deconv"][:3]:
        Bn, H, W, _ = act.shape
        Cout = d["w"].shape[1]
        patches, wmats = _deconv_patches_nhwc(act, d["w"])
        M = Bn * H * W
        tm = _pick_tile_m(M)
        y, ssum, ssq = deconv_matmul_stats(patches, wmats, tm)
        cnt = 4.0 * M                                        # B * (2H) * (2W)
        s0 = jnp.sum(ssum[:, 0, :], axis=0)
        s1 = jnp.sum(ssq[:, 0, :], axis=0)
        mean = s0 / cnt
        var = jnp.maximum(s1 / cnt - mean * mean, 0.0)
        scale = d["g"] * jax.lax.rsqrt(var + EPS)
        shift = d["beta"] - mean * scale
        actp = scale_shift_relu(y, scale.reshape(1, Cout), shift.reshape(1, Cout), tm)
        act = _interleave_nhwc(actp, Bn, H, W, Cout)

    # final ConvTranspose + tanh (9-window shared-K, lane-fused parities)
    d = params["deconv"][3]
    Bn, H, W, _ = act.shape
    Cout = d["w"].shape[1]
    xs, wbig, bias = _last_layer_inputs(act, d["w"], d["b"])
    tm = _pick_tile_m(Bn * H * W)
    y = matmul_bias_tanh(xs, wbig, bias, tm)
    return _assemble_tanh_output(y, Bn, H, W, Cout)


# ---------------------------------------------------------------------------
# Pure-JAX reference (same bf16-operand / f32-accumulate numerics)
# ---------------------------------------------------------------------------
def _ref_deconv(x, w, b):
    w_conv = jnp.flip(w, axis=(2, 3)).transpose(1, 0, 2, 3)  # (Cout, Cin, 4, 4)
    out = jax.lax.conv_general_dilated(
        x.astype(jnp.bfloat16), w_conv.astype(jnp.bfloat16),
        window_strides=(1, 1), padding=((2, 2), (2, 2)),
        lhs_dilation=(2, 2), dimension_numbers=("NCHW", "OIHW", "NCHW"),
        preferred_element_type=jnp.float32)
    return out + b[None, :, None, None]


def _ref_bn(x, g, beta, axes):
    m = jnp.mean(x, axis=axes, keepdims=True)
    v = jnp.mean((x - m) ** 2, axis=axes, keepdims=True)
    sh = [1] * x.ndim
    sh[1] = -1
    return (x - m) * jax.lax.rsqrt(v + EPS) * g.reshape(sh) + beta.reshape(sh)


def reference_forward(params, z, text_embedding):
    x = jnp.concatenate([z, text_embedding], axis=1)
    y = jnp.dot(x.astype(jnp.bfloat16), params["fc_w"].astype(jnp.bfloat16),
                preferred_element_type=jnp.float32) + params["fc_b"]
    y = jnp.maximum(_ref_bn(y, params["fc_g"], params["fc_beta"], (0,)), 0.0)
    c0 = params["deconv"][0]["w"].shape[0]
    x = y.reshape(z.shape[0], c0, 4, 4)
    for i, d in enumerate(params["deconv"]):
        x = _ref_deconv(x, d["w"], d["b"])
        if i < 3:
            x = jnp.maximum(_ref_bn(x, d["g"], d["beta"], (0, 2, 3)), 0.0)
        else:
            x = jnp.tanh(x)
    return x


# ---------------------------------------------------------------------------
if __name__ == "__main__":
    # Small shapes consistent with the module (channel widths scaled by ngf=8
    # instead of 128; structure, strides and kernel sizes identical).
    B, Z_DIM, TEXT_DIM, NGF = 2, 16, 32, 8
    key = jax.random.PRNGKey(0)
    kz, kt, kp = jax.random.split(key, 3)
    z = jax.random.normal(kz, (B, Z_DIM), jnp.float32)
    text = jax.random.normal(kt, (B, TEXT_DIM), jnp.float32)
    params = init_params(kp, Z_DIM, TEXT_DIM, NGF)

    fwd = jax.jit(stage1_generator_forward)
    out = jax.block_until_ready(fwd(params, z, text))
    assert out.shape == (B, 3, 64, 64), out.shape

    ref = jax.block_until_ready(reference_forward(params, z, text))
    np.testing.assert_allclose(np.asarray(out), np.asarray(ref),
                               atol=5e-3, rtol=5e-3)

    print("KERNEL_OK")
</pallas_src>

<mosaic_0001>
module attributes {stable_mosaic.version = 11 : i64} {
  func.func @_fc_bn_relu_kernel(%arg0: i32, %arg1: memref<2x48xbf16, #tpu.memory_space<vmem>>, %arg2: memref<48x512xbf16, #tpu.memory_space<vmem>>, %arg3: memref<1x512xf32, #tpu.memory_space<vmem>>, %arg4: memref<1x512xf32, #tpu.memory_space<vmem>>, %arg5: memref<2x512xbf16, #tpu.memory_space<vmem>>) attributes {dimension_semantics = [#tpu.dimension_semantics<parallel>], iteration_bounds = array<i64: 2>, scalar_prefetch = 0 : i64, scratch_operands = 0 : i64, tpu.core_type = #tpu.core_type<tc>, window_params = [{pipeline_mode = #tpu.pipeline_mode<synchronous>, transform_indices = @transform_0, window_bounds = array<i64: 2, 48>}, {transform_indices = @transform_1, window_bounds = array<i64: 48, 512>}, {transform_indices = @transform_2, window_bounds = array<i64: 1, 512>}, {transform_indices = @transform_3, window_bounds = array<i64: 1, 512>}, {transform_indices = @transform_4, window_bounds = array<i64: 2, 512>}]} {
    %c0 = arith.constant 0 : index
    %c0_0 = arith.constant 0 : index
    %0 = vector.load %arg1[%c0, %c0_0] : memref<2x48xbf16, #tpu.memory_space<vmem>>, vector<2x48xbf16>
    %c0_1 = arith.constant 0 : index
    %c0_2 = arith.constant 0 : index
    %1 = vector.load %arg2[%c0_1, %c0_2] : memref<48x512xbf16, #tpu.memory_space<vmem>>, vector<48x512xbf16>
    %cst = arith.constant dense<0.000000e+00> : vector<2x512xf32>
    %2 = tpu.matmul %0, %1, %cst {dimension_numbers = #tpu.dot_dimension_numbers<[1], [0], [0], [1], [0, 0, 1, 1], [], []>} : vector<2x48xbf16>, vector<48x512xbf16>, vector<2x512xf32> -> vector<2x512xf32>
    %cst_3 = arith.constant dense<0.000000e+00> : vector<512xf32>
    %3 = vector.multi_reduction <add>, %2, %cst_3 [0] : vector<2x512xf32> to vector<512xf32>
    %4 = vector.shape_cast %3 : vector<512xf32> to vector<1x512xf32>
    %cst_4 = arith.constant 2.000000e+00 : f32
    %5 = vector.broadcast %cst_4 : f32 to vector<1x512xf32>
    %6 = arith.divf %4, %5 : vector<1x512xf32>
    %7 = arith.mulf %2, %2 : vector<2x512xf32>
    %cst_5 = arith.constant dense<0.000000e+00> : vector<512xf32>
    %8 = vector.multi_reduction <add>, %7, %cst_5 [0] : vector<2x512xf32> to vector<512xf32>
    %9 = vector.shape_cast %8 : vector<512xf32> to vector<1x512xf32>
    %cst_6 = arith.constant 2.000000e+00 : f32
    %10 = vector.broadcast %cst_6 : f32 to vector<1x512xf32>
    %11 = arith.divf %9, %10 : vector<1x512xf32>
    %12 = arith.mulf %6, %6 : vector<1x512xf32>
    %13 = arith.subf %11, %12 : vector<1x512xf32>
    %cst_7 = arith.constant 0.000000e+00 : f32
    %14 = vector.broadcast %cst_7 : f32 to vector<1x512xf32>
    %15 = arith.maximumf %13, %14 : vector<1x512xf32>
    %cst_8 = arith.constant 9.99999974E-6 : f32
    %16 = vector.broadcast %cst_8 : f32 to vector<1x512xf32>
    %17 = arith.addf %15, %16 : vector<1x512xf32>
    %18 = math.rsqrt %17 : vector<1x512xf32>
    %19 = vector.broadcast %6 : vector<1x512xf32> to vector<2x512xf32>
    %20 = arith.subf %2, %19 : vector<2x512xf32>
    %21 = vector.broadcast %18 : vector<1x512xf32> to vector<2x512xf32>
    %22 = arith.mulf %20, %21 : vector<2x512xf32>
    %c0_9 = arith.constant 0 : index
    %c0_10 = arith.constant 0 : index
    %23 = vector.load %arg3[%c0_9, %c0_10] : memref<1x512xf32, #tpu.memory_space<vmem>>, vector<1x512xf32>
    %24 = vector.broadcast %23 : vector<1x512xf32> to vector<2x512xf32>
    %25 = arith.mulf %22, %24 : vector<2x512xf32>
    %c0_11 = arith.constant 0 : index
    %c0_12 = arith.constant 0 : index
    %26 = vector.load %arg4[%c0_11, %c0_12] : memref<1x512xf32, #tpu.memory_space<vmem>>, vector<1x512xf32>
    %27 = vector.broadcast %26 : vector<1x512xf32> to vector<2x512xf32>
    %28 = arith.addf %25, %27 : vector<2x512xf32>
    %cst_13 = arith.constant 0.000000e+00 : f32
    %29 = vector.broadcast %cst_13 : f32 to vector<2x512xf32>
    %30 = arith.maximumf %28, %29 : vector<2x512xf32>
    %31 = arith.truncf %30 : vector<2x512xf32> to vector<2x512xbf16>
    %c0_14 = arith.constant 0 : index
    %c0_15 = arith.constant 0 : index
    %32 = vector.load %arg5[%c0_14, %c0_15] : memref<2x512xbf16, #tpu.memory_space<vmem>>, vector<2x512xbf16>
    tpu.vector_store %arg5[%c0_14, %c0_15], %31 {strides = array<i32>} : memref<2x512xbf16, #tpu.memory_space<vmem>>, vector<2x512xbf16>,
    return
  }
  func.func @transform_0(%arg0: i32) -> (i32, i32) {
    %c0_i32 = arith.constant 0 : i32
    %c0_i32_0 = arith.constant 0 : i32
    %c0_i32_1 = arith.constant 0 : i32
    return %c0_i32, %c0_i32_0 : i32, i32
  }
  func.func @transform_1(%arg0: i32) -> (i32, i32) {
    %c0_i32 = arith.constant 0 : i32
    %c0_i32_0 = arith.constant 0 : i32
    return %c0_i32, %arg0 : i32, i32
  }
  func.func @transform_2(%arg0: i32) -> (i32, i32) {
    %c0_i32 = arith.constant 0 : i32
    %c0_i32_0 = arith.constant 0 : i32
    return %c0_i32, %arg0 : i32, i32
  }
  func.func @transform_3(%arg0: i32) -> (i32, i32) {
    %c0_i32 = arith.constant 0 : i32
    %c0_i32_0 = arith.constant 0 : i32
    return %c0_i32, %arg0 : i32, i32
  }
  func.func @transform_4(%arg0: i32) -> (i32, i32) {
    %c0_i32 = arith.constant 0 : i32
    %c0_i32_0 = arith.constant 0 : i32
    return %c0_i32, %arg0 : i32, i32
  }
}

module attributes {stable_mosaic.version = 11 : i64} {
  func.func @_mm_stats_kernel(%arg0: i32, %arg1: i32, %arg2: memref<1x32x256xbf16, #tpu.memory_space<vmem>>, %arg3: memref<1x256x32xbf16, #tpu.memory_space<vmem>>, %arg4: memref<1x32x32xf32, #tpu.memory_space<vmem>>, %arg5: memref<1x1x32xf32, #tpu.memory_space<vmem>>, %arg6: memref<1x1x32xf32, #tpu.memory_space<vmem>>) attributes {dimension_semantics = [#tpu.dimension_semantics<parallel>, #tpu.dimension_semantics<arbitrary>], iteration_bounds = array<i64: 4, 1>, scalar_prefetch = 0 : i64, scratch_operands = 0 : i64, tpu.core_type = #tpu.core_type<tc>, window_params = [{transform_indices = @transform_0, window_bounds = array<i64: 1, 32, 256>}, {transform_indices = @transform_1, window_bounds = array<i64: 1, 256, 32>}, {transform_indices = @transform_2, window_bounds = array<i64: 1, 32, 32>}, {transform_indices = @transform_3, window_bounds = array<i64: 1, 1, 32>}, {transform_indices = @transform_4, window_bounds = array<i64: 1, 1, 32>}]} {
    %c0_i32 = arith.constant 0 : i32
    %0 = arith.cmpi eq, %arg1, %c0_i32 : i32
    %1 = arith.extui %0 : i1 to i32
    %c0_i32_0 = arith.constant 0 : i32
    %2 = arith.cmpi ne, %1, %c0_i32_0 : i32
    scf.if %2 {
      %cst_23 = arith.constant 0.000000e+00 : f32
      %28 = vector.broadcast %cst_23 : f32 to vector<1x1x32xf32>
      %c0_24 = arith.constant 0 : index
      %c0_25 = arith.constant 0 : index
      %c0_26 = arith.constant 0 : index
      %29 = vector.load %arg5[%c0_24, %c0_25, %c0_26] : memref<1x1x32xf32, #tpu.memory_space<vmem>>, vector<1x1x32xf32>
      tpu.vector_store %arg5[%c0_24, %c0_25, %c0_26], %28 {strides = array<i32>} : memref<1x1x32xf32, #tpu.memory_space<vmem>>, vector<1x1x32xf32>,
      %cst_27 = arith.constant 0.000000e+00 : f32
      %30 = vector.broadcast %cst_27 : f32 to vector<1x1x32xf32>
      %c0_28 = arith.constant 0 : index
      %c0_29 = arith.constant 0 : index
      %c0_30 = arith.constant 0 : index
      %31 = vector.load %arg6[%c0_28, %c0_29, %c0_30] : memref<1x1x32xf32, #tpu.memory_space<vmem>>, vector<1x1x32xf32>
      tpu.vector_store %arg6[%c0_28, %c0_29, %c0_30], %30 {strides = array<i32>} : memref<1x1x32xf32, #tpu.memory_space<vmem>>, vector<1x1x32xf32>,
    } else {
    }
    %c0 = arith.constant 0 : index
    %c0_1 = arith.constant 0 : index
    %c0_2 = arith.constant 0 : index
    %3 = vector.load %arg2[%c0, %c0_1, %c0_2] : memref<1x32x256xbf16, #tpu.memory_space<vmem>>, vector<1x32x256xbf16>
    %4 = vector.shape_cast %3 : vector<1x32x256xbf16> to vector<32x256xbf16>
    %c0_3 = arith.constant 0 : index
    %c0_4 = arith.constant 0 : index
    %c0_5 = arith.constant 0 : index
    %5 = vector.load %arg3[%c0_3, %c0_4, %c0_5] : memref<1x256x32xbf16, #tpu.memory_space<vmem>>, vector<1x256x32xbf16>
    %6 = vector.shape_cast %5 : vector<1x256x32xbf16> to vector<256x32xbf16>
    %cst = arith.constant dense<0.000000e+00> : vector<32x32xf32>
    %7 = tpu.matmul %4, %6, %cst {dimension_numbers = #tpu.dot_dimension_numbers<[1], [0], [0], [1], [0, 0, 1, 1], [], []>} : vector<32x256xbf16>, vector<256x32xbf16>, vector<32x32xf32> -> vector<32x32xf32>
    %c0_6 = arith.constant 0 : index
    %c0_7 = arith.constant 0 : index
    %c0_8 = arith.constant 0 : index
    %8 = vector.load %arg4[%c0_6, %c0_7, %c0_8] : memref<1x32x32xf32, #tpu.memory_space<vmem>>, vector<1x32x32xf32>
    %9 = vector.shape_cast %8 : vector<1x32x32xf32> to vector<32x32xf32>
    %10 = vector.shape_cast %7 : vector<32x32xf32> to vector<1x32x32xf32>
    tpu.vector_store %arg4[%c0_6, %c0_7, %c0_8], %10 {strides = array<i32>} : memref<1x32x32xf32, #tpu.memory_space<vmem>>, vector<1x32x32xf32>,
    %c0_9 = arith.constant 0 : index
    %c0_10 = arith.constant 0 : index
    %c0_11 = arith.constant 0 : index
    %11 = vector.load %arg5[%c0_9, %c0_10, %c0_11] : memref<1x1x32xf32, #tpu.memory_space<vmem>>, vector<1x1x32xf32>
    %12 = vector.shape_cast %11 : vector<1x1x32xf32> to vector<1x32xf32>
    %cst_12 = arith.constant dense<0.000000e+00> : vector<32xf32>
    %13 = vector.multi_reduction <add>, %7, %cst_12 [0] : vector<32x32xf32> to vector<32xf32>
    %14 = vector.shape_cast %13 : vector<32xf32> to vector<1x32xf32>
    %15 = arith.addf %12, %14 : vector<1x32xf32>
    %c0_13 = arith.constant 0 : index
    %c0_14 = arith.constant 0 : index
    %c0_15 = arith.constant 0 : index
    %16 = vector.load %arg5[%c0_13, %c0_14, %c0_15] : memref<1x1x32xf32, #tpu.memory_space<vmem>>, vector<1x1x32xf32>
    %17 = vector.shape_cast %16 : vector<1x1x32xf32> to vector<1x32xf32>
    %18 = vector.shape_cast %15 : vector<1x32xf32> to vector<1x1x32xf32>
    tpu.vector_store %arg5[%c0_13, %c0_14, %c0_15], %18 {strides = array<i32>} : memref<1x1x32xf32, #tpu.memory_space<vmem>>, vector<1x1x32xf32>,
    %c0_16 = arith.constant 0 : index
    %c0_17 = arith.constant 0 : index
    %c0_18 = arith.constant 0 : index
    %19 = vector.load %arg6[%c0_16, %c0_17, %c0_18] : memref<1x1x32xf32, #tpu.memory_space<vmem>>, vector<1x1x32xf32>
    %20 = vector.shape_cast %19 : vector<1x1x32xf32> to vector<1x32xf32>
    %21 = arith.mulf %7, %7 : vector<32x32xf32>
    %cst_19 = arith.constant dense<0.000000e+00> : vector<32xf32>
    %22 = vector.multi_reduction <add>, %21, %cst_19 [0] : vector<32x32xf32> to vector<32xf32>
    %23 = vector.shape_cast %22 : vector<32xf32> to vector<1x32xf32>
    %24 = arith.addf %20, %23 : vector<1x32xf32>
    %c0_20 = arith.constant 0 : index
    %c0_21 = arith.constant 0 : index
    %c0_22 = arith.constant 0 : index
    %25 = vector.load %arg6[%c0_20, %c0_21, %c0_22] : memref<1x1x32xf32, #tpu.memory_space<vmem>>, vector<1x1x32xf32>
    %26 = vector.shape_cast %25 : vector<1x1x32xf32> to vector<1x32xf32>
    %27 = vector.shape_cast %24 : vector<1x32xf32> to vector<1x1x32xf32>
    tpu.vector_store %arg6[%c0_20, %c0_21, %c0_22], %27 {strides = array<i32>} : memref<1x1x32xf32, #tpu.memory_space<vmem>>, vector<1x1x32xf32>,
    return
  }
  func.func @transform_0(%arg0: i32, %arg1: i32) -> (i32, i32, i32) {
    %c0_i32 = arith.constant 0 : i32
    %c0_i32_0 = arith.constant 0 : i32
    return %arg0, %arg1, %c0_i32 : i32, i32, i32
  }
  func.func @transform_1(%arg0: i32, %arg1: i32) -> (i32, i32, i32) {
    %c0_i32 = arith.constant 0 : i32
    %c0_i32_0 = arith.constant 0 : i32
    %c0_i32_1 = arith.constant 0 : i32
    return %arg0, %c0_i32, %c0_i32_0 : i32, i32, i32
  }
  func.func @transform_2(%arg0: i32, %arg1: i32) -> (i32, i32, i32) {
    %c0_i32 = arith.constant 0 : i32
    %c0_i32_0 = arith.constant 0 : i32
    return %arg0, %arg1, %c0_i32 : i32, i32, i32
  }
  func.func @transform_3(%arg0: i32, %arg1: i32) -> (i32, i32, i32) {
    %c0_i32 = arith.constant 0 : i32
    %c0_i32_0 = arith.constant 0 : i32
    %c0_i32_1 = arith.constant 0 : i32
    return %arg0, %c0_i32, %c0_i32_0 : i32, i32, i32
  }
  func.func @transform_4(%arg0: i32, %arg1: i32) -> (i32, i32, i32) {
    %c0_i32 = arith.constant 0 : i32
    %c0_i32_0 = arith.constant 0 : i32
    %c0_i32_1 = arith.constant 0 : i32
    return %arg0, %c0_i32, %c0_i32_0 : i32, i32, i32
  }
}

module attributes {stable_mosaic.version = 11 : i64} {
  func.func @_scale_shift_relu_kernel(%arg0: i32, %arg1: i32, %arg2: memref<1x32x32xf32, #tpu.memory_space<vmem>>, %arg3: memref<1x32xf32, #tpu.memory_space<vmem>>, %arg4: memref<1x32xf32, #tpu.memory_space<vmem>>, %arg5: memref<1x32x32xbf16, #tpu.memory_space<vmem>>) attributes {dimension_semantics = [#tpu.dimension_semantics<parallel>, #tpu.dimension_semantics<parallel>], iteration_bounds = array<i64: 4, 1>, scalar_prefetch = 0 : i64, scratch_operands = 0 : i64, tpu.core_type = #tpu.core_type<tc>, window_params = [{transform_indices = @transform_0, window_bounds = array<i64: 1, 32, 32>}, {pipeline_mode = #tpu.pipeline_mode<synchronous>, transform_indices = @transform_1, window_bounds = array<i64: 1, 32>}, {pipeline_mode = #tpu.pipeline_mode<synchronous>, transform_indices = @transform_2, window_bounds = array<i64: 1, 32>}, {transform_indices = @transform_3, window_bounds = array<i64: 1, 32, 32>}]} {
    %c0 = arith.constant 0 : index
    %c0_0 = arith.constant 0 : index
    %c0_1 = arith.constant 0 : index
    %0 = vector.load %arg2[%c0, %c0_0, %c0_1] : memref<1x32x32xf32, #tpu.memory_space<vmem>>, vector<1x32x32xf32>
    %1 = vector.shape_cast %0 : vector<1x32x32xf32> to vector<32x32xf32>
    %c0_2 = arith.constant 0 : index
    %c0_3 = arith.constant 0 : index
    %2 = vector.load %arg3[%c0_2, %c0_3] : memref<1x32xf32, #tpu.memory_space<vmem>>, vector<1x32xf32>
    %3 = vector.broadcast %2 : vector<1x32xf32> to vector<32x32xf32>
    %4 = arith.mulf %1, %3 : vector<32x32xf32>
    %c0_4 = arith.constant 0 : index
    %c0_5 = arith.constant 0 : index
    %5 = vector.load %arg4[%c0_4, %c0_5] : memref<1x32xf32, #tpu.memory_space<vmem>>, vector<1x32xf32>
    %6 = vector.broadcast %5 : vector<1x32xf32> to vector<32x32xf32>
    %7 = arith.addf %4, %6 : vector<32x32xf32>
    %cst = arith.constant 0.000000e+00 : f32
    %8 = vector.broadcast %cst : f32 to vector<32x32xf32>
    %9 = arith.maximumf %7, %8 : vector<32x32xf32>
    %10 = arith.truncf %9 : vector<32x32xf32> to vector<32x32xbf16>
    %c0_6 = arith.constant 0 : index
    %c0_7 = arith.constant 0 : index
    %c0_8 = arith.constant 0 : index
    %11 = vector.load %arg5[%c0_6, %c0_7, %c0_8] : memref<1x32x32xbf16, #tpu.memory_space<vmem>>, vector<1x32x32xbf16>
    %12 = vector.shape_cast %11 : vector<1x32x32xbf16> to vector<32x32xbf16>
    %13 = vector.shape_cast %10 : vector<32x32xbf16> to vector<1x32x32xbf16>
    tpu.vector_store %arg5[%c0_6, %c0_7, %c0_8], %13 {strides = array<i32>} : memref<1x32x32xbf16, #tpu.memory_space<vmem>>, vector<1x32x32xbf16>,
    return
  }
  func.func @transform_0(%arg0: i32, %arg1: i32) -> (i32, i32, i32) {
    %c0_i32 = arith.constant 0 : i32
    %c0_i32_0 = arith.constant 0 : i32
    return %arg0, %arg1, %c0_i32 : i32, i32, i32
  }
  func.func @transform_1(%arg0: i32, %arg1: i32) -> (i32, i32) {
    %c0_i32 = arith.constant 0 : i32
    %c0_i32_0 = arith.constant 0 : i32
    %c0_i32_1 = arith.constant 0 : i32
    return %c0_i32, %c0_i32_0 : i32, i32
  }
  func.func @transform_2(%arg0: i32, %arg1: i32) -> (i32, i32) {
    %c0_i32 = arith.constant 0 : i32
    %c0_i32_0 = arith.constant 0 : i32
    %c0_i32_1 = arith.constant 0 : i32
    return %c0_i32, %c0_i32_0 : i32, i32
  }
  func.func @transform_3(%arg0: i32, %arg1: i32) -> (i32, i32, i32) {
    %c0_i32 = arith.constant 0 : i32
    %c0_i32_0 = arith.constant 0 : i32
    return %arg0, %arg1, %c0_i32 : i32, i32, i32
  }
}

module attributes {stable_mosaic.version = 11 : i64} {
  func.func @_mm_stats_kernel(%arg0: i32, %arg1: i32, %arg2: memref<1x128x128xbf16, #tpu.memory_space<vmem>>, %arg3: memref<1x128x16xbf16, #tpu.memory_space<vmem>>, %arg4: memref<1x128x16xf32, #tpu.memory_space<vmem>>, %arg5: memref<1x1x16xf32, #tpu.memory_space<vmem>>, %arg6: memref<1x1x16xf32, #tpu.memory_space<vmem>>) attributes {dimension_semantics = [#tpu.dimension_semantics<parallel>, #tpu.dimension_semantics<arbitrary>], iteration_bounds = array<i64: 4, 1>, scalar_prefetch = 0 : i64, scratch_operands = 0 : i64, tpu.core_type = #tpu.core_type<tc>, window_params = [{transform_indices = @transform_0, window_bounds = array<i64: 1, 128, 128>}, {transform_indices = @transform_1, window_bounds = array<i64: 1, 128, 16>}, {transform_indices = @transform_2, window_bounds = array<i64: 1, 128, 16>}, {transform_indices = @transform_3, window_bounds = array<i64: 1, 1, 16>}, {transform_indices = @transform_4, window_bounds = array<i64: 1, 1, 16>}]} {
    %c0_i32 = arith.constant 0 : i32
    %0 = arith.cmpi eq, %arg1, %c0_i32 : i32
    %1 = arith.extui %0 : i1 to i32
    %c0_i32_0 = arith.constant 0 : i32
    %2 = arith.cmpi ne, %1, %c0_i32_0 : i32
    scf.if %2 {
      %cst_23 = arith.constant 0.000000e+00 : f32
      %28 = vector.broadcast %cst_23 : f32 to vector<1x1x16xf32>
      %c0_24 = arith.constant 0 : index
      %c0_25 = arith.constant 0 : index
      %c0_26 = arith.constant 0 : index
      %29 = vector.load %arg5[%c0_24, %c0_25, %c0_26] : memref<1x1x16xf32, #tpu.memory_space<vmem>>, vector<1x1x16xf32>
      tpu.vector_store %arg5[%c0_24, %c0_25, %c0_26], %28 {strides = array<i32>} : memref<1x1x16xf32, #tpu.memory_space<vmem>>, vector<1x1x16xf32>,
      %cst_27 = arith.constant 0.000000e+00 : f32
      %30 = vector.broadcast %cst_27 : f32 to vector<1x1x16xf32>
      %c0_28 = arith.constant 0 : index
      %c0_29 = arith.constant 0 : index
      %c0_30 = arith.constant 0 : index
      %31 = vector.load %arg6[%c0_28, %c0_29, %c0_30] : memref<1x1x16xf32, #tpu.memory_space<vmem>>, vector<1x1x16xf32>
      tpu.vector_store %arg6[%c0_28, %c0_29, %c0_30], %30 {strides = array<i32>} : memref<1x1x16xf32, #tpu.memory_space<vmem>>, vector<1x1x16xf32>,
    } else {
    }
    %c0 = arith.constant 0 : index
    %c0_1 = arith.constant 0 : index
    %c0_2 = arith.constant 0 : index
    %3 = vector.load %arg2[%c0, %c0_1, %c0_2] : memref<1x128x128xbf16, #tpu.memory_space<vmem>>, vector<1x128x128xbf16>
    %4 = vector.shape_cast %3 : vector<1x128x128xbf16> to vector<128x128xbf16>
    %c0_3 = arith.constant 0 : index
    %c0_4 = arith.constant 0 : index
    %c0_5 = arith.constant 0 : index
    %5 = vector.load %arg3[%c0_3, %c0_4, %c0_5] : memref<1x128x16xbf16, #tpu.memory_space<vmem>>, vector<1x128x16xbf16>
    %6 = vector.shape_cast %5 : vector<1x128x16xbf16> to vector<128x16xbf16>
    %cst = arith.constant dense<0.000000e+00> : vector<128x16xf32>
    %7 = tpu.matmul %4, %6, %cst {dimension_numbers = #tpu.dot_dimension_numbers<[1], [0], [0], [1], [0, 0, 1, 1], [], []>} : vector<128x128xbf16>, vector<128x16xbf16>, vector<128x16xf32> -> vector<128x16xf32>
    %c0_6 = arith.constant 0 : index
    %c0_7 = arith.constant 0 : index
    %c0_8 = arith.constant 0 : index
    %8 = vector.load %arg4[%c0_6, %c0_7, %c0_8] : memref<1x128x16xf32, #tpu.memory_space<vmem>>, vector<1x128x16xf32>
    %9 = vector.shape_cast %8 : vector<1x128x16xf32> to vector<128x16xf32>
    %10 = vector.shape_cast %7 : vector<128x16xf32> to vector<1x128x16xf32>
    tpu.vector_store %arg4[%c0_6, %c0_7, %c0_8], %10 {strides = array<i32>} : memref<1x128x16xf32, #tpu.memory_space<vmem>>, vector<1x128x16xf32>,
    %c0_9 = arith.constant 0 : index
    %c0_10 = arith.constant 0 : index
    %c0_11 = arith.constant 0 : index
    %11 = vector.load %arg5[%c0_9, %c0_10, %c0_11] : memref<1x1x16xf32, #tpu.memory_space<vmem>>, vector<1x1x16xf32>
    %12 = vector.shape_cast %11 : vector<1x1x16xf32> to vector<1x16xf32>
    %cst_12 = arith.constant dense<0.000000e+00> : vector<16xf32>
    %13 = vector.multi_reduction <add>, %7, %cst_12 [0] : vector<128x16xf32> to vector<16xf32>
    %14 = vector.shape_cast %13 : vector<16xf32> to vector<1x16xf32>
    %15 = arith.addf %12, %14 : vector<1x16xf32>
    %c0_13 = arith.constant 0 : index
    %c0_14 = arith.constant 0 : index
    %c0_15 = arith.constant 0 : index
    %16 = vector.load %arg5[%c0_13, %c0_14, %c0_15] : memref<1x1x16xf32, #tpu.memory_space<vmem>>, vector<1x1x16xf32>
    %17 = vector.shape_cast %16 : vector<1x1x16xf32> to vector<1x16xf32>
    %18 = vector.shape_cast %15 : vector<1x16xf32> to vector<1x1x16xf32>
    tpu.vector_store %arg5[%c0_13, %c0_14, %c0_15], %18 {strides = array<i32>} : memref<1x1x16xf32, #tpu.memory_space<vmem>>, vector<1x1x16xf32>,
    %c0_16 = arith.constant 0 : index
    %c0_17 = arith.constant 0 : index
    %c0_18 = arith.constant 0 : index
    %19 = vector.load %arg6[%c0_16, %c0_17, %c0_18] : memref<1x1x16xf32, #tpu.memory_space<vmem>>, vector<1x1x16xf32>
    %20 = vector.shape_cast %19 : vector<1x1x16xf32> to vector<1x16xf32>
    %21 = arith.mulf %7, %7 : vector<128x16xf32>
    %cst_19 = arith.constant dense<0.000000e+00> : vector<16xf32>
    %22 = vector.multi_reduction <add>, %21, %cst_19 [0] : vector<128x16xf32> to vector<16xf32>
    %23 = vector.shape_cast %22 : vector<16xf32> to vector<1x16xf32>
    %24 = arith.addf %20, %23 : vector<1x16xf32>
    %c0_20 = arith.constant 0 : index
    %c0_21 = arith.constant 0 : index
    %c0_22 = arith.constant 0 : index
    %25 = vector.load %arg6[%c0_20, %c0_21, %c0_22] : memref<1x1x16xf32, #tpu.memory_space<vmem>>, vector<1x1x16xf32>
    %26 = vector.shape_cast %25 : vector<1x1x16xf32> to vector<1x16xf32>
    %27 = vector.shape_cast %24 : vector<1x16xf32> to vector<1x1x16xf32>
    tpu.vector_store %arg6[%c0_20, %c0_21, %c0_22], %27 {strides = array<i32>} : memref<1x1x16xf32, #tpu.memory_space<vmem>>, vector<1x1x16xf32>,
    return
  }
  func.func @transform_0(%arg0: i32, %arg1: i32) -> (i32, i32, i32) {
    %c0_i32 = arith.constant 0 : i32
    %c0_i32_0 = arith.constant 0 : i32
    return %arg0, %arg1, %c0_i32 : i32, i32, i32
  }
  func.func @transform_1(%arg0: i32, %arg1: i32) -> (i32, i32, i32) {
    %c0_i32 = arith.constant 0 : i32
    %c0_i32_0 = arith.constant 0 : i32
    %c0_i32_1 = arith.constant 0 : i32
    return %arg0, %c0_i32, %c0_i32_0 : i32, i32, i32
  }
  func.func @transform_2(%arg0: i32, %arg1: i32) -> (i32, i32, i32) {
    %c0_i32 = arith.constant 0 : i32
    %c0_i32_0 = arith.constant 0 : i32
    return %arg0, %arg1, %c0_i32 : i32, i32, i32
  }
  func.func @transform_3(%arg0: i32, %arg1: i32) -> (i32, i32, i32) {
    %c0_i32 = arith.constant 0 : i32
    %c0_i32_0 = arith.constant 0 : i32
    %c0_i32_1 = arith.constant 0 : i32
    return %arg0, %c0_i32, %c0_i32_0 : i32, i32, i32
  }
  func.func @transform_4(%arg0: i32, %arg1: i32) -> (i32, i32, i32) {
    %c0_i32 = arith.constant 0 : i32
    %c0_i32_0 = arith.constant 0 : i32
    %c0_i32_1 = arith.constant 0 : i32
    return %arg0, %c0_i32, %c0_i32_0 : i32, i32, i32
  }
}

module attributes {stable_mosaic.version = 11 : i64} {
  func.func @_scale_shift_relu_kernel(%arg0: i32, %arg1: i32, %arg2: memref<1x128x16xf32, #tpu.memory_space<vmem>>, %arg3: memref<1x16xf32, #tpu.memory_space<vmem>>, %arg4: memref<1x16xf32, #tpu.memory_space<vmem>>, %arg5: memref<1x128x16xbf16, #tpu.memory_space<vmem>>) attributes {dimension_semantics = [#tpu.dimension_semantics<parallel>, #tpu.dimension_semantics<parallel>], iteration_bounds = array<i64: 4, 1>, scalar_prefetch = 0 : i64, scratch_operands = 0 : i64, tpu.core_type = #tpu.core_type<tc>, window_params = [{transform_indices = @transform_0, window_bounds = array<i64: 1, 128, 16>}, {pipeline_mode = #tpu.pipeline_mode<synchronous>, transform_indices = @transform_1, window_bounds = array<i64: 1, 16>}, {pipeline_mode = #tpu.pipeline_mode<synchronous>, transform_indices = @transform_2, window_bounds = array<i64: 1, 16>}, {transform_indices = @transform_3, window_bounds = array<i64: 1, 128, 16>}]} {
    %c0 = arith.constant 0 : index
    %c0_0 = arith.constant 0 : index
    %c0_1 = arith.constant 0 : index
    %0 = vector.load %arg2[%c0, %c0_0, %c0_1] : memref<1x128x16xf32, #tpu.memory_space<vmem>>, vector<1x128x16xf32>
    %1 = vector.shape_cast %0 : vector<1x128x16xf32> to vector<128x16xf32>
    %c0_2 = arith.constant 0 : index
    %c0_3 = arith.constant 0 : index
    %2 = vector.load %arg3[%c0_2, %c0_3] : memref<1x16xf32, #tpu.memory_space<vmem>>, vector<1x16xf32>
    %3 = vector.broadcast %2 : vector<1x16xf32> to vector<128x16xf32>
    %4 = arith.mulf %1, %3 : vector<128x16xf32>
    %c0_4 = arith.constant 0 : index
    %c0_5 = arith.constant 0 : index
    %5 = vector.load %arg4[%c0_4, %c0_5] : memref<1x16xf32, #tpu.memory_space<vmem>>, vector<1x16xf32>
    %6 = vector.broadcast %5 : vector<1x16xf32> to vector<128x16xf32>
    %7 = arith.addf %4, %6 : vector<128x16xf32>
    %cst = arith.constant 0.000000e+00 : f32
    %8 = vector.broadcast %cst : f32 to vector<128x16xf32>
    %9 = arith.maximumf %7, %8 : vector<128x16xf32>
    %10 = arith.truncf %9 : vector<128x16xf32> to vector<128x16xbf16>
    %c0_6 = arith.constant 0 : index
    %c0_7 = arith.constant 0 : index
    %c0_8 = arith.constant 0 : index
    %11 = vector.load %arg5[%c0_6, %c0_7, %c0_8] : memref<1x128x16xbf16, #tpu.memory_space<vmem>>, vector<1x128x16xbf16>
    %12 = vector.shape_cast %11 : vector<1x128x16xbf16> to vector<128x16xbf16>
    %13 = vector.shape_cast %10 : vector<128x16xbf16> to vector<1x128x16xbf16>
    tpu.vector_store %arg5[%c0_6, %c0_7, %c0_8], %13 {strides = array<i32>} : memref<1x128x16xbf16, #tpu.memory_space<vmem>>, vector<1x128x16xbf16>,
    return
  }
  func.func @transform_0(%arg0: i32, %arg1: i32) -> (i32, i32, i32) {
    %c0_i32 = arith.constant 0 : i32
    %c0_i32_0 = arith.constant 0 : i32
    return %arg0, %arg1, %c0_i32 : i32, i32, i32
  }
  func.func @transform_1(%arg0: i32, %arg1: i32) -> (i32, i32) {
    %c0_i32 = arith.constant 0 : i32
    %c0_i32_0 = arith.constant 0 : i32
    %c0_i32_1 = arith.constant 0 : i32
    return %c0_i32, %c0_i32_0 : i32, i32
  }
  func.func @transform_2(%arg0: i32, %arg1: i32) -> (i32, i32) {
    %c0_i32 = arith.constant 0 : i32
    %c0_i32_0 = arith.constant 0 : i32
    %c0_i32_1 = arith.constant 0 : i32
    return %c0_i32, %c0_i32_0 : i32, i32
  }
  func.func @transform_3(%arg0: i32, %arg1: i32) -> (i32, i32, i32) {
    %c0_i32 = arith.constant 0 : i32
    %c0_i32_0 = arith.constant 0 : i32
    return %arg0, %arg1, %c0_i32 : i32, i32, i32
  }
}

module attributes {stable_mosaic.version = 11 : i64} {
  func.func @_mm_stats_kernel(%arg0: i32, %arg1: i32, %arg2: memref<1x512x64xbf16, #tpu.memory_space<vmem>>, %arg3: memref<1x64x8xbf16, #tpu.memory_space<vmem>>, %arg4: memref<1x512x8xf32, #tpu.memory_space<vmem>>, %arg5: memref<1x1x8xf32, #tpu.memory_space<vmem>>, %arg6: memref<1x1x8xf32, #tpu.memory_space<vmem>>) attributes {dimension_semantics = [#tpu.dimension_semantics<parallel>, #tpu.dimension_semantics<arbitrary>], iteration_bounds = array<i64: 4, 1>, scalar_prefetch = 0 : i64, scratch_operands = 0 : i64, tpu.core_type = #tpu.core_type<tc>, window_params = [{transform_indices = @transform_0, window_bounds = array<i64: 1, 512, 64>}, {transform_indices = @transform_1, window_bounds = array<i64: 1, 64, 8>}, {transform_indices = @transform_2, window_bounds = array<i64: 1, 512, 8>}, {transform_indices = @transform_3, window_bounds = array<i64: 1, 1, 8>}, {transform_indices = @transform_4, window_bounds = array<i64: 1, 1, 8>}]} {
    %c0_i32 = arith.constant 0 : i32
    %0 = arith.cmpi eq, %arg1, %c0_i32 : i32
    %1 = arith.extui %0 : i1 to i32
    %c0_i32_0 = arith.constant 0 : i32
    %2 = arith.cmpi ne, %1, %c0_i32_0 : i32
    scf.if %2 {
      %cst_23 = arith.constant 0.000000e+00 : f32
      %28 = vector.broadcast %cst_23 : f32 to vector<1x1x8xf32>
      %c0_24 = arith.constant 0 : index
      %c0_25 = arith.constant 0 : index
      %c0_26 = arith.constant 0 : index
      %29 = vector.load %arg5[%c0_24, %c0_25, %c0_26] : memref<1x1x8xf32, #tpu.memory_space<vmem>>, vector<1x1x8xf32>
      tpu.vector_store %arg5[%c0_24, %c0_25, %c0_26], %28 {strides = array<i32>} : memref<1x1x8xf32, #tpu.memory_space<vmem>>, vector<1x1x8xf32>,
      %cst_27 = arith.constant 0.000000e+00 : f32
      %30 = vector.broadcast %cst_27 : f32 to vector<1x1x8xf32>
      %c0_28 = arith.constant 0 : index
      %c0_29 = arith.constant 0 : index
      %c0_30 = arith.constant 0 : index
      %31 = vector.load %arg6[%c0_28, %c0_29, %c0_30] : memref<1x1x8xf32, #tpu.memory_space<vmem>>, vector<1x1x8xf32>
      tpu.vector_store %arg6[%c0_28, %c0_29, %c0_30], %30 {strides = array<i32>} : memref<1x1x8xf32, #tpu.memory_space<vmem>>, vector<1x1x8xf32>,
    } else {
    }
    %c0 = arith.constant 0 : index
    %c0_1 = arith.constant 0 : index
    %c0_2 = arith.constant 0 : index
    %3 = vector.load %arg2[%c0, %c0_1, %c0_2] : memref<1x512x64xbf16, #tpu.memory_space<vmem>>, vector<1x512x64xbf16>
    %4 = vector.shape_cast %3 : vector<1x512x64xbf16> to vector<512x64xbf16>
    %c0_3 = arith.constant 0 : index
    %c0_4 = arith.constant 0 : index
    %c0_5 = arith.constant 0 : index
    %5 = vector.load %arg3[%c0_3, %c0_4, %c0_5] : memref<1x64x8xbf16, #tpu.memory_space<vmem>>, vector<1x64x8xbf16>
    %6 = vector.shape_cast %5 : vector<1x64x8xbf16> to vector<64x8xbf16>
    %cst = arith.constant dense<0.000000e+00> : vector<512x8xf32>
    %7 = tpu.matmul %4, %6, %cst {dimension_numbers = #tpu.dot_dimension_numbers<[1], [0], [0], [1], [0, 0, 1, 1], [], []>} : vector<512x64xbf16>, vector<64x8xbf16>, vector<512x8xf32> -> vector<512x8xf32>
    %c0_6 = arith.constant 0 : index
    %c0_7 = arith.constant 0 : index
    %c0_8 = arith.constant 0 : index
    %8 = vector.load %arg4[%c0_6, %c0_7, %c0_8] : memref<1x512x8xf32, #tpu.memory_space<vmem>>, vector<1x512x8xf32>
    %9 = vector.shape_cast %8 : vector<1x512x8xf32> to vector<512x8xf32>
    %10 = vector.shape_cast %7 : vector<512x8xf32> to vector<1x512x8xf32>
    tpu.vector_store %arg4[%c0_6, %c0_7, %c0_8], %10 {strides = array<i32>} : memref<1x512x8xf32, #tpu.memory_space<vmem>>, vector<1x512x8xf32>,
    %c0_9 = arith.constant 0 : index
    %c0_10 = arith.constant 0 : index
    %c0_11 = arith.constant 0 : index
    %11 = vector.load %arg5[%c0_9, %c0_10, %c0_11] : memref<1x1x8xf32, #tpu.memory_space<vmem>>, vector<1x1x8xf32>
    %12 = vector.shape_cast %11 : vector<1x1x8xf32> to vector<1x8xf32>
    %cst_12 = arith.constant dense<0.000000e+00> : vector<8xf32>
    %13 = vector.multi_reduction <add>, %7, %cst_12 [0] : vector<512x8xf32> to vector<8xf32>
    %14 = vector.shape_cast %13 : vector<8xf32> to vector<1x8xf32>
    %15 = arith.addf %12, %14 : vector<1x8xf32>
    %c0_13 = arith.constant 0 : index
    %c0_14 = arith.constant 0 : index
    %c0_15 = arith.constant 0 : index
    %16 = vector.load %arg5[%c0_13, %c0_14, %c0_15] : memref<1x1x8xf32, #tpu.memory_space<vmem>>, vector<1x1x8xf32>
    %17 = vector.shape_cast %16 : vector<1x1x8xf32> to vector<1x8xf32>
    %18 = vector.shape_cast %15 : vector<1x8xf32> to vector<1x1x8xf32>
    tpu.vector_store %arg5[%c0_13, %c0_14, %c0_15], %18 {strides = array<i32>} : memref<1x1x8xf32, #tpu.memory_space<vmem>>, vector<1x1x8xf32>,
    %c0_16 = arith.constant 0 : index
    %c0_17 = arith.constant 0 : index
    %c0_18 = arith.constant 0 : index
    %19 = vector.load %arg6[%c0_16, %c0_17, %c0_18] : memref<1x1x8xf32, #tpu.memory_space<vmem>>, vector<1x1x8xf32>
    %20 = vector.shape_cast %19 : vector<1x1x8xf32> to vector<1x8xf32>
    %21 = arith.mulf %7, %7 : vector<512x8xf32>
    %cst_19 = arith.constant dense<0.000000e+00> : vector<8xf32>
    %22 = vector.multi_reduction <add>, %21, %cst_19 [0] : vector<512x8xf32> to vector<8xf32>
    %23 = vector.shape_cast %22 : vector<8xf32> to vector<1x8xf32>
    %24 = arith.addf %20, %23 : vector<1x8xf32>
    %c0_20 = arith.constant 0 : index
    %c0_21 = arith.constant 0 : index
    %c0_22 = arith.constant 0 : index
    %25 = vector.load %arg6[%c0_20, %c0_21, %c0_22] : memref<1x1x8xf32, #tpu.memory_space<vmem>>, vector<1x1x8xf32>
    %26 = vector.shape_cast %25 : vector<1x1x8xf32> to vector<1x8xf32>
    %27 = vector.shape_cast %24 : vector<1x8xf32> to vector<1x1x8xf32>
    tpu.vector_store %arg6[%c0_20, %c0_21, %c0_22], %27 {strides = array<i32>} : memref<1x1x8xf32, #tpu.memory_space<vmem>>, vector<1x1x8xf32>,
    return
  }
  func.func @transform_0(%arg0: i32, %arg1: i32) -> (i32, i32, i32) {
    %c0_i32 = arith.constant 0 : i32
    %c0_i32_0 = arith.constant 0 : i32
    return %arg0, %arg1, %c0_i32 : i32, i32, i32
  }
  func.func @transform_1(%arg0: i32, %arg1: i32) -> (i32, i32, i32) {
    %c0_i32 = arith.constant 0 : i32
    %c0_i32_0 = arith.constant 0 : i32
    %c0_i32_1 = arith.constant 0 : i32
    return %arg0, %c0_i32, %c0_i32_0 : i32, i32, i32
  }
  func.func @transform_2(%arg0: i32, %arg1: i32) -> (i32, i32, i32) {
    %c0_i32 = arith.constant 0 : i32
    %c0_i32_0 = arith.constant 0 : i32
    return %arg0, %arg1, %c0_i32 : i32, i32, i32
  }
  func.func @transform_3(%arg0: i32, %arg1: i32) -> (i32, i32, i32) {
    %c0_i32 = arith.constant 0 : i32
    %c0_i32_0 = arith.constant 0 : i32
    %c0_i32_1 = arith.constant 0 : i32
    return %arg0, %c0_i32, %c0_i32_0 : i32, i32, i32
  }
  func.func @transform_4(%arg0: i32, %arg1: i32) -> (i32, i32, i32) {
    %c0_i32 = arith.constant 0 : i32
    %c0_i32_0 = arith.constant 0 : i32
    %c0_i32_1 = arith.constant 0 : i32
    return %arg0, %c0_i32, %c0_i32_0 : i32, i32, i32
  }
}

module attributes {stable_mosaic.version = 11 : i64} {
  func.func @_scale_shift_relu_kernel(%arg0: i32, %arg1: i32, %arg2: memref<1x512x8xf32, #tpu.memory_space<vmem>>, %arg3: memref<1x8xf32, #tpu.memory_space<vmem>>, %arg4: memref<1x8xf32, #tpu.memory_space<vmem>>, %arg5: memref<1x512x8xbf16, #tpu.memory_space<vmem>>) attributes {dimension_semantics = [#tpu.dimension_semantics<parallel>, #tpu.dimension_semantics<parallel>], iteration_bounds = array<i64: 4, 1>, scalar_prefetch = 0 : i64, scratch_operands = 0 : i64, tpu.core_type = #tpu.core_type<tc>, window_params = [{transform_indices = @transform_0, window_bounds = array<i64: 1, 512, 8>}, {pipeline_mode = #tpu.pipeline_mode<synchronous>, transform_indices = @transform_1, window_bounds = array<i64: 1, 8>}, {pipeline_mode = #tpu.pipeline_mode<synchronous>, transform_indices = @transform_2, window_bounds = array<i64: 1, 8>}, {transform_indices = @transform_3, window_bounds = array<i64: 1, 512, 8>}]} {
    %c0 = arith.constant 0 : index
    %c0_0 = arith.constant 0 : index
    %c0_1 = arith.constant 0 : index
    %0 = vector.load %arg2[%c0, %c0_0, %c0_1] : memref<1x512x8xf32, #tpu.memory_space<vmem>>, vector<1x512x8xf32>
    %1 = vector.shape_cast %0 : vector<1x512x8xf32> to vector<512x8xf32>
    %c0_2 = arith.constant 0 : index
    %c0_3 = arith.constant 0 : index
    %2 = vector.load %arg3[%c0_2, %c0_3] : memref<1x8xf32, #tpu.memory_space<vmem>>, vector<1x8xf32>
    %3 = vector.broadcast %2 : vector<1x8xf32> to vector<512x8xf32>
    %4 = arith.mulf %1, %3 : vector<512x8xf32>
    %c0_4 = arith.constant 0 : index
    %c0_5 = arith.constant 0 : index
    %5 = vector.load %arg4[%c0_4, %c0_5] : memref<1x8xf32, #tpu.memory_space<vmem>>, vector<1x8xf32>
    %6 = vector.broadcast %5 : vector<1x8xf32> to vector<512x8xf32>
    %7 = arith.addf %4, %6 : vector<512x8xf32>
    %cst = arith.constant 0.000000e+00 : f32
    %8 = vector.broadcast %cst : f32 to vector<512x8xf32>
    %9 = arith.maximumf %7, %8 : vector<512x8xf32>
    %10 = arith.truncf %9 : vector<512x8xf32> to vector<512x8xbf16>
    %c0_6 = arith.constant 0 : index
    %c0_7 = arith.constant 0 : index
    %c0_8 = arith.constant 0 : index
    %11 = vector.load %arg5[%c0_6, %c0_7, %c0_8] : memref<1x512x8xbf16, #tpu.memory_space<vmem>>, vector<1x512x8xbf16>
    %12 = vector.shape_cast %11 : vector<1x512x8xbf16> to vector<512x8xbf16>
    %13 = vector.shape_cast %10 : vector<512x8xbf16> to vector<1x512x8xbf16>
    tpu.vector_store %arg5[%c0_6, %c0_7, %c0_8], %13 {strides = array<i32>} : memref<1x512x8xbf16, #tpu.memory_space<vmem>>, vector<1x512x8xbf16>,
    return
  }
  func.func @transform_0(%arg0: i32, %arg1: i32) -> (i32, i32, i32) {
    %c0_i32 = arith.constant 0 : i32
    %c0_i32_0 = arith.constant 0 : i32
    return %arg0, %arg1, %c0_i32 : i32, i32, i32
  }
  func.func @transform_1(%arg0: i32, %arg1: i32) -> (i32, i32) {
    %c0_i32 = arith.constant 0 : i32
    %c0_i32_0 = arith.constant 0 : i32
    %c0_i32_1 = arith.constant 0 : i32
    return %c0_i32, %c0_i32_0 : i32, i32
  }
  func.func @transform_2(%arg0: i32, %arg1: i32) -> (i32, i32) {
    %c0_i32 = arith.constant 0 : i32
    %c0_i32_0 = arith.constant 0 : i32
    %c0_i32_1 = arith.constant 0 : i32
    return %c0_i32, %c0_i32_0 : i32, i32
  }
  func.func @transform_3(%arg0: i32, %arg1: i32) -> (i32, i32, i32) {
    %c0_i32 = arith.constant 0 : i32
    %c0_i32_0 = arith.constant 0 : i32
    return %arg0, %arg1, %c0_i32 : i32, i32, i32
  }
}

module attributes {stable_mosaic.version = 11 : i64} {
  func.func @_mm_bias_tanh_kernel(%arg0: i32, %arg1: memref<512x72xbf16, #tpu.memory_space<vmem>>, %arg2: memref<72x12xbf16, #tpu.memory_space<vmem>>, %arg3: memref<1x12xf32, #tpu.memory_space<vmem>>, %arg4: memref<512x12xf32, #tpu.memory_space<vmem>>) attributes {dimension_semantics = [#tpu.dimension_semantics<parallel>], iteration_bounds = array<i64: 4>, scalar_prefetch = 0 : i64, scratch_operands = 0 : i64, tpu.core_type = #tpu.core_type<tc>, window_params = [{transform_indices = @transform_0, window_bounds = array<i64: 512, 72>}, {pipeline_mode = #tpu.pipeline_mode<synchronous>, transform_indices = @transform_1, window_bounds = array<i64: 72, 12>}, {pipeline_mode = #tpu.pipeline_mode<synchronous>, transform_indices = @transform_2, window_bounds = array<i64: 1, 12>}, {transform_indices = @transform_3, window_bounds = array<i64: 512, 12>}]} {
    %c0 = arith.constant 0 : index
    %c0_0 = arith.constant 0 : index
    %0 = vector.load %arg1[%c0, %c0_0] : memref<512x72xbf16, #tpu.memory_space<vmem>>, vector<512x72xbf16>
    %c0_1 = arith.constant 0 : index
    %c0_2 = arith.constant 0 : index
    %1 = vector.load %arg2[%c0_1, %c0_2] : memref<72x12xbf16, #tpu.memory_space<vmem>>, vector<72x12xbf16>
    %cst = arith.constant dense<0.000000e+00> : vector<512x12xf32>
    %2 = tpu.matmul %0, %1, %cst {dimension_numbers = #tpu.dot_dimension_numbers<[1], [0], [0], [1], [0, 0, 1, 1], [], []>} : vector<512x72xbf16>, vector<72x12xbf16>, vector<512x12xf32> -> vector<512x12xf32>
    %c0_3 = arith.constant 0 : index
    %c0_4 = arith.constant 0 : index
    %3 = vector.load %arg3[%c0_3, %c0_4] : memref<1x12xf32, #tpu.memory_space<vmem>>, vector<1x12xf32>
    %4 = vector.broadcast %3 : vector<1x12xf32> to vector<512x12xf32>
    %5 = arith.addf %2, %4 : vector<512x12xf32>
    %6 = math.tanh %5 : vector<512x12xf32>
    %c0_5 = arith.constant 0 : index
    %c0_6 = arith.constant 0 : index
    %7 = vector.load %arg4[%c0_5, %c0_6] : memref<512x12xf32, #tpu.memory_space<vmem>>, vector<512x12xf32>
    tpu.vector_store %arg4[%c0_5, %c0_6], %6 {strides = array<i32>} : memref<512x12xf32, #tpu.memory_space<vmem>>, vector<512x12xf32>,
    return
  }
  func.func @transform_0(%arg0: i32) -> (i32, i32) {
    %c0_i32 = arith.constant 0 : i32
    %c0_i32_0 = arith.constant 0 : i32
    return %arg0, %c0_i32 : i32, i32
  }
  func.func @transform_1(%arg0: i32) -> (i32, i32) {
    %c0_i32 = arith.constant 0 : i32
    %c0_i32_0 = arith.constant 0 : i32
    %c0_i32_1 = arith.constant 0 : i32
    return %c0_i32, %c0_i32_0 : i32, i32
  }
  func.func @transform_2(%arg0: i32) -> (i32, i32) {
    %c0_i32 = arith.constant 0 : i32
    %c0_i32_0 = arith.constant 0 : i32
    %c0_i32_1 = arith.constant 0 : i32
    return %c0_i32, %c0_i32_0 : i32, i32
  }
  func.func @transform_3(%arg0: i32) -> (i32, i32) {
    %c0_i32 = arith.constant 0 : i32
    %c0_i32_0 = arith.constant 0 : i32
    return %arg0, %c0_i32 : i32, i32
  }
}

</mosaic_0001>

<llo_original>
// kernel: tile.8
$region0: #{tile.8}
  #allocation2 [shape = 's32[1]{0}', space=sflag, size = 0x4, scoped, tag = 'scoped memory for tile.8']
  %s0 = inlined_call_operand.hbm [shape: f32[3], index: 0, kind: input, shape index: {}]
  %s1 = inlined_call_operand.vmem [shape: f32[4,3], index: 1, kind: output, shape index: {}]
  $region1: #{tile.8} parent=0
    #allocation0 [shape = 'u8[512]{0}', space=vmem, size = 0x400, scoped, tag = 'operand span for operand 0']
    #allocation1 [shape = 's32[1]{0}', space=sflag, size = 0x4, scoped, tag = 'scoped memory for tile.8']
    %2 = vsyncpa [#allocation1], 0
    // Predicated region
    $region2: #{tile.8} parent=1 // pred_check
      _
    $region3: #{tile.8} parent=1 // pred_check_branch
      %4 = sbr.rel (0) target = $region5
    $region4: #{tile.8} parent=1 // pred_region
      %s6 = ssub.s32 16, 16
      %7 = vsyncadd [#allocation1], %s6
      %s9 = sshll.u32 [#allocation0], 4
      %s10 = int_to_ptr.vmem [resolvable:$true] %s9
      %12 = dma.hbm_to_vmem [thread:$0]  %s0, 16, %s10, [#allocation1]
    $region5: #{tile.8} parent=1 // pred_fallthru
      _
    // Predicated region
    $region6: #{tile.8} parent=1 // pred_check
      _
    $region7: #{tile.8} parent=1 // pred_check_branch
      %14 = sbr.rel (0) target = $region9
    $region8: #{tile.8} parent=1 // pred_region
      %15 = dma.done [#allocation1], 16
    $region9: #{tile.8} parent=1 // pred_fallthru
      _
    %v16 = vld [vmem:[#allocation0] ss:$0 sm:$0xff]
    %17 = vst [vmem:[%s1] sm:$0xf] %v16
    %18 = vsyncpa [#allocation1], 1

// kernel: tile.9
$region0: #{tile.9}
  %s0 = inlined_call_operand.vmem [shape: f32[4,3], index: 0, kind: input, shape index: {}]
  %s1 = inlined_call_operand.vmem [shape: f32[1,12], index: 1, kind: output, shape index: {}]
  $region1: #{tile.9} parent=0
    #allocation0 [shape = 'u8[4096]{0}', space=vmem, size = 0x1000, scoped, tag = 'scoped mem for output reshape']
    #allocation1 [shape = 'u8[4096]{0}', space=vmem, size = 0x1000, scoped, tag = 'scoped mem for input reshape']
    %s3 = sshll.u32 1, 4
    %s4 = ssub.s32 %s3, 1
    %v5 = vld [vmem:[%s0] sm:%s4]
    %6 = vst [vmem:[#allocation1] sm:%s4] %v5
    %v7 = vld [vmem:[#allocation1] sm:$0x1]
    %vm8 = vcmask 23552
    %9 = vst.msk [vmem:[#allocation0] sm:$0x1] %vm8, %v7
    %s10 = scalar_lea.vmem [#allocation1], 3
    %v11 = vld [vmem:[%s10] sm:$0x1]
    %12 = vrot.lane.b32.xlu0 %v11, 9
    %v13 = vpop.permute.xlu0 %12
    %vm14 = vcmask 97352
    %15 = vst.msk [vmem:[#allocation0] sm:$0x1] %vm14, %v13
    %s16 = scalar_lea.vmem [#allocation1], 2
    %v17 = vld [vmem:[%s16] sm:$0x1]
    %18 = vrot.lane.b32.xlu0 %v17, 6
    %v19 = vpop.permute.xlu0 %18
    %vm20 = vcmask 72752
    %21 = vst.msk [vmem:[#allocation0] sm:$0x1] %vm20, %v19
    %s22 = scalar_lea.vmem [#allocation1], 1
    %v23 = vld [vmem:[%s22] sm:$0x1]
    %24 = vrot.lane.b32.xlu0 %v23, 3
    %v25 = vpop.permute.xlu0 %24
    %vm26 = vcmask 48152
    %27 = vst.msk [vmem:[#allocation0] sm:$0x1] %vm26, %v25
    %s29 = sshll.u32 1, 1
    %s30 = ssub.s32 %s29, 1
    %v32 = vld [vmem:[#allocation0] sm:%s30]
    %s33 = sshll.u32 1, 1
    %s34 = ssub.s32 %s33, 1
    %35 = vst [vmem:[%s1] sm:%s34] %v32

// kernel: stage1_generator_forward.8
$region0: #{stage1_generator_forward.8}
  #allocation0 [shape = 'u32[]', space=smem, size = 0x4, offset = 0x4, fixed_abs, tag = 'smem constant byte address 0x4 - core index']
  #allocation1 [shape = 'u32[144,128]{1,0:T(1,128)}', space=vmem, size = 0x12000, scoped, tag = 'internal scratch']
  %s0 = inlined_call_operand.vmem [shape: bf16[2,48], index: 0, kind: input, shape index: {}]
  %s1 = inlined_call_operand.vmem [shape: bf16[48,1024], index: 1, kind: input, shape index: {}]
  %s2 = inlined_call_operand.hbm [shape: f32[1,1024], index: 2, kind: input, shape index: {}]
  %s3 = inlined_call_operand.hbm [shape: f32[1,1024], index: 3, kind: input, shape index: {}]
  %s4 = inlined_call_operand.vmem [shape: bf16[2,1024], index: 4, kind: output, shape index: {}]
  %s5 = sld [smem:[#allocation0]]
  $region80: #{stage1_generator_forward.8} parent=0
    _
  %s7 = ssub.s32 1, %s5
  %s8 = scalar_select 0, %s7, %s5
  $region1: #{stage1_generator_forward.8} parent=0
    #allocation2 [shape = 'u8[98304]{0}', space=vmem, size = 0x18000, scoped, tag = 'input window, operand 1']
    #allocation3 [shape = 'u8[4096]{0}', space=vmem, size = 0x1000, scoped, tag = 'input window, operand 2']
    #allocation4 [shape = 's32[2]{0}', space=sflag, size = 0x8, scoped, tag = 'scoped memory for stage1_generator_forward.8']
    #allocation5 [shape = 'u8[4096]{0}', space=vmem, size = 0x1000, scoped, tag = 'input window, operand 3']
    #allocation6 [shape = 's32[2]{0}', space=sflag, size = 0x8, scoped, tag = 'scoped memory for stage1_generator_forward.8']
    %9 = vsyncpa [#allocation4], 0
    %s10 = scalar_lea.sflag [#allocation4], 1
    %11 = vsyncpa %s10, 0
    %12 = vsyncpa [#allocation6], 0
    %s13 = scalar_lea.sflag [#allocation6], 1
    %14 = vsyncpa %s13, 0
    loop: start=0, step=1, limit=4
    $region2: #{stage1_generator_forward.8} parent=1 // loop_pre_header
      _
    $region3: #{stage1_generator_forward.8} parent=1 // loop_header
      %s16 = sphi 0, %s20
      %p17 = scmp.ge.s32.totalorder %s16, 4
      %s24 = sphi 0, %s24
      %s26 = sphi 0, %s24
      %s27 = sphi 0, %s26
      %s41 = sphi 0, %s27
      %s47 = sphi 0, %s49
      %s50 = sphi 0, %s47
      %s51 = sphi 0, %s50
      %s67 = sphi 0, %s51
      %s73 = sphi 0, %s75
      %s76 = sphi 0, %s73
      %s77 = sphi 0, %s76
      %s93 = sphi 0, %s77
      %s99 = sphi 0, %s101
      %s102 = sphi 0, %s99
      %s103 = sphi 0, %s102
      %s119 = sphi 0, %s103
      %s125 = sphi 0, %s127
      %s128 = sphi 0, %s125
      %s129 = sphi 0, %s128
      %s145 = sphi 0, %s129
    $region4: #{stage1_generator_forward.8} parent=1 // loop_header_branch
      %19 = sbr.rel (%p17) target = $region8
    $region5: #{stage1_generator_forward.8} parent=1 // loop_body
      %s21 = ssub.s32 %s16, 1
      %s22 = ssub.s32 %s16, 2
      %s23 = sadd.s32 %s16, 1
      %s25 = sadd.s32 %s24, 1
      %p28 = scmp.eq.s32.totalorder %s16, 1
      %p29 = scmp.ne.s32.totalorder %s24, %s26
      %p30 = scmp.eq.s32.totalorder %s16, 0
      %p31 = por %p29, %p30
      %p32 = scmp.ne.s32.totalorder %s24, %s26
      %p33 = scmp.eq.s32.totalorder %s21, 1
      %p34 = por %p32, %p33
      %p35 = scmp.ne.s32.totalorder %s26, %s27
      %p36 = scmp.eq.s32.totalorder %s21, 0
      %p37 = por %p35, %p36
      %p38 = scmp.ne.s32.totalorder %s26, %s27
      %p39 = scmp.eq.s32.totalorder %s22, 1
      %p40 = por %p38, %p39
      %p42 = scmp.ne.s32.totalorder %s27, %s41
      %p43 = scmp.eq.s32.totalorder %s22, 0
      %p44 = por %p42, %p43
      %s45 = ssub.s32 %s16, %s23
      %p46 = scmp.eq.s32.totalorder %s45, 0
      %s48 = sadd.s32 %s47, 1
      %s49 = scalar_select %p46, %s47, %s48
      %p52 = pneg %p46
      %p53 = scmp.eq.s32.totalorder %s16, 1
      %p54 = por %p52, %p53
      %p55 = scmp.ne.s32.totalorder %s47, %s50
      %p56 = scmp.eq.s32.totalorder %s16, 0
      %p57 = por %p55, %p56
      %p58 = scmp.ne.s32.totalorder %s47, %s50
      %p59 = scmp.eq.s32.totalorder %s21, 1
      %p60 = por %p58, %p59
      %p61 = scmp.ne.s32.totalorder %s50, %s51
      %p62 = scmp.eq.s32.totalorder %s21, 0
      %p63 = por %p61, %p62
      %p64 = scmp.ne.s32.totalorder %s50, %s51
      %p65 = scmp.eq.s32.totalorder %s22, 1
      %p66 = por %p64, %p65
      %p68 = scmp.ne.s32.totalorder %s51, %s67
      %p69 = scmp.eq.s32.totalorder %s22, 0
      %p70 = por %p68, %p69
      %s71 = ssub.s32 %s16, %s23
      %p72 = scmp.eq.s32.totalorder %s71, 0
      %s74 = sadd.s32 %s73, 1
      %s75 = scalar_select %p72, %s73, %s74
      %p78 = pneg %p72
      %p79 = scmp.eq.s32.totalorder %s16, 1
      %p80 = por %p78, %p79
      %p81 = scmp.ne.s32.totalorder %s73, %s76
      %p82 = scmp.eq.s32.totalorder %s16, 0
      %p83 = por %p81, %p82
      %p84 = scmp.ne.s32.totalorder %s73, %s76
      %p85 = scmp.eq.s32.totalorder %s21, 1
      %p86 = por %p84, %p85
      %p87 = scmp.ne.s32.totalorder %s76, %s77
      %p88 = scmp.eq.s32.totalorder %s21, 0
      %p89 = por %p87, %p88
      %p90 = scmp.ne.s32.totalorder %s76, %s77
      %p91 = scmp.eq.s32.totalorder %s22, 1
      %p92 = por %p90, %p91
      %p94 = scmp.ne.s32.totalorder %s77, %s93
      %p95 = scmp.eq.s32.totalorder %s22, 0
      %p96 = por %p94, %p95
      %s97 = ssub.s32 %s16, %s23
      %p98 = scmp.eq.s32.totalorder %s97, 0
      %s100 = sadd.s32 %s99, 1
      %s101 = scalar_select %p98, %s99, %s100
      %p104 = pneg %p98
      %p105 = scmp.eq.s32.totalorder %s16, 1
      %p106 = por %p104, %p105
      %p107 = scmp.ne.s32.totalorder %s99, %s102
      %p108 = scmp.eq.s32.totalorder %s16, 0
      %p109 = por %p107, %p108
      %p110 = scmp.ne.s32.totalorder %s99, %s102
      %p111 = scmp.eq.s32.totalorder %s21, 1
      %p112 = por %p110, %p111
      %p113 = scmp.ne.s32.totalorder %s102, %s103
      %p114 = scmp.eq.s32.totalorder %s21, 0
      %p115 = por %p113, %p114
      %p116 = scmp.ne.s32.totalorder %s102, %s103
      %p117 = scmp.eq.s32.totalorder %s22, 1
      %p118 = por %p116, %p117
      %p120 = scmp.ne.s32.totalorder %s103, %s119
      %p121 = scmp.eq.s32.totalorder %s22, 0
      %p122 = por %p120, %p121
      %s123 = ssub.s32 %s16, %s23
      %p124 = scmp.eq.s32.totalorder %s123, 0
      %s126 = sadd.s32 %s125, 1
      %s127 = scalar_select %p124, %s125, %s126
      %p130 = pneg %p124
      %p131 = scmp.eq.s32.totalorder %s16, 1
      %p132 = por %p130, %p131
      %p133 = scmp.ne.s32.totalorder %s125, %s128
      %p134 = scmp.eq.s32.totalorder %s16, 0
      %p135 = por %p133, %p134
      %p136 = scmp.ne.s32.totalorder %s125, %s128
      %p137 = scmp.eq.s32.totalorder %s21, 1
      %p138 = por %p136, %p137
      %p139 = scmp.ne.s32.totalorder %s128, %s129
      %p140 = scmp.eq.s32.totalorder %s21, 0
      %p141 = por %p139, %p140
      %p142 = scmp.ne.s32.totalorder %s128, %s129
      %p143 = scmp.eq.s32.totalorder %s22, 1
      %p144 = por %p142, %p143
      %p146 = scmp.ne.s32.totalorder %s129, %s145
      %p147 = scmp.eq.s32.totalorder %s22, 0
      %p148 = por %p146, %p147
      %p149 = scmp.le.s32.totalorder 1, %s16
      %p150 = scmp.lt.s32.totalorder %s16, 3
      %p151 = pnand %p149, %p150
      %p152 = pneg %p151
      // Predicated region
      $region9: #{stage1_generator_forward.8} parent=5 // pred_check
        _
      $region10: #{stage1_generator_forward.8} parent=5 // pred_check_branch
        %154 = sbr.rel (%p151) target = $region12
      $region11: #{stage1_generator_forward.8} parent=5 // pred_region
        %s155 = ssub.s32 %s16, 1
        // Predicated region
        $region13: #{stage1_generator_forward.8} parent=11 // pred_check
          %p156 = pneg %p37
        $region14: #{stage1_generator_forward.8} parent=11 // pred_check_branch
          %158 = sbr.rel (%p156) target = $region16
        $region15: #{stage1_generator_forward.8} parent=11 // pred_region
          _
        $region16: #{stage1_generator_forward.8} parent=11 // pred_fallthru
          _
      $region12: #{stage1_generator_forward.8} parent=5 // pred_fallthru
        _
      %p159 = scmp.lt.s32.totalorder %s16, 2
      // Predicated region
      $region17: #{stage1_generator_forward.8} parent=5 // pred_check
        %p160 = pneg %p159
      $region18: #{stage1_generator_forward.8} parent=5 // pred_check_branch
        %162 = sbr.rel (%p160) target = $region20
      $region19: #{stage1_generator_forward.8} parent=5 // pred_region
        // Predicated region
        $region21: #{stage1_generator_forward.8} parent=19 // pred_check
          %p163 = pneg %p57
        $region22: #{stage1_generator_forward.8} parent=19 // pred_check_branch
          %165 = sbr.rel (%p163) target = $region24
        $region23: #{stage1_generator_forward.8} parent=19 // pred_region
          %s166 = sand.u32 %s47, 1
          %s167 = sand.u32 %s47, 1
          %s168 = smul.addr %s167, 96
          %s169 = scalar_lea.vmem [#allocation2], %s168
          %s170 = smul.u32 4, %s16
          %s171 = smul.addr %s170, 4
          %s172 = scalar_lea.vmem %s1, %s171
          // Predicated region
          $region25: #{stage1_generator_forward.8} parent=23 // pred_check
            _
          $region26: #{stage1_generator_forward.8} parent=23 // pred_check_branch
            %174 = sbr.rel (0) target = $region28
          $region27: #{stage1_generator_forward.8} parent=23 // pred_region
            // Predicated region
            $region29: #{stage1_generator_forward.8} parent=27 // pred_check
              _
            $region30: #{stage1_generator_forward.8} parent=27 // pred_check_branch
              %176 = sbr.rel (0) target = $region32
            $region31: #{stage1_generator_forward.8} parent=27 // pred_region
              loop: start=0, step=1, limit=1
              $region33: #{stage1_generator_forward.8} parent=31 // loop_pre_header
                _
              $region34: #{stage1_generator_forward.8} parent=31 // loop_header
                %s178 = sphi 0, %s182
                %p179 = scmp.ge.s32.totalorder %s178, 1
                %s183 = sphi %s172, %s172
                %s184 = sphi %s169, %s169
              $region35: #{stage1_generator_forward.8} parent=31 // loop_header_branch
                %181 = sbr.rel (%p179) target = $region39
              $region36: #{stage1_generator_forward.8} parent=31 // loop_body
                %v185 = vld [vmem:[%s183] sm:$0xff]
                %186 = vst [vmem:[%s184] sm:$0xff] %v185
                %v187 = vld [vmem:[%s183 + $0x8] sm:$0xff]
                %188 = vst [vmem:[%s184 + $0x8] sm:$0xff] %v187
                %v189 = vld [vmem:[%s183 + $0x20] sm:$0xff]
                %190 = vst [vmem:[%s184 + $0x10] sm:$0xff] %v189
                %v191 = vld [vmem:[%s183 + $0x28] sm:$0xff]
                %192 = vst [vmem:[%s184 + $0x18] sm:$0xff] %v191
                %v193 = vld [vmem:[%s183 + $0x40] sm:$0xff]
                %194 = vst [vmem:[%s184 + $0x20] sm:$0xff] %v193
                %v195 = vld [vmem:[%s183 + $0x48] sm:$0xff]
                %196 = vst [vmem:[%s184 + $0x28] sm:$0xff] %v195
                %v197 = vld [vmem:[%s183 + $0x60] sm:$0xff]
                %198 = vst [vmem:[%s184 + $0x30] sm:$0xff] %v197
                %v199 = vld [vmem:[%s183 + $0x68] sm:$0xff]
                %200 = vst [vmem:[%s184 + $0x38] sm:$0xff] %v199
                %v201 = vld [vmem:[%s183 + $0x80] sm:$0xff]
                %202 = vst [vmem:[%s184 + $0x40] sm:$0xff] %v201
                %v203 = vld [vmem:[%s183 + $0x88] sm:$0xff]
                %204 = vst [vmem:[%s184 + $0x48] sm:$0xff] %v203
                %v205 = vld [vmem:[%s183 + $0xa0] sm:$0xff]
                %206 = vst [vmem:[%s184 + $0x50] sm:$0xff] %v205
                %v207 = vld [vmem:[%s183 + $0xa8] sm:$0xff]
                %208 = vst [vmem:[%s184 + $0x58] sm:$0xff] %v207
              $region37: #{stage1_generator_forward.8} parent=31 // loop_footer
                %s182 = sadd.s32 1, %s178
              $region38: #{stage1_generator_forward.8} parent=31 // loop_footer_branch
                %177 = sbr.rel target = $region34
              $region39: #{stage1_generator_forward.8} parent=31 // loop_exit
                _
            $region32: #{stage1_generator_forward.8} parent=27 // pred_fallthru
              _
            // Predicated region
            $region40: #{stage1_generator_forward.8} parent=27 // pred_check
              _
            $region41: #{stage1_generator_forward.8} parent=27 // pred_check_branch
              %210 = sbr.rel target = $region43
            $region42: #{stage1_generator_forward.8} parent=27 // pred_region
              _
            $region43: #{stage1_generator_forward.8} parent=27 // pred_fallthru
              _
          $region28: #{stage1_generator_forward.8} parent=23 // pred_fallthru
            _
          %211 = vnop
        $region24: #{stage1_generator_forward.8} parent=19 // pred_fallthru
          _
        // Predicated region
        $region44: #{stage1_generator_forward.8} parent=19 // pred_check
          %p212 = pneg %p83
        $region45: #{stage1_generator_forward.8} parent=19 // pred_check_branch
          %214 = sbr.rel (%p212) target = $region47
        $region46: #{stage1_generator_forward.8} parent=19 // pred_region
          %s215 = sand.u32 %s73, 1
          %s216 = scalar_lea.sflag [#allocation4], %s215
          %s217 = sand.u32 %s73, 1
          %s218 = smul.addr %s217, 4
          %s219 = scalar_lea.vmem [#allocation3], %s218
          %s220 = smul.u32 4, %s16
          %s222 = ssub.s32 64, 64
          %223 = vsyncadd %s216, %s222
          %s224 = smul.addr %s220, 16
          %s225 = scalar_lea.hbm %s2, %s224
          %s227 = sshll.u32 %s219, 4
          %s228 = int_to_ptr.vmem [resolvable:$true] %s227
          %230 = dma.hbm_to_vmem [thread:$0]  %s225, 64, %s228, %s216
        $region47: #{stage1_generator_forward.8} parent=19 // pred_fallthru
          _
        // Predicated region
        $region48: #{stage1_generator_forward.8} parent=19 // pred_check
          %p231 = pneg %p109
        $region49: #{stage1_generator_forward.8} parent=19 // pred_check_branch
          %233 = sbr.rel (%p231) target = $region51
        $region50: #{stage1_generator_forward.8} parent=19 // pred_region
          %s234 = sand.u32 %s99, 1
          %s235 = scalar_lea.sflag [#allocation6], %s234
          %s236 = sand.u32 %s99, 1
          %s237 = smul.addr %s236, 4
          %s238 = scalar_lea.vmem [#allocation5], %s237
          %s239 = smul.u32 4, %s16
          %s241 = ssub.s32 64, 64
          %242 = vsyncadd %s235, %s241
          %s243 = smul.addr %s239, 16
          %s244 = scalar_lea.hbm %s3, %s243
          %s246 = sshll.u32 %s238, 4
          %s247 = int_to_ptr.vmem [resolvable:$true] %s246
          %249 = dma.hbm_to_vmem [thread:$0]  %s244, 64, %s247, %s235
        $region51: #{stage1_generator_forward.8} parent=19 // pred_fallthru
          _
      $region20: #{stage1_generator_forward.8} parent=5 // pred_fallthru
        _
      %p250 = scmp.le.s32.totalorder 1, %s16
      %p251 = scmp.lt.s32.totalorder %s16, 3
      %p252 = pnand %p250, %p251
      %p253 = pneg %p252
      // Predicated region
      $region52: #{stage1_generator_forward.8} parent=5 // pred_check
        _
      $region53: #{stage1_generator_forward.8} parent=5 // pred_check_branch
        %255 = sbr.rel (%p252) target = $region55
      $region54: #{stage1_generator_forward.8} parent=5 // pred_region
        %s256 = ssub.s32 %s16, 1
        %s257 = sand.u32 %s50, 1
        %s258 = sand.u32 %s50, 1
        %s259 = smul.addr %s258, 96
        %s260 = scalar_lea.vmem [#allocation2], %s259
        // Predicated region
        $region56: #{stage1_generator_forward.8} parent=54 // pred_check
          %p261 = pneg %p63
        $region57: #{stage1_generator_forward.8} parent=54 // pred_check_branch
          %263 = sbr.rel (%p261) target = $region59
        $region58: #{stage1_generator_forward.8} parent=54 // pred_region
          _
        $region59: #{stage1_generator_forward.8} parent=54 // pred_fallthru
          _
        %s264 = sand.u32 %s76, 1
        %s265 = scalar_lea.sflag [#allocation4], %s264
        %s266 = sand.u32 %s76, 1
        %s267 = smul.addr %s266, 4
        %s268 = scalar_lea.vmem [#allocation3], %s267
        // Predicated region
        $region60: #{stage1_generator_forward.8} parent=54 // pred_check
          %p269 = pneg %p89
        $region61: #{stage1_generator_forward.8} parent=54 // pred_check_branch
          %271 = sbr.rel (%p269) target = $region63
        $region62: #{stage1_generator_forward.8} parent=54 // pred_region
          %272 = dma.done %s265, 64
        $region63: #{stage1_generator_forward.8} parent=54 // pred_fallthru
          _
        %s273 = sand.u32 %s102, 1
        %s274 = scalar_lea.sflag [#allocation6], %s273
        %s275 = sand.u32 %s102, 1
        %s276 = smul.addr %s275, 4
        %s277 = scalar_lea.vmem [#allocation5], %s276
        // Predicated region
        $region64: #{stage1_generator_forward.8} parent=54 // pred_check
          %p278 = pneg %p115
        $region65: #{stage1_generator_forward.8} parent=54 // pred_check_branch
          %280 = sbr.rel (%p278) target = $region67
        $region66: #{stage1_generator_forward.8} parent=54 // pred_region
          %281 = dma.done %s274, 64
        $region67: #{stage1_generator_forward.8} parent=54 // pred_fallthru
          _
        %p282 = pneg %p37
        %p283 = pneg %p34
        %s284 = sand.u32 %s50, 1
        %s285 = sand.u32 %s50, 1
        %s286 = smul.addr %s285, 96
        %s287 = scalar_lea.vmem [#allocation2], %s286
        %p288 = pneg %p63
        %p289 = pneg %p60
        %s290 = sand.u32 %s76, 1
        %s291 = scalar_lea.sflag [#allocation4], %s290
        %s292 = sand.u32 %s76, 1
        %s293 = smul.addr %s292, 4
        %s294 = scalar_lea.vmem [#allocation3], %s293
        %p295 = pneg %p89
        %p296 = pneg %p86
        %s297 = sand.u32 %s102, 1
        %s298 = scalar_lea.sflag [#allocation6], %s297
        %s299 = sand.u32 %s102, 1
        %s300 = smul.addr %s299, 4
        %s301 = scalar_lea.vmem [#allocation5], %s300
        %p302 = pneg %p115
        %p303 = pneg %p112
        %p304 = pneg %p141
        %p305 = pneg %p138
        %s306 = smul.u32 4, %s21
        %p307 = scmp.lt.s32.totalorder %s306, 7
        %s308 = scalar_select %p307, %s306, 7
        %s309 = scalar_lea.vmem %s4, %s308
        %s310 = smul.u32 4, %s21
        %s311 = smul.u32 4, %s21
        %s312 = smul.u32 4, %s21
        %s313 = smul.u32 4, %s21
        %p314 = scmp.lt.s32.totalorder %s313, 7
        %s315 = scalar_select %p314, %s313, 7
        %s316 = scalar_lea.vmem %s4, %s315
        %s317 = smul.u32 4, %s21
        %v319 = vld [vmem:[%s0] sm:$0x1]
        %v320 = vld [vmem:[%s260] sm:$0xff]
        %v321 = vld [vmem:[%s260 + $0x8] sm:$0xff]
        %v322 = vld [vmem:[%s260 + $0x10] sm:$0xff]
        %v323 = vld [vmem:[%s260 + $0x18] sm:$0xff]
        %v324 = vld [vmem:[%s260 + $0x20] sm:$0xff]
        %v325 = vld [vmem:[%s260 + $0x28] sm:$0xff]
        %v326 = vld [vmem:[%s260 + $0x30] sm:$0xff]
        %v327 = vld [vmem:[%s260 + $0x38] sm:$0xff]
        %v328 = vld [vmem:[%s260 + $0x40] sm:$0xff]
        %v329 = vld [vmem:[%s260 + $0x48] sm:$0xff]
        %v330 = vld [vmem:[%s260 + $0x50] sm:$0xff]
        %v331 = vld [vmem:[%s260 + $0x58] sm:$0xff]
        %v344 = vunpack.c.l.b16 %v320
        %v345 = vunpack.c.h.b16 %v320
        %v346 = vunpack.c.l.b16 %v321
        %v347 = vunpack.c.h.b16 %v321
        %v348 = vunpack.c.l.b16 %v322
        %v349 = vunpack.c.h.b16 %v322
        %v350 = vunpack.c.l.b16 %v323
        %v351 = vunpack.c.h.b16 %v323
        %v352 = vunpack.c.l.b16 %v324
        %v353 = vunpack.c.h.b16 %v324
        %v354 = vunpack.c.l.b16 %v325
        %v355 = vunpack.c.h.b16 %v325
        %v356 = vunpack.c.l.b16 %v326
        %v357 = vunpack.c.h.b16 %v326
        %v358 = vunpack.c.l.b16 %v327
        %v359 = vunpack.c.h.b16 %v327
        %v360 = vunpack.c.l.b16 %v328
        %v361 = vunpack.c.h.b16 %v328
        %v362 = vunpack.c.l.b16 %v329
        %v363 = vunpack.c.h.b16 %v329
        %v364 = vunpack.c.l.b16 %v330
        %v365 = vunpack.c.h.b16 %v330
        %v366 = vunpack.c.l.b16 %v331
        %v367 = vunpack.c.h.b16 %v331
        %v368 = vpack.c.b16 %v348, %v344
        %v369 = vpack.c.b16 %v349, %v345
        %v370 = vpack.c.b16 %v350, %v346
        %v371 = vpack.c.b16 %v351, %v347
        %v372 = vpack.c.b16 %v356, %v352
        %v373 = vpack.c.b16 %v357, %v353
        %v374 = vpack.c.b16 %v358, %v354
        %v375 = vpack.c.b16 %v359, %v355
        %v376 = vpack.c.b16 %v364, %v360
        %v377 = vpack.c.b16 %v365, %v361
        %v378 = vpack.c.b16 %v366, %v362
        %v379 = vpack.c.b16 %v367, %v363
        %vm392 = vcmask 392192
        %v394 = vsel %vm392, %v319, 0
        %396 = vmatprep.subr.bf16.mxu0 0
        %397 = vmatpush1.bf16.msra.mxu0 0
        %398 = vmatprep.subr.bf16.mxu0 0
        %399 = vmatpush1.bf16.msra.mxu0 0
        %400 = vmatprep.subr.bf16.mxu0 0
        %401 = vmatpush1.bf16.msra.mxu0 0
        %402 = vmatprep.subr.bf16.mxu0 0
        %403 = vmatpush1.bf16.msra.mxu0 0
        %404 = vmatprep.subr.bf16.mxu0 0
        %405 = vmatpush1.bf16.msra.mxu0 0
        %406 = vmatprep.subr.bf16.mxu0 %v377
        %407 = vmatpush1.bf16.msra.mxu0 %v376
        %408 = vmatprep.subr.bf16.mxu0 %v373
        %409 = vmatpush1.bf16.msra.mxu0 %v372
        %410 = vmatprep.subr.bf16.mxu0 %v369
        %411 = vmatpush1.bf16.msra.mxu0 %v368
        %412 = vmatprep.subr.bf16.mxu0 0
        %413 = vmatpush2.bf16.msra.mxu0 0
        %414 = vmatprep.subr.bf16.mxu0 0
        %415 = vmatpush2.bf16.msra.mxu0 0
        %416 = vmatprep.subr.bf16.mxu0 0
        %417 = vmatpush2.bf16.msra.mxu0 0
        %418 = vmatprep.subr.bf16.mxu0 0
        %419 = vmatpush2.bf16.msra.mxu0 0
        %420 = vmatprep.subr.bf16.mxu0 0
        %421 = vmatpush2.bf16.msra.mxu0 0
        %422 = vmatprep.subr.bf16.mxu0 0
        %423 = vmatpush2.bf16.msra.mxu0 0
        %424 = vmatprep.subr.bf16.mxu0 0
        %425 = vmatpush2.bf16.msra.mxu0 0
        %426 = vmatprep.subr.bf16.mxu0 0
        %427 = vmatpush2.bf16.msra.mxu0 0
        %428 = vmatprep.mubr.bf16.mxu0 0
        %429 = vmatmul.mubr.bf16.gmra.mxu0 %v394
        %v430 = vpop.f32.mrf.mxu0
        %v431 = vadd.f32 0.0, %v430
        %v432 = vpop.f32.mrf.mxu0
        %v433 = vadd.f32 0.0, %v432
        %v434 = vpop.f32.mrf.mxu0
        %v435 = vpop.f32.mrf.mxu0
        %436 = vdwg.mxu0
        %437 = vmatprep.subr.bf16.mxu0 0
        %438 = vmatpush1.bf16.msra.mxu0 0
        %439 = vmatprep.subr.bf16.mxu0 0
        %440 = vmatpush1.bf16.msra.mxu0 0
        %441 = vmatprep.subr.bf16.mxu0 0
        %442 = vmatpush1.bf16.msra.mxu0 0
        %443 = vmatprep.subr.bf16.mxu0 0
        %444 = vmatpush1.bf16.msra.mxu0 0
        %445 = vmatprep.subr.bf16.mxu0 0
        %446 = vmatpush1.bf16.msra.mxu0 0
        %447 = vmatprep.subr.bf16.mxu0 %v379
        %448 = vmatpush1.bf16.msra.mxu0 %v378
        %449 = vmatprep.subr.bf16.mxu0 %v375
        %450 = vmatpush1.bf16.msra.mxu0 %v374
        %451 = vmatprep.subr.bf16.mxu0 %v371
        %452 = vmatpush1.bf16.msra.mxu0 %v370
        %453 = vmatprep.subr.bf16.mxu0 0
        %454 = vmatpush2.bf16.msra.mxu0 0
        %455 = vmatprep.subr.bf16.mxu0 0
        %456 = vmatpush2.bf16.msra.mxu0 0
        %457 = vmatprep.subr.bf16.mxu0 0
        %458 = vmatpush2.bf16.msra.mxu0 0
        %459 = vmatprep.subr.bf16.mxu0 0
        %460 = vmatpush2.bf16.msra.mxu0 0
        %461 = vmatprep.subr.bf16.mxu0 0
        %462 = vmatpush2.bf16.msra.mxu0 0
        %463 = vmatprep.subr.bf16.mxu0 0
        %464 = vmatpush2.bf16.msra.mxu0 0
        %465 = vmatprep.subr.bf16.mxu0 0
        %466 = vmatpush2.bf16.msra.mxu0 0
        %467 = vmatprep.subr.bf16.mxu0 0
        %468 = vmatpush2.bf16.msra.mxu0 0
        %469 = vmatprep.mubr.bf16.mxu0 0
        %470 = vmatmul.mubr.bf16.gmra.mxu0 %v394
        %v471 = vpop.f32.mrf.mxu0
        %v472 = vadd.f32 0.0, %v471
        %v473 = vpop.f32.mrf.mxu0
        %v474 = vadd.f32 0.0, %v473
        %v475 = vpop.f32.mrf.mxu0
        %v476 = vpop.f32.mrf.mxu0
        %477 = vdwg.mxu0
        %vm478 = vcmask 1041408
        %v479 = vsel %vm478, %v431, 0.0
        %v480 = vrot.slane %v479, 4
        %v481 = vadd.f32 %v479, %v480
        %v482 = vrot.slane %v481, 2
        %v483 = vadd.f32 %v481, %v482
        %v484 = vrot.slane %v483, 1
        %v485 = vadd.f32 %v483, %v484
        %v486 = vsel %vm478, %v433, 0.0
        %v487 = vrot.slane %v486, 4
        %v488 = vadd.f32 %v486, %v487
        %v489 = vrot.slane %v488, 2
        %v490 = vadd.f32 %v488, %v489
        %v491 = vrot.slane %v490, 1
        %v492 = vadd.f32 %v490, %v491
        %v493 = vsel %vm478, %v472, 0.0
        %v494 = vrot.slane %v493, 4
        %v495 = vadd.f32 %v493, %v494
        %v496 = vrot.slane %v495, 2
        %v497 = vadd.f32 %v495, %v496
        %v498 = vrot.slane %v497, 1
        %v499 = vadd.f32 %v497, %v498
        %v500 = vsel %vm478, %v474, 0.0
        %v501 = vrot.slane %v500, 4
        %v502 = vadd.f32 %v500, %v501
        %v503 = vrot.slane %v502, 2
        %v504 = vadd.f32 %v502, %v503
        %v505 = vrot.slane %v504, 1
        %v506 = vadd.f32 %v504, %v505
        %v507 = vrcp.pop 2.0
        %v508 = vmul.f32 %v485, %v507
        %v509 = vmul.f32 %v492, %v507
        %v510 = vmul.f32 %v499, %v507
        %v511 = vmul.f32 %v506, %v507
        %v512 = vmul.f32 %v431, %v431
        %v513 = vmul.f32 %v433, %v433
        %v514 = vmul.f32 %v472, %v472
        %v515 = vmul.f32 %v474, %v474
        %v516 = vsel %vm478, %v512, 0.0
        %v517 = vrot.slane %v516, 4
        %v518 = vadd.f32 %v516, %v517
        %v519 = vrot.slane %v518, 2
        %v520 = vadd.f32 %v518, %v519
        %v521 = vrot.slane %v520, 1
        %v522 = vadd.f32 %v520, %v521
        %v523 = vsel %vm478, %v513, 0.0
        %v524 = vrot.slane %v523, 4
        %v525 = vadd.f32 %v523, %v524
        %v526 = vrot.slane %v525, 2
        %v527 = vadd.f32 %v525, %v526
        %v528 = vrot.slane %v527, 1
        %v529 = vadd.f32 %v527, %v528
        %v530 = vsel %vm478, %v514, 0.0
        %v531 = vrot.slane %v530, 4
        %v532 = vadd.f32 %v530, %v531
        %v533 = vrot.slane %v532, 2
        %v534 = vadd.f32 %v532, %v533
        %v535 = vrot.slane %v534, 1
        %v536 = vadd.f32 %v534, %v535
        %v537 = vsel %vm478, %v515, 0.0
        %v538 = vrot.slane %v537, 4
        %v539 = vadd.f32 %v537, %v538
        %v540 = vrot.slane %v539, 2
        %v541 = vadd.f32 %v539, %v540
        %v542 = vrot.slane %v541, 1
        %v543 = vadd.f32 %v541, %v542
        %v544 = vmul.f32 %v522, %v507
        %v545 = vmul.f32 %v529, %v507
        %v546 = vmul.f32 %v536, %v507
        %v547 = vmul.f32 %v543, %v507
        %v548 = vmul.f32 %v508, %v508
        %v549 = vmul.f32 %v509, %v509
        %v550 = vmul.f32 %v510, %v510
        %v551 = vmul.f32 %v511, %v511
        %v552 = vsub.f32 %v544, %v548
        %v553 = vsub.f32 %v545, %v549
        %v554 = vsub.f32 %v546, %v550
        %v555 = vsub.f32 %v547, %v551
        %v556 = vmax.f32 %v552, 0.0
        %v557 = vmax.f32 %v553, 0.0
        %v558 = vmax.f32 %v554, 0.0
        %v559 = vmax.f32 %v555, 0.0
        %v560 = vadd.f32 %v556, 1e-05
        %v561 = vadd.f32 %v557, 1e-05
        %v562 = vadd.f32 %v558, 1e-05
        %v563 = vadd.f32 %v559, 1e-05
        %v564 = vrsqrt.pop %v560
        %v565 = vrsqrt.pop %v561
        %v566 = vrsqrt.pop %v562
        %v567 = vrsqrt.pop %v563
        %v568 = vsub.f32 %v431, %v508
        %v569 = vsub.f32 %v433, %v509
        %v570 = vsub.f32 %v472, %v510
        %v571 = vsub.f32 %v474, %v511
        %v572 = vmul.f32 %v568, %v564
        %v573 = vmul.f32 %v569, %v565
        %v574 = vmul.f32 %v570, %v566
        %v575 = vmul.f32 %v571, %v567
        %v576 = vld [vmem:[%s268] sm:$0xf]
        %v578 = vlaneseq
        %v579 = vshrl.u32 %v578, 7
        %v580 = vsub.s32 0, %v579
        %v581 = vrot.slane %v576, %v580
        %v582 = vlaneseq
        %v583 = vshrl.u32 %v582, 7
        %v584 = vsub.s32 1, %v583
        %v585 = vrot.slane %v576, %v584
        %v586 = vlaneseq
        %v587 = vshrl.u32 %v586, 7
        %v588 = vsub.s32 2, %v587
        %v589 = vrot.slane %v576, %v588
        %v590 = vlaneseq
        %v591 = vshrl.u32 %v590, 7
        %v592 = vsub.s32 3, %v591
        %v593 = vrot.slane %v576, %v592
        %v598 = vmul.f32 %v572, %v581
        %v599 = vmul.f32 %v573, %v585
        %v600 = vmul.f32 %v574, %v589
        %v601 = vmul.f32 %v575, %v593
        %v602 = vld [vmem:[%s277] sm:$0xf]
        %v604 = vlaneseq
        %v605 = vshrl.u32 %v604, 7
        %v606 = vsub.s32 0, %v605
        %v607 = vrot.slane %v602, %v606
        %v608 = vlaneseq
        %v609 = vshrl.u32 %v608, 7
        %v610 = vsub.s32 1, %v609
        %v611 = vrot.slane %v602, %v610
        %v612 = vlaneseq
        %v613 = vshrl.u32 %v612, 7
        %v614 = vsub.s32 2, %v613
        %v615 = vrot.slane %v602, %v614
        %v616 = vlaneseq
        %v617 = vshrl.u32 %v616, 7
        %v618 = vsub.s32 3, %v617
        %v619 = vrot.slane %v602, %v618
        %v624 = vadd.f32 %v598, %v607
        %v625 = vadd.f32 %v599, %v611
        %v626 = vadd.f32 %v600, %v615
        %v627 = vadd.f32 %v601, %v619
        %v628 = vmax.f32 %v624, 0.0
        %v629 = vmax.f32 %v625, 0.0
        %v630 = vmax.f32 %v626, 0.0
        %v631 = vmax.f32 %v627, 0.0
        %v632 = vpack.c.bf16 %v628, %v628
        %v633 = vpack.c.bf16 %v629, %v629
        %v634 = vpack.c.bf16 %v630, %v630
        %v635 = vpack.c.bf16 %v631, %v631
        %v640 = vcombine.low %v632, %v633
        %v641 = vcombine.low %v634, %v635
        %v643 = vunpack.c.l.s4 1966171168
        %v644 = vunpack.c.0.s8 %v643
        %v645 = vlaneseq
        %v646 = vshrl.u32 %v645, 7
        %v647 = vsub.s32 %v644, %v646
        %v648 = vrot.slane %v640, %v647
        %v650 = vunpack.c.l.s4 1966171168
        %v651 = vunpack.c.0.s8 %v650
        %v652 = vlaneseq
        %v653 = vshrl.u32 %v652, 7
        %v654 = vsub.s32 %v651, %v653
        %v655 = vrot.slane %v641, %v654
        %v656 = vcombine.low %v648, %v655
        %v658 = vunpack.c.l.s4 1966171168
        %v659 = vunpack.c.0.s8 %v658
        %v660 = vlaneseq
        %v661 = vshrl.u32 %v660, 7
        %v662 = vsub.s32 %v659, %v661
        %v663 = vrot.slane %v656, %v662
        %665 = vst [vmem:[%s316] sm:$0xf] %v663
        %s666 = smul.u32 4, %s21
        %p667 = scmp.lt.s32.totalorder %s666, 7
        %s668 = scalar_select %p667, %s666, 7
        %s669 = scalar_lea.vmem %s4, %s668
        // Predicated region
        $region68: #{stage1_generator_forward.8} parent=54 // pred_check
          %p670 = pneg %p138
        $region69: #{stage1_generator_forward.8} parent=54 // pred_check_branch
          %672 = sbr.rel (%p670) target = $region71
        $region70: #{stage1_generator_forward.8} parent=54 // pred_region
          %s673 = smul.u32 4, %s21
        $region71: #{stage1_generator_forward.8} parent=54 // pred_fallthru
          _
      $region55: #{stage1_generator_forward.8} parent=5 // pred_fallthru
        _
      %p674 = scmp.le.s32.totalorder 2, %s16
      // Predicated region
      $region72: #{stage1_generator_forward.8} parent=5 // pred_check
        %p675 = pneg %p674
      $region73: #{stage1_generator_forward.8} parent=5 // pred_check_branch
        %677 = sbr.rel (%p675) target = $region75
      $region74: #{stage1_generator_forward.8} parent=5 // pred_region
        %s678 = ssub.s32 %s16, 2
        // Predicated region
        $region76: #{stage1_generator_forward.8} parent=74 // pred_check
          %p679 = pneg %p144
        $region77: #{stage1_generator_forward.8} parent=74 // pred_check_branch
          %681 = sbr.rel (%p679) target = $region79
        $region78: #{stage1_generator_forward.8} parent=74 // pred_region
          %s682 = smul.u32 4, %s22
          %p683 = scmp.lt.s32.totalorder %s682, 7
          %s684 = scalar_select %p683, %s682, 7
          %s685 = scalar_lea.vmem %s4, %s684
        $region79: #{stage1_generator_forward.8} parent=74 // pred_fallthru
          _
      $region75: #{stage1_generator_forward.8} parent=5 // pred_fallthru
        _
    $region6: #{stage1_generator_forward.8} parent=1 // loop_footer
      %s20 = sadd.s32 1, %s16
    $region7: #{stage1_generator_forward.8} parent=1 // loop_footer_branch
      %15 = sbr.rel target = $region3
    $region8: #{stage1_generator_forward.8} parent=1 // loop_exit
      _
    %686 = vsyncpa [#allocation4], 1
    %s687 = scalar_lea.sflag [#allocation4], 1
    %688 = vsyncpa %s687, 1
    %689 = vsyncpa [#allocation6], 1
    %s690 = scalar_lea.sflag [#allocation6], 1
    %691 = vsyncpa %s690, 1

// kernel: stage1_generator_forward.10
$region0: #{stage1_generator_forward.10}
  #allocation0 [shape = 'u32[]', space=smem, size = 0x4, offset = 0x4, fixed_abs, tag = 'smem constant byte address 0x4 - core index']
  #allocation1 [shape = 'u32[144,128]{1,0:T(1,128)}', space=vmem, size = 0x12000, scoped, tag = 'internal scratch']
  %s0 = inlined_call_operand.vmem [shape: f32[4,32,32], index: 0, kind: input, shape index: {}]
  %s1 = inlined_call_operand.vmem [shape: f32[1,32], index: 1, kind: input, shape index: {}]
  %s2 = inlined_call_operand.vmem [shape: f32[1,32], index: 2, kind: input, shape index: {}]
  %s3 = inlined_call_operand.vmem [shape: bf16[4,32,32], index: 3, kind: output, shape index: {}]
  %s4 = sld [smem:[#allocation0]]
  $region45: #{stage1_generator_forward.10} parent=0
    _
  %s6 = ssub.s32 1, %s4
  %s7 = scalar_select 0, %s6, %s4
  loop: start=0, step=1, limit=6
  $region2: #{stage1_generator_forward.10} parent=0 // loop_pre_header
    _
  $region3: #{stage1_generator_forward.10} parent=0 // loop_header
    %s9 = sphi 0, %s13
    %p10 = scmp.ge.s32.totalorder %s9, 6
    %s16 = sphi 0, %s28
    %s17 = sphi 0, %s24
    %s18 = sphi 0, %s16
    %s19 = sphi 0, %s17
    %s20 = sphi 0, %s18
    %s21 = sphi 0, %s19
    %s33 = sphi 0, %s35
    %s36 = sphi 0, %s33
    %s37 = sphi 0, %s36
    %s53 = sphi 0, %s37
    %s57 = sphi 0, %s57
    %s59 = sphi 0, %s57
    %s60 = sphi 0, %s59
    %s74 = sphi 0, %s60
    %s78 = sphi 0, %s78
    %s80 = sphi 0, %s78
    %s81 = sphi 0, %s80
    %s95 = sphi 0, %s81
    %s103 = sphi 0, %s105
    %s106 = sphi 0, %s103
    %s107 = sphi 0, %s106
    %s123 = sphi 0, %s107
  $region4: #{stage1_generator_forward.10} parent=0 // loop_header_branch
    %12 = sbr.rel (%p10) target = $region8
  $region5: #{stage1_generator_forward.10} parent=0 // loop_body
    %s14 = ssub.s32 %s9, 1
    %s15 = ssub.s32 %s9, 2
    %s22 = sadd.s32 1, %s17
    %p23 = scmp.ge.s32.totalorder %s22, 1
    %s24 = scalar_select %p23, 0, %s22
    %s25 = sadd.s32 1, %s16
    %s26 = scalar_select %p23, %s25, %s16
    %p27 = scmp.ge.s32.totalorder %s26, 4
    %s28 = scalar_select %p27, 0, %s26
    %s29 = ssub.s32 %s16, %s28
    %s30 = ssub.s32 %s17, %s24
    %s31 = sor.u32 %s29, %s30
    %p32 = scmp.eq.s32.totalorder %s31, 0
    %s34 = sadd.s32 %s33, 1
    %s35 = scalar_select %p32, %s33, %s34
    %p38 = pneg %p32
    %p39 = scmp.eq.s32.totalorder %s9, 3
    %p40 = por %p38, %p39
    %p41 = scmp.ne.s32.totalorder %s33, %s36
    %p42 = scmp.eq.s32.totalorder %s9, 0
    %p43 = por %p41, %p42
    %p44 = scmp.ne.s32.totalorder %s33, %s36
    %p45 = scmp.eq.s32.totalorder %s14, 3
    %p46 = por %p44, %p45
    %p47 = scmp.ne.s32.totalorder %s36, %s37
    %p48 = scmp.eq.s32.totalorder %s14, 0
    %p49 = por %p47, %p48
    %p50 = scmp.ne.s32.totalorder %s36, %s37
    %p51 = scmp.eq.s32.totalorder %s15, 3
    %p52 = por %p50, %p51
    %p54 = scmp.ne.s32.totalorder %s37, %s53
    %p55 = scmp.eq.s32.totalorder %s15, 0
    %p56 = por %p54, %p55
    %s58 = sadd.s32 %s57, 1
    %p61 = scmp.eq.s32.totalorder %s9, 3
    %p62 = scmp.ne.s32.totalorder %s57, %s59
    %p63 = scmp.eq.s32.totalorder %s9, 0
    %p64 = por %p62, %p63
    %p65 = scmp.ne.s32.totalorder %s57, %s59
    %p66 = scmp.eq.s32.totalorder %s14, 3
    %p67 = por %p65, %p66
    %p68 = scmp.ne.s32.totalorder %s59, %s60
    %p69 = scmp.eq.s32.totalorder %s14, 0
    %p70 = por %p68, %p69
    %p71 = scmp.ne.s32.totalorder %s59, %s60
    %p72 = scmp.eq.s32.totalorder %s15, 3
    %p73 = por %p71, %p72
    %p75 = scmp.ne.s32.totalorder %s60, %s74
    %p76 = scmp.eq.s32.totalorder %s15, 0
    %p77 = por %p75, %p76
    %s79 = sadd.s32 %s78, 1
    %p82 = scmp.eq.s32.totalorder %s9, 3
    %p83 = scmp.ne.s32.totalorder %s78, %s80
    %p84 = scmp.eq.s32.totalorder %s9, 0
    %p85 = por %p83, %p84
    %p86 = scmp.ne.s32.totalorder %s78, %s80
    %p87 = scmp.eq.s32.totalorder %s14, 3
    %p88 = por %p86, %p87
    %p89 = scmp.ne.s32.totalorder %s80, %s81
    %p90 = scmp.eq.s32.totalorder %s14, 0
    %p91 = por %p89, %p90
    %p92 = scmp.ne.s32.totalorder %s80, %s81
    %p93 = scmp.eq.s32.totalorder %s15, 3
    %p94 = por %p92, %p93
    %p96 = scmp.ne.s32.totalorder %s81, %s95
    %p97 = scmp.eq.s32.totalorder %s15, 0
    %p98 = por %p96, %p97
    %s99 = ssub.s32 %s16, %s28
    %s100 = ssub.s32 %s17, %s24
    %s101 = sor.u32 %s99, %s100
    %p102 = scmp.eq.s32.totalorder %s101, 0
    %s104 = sadd.s32 %s103, 1
    %s105 = scalar_select %p102, %s103, %s104
    %p108 = pneg %p102
    %p109 = scmp.eq.s32.totalorder %s9, 3
    %p110 = por %p108, %p109
    %p111 = scmp.ne.s32.totalorder %s103, %s106
    %p112 = scmp.eq.s32.totalorder %s9, 0
    %p113 = por %p111, %p112
    %p114 = scmp.ne.s32.totalorder %s103, %s106
    %p115 = scmp.eq.s32.totalorder %s14, 3
    %p116 = por %p114, %p115
    %p117 = scmp.ne.s32.totalorder %s106, %s107
    %p118 = scmp.eq.s32.totalorder %s14, 0
    %p119 = por %p117, %p118
    %p120 = scmp.ne.s32.totalorder %s106, %s107
    %p121 = scmp.eq.s32.totalorder %s15, 3
    %p122 = por %p120, %p121
    %p124 = scmp.ne.s32.totalorder %s107, %s123
    %p125 = scmp.eq.s32.totalorder %s15, 0
    %p126 = por %p124, %p125
    %p127 = scmp.le.s32.totalorder 1, %s9
    %p128 = scmp.lt.s32.totalorder %s9, 5
    %p129 = pnand %p127, %p128
    %p130 = pneg %p129
    // Predicated region
    $region9: #{stage1_generator_forward.10} parent=5 // pred_check
      _
    $region10: #{stage1_generator_forward.10} parent=5 // pred_check_branch
      %132 = sbr.rel (%p129) target = $region12
    $region11: #{stage1_generator_forward.10} parent=5 // pred_region
      %s133 = ssub.s32 %s9, 1
      // Predicated region
      $region13: #{stage1_generator_forward.10} parent=11 // pred_check
        %p134 = pneg %p70
      $region14: #{stage1_generator_forward.10} parent=11 // pred_check_branch
        %136 = sbr.rel (%p134) target = $region16
      $region15: #{stage1_generator_forward.10} parent=11 // pred_region
        _
      $region16: #{stage1_generator_forward.10} parent=11 // pred_fallthru
        _
      // Predicated region
      $region17: #{stage1_generator_forward.10} parent=11 // pred_check
        %p137 = pneg %p91
      $region18: #{stage1_generator_forward.10} parent=11 // pred_check_branch
        %139 = sbr.rel (%p137) target = $region20
      $region19: #{stage1_generator_forward.10} parent=11 // pred_region
        _
      $region20: #{stage1_generator_forward.10} parent=11 // pred_fallthru
        _
    $region12: #{stage1_generator_forward.10} parent=5 // pred_fallthru
      _
    %p140 = scmp.lt.s32.totalorder %s9, 4
    // Predicated region
    $region21: #{stage1_generator_forward.10} parent=5 // pred_check
      %p141 = pneg %p140
    $region22: #{stage1_generator_forward.10} parent=5 // pred_check_branch
      %143 = sbr.rel (%p141) target = $region24
    $region23: #{stage1_generator_forward.10} parent=5 // pred_region
      // Predicated region
      $region25: #{stage1_generator_forward.10} parent=23 // pred_check
        %p144 = pneg %p43
      $region26: #{stage1_generator_forward.10} parent=23 // pred_check_branch
        %146 = sbr.rel (%p144) target = $region28
      $region27: #{stage1_generator_forward.10} parent=23 // pred_region
        %s147 = smul.u32 4, %s17
        %p148 = scmp.lt.s32.totalorder %s16, 3
        %s149 = scalar_select %p148, %s16, 3
        %p150 = scmp.lt.s32.totalorder %s147, 3
        %s151 = scalar_select %p150, %s147, 3
        %s152 = smul.addr %s149, 4
        %s153 = sadd.s32 %s151, %s152
        %s154 = smul.addr %s153, 8
        %s155 = scalar_lea.vmem %s0, %s154
        %s156 = smul.u32 4, %s17
      $region28: #{stage1_generator_forward.10} parent=23 // pred_fallthru
        _
    $region24: #{stage1_generator_forward.10} parent=5 // pred_fallthru
      _
    %p157 = scmp.le.s32.totalorder 1, %s9
    %p158 = scmp.lt.s32.totalorder %s9, 5
    %p159 = pnand %p157, %p158
    %p160 = pneg %p159
    // Predicated region
    $region29: #{stage1_generator_forward.10} parent=5 // pred_check
      _
    $region30: #{stage1_generator_forward.10} parent=5 // pred_check_branch
      %162 = sbr.rel (%p159) target = $region32
    $region31: #{stage1_generator_forward.10} parent=5 // pred_region
      %s163 = ssub.s32 %s9, 1
      %s164 = smul.u32 4, %s19
      %p165 = scmp.lt.s32.totalorder %s18, 3
      %s166 = scalar_select %p165, %s18, 3
      %p167 = scmp.lt.s32.totalorder %s164, 3
      %s168 = scalar_select %p167, %s164, 3
      %s169 = smul.addr %s166, 4
      %s170 = sadd.s32 %s168, %s169
      %s171 = smul.addr %s170, 8
      %s172 = scalar_lea.vmem %s0, %s171
      %p173 = pneg %p49
      %p174 = pneg %p46
      %p175 = pneg %p70
      %p176 = pneg %p67
      %p177 = pneg %p91
      %p178 = pneg %p88
      %p179 = pneg %p119
      %p180 = pneg %p116
      %s181 = smul.u32 4, %s19
      %p182 = scmp.lt.s32.totalorder %s18, 3
      %s183 = scalar_select %p182, %s18, 3
      %p184 = scmp.lt.s32.totalorder %s181, 3
      %s185 = scalar_select %p184, %s181, 3
      %s186 = smul.addr %s183, 4
      %s187 = sadd.s32 %s185, %s186
      %s188 = smul.addr %s187, 4
      %s189 = scalar_lea.vmem %s3, %s188
      %s190 = smul.u32 4, %s19
      %p191 = scmp.lt.s32.totalorder %s18, 3
      %s192 = scalar_select %p191, %s18, 3
      %p193 = scmp.lt.s32.totalorder %s190, 3
      %s194 = scalar_select %p193, %s190, 3
      %s195 = smul.addr %s192, 4
      %s196 = sadd.s32 %s194, %s195
      %s197 = smul.addr %s196, 8
      %s198 = scalar_lea.vmem %s0, %s197
      %s199 = smul.u32 4, %s19
      %s200 = smul.u32 4, %s19
      %p201 = scmp.lt.s32.totalorder %s18, 3
      %s202 = scalar_select %p201, %s18, 3
      %p203 = scmp.lt.s32.totalorder %s200, 3
      %s204 = scalar_select %p203, %s200, 3
      %s205 = smul.addr %s202, 4
      %s206 = sadd.s32 %s204, %s205
      %s207 = smul.addr %s206, 4
      %s208 = scalar_lea.vmem %s3, %s207
      %s209 = smul.u32 4, %s19
      %v210 = vld [vmem:[%s198] sm:$0xff]
      %v211 = vld [vmem:[%s198 + $0x8] sm:$0xff]
      %v212 = vld [vmem:[%s198 + $0x10] sm:$0xff]
      %v213 = vld [vmem:[%s198 + $0x18] sm:$0xff]
      %v214 = vld [vmem:[%s1] sm:$0x1]
      %v216 = vlaneseq
      %v217 = vshrl.u32 %v216, 7
      %v218 = vsub.s32 0, %v217
      %v219 = vrot.slane %v214, %v218
      %v221 = vmul.f32 %v210, %v219
      %v222 = vmul.f32 %v211, %v219
      %v223 = vmul.f32 %v212, %v219
      %v224 = vmul.f32 %v213, %v219
      %v225 = vld [vmem:[%s2] sm:$0x1]
      %v227 = vlaneseq
      %v228 = vshrl.u32 %v227, 7
      %v229 = vsub.s32 0, %v228
      %v230 = vrot.slane %v225, %v229
      %v232 = vadd.f32 %v221, %v230
      %v233 = vadd.f32 %v222, %v230
      %v234 = vadd.f32 %v223, %v230
      %v235 = vadd.f32 %v224, %v230
      %v236 = vmax.f32 %v232, 0.0
      %v237 = vmax.f32 %v233, 0.0
      %v238 = vmax.f32 %v234, 0.0
      %v239 = vmax.f32 %v235, 0.0
      %v240 = vpack.c.bf16 %v237, %v236
      %v241 = vpack.c.bf16 %v239, %v238
      %v244 = vunpack.c.l.b16 %v240
      %v245 = vunpack.c.h.b16 %v240
      %v246 = vunpack.c.l.b16 %v241
      %v247 = vunpack.c.h.b16 %v241
      %v248 = vpack.c.b16 %v244, %v244
      %v249 = vpack.c.b16 %v245, %v245
      %v250 = vpack.c.b16 %v246, %v246
      %v251 = vpack.c.b16 %v247, %v247
      %vm256 = vcmask 257024
      %257 = vst.msk [vmem:[%s208] sm:$0xf] %vm256, %v248
      %258 = vst.msk [vmem:[%s208 + $0x4] sm:$0xf] %vm256, %v249
      %259 = vst.msk [vmem:[%s208 + $0x8] sm:$0xf] %vm256, %v250
      %260 = vst.msk [vmem:[%s208 + $0xc] sm:$0xf] %vm256, %v251
      %s261 = smul.u32 4, %s19
      %p262 = scmp.lt.s32.totalorder %s18, 3
      %s263 = scalar_select %p262, %s18, 3
      %p264 = scmp.lt.s32.totalorder %s261, 3
      %s265 = scalar_select %p264, %s261, 3
      %s266 = smul.addr %s263, 4
      %s267 = sadd.s32 %s265, %s266
      %s268 = smul.addr %s267, 4
      %s269 = scalar_lea.vmem %s3, %s268
      // Predicated region
      $region33: #{stage1_generator_forward.10} parent=31 // pred_check
        %p270 = pneg %p116
      $region34: #{stage1_generator_forward.10} parent=31 // pred_check_branch
        %272 = sbr.rel (%p270) target = $region36
      $region35: #{stage1_generator_forward.10} parent=31 // pred_region
        %s273 = smul.u32 4, %s19
      $region36: #{stage1_generator_forward.10} parent=31 // pred_fallthru
        _
    $region32: #{stage1_generator_forward.10} parent=5 // pred_fallthru
      _
    %p274 = scmp.le.s32.totalorder 2, %s9
    // Predicated region
    $region37: #{stage1_generator_forward.10} parent=5 // pred_check
      %p275 = pneg %p274
    $region38: #{stage1_generator_forward.10} parent=5 // pred_check_branch
      %277 = sbr.rel (%p275) target = $region40
    $region39: #{stage1_generator_forward.10} parent=5 // pred_region
      %s278 = ssub.s32 %s9, 2
      // Predicated region
      $region41: #{stage1_generator_forward.10} parent=39 // pred_check
        %p279 = pneg %p122
      $region42: #{stage1_generator_forward.10} parent=39 // pred_check_branch
        %281 = sbr.rel (%p279) target = $region44
      $region43: #{stage1_generator_forward.10} parent=39 // pred_region
        %s282 = smul.u32 4, %s21
        %p283 = scmp.lt.s32.totalorder %s20, 3
        %s284 = scalar_select %p283, %s20, 3
        %p285 = scmp.lt.s32.totalorder %s282, 3
        %s286 = scalar_select %p285, %s282, 3
        %s287 = smul.addr %s284, 4
        %s288 = sadd.s32 %s286, %s287
        %s289 = smul.addr %s288, 4
        %s290 = scalar_lea.vmem %s3, %s289
      $region44: #{stage1_generator_forward.10} parent=39 // pred_fallthru
        _
    $region40: #{stage1_generator_forward.10} parent=5 // pred_fallthru
      _
  $region6: #{stage1_generator_forward.10} parent=0 // loop_footer
    %s13 = sadd.s32 1, %s9
  $region7: #{stage1_generator_forward.10} parent=0 // loop_footer_branch
    %8 = sbr.rel target = $region3
  $region8: #{stage1_generator_forward.10} parent=0 // loop_exit
    _

// kernel: stage1_generator_forward.9
$region0: #{stage1_generator_forward.9}
  #allocation0 [shape = 'u32[]', space=smem, size = 0x4, offset = 0x4, fixed_abs, tag = 'smem constant byte address 0x4 - core index']
  #allocation1 [shape = 'u32[144,128]{1,0:T(1,128)}', space=vmem, size = 0x12000, scoped, tag = 'internal scratch']
  %s0 = inlined_call_operand.vmem [shape: bf16[4,32,256], index: 0, kind: input, shape index: {}]
  %s1 = inlined_call_operand.vmem [shape: bf16[4,256,32], index: 1, kind: input, shape index: {}]
  %s2 = inlined_call_operand.vmem [shape: f32[4,32,32], index: 2, kind: output, shape index: {0}]
  %s3 = inlined_call_operand.vmem [shape: f32[4,1,32], index: 3, kind: output, shape index: {1}]
  %s4 = inlined_call_operand.vmem [shape: f32[4,1,32], index: 4, kind: output, shape index: {2}]
  %5 = xla_tuple %s2, %s3, %s4
  %s6 = sld [smem:[#allocation0]]
  $region61: #{stage1_generator_forward.9} parent=0
    _
  %s8 = ssub.s32 1, %s6
  %s9 = scalar_select 0, %s8, %s6
  loop: start=0, step=1, limit=6
  $region2: #{stage1_generator_forward.9} parent=0 // loop_pre_header
    _
  $region3: #{stage1_generator_forward.9} parent=0 // loop_header
    %s11 = sphi 0, %s15
    %p12 = scmp.ge.s32.totalorder %s11, 6
    %s18 = sphi 0, %s30
    %s19 = sphi 0, %s26
    %s20 = sphi 0, %s18
    %s21 = sphi 0, %s19
    %s22 = sphi 0, %s20
    %s23 = sphi 0, %s21
    %s35 = sphi 0, %s37
    %s38 = sphi 0, %s35
    %s39 = sphi 0, %s38
    %s55 = sphi 0, %s39
    %s61 = sphi 0, %s63
    %s64 = sphi 0, %s61
    %s65 = sphi 0, %s64
    %s81 = sphi 0, %s65
    %s89 = sphi 0, %s91
    %s92 = sphi 0, %s89
    %s93 = sphi 0, %s92
    %s109 = sphi 0, %s93
    %s115 = sphi 0, %s117
    %s118 = sphi 0, %s115
    %s119 = sphi 0, %s118
    %s135 = sphi 0, %s119
    %s141 = sphi 0, %s143
    %s144 = sphi 0, %s141
    %s145 = sphi 0, %s144
    %s161 = sphi 0, %s145
  $region4: #{stage1_generator_forward.9} parent=0 // loop_header_branch
    %14 = sbr.rel (%p12) target = $region8
  $region5: #{stage1_generator_forward.9} parent=0 // loop_body
    %s16 = ssub.s32 %s11, 1
    %s17 = ssub.s32 %s11, 2
    %s24 = sadd.s32 1, %s19
    %p25 = scmp.ge.s32.totalorder %s24, 1
    %s26 = scalar_select %p25, 0, %s24
    %s27 = sadd.s32 1, %s18
    %s28 = scalar_select %p25, %s27, %s18
    %p29 = scmp.ge.s32.totalorder %s28, 4
    %s30 = scalar_select %p29, 0, %s28
    %s31 = ssub.s32 %s18, %s30
    %s32 = ssub.s32 %s19, %s26
    %s33 = sor.u32 %s31, %s32
    %p34 = scmp.eq.s32.totalorder %s33, 0
    %s36 = sadd.s32 %s35, 1
    %s37 = scalar_select %p34, %s35, %s36
    %p40 = pneg %p34
    %p41 = scmp.eq.s32.totalorder %s11, 3
    %p42 = por %p40, %p41
    %p43 = scmp.ne.s32.totalorder %s35, %s38
    %p44 = scmp.eq.s32.totalorder %s11, 0
    %p45 = por %p43, %p44
    %p46 = scmp.ne.s32.totalorder %s35, %s38
    %p47 = scmp.eq.s32.totalorder %s16, 3
    %p48 = por %p46, %p47
    %p49 = scmp.ne.s32.totalorder %s38, %s39
    %p50 = scmp.eq.s32.totalorder %s16, 0
    %p51 = por %p49, %p50
    %p52 = scmp.ne.s32.totalorder %s38, %s39
    %p53 = scmp.eq.s32.totalorder %s17, 3
    %p54 = por %p52, %p53
    %p56 = scmp.ne.s32.totalorder %s39, %s55
    %p57 = scmp.eq.s32.totalorder %s17, 0
    %p58 = por %p56, %p57
    %s59 = ssub.s32 %s18, %s30
    %p60 = scmp.eq.s32.totalorder %s59, 0
    %s62 = sadd.s32 %s61, 1
    %s63 = scalar_select %p60, %s61, %s62
    %p66 = pneg %p60
    %p67 = scmp.eq.s32.totalorder %s11, 3
    %p68 = por %p66, %p67
    %p69 = scmp.ne.s32.totalorder %s61, %s64
    %p70 = scmp.eq.s32.totalorder %s11, 0
    %p71 = por %p69, %p70
    %p72 = scmp.ne.s32.totalorder %s61, %s64
    %p73 = scmp.eq.s32.totalorder %s16, 3
    %p74 = por %p72, %p73
    %p75 = scmp.ne.s32.totalorder %s64, %s65
    %p76 = scmp.eq.s32.totalorder %s16, 0
    %p77 = por %p75, %p76
    %p78 = scmp.ne.s32.totalorder %s64, %s65
    %p79 = scmp.eq.s32.totalorder %s17, 3
    %p80 = por %p78, %p79
    %p82 = scmp.ne.s32.totalorder %s65, %s81
    %p83 = scmp.eq.s32.totalorder %s17, 0
    %p84 = por %p82, %p83
    %s85 = ssub.s32 %s18, %s30
    %s86 = ssub.s32 %s19, %s26
    %s87 = sor.u32 %s85, %s86
    %p88 = scmp.eq.s32.totalorder %s87, 0
    %s90 = sadd.s32 %s89, 1
    %s91 = scalar_select %p88, %s89, %s90
    %p94 = pneg %p88
    %p95 = scmp.eq.s32.totalorder %s11, 3
    %p96 = por %p94, %p95
    %p97 = scmp.ne.s32.totalorder %s89, %s92
    %p98 = scmp.eq.s32.totalorder %s11, 0
    %p99 = por %p97, %p98
    %p100 = scmp.ne.s32.totalorder %s89, %s92
    %p101 = scmp.eq.s32.totalorder %s16, 3
    %p102 = por %p100, %p101
    %p103 = scmp.ne.s32.totalorder %s92, %s93
    %p104 = scmp.eq.s32.totalorder %s16, 0
    %p105 = por %p103, %p104
    %p106 = scmp.ne.s32.totalorder %s92, %s93
    %p107 = scmp.eq.s32.totalorder %s17, 3
    %p108 = por %p106, %p107
    %p110 = scmp.ne.s32.totalorder %s93, %s109
    %p111 = scmp.eq.s32.totalorder %s17, 0
    %p112 = por %p110, %p111
    %s113 = ssub.s32 %s18, %s30
    %p114 = scmp.eq.s32.totalorder %s113, 0
    %s116 = sadd.s32 %s115, 1
    %s117 = scalar_select %p114, %s115, %s116
    %p120 = pneg %p114
    %p121 = scmp.eq.s32.totalorder %s11, 3
    %p122 = por %p120, %p121
    %p123 = scmp.ne.s32.totalorder %s115, %s118
    %p124 = scmp.eq.s32.totalorder %s11, 0
    %p125 = por %p123, %p124
    %p126 = scmp.ne.s32.totalorder %s115, %s118
    %p127 = scmp.eq.s32.totalorder %s16, 3
    %p128 = por %p126, %p127
    %p129 = scmp.ne.s32.totalorder %s118, %s119
    %p130 = scmp.eq.s32.totalorder %s16, 0
    %p131 = por %p129, %p130
    %p132 = scmp.ne.s32.totalorder %s118, %s119
    %p133 = scmp.eq.s32.totalorder %s17, 3
    %p134 = por %p132, %p133
    %p136 = scmp.ne.s32.totalorder %s119, %s135
    %p137 = scmp.eq.s32.totalorder %s17, 0
    %p138 = por %p136, %p137
    %s139 = ssub.s32 %s18, %s30
    %p140 = scmp.eq.s32.totalorder %s139, 0
    %s142 = sadd.s32 %s141, 1
    %s143 = scalar_select %p140, %s141, %s142
    %p146 = pneg %p140
    %p147 = scmp.eq.s32.totalorder %s11, 3
    %p148 = por %p146, %p147
    %p149 = scmp.ne.s32.totalorder %s141, %s144
    %p150 = scmp.eq.s32.totalorder %s11, 0
    %p151 = por %p149, %p150
    %p152 = scmp.ne.s32.totalorder %s141, %s144
    %p153 = scmp.eq.s32.totalorder %s16, 3
    %p154 = por %p152, %p153
    %p155 = scmp.ne.s32.totalorder %s144, %s145
    %p156 = scmp.eq.s32.totalorder %s16, 0
    %p157 = por %p155, %p156
    %p158 = scmp.ne.s32.totalorder %s144, %s145
    %p159 = scmp.eq.s32.totalorder %s17, 3
    %p160 = por %p158, %p159
    %p162 = scmp.ne.s32.totalorder %s145, %s161
    %p163 = scmp.eq.s32.totalorder %s17, 0
    %p164 = por %p162, %p163
    %p165 = scmp.le.s32.totalorder 1, %s11
    %p166 = scmp.lt.s32.totalorder %s11, 5
    %p167 = pnand %p165, %p166
    %p168 = pneg %p167
    // Predicated region
    $region9: #{stage1_generator_forward.9} parent=5 // pred_check
      _
    $region10: #{stage1_generator_forward.9} parent=5 // pred_check_branch
      %170 = sbr.rel (%p167) target = $region12
    $region11: #{stage1_generator_forward.9} parent=5 // pred_region
      %s171 = ssub.s32 %s11, 1
    $region12: #{stage1_generator_forward.9} parent=5 // pred_fallthru
      _
    %p172 = scmp.lt.s32.totalorder %s11, 4
    // Predicated region
    $region13: #{stage1_generator_forward.9} parent=5 // pred_check
      %p173 = pneg %p172
    $region14: #{stage1_generator_forward.9} parent=5 // pred_check_branch
      %175 = sbr.rel (%p173) target = $region16
    $region15: #{stage1_generator_forward.9} parent=5 // pred_region
      // Predicated region
      $region17: #{stage1_generator_forward.9} parent=15 // pred_check
        %p176 = pneg %p45
      $region18: #{stage1_generator_forward.9} parent=15 // pred_check_branch
        %178 = sbr.rel (%p176) target = $region20
      $region19: #{stage1_generator_forward.9} parent=15 // pred_region
        %s179 = smul.u32 4, %s19
        %p180 = scmp.lt.s32.totalorder %s18, 3
        %s181 = scalar_select %p180, %s18, 3
        %p182 = scmp.lt.s32.totalorder %s179, 3
        %s183 = scalar_select %p182, %s179, 3
        %s184 = smul.addr %s183, 2
        %s185 = smul.addr %s181, 8
        %s186 = sadd.s32 %s184, %s185
        %s187 = smul.addr %s186, 4
        %s188 = scalar_lea.vmem %s0, %s187
        %s189 = smul.u32 4, %s19
      $region20: #{stage1_generator_forward.9} parent=15 // pred_fallthru
        _
      // Predicated region
      $region21: #{stage1_generator_forward.9} parent=15 // pred_check
        %p190 = pneg %p71
      $region22: #{stage1_generator_forward.9} parent=15 // pred_check_branch
        %192 = sbr.rel (%p190) target = $region24
      $region23: #{stage1_generator_forward.9} parent=15 // pred_region
        %p193 = scmp.lt.s32.totalorder %s18, 3
        %s194 = scalar_select %p193, %s18, 3
        %s195 = smul.addr %s194, 32
        %s196 = smul.addr %s195, 4
        %s197 = scalar_lea.vmem %s1, %s196
      $region24: #{stage1_generator_forward.9} parent=15 // pred_fallthru
        _
    $region16: #{stage1_generator_forward.9} parent=5 // pred_fallthru
      _
    %p198 = scmp.le.s32.totalorder 1, %s11
    %p199 = scmp.lt.s32.totalorder %s11, 5
    %p200 = pnand %p198, %p199
    %p201 = pneg %p200
    // Predicated region
    $region25: #{stage1_generator_forward.9} parent=5 // pred_check
      _
    $region26: #{stage1_generator_forward.9} parent=5 // pred_check_branch
      %203 = sbr.rel (%p200) target = $region28
    $region27: #{stage1_generator_forward.9} parent=5 // pred_region
      %s204 = ssub.s32 %s11, 1
      %s205 = smul.u32 4, %s21
      %p206 = scmp.lt.s32.totalorder %s20, 3
      %s207 = scalar_select %p206, %s20, 3
      %p208 = scmp.lt.s32.totalorder %s205, 3
      %s209 = scalar_select %p208, %s205, 3
      %s210 = smul.addr %s209, 2
      %s211 = smul.addr %s207, 8
      %s212 = sadd.s32 %s210, %s211
      %s213 = smul.addr %s212, 4
      %s214 = scalar_lea.vmem %s0, %s213
      %p215 = pneg %p51
      %p216 = pneg %p48
      %p217 = scmp.lt.s32.totalorder %s20, 3
      %s218 = scalar_select %p217, %s20, 3
      %s219 = smul.addr %s218, 32
      %s220 = smul.addr %s219, 4
      %s221 = scalar_lea.vmem %s1, %s220
      %p222 = pneg %p77
      %p223 = pneg %p74
      %p224 = pneg %p105
      %p225 = pneg %p102
      %s226 = smul.u32 4, %s21
      %p227 = scmp.lt.s32.totalorder %s20, 3
      %s228 = scalar_select %p227, %s20, 3
      %p229 = scmp.lt.s32.totalorder %s226, 3
      %s230 = scalar_select %p229, %s226, 3
      %s231 = smul.addr %s228, 4
      %s232 = sadd.s32 %s230, %s231
      %s233 = smul.addr %s232, 8
      %s234 = scalar_lea.vmem %s2, %s233
      %p235 = pneg %p131
      %p236 = pneg %p128
      %p237 = scmp.lt.s32.totalorder %s20, 3
      %s238 = scalar_select %p237, %s20, 3
      %s239 = scalar_lea.vmem %s3, %s238
      %p240 = pneg %p157
      %p241 = pneg %p154
      %p242 = scmp.lt.s32.totalorder %s20, 3
      %s243 = scalar_select %p242, %s20, 3
      %s244 = scalar_lea.vmem %s4, %s243
      %s245 = smul.u32 4, %s21
      %p246 = scmp.lt.s32.totalorder %s20, 3
      %s247 = scalar_select %p246, %s20, 3
      %p248 = scmp.lt.s32.totalorder %s245, 3
      %s249 = scalar_select %p248, %s245, 3
      %s250 = smul.addr %s249, 2
      %s251 = smul.addr %s247, 8
      %s252 = sadd.s32 %s250, %s251
      %s253 = smul.addr %s252, 4
      %s254 = scalar_lea.vmem %s0, %s253
      %s255 = smul.u32 4, %s21
      %p256 = scmp.lt.s32.totalorder %s20, 3
      %s257 = scalar_select %p256, %s20, 3
      %s258 = smul.addr %s257, 32
      %s259 = smul.addr %s258, 4
      %s260 = scalar_lea.vmem %s1, %s259
      %s261 = smul.u32 4, %s21
      %p262 = scmp.lt.s32.totalorder %s20, 3
      %s263 = scalar_select %p262, %s20, 3
      %p264 = scmp.lt.s32.totalorder %s261, 3
      %s265 = scalar_select %p264, %s261, 3
      %s266 = smul.addr %s263, 4
      %s267 = sadd.s32 %s265, %s266
      %s268 = smul.addr %s267, 8
      %s269 = scalar_lea.vmem %s2, %s268
      %s270 = smul.u32 4, %s21
      %p271 = scmp.lt.s32.totalorder %s20, 3
      %s272 = scalar_select %p271, %s20, 3
      %s273 = scalar_lea.vmem %s3, %s272
      %p274 = scmp.lt.s32.totalorder %s20, 3
      %s275 = scalar_select %p274, %s20, 3
      %s276 = scalar_lea.vmem %s4, %s275
      %p278 = scmp.eq.s32.totalorder %s21, 0
      // Predicated region
      $region29: #{stage1_generator_forward.9} parent=27 // pred_check
        %p279 = pneg %p278
      $region30: #{stage1_generator_forward.9} parent=27 // pred_check_branch
        %281 = sbr.rel (%p279) target = $region32
      $region31: #{stage1_generator_forward.9} parent=27 // pred_region
        %vm282 = vcmask 253952
        %283 = vst.msk [vmem:[%s273] sm:$0x1] %vm282, 0.0
        %284 = vst.msk [vmem:[%s276] sm:$0x1] %vm282, 0.0
      $region32: #{stage1_generator_forward.9} parent=27 // pred_fallthru
        _
      %v285 = vld [vmem:[%s254] sm:$0xff]
      %v286 = vld [vmem:[%s254 + $0x8] sm:$0xff]
      %v287 = vld [vmem:[%s254 + $0x10] sm:$0xff]
      %v288 = vld [vmem:[%s254 + $0x18] sm:$0xff]
      %v289 = vld [vmem:[%s260] sm:$0xf]
      %v290 = vld [vmem:[%s260 + $0x4] sm:$0xf]
      %v291 = vld [vmem:[%s260 + $0x8] sm:$0xf]
      %v292 = vld [vmem:[%s260 + $0xc] sm:$0xf]
      %v293 = vld [vmem:[%s260 + $0x10] sm:$0xf]
      %v294 = vld [vmem:[%s260 + $0x14] sm:$0xf]
      %v295 = vld [vmem:[%s260 + $0x18] sm:$0xf]
      %v296 = vld [vmem:[%s260 + $0x1c] sm:$0xf]
      %v297 = vld [vmem:[%s260 + $0x20] sm:$0xf]
      %v298 = vld [vmem:[%s260 + $0x24] sm:$0xf]
      %v299 = vld [vmem:[%s260 + $0x28] sm:$0xf]
      %v300 = vld [vmem:[%s260 + $0x2c] sm:$0xf]
      %v301 = vld [vmem:[%s260 + $0x30] sm:$0xf]
      %v302 = vld [vmem:[%s260 + $0x34] sm:$0xf]
      %v303 = vld [vmem:[%s260 + $0x38] sm:$0xf]
      %v304 = vld [vmem:[%s260 + $0x3c] sm:$0xf]
      %v305 = vld [vmem:[%s260 + $0x40] sm:$0xf]
      %v306 = vld [vmem:[%s260 + $0x44] sm:$0xf]
      %v307 = vld [vmem:[%s260 + $0x48] sm:$0xf]
      %v308 = vld [vmem:[%s260 + $0x4c] sm:$0xf]
      %v309 = vld [vmem:[%s260 + $0x50] sm:$0xf]
      %v310 = vld [vmem:[%s260 + $0x54] sm:$0xf]
      %v311 = vld [vmem:[%s260 + $0x58] sm:$0xf]
      %v312 = vld [vmem:[%s260 + $0x5c] sm:$0xf]
      %v313 = vld [vmem:[%s260 + $0x60] sm:$0xf]
      %v314 = vld [vmem:[%s260 + $0x64] sm:$0xf]
      %v315 = vld [vmem:[%s260 + $0x68] sm:$0xf]
      %v316 = vld [vmem:[%s260 + $0x6c] sm:$0xf]
      %v317 = vld [vmem:[%s260 + $0x70] sm:$0xf]
      %v318 = vld [vmem:[%s260 + $0x74] sm:$0xf]
      %v319 = vld [vmem:[%s260 + $0x78] sm:$0xf]
      %v320 = vld [vmem:[%s260 + $0x7c] sm:$0xf]
      %v325 = vunpack.c.l.b16 %v285
      %v326 = vunpack.c.h.b16 %v285
      %v327 = vunpack.c.l.b16 %v286
      %v328 = vunpack.c.h.b16 %v286
      %v329 = vunpack.c.l.b16 %v287
      %v330 = vunpack.c.h.b16 %v287
      %v331 = vunpack.c.l.b16 %v288
      %v332 = vunpack.c.h.b16 %v288
      %v333 = vpack.c.b16 %v327, %v325
      %v334 = vpack.c.b16 %v328, %v326
      %v335 = vpack.c.b16 %v331, %v329
      %v336 = vpack.c.b16 %v332, %v330
      %v373 = vunpack.c.l.b16 %v289
      %v374 = vunpack.c.l.b16 %v290
      %v375 = vunpack.c.l.b16 %v291
      %v376 = vunpack.c.l.b16 %v292
      %v377 = vunpack.c.l.b16 %v293
      %v378 = vunpack.c.l.b16 %v294
      %v379 = vunpack.c.l.b16 %v295
      %v380 = vunpack.c.l.b16 %v296
      %v381 = vunpack.c.l.b16 %v297
      %v382 = vunpack.c.l.b16 %v298
      %v383 = vunpack.c.l.b16 %v299
      %v384 = vunpack.c.l.b16 %v300
      %v385 = vunpack.c.l.b16 %v301
      %v386 = vunpack.c.l.b16 %v302
      %v387 = vunpack.c.l.b16 %v303
      %v388 = vunpack.c.l.b16 %v304
      %v389 = vunpack.c.l.b16 %v305
      %v390 = vunpack.c.l.b16 %v306
      %v391 = vunpack.c.l.b16 %v307
      %v392 = vunpack.c.l.b16 %v308
      %v393 = vunpack.c.l.b16 %v309
      %v394 = vunpack.c.l.b16 %v310
      %v395 = vunpack.c.l.b16 %v311
      %v396 = vunpack.c.l.b16 %v312
      %v397 = vunpack.c.l.b16 %v313
      %v398 = vunpack.c.l.b16 %v314
      %v399 = vunpack.c.l.b16 %v315
      %v400 = vunpack.c.l.b16 %v316
      %v401 = vunpack.c.l.b16 %v317
      %v402 = vunpack.c.l.b16 %v318
      %v403 = vunpack.c.l.b16 %v319
      %v404 = vunpack.c.l.b16 %v320
      %v405 = vpack.c.b16 %v374, %v373
      %v406 = vpack.c.b16 %v376, %v375
      %v407 = vpack.c.b16 %v378, %v377
      %v408 = vpack.c.b16 %v380, %v379
      %v409 = vpack.c.b16 %v382, %v381
      %v410 = vpack.c.b16 %v384, %v383
      %v411 = vpack.c.b16 %v386, %v385
      %v412 = vpack.c.b16 %v388, %v387
      %v413 = vpack.c.b16 %v390, %v389
      %v414 = vpack.c.b16 %v392, %v391
      %v415 = vpack.c.b16 %v394, %v393
      %v416 = vpack.c.b16 %v396, %v395
      %v417 = vpack.c.b16 %v398, %v397
      %v418 = vpack.c.b16 %v400, %v399
      %v419 = vpack.c.b16 %v402, %v401
      %v420 = vpack.c.b16 %v404, %v403
      %437 = vmatprep.subr.bf16.mxu0 0
      %438 = vmatpush1.bf16.msra.mxu0 %v412
      %439 = vmatprep.subr.bf16.mxu0 0
      %440 = vmatpush1.bf16.msra.mxu0 %v411
      %441 = vmatprep.subr.bf16.mxu0 0
      %442 = vmatpush1.bf16.msra.mxu0 %v410
      %443 = vmatprep.subr.bf16.mxu0 0
      %444 = vmatpush1.bf16.msra.mxu0 %v409
      %445 = vmatprep.subr.bf16.mxu0 0
      %446 = vmatpush1.bf16.msra.mxu0 %v408
      %447 = vmatprep.subr.bf16.mxu0 0
      %448 = vmatpush1.bf16.msra.mxu0 %v407
      %449 = vmatprep.subr.bf16.mxu0 0
      %450 = vmatpush1.bf16.msra.mxu0 %v406
      %451 = vmatprep.subr.bf16.mxu0 0
      %452 = vmatpush1.bf16.msra.mxu0 %v405
      %453 = vmatprep.subr.bf16.mxu0 0
      %454 = vmatpush2.bf16.msra.mxu0 %v420
      %455 = vmatprep.subr.bf16.mxu0 0
      %456 = vmatpush2.bf16.msra.mxu0 %v419
      %457 = vmatprep.subr.bf16.mxu0 0
      %458 = vmatpush2.bf16.msra.mxu0 %v418
      %459 = vmatprep.subr.bf16.mxu0 0
      %460 = vmatpush2.bf16.msra.mxu0 %v417
      %461 = vmatprep.subr.bf16.mxu0 0
      %462 = vmatpush2.bf16.msra.mxu0 %v416
      %463 = vmatprep.subr.bf16.mxu0 0
      %464 = vmatpush2.bf16.msra.mxu0 %v415
      %465 = vmatprep.subr.bf16.mxu0 0
      %466 = vmatpush2.bf16.msra.mxu0 %v414
      %467 = vmatprep.subr.bf16.mxu0 0
      %468 = vmatpush2.bf16.msra.mxu0 %v413
      %469 = vmatprep.mubr.bf16.mxu0 %v334
      %470 = vmatmul.mubr.bf16.gmra.mxu0 %v333
      %v471 = vpop.f32.mrf.mxu0
      %v472 = vadd.f32 0.0, %v471
      %v473 = vpop.f32.mrf.mxu0
      %v474 = vpop.f32.mrf.mxu0
      %v475 = vadd.f32 0.0, %v474
      %v476 = vpop.f32.mrf.mxu0
      %477 = vmatprep.mubr.bf16.mxu0 %v336
      %478 = vmatmul.mubr.bf16.gmra.mxu0 %v335
      %v479 = vpop.f32.mrf.mxu0
      %v480 = vadd.f32 0.0, %v479
      %v481 = vpop.f32.mrf.mxu0
      %v482 = vpop.f32.mrf.mxu0
      %v483 = vadd.f32 0.0, %v482
      %v484 = vpop.f32.mrf.mxu0
      %485 = vdwg.mxu0
      %vm486 = vcmask 261120
      %487 = vst.msk [vmem:[%s269] sm:$0xff] %vm486, %v472
      %488 = vst.msk [vmem:[%s269 + $0x8] sm:$0xff] %vm486, %v475
      %489 = vst.msk [vmem:[%s269 + $0x10] sm:$0xff] %vm486, %v480
      %490 = vst.msk [vmem:[%s269 + $0x18] sm:$0xff] %vm486, %v483
      %v491 = vld [vmem:[%s273] sm:$0x1]
      %v492 = vsel %vm486, %v472, 0.0
      %v493 = vsel %vm486, %v475, 0.0
      %v494 = vadd.f32 %v492, %v493
      %v495 = vsel %vm486, %v480, 0.0
      %v496 = vadd.f32 %v494, %v495
      %v497 = vsel %vm486, %v483, 0.0
      %v498 = vadd.f32 %v496, %v497
      %v499 = vrot.slane %v498, 4
      %v500 = vadd.f32 %v498, %v499
      %v501 = vrot.slane %v500, 2
      %v502 = vadd.f32 %v500, %v501
      %v503 = vrot.slane %v502, 1
      %v504 = vadd.f32 %v502, %v503
      %v505 = vadd.f32 %v491, %v504
      %vm506 = vcmask 253952
      %507 = vst.msk [vmem:[%s273] sm:$0x1] %vm506, %v505
      %v508 = vld [vmem:[%s276] sm:$0x1]
      %v509 = vmul.f32 %v472, %v472
      %v510 = vmul.f32 %v475, %v475
      %v511 = vmul.f32 %v480, %v480
      %v512 = vmul.f32 %v483, %v483
      %v513 = vsel %vm486, %v509, 0.0
      %v514 = vsel %vm486, %v510, 0.0
      %v515 = vadd.f32 %v513, %v514
      %v516 = vsel %vm486, %v511, 0.0
      %v517 = vadd.f32 %v515, %v516
      %v518 = vsel %vm486, %v512, 0.0
      %v519 = vadd.f32 %v517, %v518
      %v520 = vrot.slane %v519, 4
      %v521 = vadd.f32 %v519, %v520
      %v522 = vrot.slane %v521, 2
      %v523 = vadd.f32 %v521, %v522
      %v524 = vrot.slane %v523, 1
      %v525 = vadd.f32 %v523, %v524
      %v526 = vadd.f32 %v508, %v525
      %527 = vst.msk [vmem:[%s276] sm:$0x1] %vm506, %v526
      %s528 = smul.u32 4, %s21
      %p529 = scmp.lt.s32.totalorder %s20, 3
      %s530 = scalar_select %p529, %s20, 3
      %p531 = scmp.lt.s32.totalorder %s528, 3
      %s532 = scalar_select %p531, %s528, 3
      %s533 = smul.addr %s530, 4
      %s534 = sadd.s32 %s532, %s533
      %s535 = smul.addr %s534, 8
      %s536 = scalar_lea.vmem %s2, %s535
      %p537 = scmp.lt.s32.totalorder %s20, 3
      %s538 = scalar_select %p537, %s20, 3
      %s539 = scalar_lea.vmem %s3, %s538
      %p540 = scmp.lt.s32.totalorder %s20, 3
      %s541 = scalar_select %p540, %s20, 3
      %s542 = scalar_lea.vmem %s4, %s541
      // Predicated region
      $region33: #{stage1_generator_forward.9} parent=27 // pred_check
        %p543 = pneg %p102
      $region34: #{stage1_generator_forward.9} parent=27 // pred_check_branch
        %545 = sbr.rel (%p543) target = $region36
      $region35: #{stage1_generator_forward.9} parent=27 // pred_region
        %s546 = smul.u32 4, %s21
      $region36: #{stage1_generator_forward.9} parent=27 // pred_fallthru
        _
      // Predicated region
      $region37: #{stage1_generator_forward.9} parent=27 // pred_check
        %p547 = pneg %p128
      $region38: #{stage1_generator_forward.9} parent=27 // pred_check_branch
        %549 = sbr.rel (%p547) target = $region40
      $region39: #{stage1_generator_forward.9} parent=27 // pred_region
        _
      $region40: #{stage1_generator_forward.9} parent=27 // pred_fallthru
        _
      // Predicated region
      $region41: #{stage1_generator_forward.9} parent=27 // pred_check
        %p550 = pneg %p154
      $region42: #{stage1_generator_forward.9} parent=27 // pred_check_branch
        %552 = sbr.rel (%p550) target = $region44
      $region43: #{stage1_generator_forward.9} parent=27 // pred_region
        _
      $region44: #{stage1_generator_forward.9} parent=27 // pred_fallthru
        _
    $region28: #{stage1_generator_forward.9} parent=5 // pred_fallthru
      _
    %p553 = scmp.le.s32.totalorder 2, %s11
    // Predicated region
    $region45: #{stage1_generator_forward.9} parent=5 // pred_check
      %p554 = pneg %p553
    $region46: #{stage1_generator_forward.9} parent=5 // pred_check_branch
      %556 = sbr.rel (%p554) target = $region48
    $region47: #{stage1_generator_forward.9} parent=5 // pred_region
      %s557 = ssub.s32 %s11, 2
      // Predicated region
      $region49: #{stage1_generator_forward.9} parent=47 // pred_check
        %p558 = pneg %p108
      $region50: #{stage1_generator_forward.9} parent=47 // pred_check_branch
        %560 = sbr.rel (%p558) target = $region52
      $region51: #{stage1_generator_forward.9} parent=47 // pred_region
        %s561 = smul.u32 4, %s23
        %p562 = scmp.lt.s32.totalorder %s22, 3
        %s563 = scalar_select %p562, %s22, 3
        %p564 = scmp.lt.s32.totalorder %s561, 3
        %s565 = scalar_select %p564, %s561, 3
        %s566 = smul.addr %s563, 4
        %s567 = sadd.s32 %s565, %s566
        %s568 = smul.addr %s567, 8
        %s569 = scalar_lea.vmem %s2, %s568
      $region52: #{stage1_generator_forward.9} parent=47 // pred_fallthru
        _
      // Predicated region
      $region53: #{stage1_generator_forward.9} parent=47 // pred_check
        %p570 = pneg %p134
      $region54: #{stage1_generator_forward.9} parent=47 // pred_check_branch
        %572 = sbr.rel (%p570) target = $region56
      $region55: #{stage1_generator_forward.9} parent=47 // pred_region
        %p573 = scmp.lt.s32.totalorder %s22, 3
        %s574 = scalar_select %p573, %s22, 3
        %s575 = scalar_lea.vmem %s3, %s574
      $region56: #{stage1_generator_forward.9} parent=47 // pred_fallthru
        _
      // Predicated region
      $region57: #{stage1_generator_forward.9} parent=47 // pred_check
        %p576 = pneg %p160
      $region58: #{stage1_generator_forward.9} parent=47 // pred_check_branch
        %578 = sbr.rel (%p576) target = $region60
      $region59: #{stage1_generator_forward.9} parent=47 // pred_region
        %p579 = scmp.lt.s32.totalorder %s22, 3
        %s580 = scalar_select %p579, %s22, 3
        %s581 = scalar_lea.vmem %s4, %s580
      $region60: #{stage1_generator_forward.9} parent=47 // pred_fallthru
        _
    $region48: #{stage1_generator_forward.9} parent=5 // pred_fallthru
      _
  $region6: #{stage1_generator_forward.9} parent=0 // loop_footer
    %s15 = sadd.s32 1, %s11
  $region7: #{stage1_generator_forward.9} parent=0 // loop_footer_branch
    %10 = sbr.rel target = $region3
  $region8: #{stage1_generator_forward.9} parent=0 // loop_exit
    _

// kernel: stage1_generator_forward.11
$region0: #{stage1_generator_forward.11}
  #allocation0 [shape = 'u32[]', space=smem, size = 0x4, offset = 0x4, fixed_abs, tag = 'smem constant byte address 0x4 - core index']
  #allocation1 [shape = 'u32[144,128]{1,0:T(1,128)}', space=vmem, size = 0x12000, scoped, tag = 'internal scratch']
  %s0 = inlined_call_operand.vmem [shape: bf16[4,128,128], index: 0, kind: input, shape index: {}]
  %s1 = inlined_call_operand.vmem [shape: bf16[4,128,16], index: 1, kind: input, shape index: {}]
  %s2 = inlined_call_operand.vmem [shape: f32[4,128,16], index: 2, kind: output, shape index: {0}]
  %s3 = inlined_call_operand.vmem [shape: f32[4,1,16], index: 3, kind: output, shape index: {1}]
  %s4 = inlined_call_operand.vmem [shape: f32[4,1,16], index: 4, kind: output, shape index: {2}]
  %5 = xla_tuple %s2, %s3, %s4
  %s6 = sld [smem:[#allocation0]]
  $region61: #{stage1_generator_forward.11} parent=0
    _
  %s8 = ssub.s32 1, %s6
  %s9 = scalar_select 0, %s8, %s6
  loop: start=0, step=1, limit=6
  $region2: #{stage1_generator_forward.11} parent=0 // loop_pre_header
    _
  $region3: #{stage1_generator_forward.11} parent=0 // loop_header
    %s11 = sphi 0, %s15
    %p12 = scmp.ge.s32.totalorder %s11, 6
    %s18 = sphi 0, %s30
    %s19 = sphi 0, %s26
    %s20 = sphi 0, %s18
    %s21 = sphi 0, %s19
    %s22 = sphi 0, %s20
    %s23 = sphi 0, %s21
    %s35 = sphi 0, %s37
    %s38 = sphi 0, %s35
    %s39 = sphi 0, %s38
    %s55 = sphi 0, %s39
    %s61 = sphi 0, %s63
    %s64 = sphi 0, %s61
    %s65 = sphi 0, %s64
    %s81 = sphi 0, %s65
    %s89 = sphi 0, %s91
    %s92 = sphi 0, %s89
    %s93 = sphi 0, %s92
    %s109 = sphi 0, %s93
    %s115 = sphi 0, %s117
    %s118 = sphi 0, %s115
    %s119 = sphi 0, %s118
    %s135 = sphi 0, %s119
    %s141 = sphi 0, %s143
    %s144 = sphi 0, %s141
    %s145 = sphi 0, %s144
    %s161 = sphi 0, %s145
  $region4: #{stage1_generator_forward.11} parent=0 // loop_header_branch
    %14 = sbr.rel (%p12) target = $region8
  $region5: #{stage1_generator_forward.11} parent=0 // loop_body
    %s16 = ssub.s32 %s11, 1
    %s17 = ssub.s32 %s11, 2
    %s24 = sadd.s32 1, %s19
    %p25 = scmp.ge.s32.totalorder %s24, 1
    %s26 = scalar_select %p25, 0, %s24
    %s27 = sadd.s32 1, %s18
    %s28 = scalar_select %p25, %s27, %s18
    %p29 = scmp.ge.s32.totalorder %s28, 4
    %s30 = scalar_select %p29, 0, %s28
    %s31 = ssub.s32 %s18, %s30
    %s32 = ssub.s32 %s19, %s26
    %s33 = sor.u32 %s31, %s32
    %p34 = scmp.eq.s32.totalorder %s33, 0
    %s36 = sadd.s32 %s35, 1
    %s37 = scalar_select %p34, %s35, %s36
    %p40 = pneg %p34
    %p41 = scmp.eq.s32.totalorder %s11, 3
    %p42 = por %p40, %p41
    %p43 = scmp.ne.s32.totalorder %s35, %s38
    %p44 = scmp.eq.s32.totalorder %s11, 0
    %p45 = por %p43, %p44
    %p46 = scmp.ne.s32.totalorder %s35, %s38
    %p47 = scmp.eq.s32.totalorder %s16, 3
    %p48 = por %p46, %p47
    %p49 = scmp.ne.s32.totalorder %s38, %s39
    %p50 = scmp.eq.s32.totalorder %s16, 0
    %p51 = por %p49, %p50
    %p52 = scmp.ne.s32.totalorder %s38, %s39
    %p53 = scmp.eq.s32.totalorder %s17, 3
    %p54 = por %p52, %p53
    %p56 = scmp.ne.s32.totalorder %s39, %s55
    %p57 = scmp.eq.s32.totalorder %s17, 0
    %p58 = por %p56, %p57
    %s59 = ssub.s32 %s18, %s30
    %p60 = scmp.eq.s32.totalorder %s59, 0
    %s62 = sadd.s32 %s61, 1
    %s63 = scalar_select %p60, %s61, %s62
    %p66 = pneg %p60
    %p67 = scmp.eq.s32.totalorder %s11, 3
    %p68 = por %p66, %p67
    %p69 = scmp.ne.s32.totalorder %s61, %s64
    %p70 = scmp.eq.s32.totalorder %s11, 0
    %p71 = por %p69, %p70
    %p72 = scmp.ne.s32.totalorder %s61, %s64
    %p73 = scmp.eq.s32.totalorder %s16, 3
    %p74 = por %p72, %p73
    %p75 = scmp.ne.s32.totalorder %s64, %s65
    %p76 = scmp.eq.s32.totalorder %s16, 0
    %p77 = por %p75, %p76
    %p78 = scmp.ne.s32.totalorder %s64, %s65
    %p79 = scmp.eq.s32.totalorder %s17, 3
    %p80 = por %p78, %p79
    %p82 = scmp.ne.s32.totalorder %s65, %s81
    %p83 = scmp.eq.s32.totalorder %s17, 0
    %p84 = por %p82, %p83
    %s85 = ssub.s32 %s18, %s30
    %s86 = ssub.s32 %s19, %s26
    %s87 = sor.u32 %s85, %s86
    %p88 = scmp.eq.s32.totalorder %s87, 0
    %s90 = sadd.s32 %s89, 1
    %s91 = scalar_select %p88, %s89, %s90
    %p94 = pneg %p88
    %p95 = scmp.eq.s32.totalorder %s11, 3
    %p96 = por %p94, %p95
    %p97 = scmp.ne.s32.totalorder %s89, %s92
    %p98 = scmp.eq.s32.totalorder %s11, 0
    %p99 = por %p97, %p98
    %p100 = scmp.ne.s32.totalorder %s89, %s92
    %p101 = scmp.eq.s32.totalorder %s16, 3
    %p102 = por %p100, %p101
    %p103 = scmp.ne.s32.totalorder %s92, %s93
    %p104 = scmp.eq.s32.totalorder %s16, 0
    %p105 = por %p103, %p104
    %p106 = scmp.ne.s32.totalorder %s92, %s93
    %p107 = scmp.eq.s32.totalorder %s17, 3
    %p108 = por %p106, %p107
    %p110 = scmp.ne.s32.totalorder %s93, %s109
    %p111 = scmp.eq.s32.totalorder %s17, 0
    %p112 = por %p110, %p111
    %s113 = ssub.s32 %s18, %s30
    %p114 = scmp.eq.s32.totalorder %s113, 0
    %s116 = sadd.s32 %s115, 1
    %s117 = scalar_select %p114, %s115, %s116
    %p120 = pneg %p114
    %p121 = scmp.eq.s32.totalorder %s11, 3
    %p122 = por %p120, %p121
    %p123 = scmp.ne.s32.totalorder %s115, %s118
    %p124 = scmp.eq.s32.totalorder %s11, 0
    %p125 = por %p123, %p124
    %p126 = scmp.ne.s32.totalorder %s115, %s118
    %p127 = scmp.eq.s32.totalorder %s16, 3
    %p128 = por %p126, %p127
    %p129 = scmp.ne.s32.totalorder %s118, %s119
    %p130 = scmp.eq.s32.totalorder %s16, 0
    %p131 = por %p129, %p130
    %p132 = scmp.ne.s32.totalorder %s118, %s119
    %p133 = scmp.eq.s32.totalorder %s17, 3
    %p134 = por %p132, %p133
    %p136 = scmp.ne.s32.totalorder %s119, %s135
    %p137 = scmp.eq.s32.totalorder %s17, 0
    %p138 = por %p136, %p137
    %s139 = ssub.s32 %s18, %s30
    %p140 = scmp.eq.s32.totalorder %s139, 0
    %s142 = sadd.s32 %s141, 1
    %s143 = scalar_select %p140, %s141, %s142
    %p146 = pneg %p140
    %p147 = scmp.eq.s32.totalorder %s11, 3
    %p148 = por %p146, %p147
    %p149 = scmp.ne.s32.totalorder %s141, %s144
    %p150 = scmp.eq.s32.totalorder %s11, 0
    %p151 = por %p149, %p150
    %p152 = scmp.ne.s32.totalorder %s141, %s144
    %p153 = scmp.eq.s32.totalorder %s16, 3
    %p154 = por %p152, %p153
    %p155 = scmp.ne.s32.totalorder %s144, %s145
    %p156 = scmp.eq.s32.totalorder %s16, 0
    %p157 = por %p155, %p156
    %p158 = scmp.ne.s32.totalorder %s144, %s145
    %p159 = scmp.eq.s32.totalorder %s17, 3
    %p160 = por %p158, %p159
    %p162 = scmp.ne.s32.totalorder %s145, %s161
    %p163 = scmp.eq.s32.totalorder %s17, 0
    %p164 = por %p162, %p163
    %p165 = scmp.le.s32.totalorder 1, %s11
    %p166 = scmp.lt.s32.totalorder %s11, 5
    %p167 = pnand %p165, %p166
    %p168 = pneg %p167
    // Predicated region
    $region9: #{stage1_generator_forward.11} parent=5 // pred_check
      _
    $region10: #{stage1_generator_forward.11} parent=5 // pred_check_branch
      %170 = sbr.rel (%p167) target = $region12
    $region11: #{stage1_generator_forward.11} parent=5 // pred_region
      %s171 = ssub.s32 %s11, 1
    $region12: #{stage1_generator_forward.11} parent=5 // pred_fallthru
      _
    %p172 = scmp.lt.s32.totalorder %s11, 4
    // Predicated region
    $region13: #{stage1_generator_forward.11} parent=5 // pred_check
      %p173 = pneg %p172
    $region14: #{stage1_generator_forward.11} parent=5 // pred_check_branch
      %175 = sbr.rel (%p173) target = $region16
    $region15: #{stage1_generator_forward.11} parent=5 // pred_region
      // Predicated region
      $region17: #{stage1_generator_forward.11} parent=15 // pred_check
        %p176 = pneg %p45
      $region18: #{stage1_generator_forward.11} parent=15 // pred_check_branch
        %178 = sbr.rel (%p176) target = $region20
      $region19: #{stage1_generator_forward.11} parent=15 // pred_region
        %s179 = smul.u32 16, %s19
        %p180 = scmp.lt.s32.totalorder %s18, 3
        %s181 = scalar_select %p180, %s18, 3
        %p182 = scmp.lt.s32.totalorder %s179, 15
        %s183 = scalar_select %p182, %s179, 15
        %s184 = smul.addr %s181, 16
        %s185 = sadd.s32 %s183, %s184
        %s186 = smul.addr %s185, 4
        %s187 = scalar_lea.vmem %s0, %s186
        %s188 = smul.u32 16, %s19
      $region20: #{stage1_generator_forward.11} parent=15 // pred_fallthru
        _
      // Predicated region
      $region21: #{stage1_generator_forward.11} parent=15 // pred_check
        %p189 = pneg %p71
      $region22: #{stage1_generator_forward.11} parent=15 // pred_check_branch
        %191 = sbr.rel (%p189) target = $region24
      $region23: #{stage1_generator_forward.11} parent=15 // pred_region
        %p192 = scmp.lt.s32.totalorder %s18, 3
        %s193 = scalar_select %p192, %s18, 3
        %s194 = smul.addr %s193, 16
        %s195 = smul.addr %s194, 4
        %s196 = scalar_lea.vmem %s1, %s195
      $region24: #{stage1_generator_forward.11} parent=15 // pred_fallthru
        _
    $region16: #{stage1_generator_forward.11} parent=5 // pred_fallthru
      _
    %p197 = scmp.le.s32.totalorder 1, %s11
    %p198 = scmp.lt.s32.totalorder %s11, 5
    %p199 = pnand %p197, %p198
    %p200 = pneg %p199
    // Predicated region
    $region25: #{stage1_generator_forward.11} parent=5 // pred_check
      _
    $region26: #{stage1_generator_forward.11} parent=5 // pred_check_branch
      %202 = sbr.rel (%p199) target = $region28
    $region27: #{stage1_generator_forward.11} parent=5 // pred_region
      %s203 = ssub.s32 %s11, 1
      %s204 = smul.u32 16, %s21
      %p205 = scmp.lt.s32.totalorder %s20, 3
      %s206 = scalar_select %p205, %s20, 3
      %p207 = scmp.lt.s32.totalorder %s204, 15
      %s208 = scalar_select %p207, %s204, 15
      %s209 = smul.addr %s206, 16
      %s210 = sadd.s32 %s208, %s209
      %s211 = smul.addr %s210, 4
      %s212 = scalar_lea.vmem %s0, %s211
      %p213 = pneg %p51
      %p214 = pneg %p48
      %p215 = scmp.lt.s32.totalorder %s20, 3
      %s216 = scalar_select %p215, %s20, 3
      %s217 = smul.addr %s216, 16
      %s218 = smul.addr %s217, 4
      %s219 = scalar_lea.vmem %s1, %s218
      %p220 = pneg %p77
      %p221 = pneg %p74
      %p222 = pneg %p105
      %p223 = pneg %p102
      %s224 = smul.u32 16, %s21
      %p225 = scmp.lt.s32.totalorder %s20, 3
      %s226 = scalar_select %p225, %s20, 3
      %p227 = scmp.lt.s32.totalorder %s224, 15
      %s228 = scalar_select %p227, %s224, 15
      %s229 = smul.addr %s226, 16
      %s230 = sadd.s32 %s228, %s229
      %s231 = smul.addr %s230, 8
      %s232 = scalar_lea.vmem %s2, %s231
      %p233 = pneg %p131
      %p234 = pneg %p128
      %p235 = scmp.lt.s32.totalorder %s20, 3
      %s236 = scalar_select %p235, %s20, 3
      %s237 = scalar_lea.vmem %s3, %s236
      %p238 = pneg %p157
      %p239 = pneg %p154
      %p240 = scmp.lt.s32.totalorder %s20, 3
      %s241 = scalar_select %p240, %s20, 3
      %s242 = scalar_lea.vmem %s4, %s241
      %s243 = smul.u32 16, %s21
      %p244 = scmp.lt.s32.totalorder %s20, 3
      %s245 = scalar_select %p244, %s20, 3
      %p246 = scmp.lt.s32.totalorder %s243, 15
      %s247 = scalar_select %p246, %s243, 15
      %s248 = smul.addr %s245, 16
      %s249 = sadd.s32 %s247, %s248
      %s250 = smul.addr %s249, 4
      %s251 = scalar_lea.vmem %s0, %s250
      %s252 = smul.u32 16, %s21
      %p253 = scmp.lt.s32.totalorder %s20, 3
      %s254 = scalar_select %p253, %s20, 3
      %s255 = smul.addr %s254, 16
      %s256 = smul.addr %s255, 4
      %s257 = scalar_lea.vmem %s1, %s256
      %s258 = smul.u32 16, %s21
      %p259 = scmp.lt.s32.totalorder %s20, 3
      %s260 = scalar_select %p259, %s20, 3
      %p261 = scmp.lt.s32.totalorder %s258, 15
      %s262 = scalar_select %p261, %s258, 15
      %s263 = smul.addr %s260, 16
      %s264 = sadd.s32 %s262, %s263
      %s265 = smul.addr %s264, 8
      %s266 = scalar_lea.vmem %s2, %s265
      %s267 = smul.u32 16, %s21
      %p268 = scmp.lt.s32.totalorder %s20, 3
      %s269 = scalar_select %p268, %s20, 3
      %s270 = scalar_lea.vmem %s3, %s269
      %p271 = scmp.lt.s32.totalorder %s20, 3
      %s272 = scalar_select %p271, %s20, 3
      %s273 = scalar_lea.vmem %s4, %s272
      %p275 = scmp.eq.s32.totalorder %s21, 0
      // Predicated region
      $region29: #{stage1_generator_forward.11} parent=27 // pred_check
        %p276 = pneg %p275
      $region30: #{stage1_generator_forward.11} parent=27 // pred_check_branch
        %278 = sbr.rel (%p276) target = $region32
      $region31: #{stage1_generator_forward.11} parent=27 // pred_region
        %vm279 = vcmask 122880
        %280 = vst.msk [vmem:[%s270] sm:$0x1] %vm279, 0.0
        %281 = vst.msk [vmem:[%s273] sm:$0x1] %vm279, 0.0
      $region32: #{stage1_generator_forward.11} parent=27 // pred_fallthru
        _
      %v282 = vld [vmem:[%s251] sm:$0xf]
      %v283 = vld [vmem:[%s251 + $0x4] sm:$0xf]
      %v284 = vld [vmem:[%s251 + $0x8] sm:$0xf]
      %v285 = vld [vmem:[%s251 + $0xc] sm:$0xf]
      %v286 = vld [vmem:[%s251 + $0x10] sm:$0xf]
      %v287 = vld [vmem:[%s251 + $0x14] sm:$0xf]
      %v288 = vld [vmem:[%s251 + $0x18] sm:$0xf]
      %v289 = vld [vmem:[%s251 + $0x1c] sm:$0xf]
      %v290 = vld [vmem:[%s251 + $0x20] sm:$0xf]
      %v291 = vld [vmem:[%s251 + $0x24] sm:$0xf]
      %v292 = vld [vmem:[%s251 + $0x28] sm:$0xf]
      %v293 = vld [vmem:[%s251 + $0x2c] sm:$0xf]
      %v294 = vld [vmem:[%s251 + $0x30] sm:$0xf]
      %v295 = vld [vmem:[%s251 + $0x34] sm:$0xf]
      %v296 = vld [vmem:[%s251 + $0x38] sm:$0xf]
      %v297 = vld [vmem:[%s251 + $0x3c] sm:$0xf]
      %v298 = vld [vmem:[%s257] sm:$0xf]
      %v299 = vld [vmem:[%s257 + $0x4] sm:$0xf]
      %v300 = vld [vmem:[%s257 + $0x8] sm:$0xf]
      %v301 = vld [vmem:[%s257 + $0xc] sm:$0xf]
      %v302 = vld [vmem:[%s257 + $0x10] sm:$0xf]
      %v303 = vld [vmem:[%s257 + $0x14] sm:$0xf]
      %v304 = vld [vmem:[%s257 + $0x18] sm:$0xf]
      %v305 = vld [vmem:[%s257 + $0x1c] sm:$0xf]
      %v306 = vld [vmem:[%s257 + $0x20] sm:$0xf]
      %v307 = vld [vmem:[%s257 + $0x24] sm:$0xf]
      %v308 = vld [vmem:[%s257 + $0x28] sm:$0xf]
      %v309 = vld [vmem:[%s257 + $0x2c] sm:$0xf]
      %v310 = vld [vmem:[%s257 + $0x30] sm:$0xf]
      %v311 = vld [vmem:[%s257 + $0x34] sm:$0xf]
      %v312 = vld [vmem:[%s257 + $0x38] sm:$0xf]
      %v313 = vld [vmem:[%s257 + $0x3c] sm:$0xf]
      %v330 = vunpack.c.l.b16 %v282
      %v331 = vunpack.c.l.b16 %v283
      %v332 = vunpack.c.l.b16 %v284
      %v333 = vunpack.c.l.b16 %v285
      %v334 = vunpack.c.l.b16 %v286
      %v335 = vunpack.c.l.b16 %v287
      %v336 = vunpack.c.l.b16 %v288
      %v337 = vunpack.c.l.b16 %v289
      %v338 = vunpack.c.l.b16 %v290
      %v339 = vunpack.c.l.b16 %v291
      %v340 = vunpack.c.l.b16 %v292
      %v341 = vunpack.c.l.b16 %v293
      %v342 = vunpack.c.l.b16 %v294
      %v343 = vunpack.c.l.b16 %v295
      %v344 = vunpack.c.l.b16 %v296
      %v345 = vunpack.c.l.b16 %v297
      %v346 = vpack.c.b16 %v331, %v330
      %v347 = vpack.c.b16 %v333, %v332
      %v348 = vpack.c.b16 %v335, %v334
      %v349 = vpack.c.b16 %v337, %v336
      %v350 = vpack.c.b16 %v339, %v338
      %v351 = vpack.c.b16 %v341, %v340
      %v352 = vpack.c.b16 %v343, %v342
      %v353 = vpack.c.b16 %v345, %v344
      %v378 = vunpack.c.l.b16 %v298
      %v379 = vunpack.c.l.b16 %v299
      %v380 = vunpack.c.l.b16 %v300
      %v381 = vunpack.c.l.b16 %v301
      %v382 = vunpack.c.l.b16 %v302
      %v383 = vunpack.c.l.b16 %v303
      %v384 = vunpack.c.l.b16 %v304
      %v385 = vunpack.c.l.b16 %v305
      %v386 = vunpack.c.l.b16 %v306
      %v387 = vunpack.c.l.b16 %v307
      %v388 = vunpack.c.l.b16 %v308
      %v389 = vunpack.c.l.b16 %v309
      %v390 = vunpack.c.l.b16 %v310
      %v391 = vunpack.c.l.b16 %v311
      %v392 = vunpack.c.l.b16 %v312
      %v393 = vunpack.c.l.b16 %v313
      %v394 = vpack.c.b16 %v379, %v378
      %v395 = vpack.c.b16 %v381, %v380
      %v396 = vpack.c.b16 %v383, %v382
      %v397 = vpack.c.b16 %v385, %v384
      %v398 = vpack.c.b16 %v387, %v386
      %v399 = vpack.c.b16 %v389, %v388
      %v400 = vpack.c.b16 %v391, %v390
      %v401 = vpack.c.b16 %v393, %v392
      %410 = vmatprep.subr.bf16.mxu0 0
      %411 = vmatpush1.bf16.msra.mxu0 %v401
      %412 = vmatprep.subr.bf16.mxu0 0
      %413 = vmatpush1.bf16.msra.mxu0 %v400
      %414 = vmatprep.subr.bf16.mxu0 0
      %415 = vmatpush1.bf16.msra.mxu0 %v399
      %416 = vmatprep.subr.bf16.mxu0 0
      %417 = vmatpush1.bf16.msra.mxu0 %v398
      %418 = vmatprep.subr.bf16.mxu0 0
      %419 = vmatpush1.bf16.msra.mxu0 %v397
      %420 = vmatprep.subr.bf16.mxu0 0
      %421 = vmatpush1.bf16.msra.mxu0 %v396
      %422 = vmatprep.subr.bf16.mxu0 0
      %423 = vmatpush1.bf16.msra.mxu0 %v395
      %424 = vmatprep.subr.bf16.mxu0 0
      %425 = vmatpush1.bf16.msra.mxu0 %v394
      %426 = vmatprep.subr.bf16.mxu0 0
      %427 = vmatpush2.bf16.msra.mxu0 0
      %428 = vmatprep.subr.bf16.mxu0 0
      %429 = vmatpush2.bf16.msra.mxu0 0
      %430 = vmatprep.subr.bf16.mxu0 0
      %431 = vmatpush2.bf16.msra.mxu0 0
      %432 = vmatprep.subr.bf16.mxu0 0
      %433 = vmatpush2.bf16.msra.mxu0 0
      %434 = vmatprep.subr.bf16.mxu0 0
      %435 = vmatpush2.bf16.msra.mxu0 0
      %436 = vmatprep.subr.bf16.mxu0 0
      %437 = vmatpush2.bf16.msra.mxu0 0
      %438 = vmatprep.subr.bf16.mxu0 0
      %439 = vmatpush2.bf16.msra.mxu0 0
      %440 = vmatprep.subr.bf16.mxu0 0
      %441 = vmatpush2.bf16.msra.mxu0 0
      %442 = vmatprep.mubr.bf16.mxu0 0
      %443 = vmatmul.mubr.bf16.gmra.mxu0 %v346
      %v444 = vpop.f32.mrf.mxu0
      %v445 = vadd.f32 0.0, %v444
      %v446 = vpop.f32.mrf.mxu0
      %v447 = vpop.f32.mrf.mxu0
      %v448 = vadd.f32 0.0, %v447
      %v449 = vpop.f32.mrf.mxu0
      %450 = vmatprep.mubr.bf16.mxu0 0
      %451 = vmatmul.mubr.bf16.gmra.mxu0 %v347
      %v452 = vpop.f32.mrf.mxu0
      %v453 = vadd.f32 0.0, %v452
      %v454 = vpop.f32.mrf.mxu0
      %v455 = vpop.f32.mrf.mxu0
      %v456 = vadd.f32 0.0, %v455
      %v457 = vpop.f32.mrf.mxu0
      %458 = vmatprep.mubr.bf16.mxu0 0
      %459 = vmatmul.mubr.bf16.gmra.mxu0 %v348
      %v460 = vpop.f32.mrf.mxu0
      %v461 = vadd.f32 0.0, %v460
      %v462 = vpop.f32.mrf.mxu0
      %v463 = vpop.f32.mrf.mxu0
      %v464 = vadd.f32 0.0, %v463
      %v465 = vpop.f32.mrf.mxu0
      %466 = vmatprep.mubr.bf16.mxu0 0
      %467 = vmatmul.mubr.bf16.gmra.mxu0 %v349
      %v468 = vpop.f32.mrf.mxu0
      %v469 = vadd.f32 0.0, %v468
      %v470 = vpop.f32.mrf.mxu0
      %v471 = vpop.f32.mrf.mxu0
      %v472 = vadd.f32 0.0, %v471
      %v473 = vpop.f32.mrf.mxu0
      %474 = vmatprep.mubr.bf16.mxu0 0
      %475 = vmatmul.mubr.bf16.gmra.mxu0 %v350
      %v476 = vpop.f32.mrf.mxu0
      %v477 = vadd.f32 0.0, %v476
      %v478 = vpop.f32.mrf.mxu0
      %v479 = vpop.f32.mrf.mxu0
      %v480 = vadd.f32 0.0, %v479
      %v481 = vpop.f32.mrf.mxu0
      %482 = vmatprep.mubr.bf16.mxu0 0
      %483 = vmatmul.mubr.bf16.gmra.mxu0 %v351
      %v484 = vpop.f32.mrf.mxu0
      %v485 = vadd.f32 0.0, %v484
      %v486 = vpop.f32.mrf.mxu0
      %v487 = vpop.f32.mrf.mxu0
      %v488 = vadd.f32 0.0, %v487
      %v489 = vpop.f32.mrf.mxu0
      %490 = vmatprep.mubr.bf16.mxu0 0
      %491 = vmatmul.mubr.bf16.gmra.mxu0 %v352
      %v492 = vpop.f32.mrf.mxu0
      %v493 = vadd.f32 0.0, %v492
      %v494 = vpop.f32.mrf.mxu0
      %v495 = vpop.f32.mrf.mxu0
      %v496 = vadd.f32 0.0, %v495
      %v497 = vpop.f32.mrf.mxu0
      %498 = vmatprep.mubr.bf16.mxu0 0
      %499 = vmatmul.mubr.bf16.gmra.mxu0 %v353
      %v500 = vpop.f32.mrf.mxu0
      %v501 = vadd.f32 0.0, %v500
      %v502 = vpop.f32.mrf.mxu0
      %v503 = vpop.f32.mrf.mxu0
      %v504 = vadd.f32 0.0, %v503
      %v505 = vpop.f32.mrf.mxu0
      %506 = vdwg.mxu0
      %vm507 = vcmask 130048
      %508 = vst.msk [vmem:[%s266] sm:$0xff] %vm507, %v445
      %509 = vst.msk [vmem:[%s266 + $0x8] sm:$0xff] %vm507, %v448
      %510 = vst.msk [vmem:[%s266 + $0x10] sm:$0xff] %vm507, %v453
      %511 = vst.msk [vmem:[%s266 + $0x18] sm:$0xff] %vm507, %v456
      %512 = vst.msk [vmem:[%s266 + $0x20] sm:$0xff] %vm507, %v461
      %513 = vst.msk [vmem:[%s266 + $0x28] sm:$0xff] %vm507, %v464
      %514 = vst.msk [vmem:[%s266 + $0x30] sm:$0xff] %vm507, %v469
      %515 = vst.msk [vmem:[%s266 + $0x38] sm:$0xff] %vm507, %v472
      %516 = vst.msk [vmem:[%s266 + $0x40] sm:$0xff] %vm507, %v477
      %517 = vst.msk [vmem:[%s266 + $0x48] sm:$0xff] %vm507, %v480
      %518 = vst.msk [vmem:[%s266 + $0x50] sm:$0xff] %vm507, %v485
      %519 = vst.msk [vmem:[%s266 + $0x58] sm:$0xff] %vm507, %v488
      %520 = vst.msk [vmem:[%s266 + $0x60] sm:$0xff] %vm507, %v493
      %521 = vst.msk [vmem:[%s266 + $0x68] sm:$0xff] %vm507, %v496
      %522 = vst.msk [vmem:[%s266 + $0x70] sm:$0xff] %vm507, %v501
      %523 = vst.msk [vmem:[%s266 + $0x78] sm:$0xff] %vm507, %v504
      %v524 = vld [vmem:[%s270] sm:$0x1]
      %v525 = vsel %vm507, %v445, 0.0
      %v526 = vsel %vm507, %v448, 0.0
      %v527 = vadd.f32 %v525, %v526
      %v528 = vsel %vm507, %v453, 0.0
      %v529 = vadd.f32 %v527, %v528
      %v530 = vsel %vm507, %v456, 0.0
      %v531 = vadd.f32 %v529, %v530
      %v532 = vsel %vm507, %v461, 0.0
      %v533 = vadd.f32 %v531, %v532
      %v534 = vsel %vm507, %v464, 0.0
      %v535 = vadd.f32 %v533, %v534
      %v536 = vsel %vm507, %v469, 0.0
      %v537 = vadd.f32 %v535, %v536
      %v538 = vsel %vm507, %v472, 0.0
      %v539 = vadd.f32 %v537, %v538
      %v540 = vsel %vm507, %v477, 0.0
      %v541 = vadd.f32 %v539, %v540
      %v542 = vsel %vm507, %v480, 0.0
      %v543 = vadd.f32 %v541, %v542
      %v544 = vsel %vm507, %v485, 0.0
      %v545 = vadd.f32 %v543, %v544
      %v546 = vsel %vm507, %v488, 0.0
      %v547 = vadd.f32 %v545, %v546
      %v548 = vsel %vm507, %v493, 0.0
      %v549 = vadd.f32 %v547, %v548
      %v550 = vsel %vm507, %v496, 0.0
      %v551 = vadd.f32 %v549, %v550
      %v552 = vsel %vm507, %v501, 0.0
      %v553 = vadd.f32 %v551, %v552
      %v554 = vsel %vm507, %v504, 0.0
      %v555 = vadd.f32 %v553, %v554
      %v556 = vrot.slane %v555, 4
      %v557 = vadd.f32 %v555, %v556
      %v558 = vrot.slane %v557, 2
      %v559 = vadd.f32 %v557, %v558
      %v560 = vrot.slane %v559, 1
      %v561 = vadd.f32 %v559, %v560
      %v562 = vadd.f32 %v524, %v561
      %vm563 = vcmask 122880
      %564 = vst.msk [vmem:[%s270] sm:$0x1] %vm563, %v562
      %v565 = vld [vmem:[%s273] sm:$0x1]
      %v566 = vmul.f32 %v445, %v445
      %v567 = vmul.f32 %v448, %v448
      %v568 = vmul.f32 %v453, %v453
      %v569 = vmul.f32 %v456, %v456
      %v570 = vmul.f32 %v461, %v461
      %v571 = vmul.f32 %v464, %v464
      %v572 = vmul.f32 %v469, %v469
      %v573 = vmul.f32 %v472, %v472
      %v574 = vmul.f32 %v477, %v477
      %v575 = vmul.f32 %v480, %v480
      %v576 = vmul.f32 %v485, %v485
      %v577 = vmul.f32 %v488, %v488
      %v578 = vmul.f32 %v493, %v493
      %v579 = vmul.f32 %v496, %v496
      %v580 = vmul.f32 %v501, %v501
      %v581 = vmul.f32 %v504, %v504
      %v582 = vsel %vm507, %v566, 0.0
      %v583 = vsel %vm507, %v567, 0.0
      %v584 = vadd.f32 %v582, %v583
      %v585 = vsel %vm507, %v568, 0.0
      %v586 = vadd.f32 %v584, %v585
      %v587 = vsel %vm507, %v569, 0.0
      %v588 = vadd.f32 %v586, %v587
      %v589 = vsel %vm507, %v570, 0.0
      %v590 = vadd.f32 %v588, %v589
      %v591 = vsel %vm507, %v571, 0.0
      %v592 = vadd.f32 %v590, %v591
      %v593 = vsel %vm507, %v572, 0.0
      %v594 = vadd.f32 %v592, %v593
      %v595 = vsel %vm507, %v573, 0.0
      %v596 = vadd.f32 %v594, %v595
      %v597 = vsel %vm507, %v574, 0.0
      %v598 = vadd.f32 %v596, %v597
      %v599 = vsel %vm507, %v575, 0.0
      %v600 = vadd.f32 %v598, %v599
      %v601 = vsel %vm507, %v576, 0.0
      %v602 = vadd.f32 %v600, %v601
      %v603 = vsel %vm507, %v577, 0.0
      %v604 = vadd.f32 %v602, %v603
      %v605 = vsel %vm507, %v578, 0.0
      %v606 = vadd.f32 %v604, %v605
      %v607 = vsel %vm507, %v579, 0.0
      %v608 = vadd.f32 %v606, %v607
      %v609 = vsel %vm507, %v580, 0.0
      %v610 = vadd.f32 %v608, %v609
      %v611 = vsel %vm507, %v581, 0.0
      %v612 = vadd.f32 %v610, %v611
      %v613 = vrot.slane %v612, 4
      %v614 = vadd.f32 %v612, %v613
      %v615 = vrot.slane %v614, 2
      %v616 = vadd.f32 %v614, %v615
      %v617 = vrot.slane %v616, 1
      %v618 = vadd.f32 %v616, %v617
      %v619 = vadd.f32 %v565, %v618
      %620 = vst.msk [vmem:[%s273] sm:$0x1] %vm563, %v619
      %s621 = smul.u32 16, %s21
      %p622 = scmp.lt.s32.totalorder %s20, 3
      %s623 = scalar_select %p622, %s20, 3
      %p624 = scmp.lt.s32.totalorder %s621, 15
      %s625 = scalar_select %p624, %s621, 15
      %s626 = smul.addr %s623, 16
      %s627 = sadd.s32 %s625, %s626
      %s628 = smul.addr %s627, 8
      %s629 = scalar_lea.vmem %s2, %s628
      %p630 = scmp.lt.s32.totalorder %s20, 3
      %s631 = scalar_select %p630, %s20, 3
      %s632 = scalar_lea.vmem %s3, %s631
      %p633 = scmp.lt.s32.totalorder %s20, 3
      %s634 = scalar_select %p633, %s20, 3
      %s635 = scalar_lea.vmem %s4, %s634
      // Predicated region
      $region33: #{stage1_generator_forward.11} parent=27 // pred_check
        %p636 = pneg %p102
      $region34: #{stage1_generator_forward.11} parent=27 // pred_check_branch
        %638 = sbr.rel (%p636) target = $region36
      $region35: #{stage1_generator_forward.11} parent=27 // pred_region
        %s639 = smul.u32 16, %s21
      $region36: #{stage1_generator_forward.11} parent=27 // pred_fallthru
        _
      // Predicated region
      $region37: #{stage1_generator_forward.11} parent=27 // pred_check
        %p640 = pneg %p128
      $region38: #{stage1_generator_forward.11} parent=27 // pred_check_branch
        %642 = sbr.rel (%p640) target = $region40
      $region39: #{stage1_generator_forward.11} parent=27 // pred_region
        _
      $region40: #{stage1_generator_forward.11} parent=27 // pred_fallthru
        _
      // Predicated region
      $region41: #{stage1_generator_forward.11} parent=27 // pred_check
        %p643 = pneg %p154
      $region42: #{stage1_generator_forward.11} parent=27 // pred_check_branch
        %645 = sbr.rel (%p643) target = $region44
      $region43: #{stage1_generator_forward.11} parent=27 // pred_region
        _
      $region44: #{stage1_generator_forward.11} parent=27 // pred_fallthru
        _
    $region28: #{stage1_generator_forward.11} parent=5 // pred_fallthru
      _
    %p646 = scmp.le.s32.totalorder 2, %s11
    // Predicated region
    $region45: #{stage1_generator_forward.11} parent=5 // pred_check
      %p647 = pneg %p646
    $region46: #{stage1_generator_forward.11} parent=5 // pred_check_branch
      %649 = sbr.rel (%p647) target = $region48
    $region47: #{stage1_generator_forward.11} parent=5 // pred_region
      %s650 = ssub.s32 %s11, 2
      // Predicated region
      $region49: #{stage1_generator_forward.11} parent=47 // pred_check
        %p651 = pneg %p108
      $region50: #{stage1_generator_forward.11} parent=47 // pred_check_branch
        %653 = sbr.rel (%p651) target = $region52
      $region51: #{stage1_generator_forward.11} parent=47 // pred_region
        %s654 = smul.u32 16, %s23
        %p655 = scmp.lt.s32.totalorder %s22, 3
        %s656 = scalar_select %p655, %s22, 3
        %p657 = scmp.lt.s32.totalorder %s654, 15
        %s658 = scalar_select %p657, %s654, 15
        %s659 = smul.addr %s656, 16
        %s660 = sadd.s32 %s658, %s659
        %s661 = smul.addr %s660, 8
        %s662 = scalar_lea.vmem %s2, %s661
      $region52: #{stage1_generator_forward.11} parent=47 // pred_fallthru
        _
      // Predicated region
      $region53: #{stage1_generator_forward.11} parent=47 // pred_check
        %p663 = pneg %p134
      $region54: #{stage1_generator_forward.11} parent=47 // pred_check_branch
        %665 = sbr.rel (%p663) target = $region56
      $region55: #{stage1_generator_forward.11} parent=47 // pred_region
        %p666 = scmp.lt.s32.totalorder %s22, 3
        %s667 = scalar_select %p666, %s22, 3
        %s668 = scalar_lea.vmem %s3, %s667
      $region56: #{stage1_generator_forward.11} parent=47 // pred_fallthru
        _
      // Predicated region
      $region57: #{stage1_generator_forward.11} parent=47 // pred_check
        %p669 = pneg %p160
      $region58: #{stage1_generator_forward.11} parent=47 // pred_check_branch
        %671 = sbr.rel (%p669) target = $region60
      $region59: #{stage1_generator_forward.11} parent=47 // pred_region
        %p672 = scmp.lt.s32.totalorder %s22, 3
        %s673 = scalar_select %p672, %s22, 3
        %s674 = scalar_lea.vmem %s4, %s673
      $region60: #{stage1_generator_forward.11} parent=47 // pred_fallthru
        _
    $region48: #{stage1_generator_forward.11} parent=5 // pred_fallthru
      _
  $region6: #{stage1_generator_forward.11} parent=0 // loop_footer
    %s15 = sadd.s32 1, %s11
  $region7: #{stage1_generator_forward.11} parent=0 // loop_footer_branch
    %10 = sbr.rel target = $region3
  $region8: #{stage1_generator_forward.11} parent=0 // loop_exit
    _

// kernel: stage1_generator_forward.12
$region0: #{stage1_generator_forward.12}
  #allocation0 [shape = 'u32[]', space=smem, size = 0x4, offset = 0x4, fixed_abs, tag = 'smem constant byte address 0x4 - core index']
  #allocation1 [shape = 'u32[144,128]{1,0:T(1,128)}', space=vmem, size = 0x12000, scoped, tag = 'internal scratch']
  %s0 = inlined_call_operand.vmem [shape: f32[4,128,16], index: 0, kind: input, shape index: {}]
  %s1 = inlined_call_operand.vmem [shape: f32[1,16], index: 1, kind: input, shape index: {}]
  %s2 = inlined_call_operand.vmem [shape: f32[1,16], index: 2, kind: input, shape index: {}]
  %s3 = inlined_call_operand.vmem [shape: bf16[4,128,16], index: 3, kind: output, shape index: {}]
  %s4 = sld [smem:[#allocation0]]
  $region45: #{stage1_generator_forward.12} parent=0
    _
  %s6 = ssub.s32 1, %s4
  %s7 = scalar_select 0, %s6, %s4
  loop: start=0, step=1, limit=6
  $region2: #{stage1_generator_forward.12} parent=0 // loop_pre_header
    _
  $region3: #{stage1_generator_forward.12} parent=0 // loop_header
    %s9 = sphi 0, %s13
    %p10 = scmp.ge.s32.totalorder %s9, 6
    %s16 = sphi 0, %s28
    %s17 = sphi 0, %s24
    %s18 = sphi 0, %s16
    %s19 = sphi 0, %s17
    %s20 = sphi 0, %s18
    %s21 = sphi 0, %s19
    %s33 = sphi 0, %s35
    %s36 = sphi 0, %s33
    %s37 = sphi 0, %s36
    %s53 = sphi 0, %s37
    %s57 = sphi 0, %s57
    %s59 = sphi 0, %s57
    %s60 = sphi 0, %s59
    %s74 = sphi 0, %s60
    %s78 = sphi 0, %s78
    %s80 = sphi 0, %s78
    %s81 = sphi 0, %s80
    %s95 = sphi 0, %s81
    %s103 = sphi 0, %s105
    %s106 = sphi 0, %s103
    %s107 = sphi 0, %s106
    %s123 = sphi 0, %s107
  $region4: #{stage1_generator_forward.12} parent=0 // loop_header_branch
    %12 = sbr.rel (%p10) target = $region8
  $region5: #{stage1_generator_forward.12} parent=0 // loop_body
    %s14 = ssub.s32 %s9, 1
    %s15 = ssub.s32 %s9, 2
    %s22 = sadd.s32 1, %s17
    %p23 = scmp.ge.s32.totalorder %s22, 1
    %s24 = scalar_select %p23, 0, %s22
    %s25 = sadd.s32 1, %s16
    %s26 = scalar_select %p23, %s25, %s16
    %p27 = scmp.ge.s32.totalorder %s26, 4
    %s28 = scalar_select %p27, 0, %s26
    %s29 = ssub.s32 %s16, %s28
    %s30 = ssub.s32 %s17, %s24
    %s31 = sor.u32 %s29, %s30
    %p32 = scmp.eq.s32.totalorder %s31, 0
    %s34 = sadd.s32 %s33, 1
    %s35 = scalar_select %p32, %s33, %s34
    %p38 = pneg %p32
    %p39 = scmp.eq.s32.totalorder %s9, 3
    %p40 = por %p38, %p39
    %p41 = scmp.ne.s32.totalorder %s33, %s36
    %p42 = scmp.eq.s32.totalorder %s9, 0
    %p43 = por %p41, %p42
    %p44 = scmp.ne.s32.totalorder %s33, %s36
    %p45 = scmp.eq.s32.totalorder %s14, 3
    %p46 = por %p44, %p45
    %p47 = scmp.ne.s32.totalorder %s36, %s37
    %p48 = scmp.eq.s32.totalorder %s14, 0
    %p49 = por %p47, %p48
    %p50 = scmp.ne.s32.totalorder %s36, %s37
    %p51 = scmp.eq.s32.totalorder %s15, 3
    %p52 = por %p50, %p51
    %p54 = scmp.ne.s32.totalorder %s37, %s53
    %p55 = scmp.eq.s32.totalorder %s15, 0
    %p56 = por %p54, %p55
    %s58 = sadd.s32 %s57, 1
    %p61 = scmp.eq.s32.totalorder %s9, 3
    %p62 = scmp.ne.s32.totalorder %s57, %s59
    %p63 = scmp.eq.s32.totalorder %s9, 0
    %p64 = por %p62, %p63
    %p65 = scmp.ne.s32.totalorder %s57, %s59
    %p66 = scmp.eq.s32.totalorder %s14, 3
    %p67 = por %p65, %p66
    %p68 = scmp.ne.s32.totalorder %s59, %s60
    %p69 = scmp.eq.s32.totalorder %s14, 0
    %p70 = por %p68, %p69
    %p71 = scmp.ne.s32.totalorder %s59, %s60
    %p72 = scmp.eq.s32.totalorder %s15, 3
    %p73 = por %p71, %p72
    %p75 = scmp.ne.s32.totalorder %s60, %s74
    %p76 = scmp.eq.s32.totalorder %s15, 0
    %p77 = por %p75, %p76
    %s79 = sadd.s32 %s78, 1
    %p82 = scmp.eq.s32.totalorder %s9, 3
    %p83 = scmp.ne.s32.totalorder %s78, %s80
    %p84 = scmp.eq.s32.totalorder %s9, 0
    %p85 = por %p83, %p84
    %p86 = scmp.ne.s32.totalorder %s78, %s80
    %p87 = scmp.eq.s32.totalorder %s14, 3
    %p88 = por %p86, %p87
    %p89 = scmp.ne.s32.totalorder %s80, %s81
    %p90 = scmp.eq.s32.totalorder %s14, 0
    %p91 = por %p89, %p90
    %p92 = scmp.ne.s32.totalorder %s80, %s81
    %p93 = scmp.eq.s32.totalorder %s15, 3
    %p94 = por %p92, %p93
    %p96 = scmp.ne.s32.totalorder %s81, %s95
    %p97 = scmp.eq.s32.totalorder %s15, 0
    %p98 = por %p96, %p97
    %s99 = ssub.s32 %s16, %s28
    %s100 = ssub.s32 %s17, %s24
    %s101 = sor.u32 %s99, %s100
    %p102 = scmp.eq.s32.totalorder %s101, 0
    %s104 = sadd.s32 %s103, 1
    %s105 = scalar_select %p102, %s103, %s104
    %p108 = pneg %p102
    %p109 = scmp.eq.s32.totalorder %s9, 3
    %p110 = por %p108, %p109
    %p111 = scmp.ne.s32.totalorder %s103, %s106
    %p112 = scmp.eq.s32.totalorder %s9, 0
    %p113 = por %p111, %p112
    %p114 = scmp.ne.s32.totalorder %s103, %s106
    %p115 = scmp.eq.s32.totalorder %s14, 3
    %p116 = por %p114, %p115
    %p117 = scmp.ne.s32.totalorder %s106, %s107
    %p118 = scmp.eq.s32.totalorder %s14, 0
    %p119 = por %p117, %p118
    %p120 = scmp.ne.s32.totalorder %s106, %s107
    %p121 = scmp.eq.s32.totalorder %s15, 3
    %p122 = por %p120, %p121
    %p124 = scmp.ne.s32.totalorder %s107, %s123
    %p125 = scmp.eq.s32.totalorder %s15, 0
    %p126 = por %p124, %p125
    %p127 = scmp.le.s32.totalorder 1, %s9
    %p128 = scmp.lt.s32.totalorder %s9, 5
    %p129 = pnand %p127, %p128
    %p130 = pneg %p129
    // Predicated region
    $region9: #{stage1_generator_forward.12} parent=5 // pred_check
      _
    $region10: #{stage1_generator_forward.12} parent=5 // pred_check_branch
      %132 = sbr.rel (%p129) target = $region12
    $region11: #{stage1_generator_forward.12} parent=5 // pred_region
      %s133 = ssub.s32 %s9, 1
      // Predicated region
      $region13: #{stage1_generator_forward.12} parent=11 // pred_check
        %p134 = pneg %p70
      $region14: #{stage1_generator_forward.12} parent=11 // pred_check_branch
        %136 = sbr.rel (%p134) target = $region16
      $region15: #{stage1_generator_forward.12} parent=11 // pred_region
        _
      $region16: #{stage1_generator_forward.12} parent=11 // pred_fallthru
        _
      // Predicated region
      $region17: #{stage1_generator_forward.12} parent=11 // pred_check
        %p137 = pneg %p91
      $region18: #{stage1_generator_forward.12} parent=11 // pred_check_branch
        %139 = sbr.rel (%p137) target = $region20
      $region19: #{stage1_generator_forward.12} parent=11 // pred_region
        _
      $region20: #{stage1_generator_forward.12} parent=11 // pred_fallthru
        _
    $region12: #{stage1_generator_forward.12} parent=5 // pred_fallthru
      _
    %p140 = scmp.lt.s32.totalorder %s9, 4
    // Predicated region
    $region21: #{stage1_generator_forward.12} parent=5 // pred_check
      %p141 = pneg %p140
    $region22: #{stage1_generator_forward.12} parent=5 // pred_check_branch
      %143 = sbr.rel (%p141) target = $region24
    $region23: #{stage1_generator_forward.12} parent=5 // pred_region
      // Predicated region
      $region25: #{stage1_generator_forward.12} parent=23 // pred_check
        %p144 = pneg %p43
      $region26: #{stage1_generator_forward.12} parent=23 // pred_check_branch
        %146 = sbr.rel (%p144) target = $region28
      $region27: #{stage1_generator_forward.12} parent=23 // pred_region
        %s147 = smul.u32 16, %s17
        %p148 = scmp.lt.s32.totalorder %s16, 3
        %s149 = scalar_select %p148, %s16, 3
        %p150 = scmp.lt.s32.totalorder %s147, 15
        %s151 = scalar_select %p150, %s147, 15
        %s152 = smul.addr %s149, 16
        %s153 = sadd.s32 %s151, %s152
        %s154 = smul.addr %s153, 8
        %s155 = scalar_lea.vmem %s0, %s154
        %s156 = smul.u32 16, %s17
      $region28: #{stage1_generator_forward.12} parent=23 // pred_fallthru
        _
    $region24: #{stage1_generator_forward.12} parent=5 // pred_fallthru
      _
    %p157 = scmp.le.s32.totalorder 1, %s9
    %p158 = scmp.lt.s32.totalorder %s9, 5
    %p159 = pnand %p157, %p158
    %p160 = pneg %p159
    // Predicated region
    $region29: #{stage1_generator_forward.12} parent=5 // pred_check
      _
    $region30: #{stage1_generator_forward.12} parent=5 // pred_check_branch
      %162 = sbr.rel (%p159) target = $region32
    $region31: #{stage1_generator_forward.12} parent=5 // pred_region
      %s163 = ssub.s32 %s9, 1
      %s164 = smul.u32 16, %s19
      %p165 = scmp.lt.s32.totalorder %s18, 3
      %s166 = scalar_select %p165, %s18, 3
      %p167 = scmp.lt.s32.totalorder %s164, 15
      %s168 = scalar_select %p167, %s164, 15
      %s169 = smul.addr %s166, 16
      %s170 = sadd.s32 %s168, %s169
      %s171 = smul.addr %s170, 8
      %s172 = scalar_lea.vmem %s0, %s171
      %p173 = pneg %p49
      %p174 = pneg %p46
      %p175 = pneg %p70
      %p176 = pneg %p67
      %p177 = pneg %p91
      %p178 = pneg %p88
      %p179 = pneg %p119
      %p180 = pneg %p116
      %s181 = smul.u32 16, %s19
      %p182 = scmp.lt.s32.totalorder %s18, 3
      %s183 = scalar_select %p182, %s18, 3
      %p184 = scmp.lt.s32.totalorder %s181, 15
      %s185 = scalar_select %p184, %s181, 15
      %s186 = smul.addr %s183, 16
      %s187 = sadd.s32 %s185, %s186
      %s188 = smul.addr %s187, 4
      %s189 = scalar_lea.vmem %s3, %s188
      %s190 = smul.u32 16, %s19
      %p191 = scmp.lt.s32.totalorder %s18, 3
      %s192 = scalar_select %p191, %s18, 3
      %p193 = scmp.lt.s32.totalorder %s190, 15
      %s194 = scalar_select %p193, %s190, 15
      %s195 = smul.addr %s192, 16
      %s196 = sadd.s32 %s194, %s195
      %s197 = smul.addr %s196, 8
      %s198 = scalar_lea.vmem %s0, %s197
      %s199 = smul.u32 16, %s19
      %s200 = smul.u32 16, %s19
      %p201 = scmp.lt.s32.totalorder %s18, 3
      %s202 = scalar_select %p201, %s18, 3
      %p203 = scmp.lt.s32.totalorder %s200, 15
      %s204 = scalar_select %p203, %s200, 15
      %s205 = smul.addr %s202, 16
      %s206 = sadd.s32 %s204, %s205
      %s207 = smul.addr %s206, 4
      %s208 = scalar_lea.vmem %s3, %s207
      %s209 = smul.u32 16, %s19
      %v210 = vld [vmem:[%s198] sm:$0xff]
      %v211 = vld [vmem:[%s198 + $0x8] sm:$0xff]
      %v212 = vld [vmem:[%s198 + $0x10] sm:$0xff]
      %v213 = vld [vmem:[%s198 + $0x18] sm:$0xff]
      %v214 = vld [vmem:[%s198 + $0x20] sm:$0xff]
      %v215 = vld [vmem:[%s198 + $0x28] sm:$0xff]
      %v216 = vld [vmem:[%s198 + $0x30] sm:$0xff]
      %v217 = vld [vmem:[%s198 + $0x38] sm:$0xff]
      %v218 = vld [vmem:[%s198 + $0x40] sm:$0xff]
      %v219 = vld [vmem:[%s198 + $0x48] sm:$0xff]
      %v220 = vld [vmem:[%s198 + $0x50] sm:$0xff]
      %v221 = vld [vmem:[%s198 + $0x58] sm:$0xff]
      %v222 = vld [vmem:[%s198 + $0x60] sm:$0xff]
      %v223 = vld [vmem:[%s198 + $0x68] sm:$0xff]
      %v224 = vld [vmem:[%s198 + $0x70] sm:$0xff]
      %v225 = vld [vmem:[%s198 + $0x78] sm:$0xff]
      %v226 = vld [vmem:[%s1] sm:$0x1]
      %v228 = vlaneseq
      %v229 = vshrl.u32 %v228, 7
      %v230 = vsub.s32 0, %v229
      %v231 = vrot.slane %v226, %v230
      %v233 = vmul.f32 %v210, %v231
      %v234 = vmul.f32 %v211, %v231
      %v235 = vmul.f32 %v212, %v231
      %v236 = vmul.f32 %v213, %v231
      %v237 = vmul.f32 %v214, %v231
      %v238 = vmul.f32 %v215, %v231
      %v239 = vmul.f32 %v216, %v231
      %v240 = vmul.f32 %v217, %v231
      %v241 = vmul.f32 %v218, %v231
      %v242 = vmul.f32 %v219, %v231
      %v243 = vmul.f32 %v220, %v231
      %v244 = vmul.f32 %v221, %v231
      %v245 = vmul.f32 %v222, %v231
      %v246 = vmul.f32 %v223, %v231
      %v247 = vmul.f32 %v224, %v231
      %v248 = vmul.f32 %v225, %v231
      %v249 = vld [vmem:[%s2] sm:$0x1]
      %v251 = vlaneseq
      %v252 = vshrl.u32 %v251, 7
      %v253 = vsub.s32 0, %v252
      %v254 = vrot.slane %v249, %v253
      %v256 = vadd.f32 %v233, %v254
      %v257 = vadd.f32 %v234, %v254
      %v258 = vadd.f32 %v235, %v254
      %v259 = vadd.f32 %v236, %v254
      %v260 = vadd.f32 %v237, %v254
      %v261 = vadd.f32 %v238, %v254
      %v262 = vadd.f32 %v239, %v254
      %v263 = vadd.f32 %v240, %v254
      %v264 = vadd.f32 %v241, %v254
      %v265 = vadd.f32 %v242, %v254
      %v266 = vadd.f32 %v243, %v254
      %v267 = vadd.f32 %v244, %v254
      %v268 = vadd.f32 %v245, %v254
      %v269 = vadd.f32 %v246, %v254
      %v270 = vadd.f32 %v247, %v254
      %v271 = vadd.f32 %v248, %v254
      %v272 = vmax.f32 %v256, 0.0
      %v273 = vmax.f32 %v257, 0.0
      %v274 = vmax.f32 %v258, 0.0
      %v275 = vmax.f32 %v259, 0.0
      %v276 = vmax.f32 %v260, 0.0
      %v277 = vmax.f32 %v261, 0.0
      %v278 = vmax.f32 %v262, 0.0
      %v279 = vmax.f32 %v263, 0.0
      %v280 = vmax.f32 %v264, 0.0
      %v281 = vmax.f32 %v265, 0.0
      %v282 = vmax.f32 %v266, 0.0
      %v283 = vmax.f32 %v267, 0.0
      %v284 = vmax.f32 %v268, 0.0
      %v285 = vmax.f32 %v269, 0.0
      %v286 = vmax.f32 %v270, 0.0
      %v287 = vmax.f32 %v271, 0.0
      %v288 = vpack.c.bf16 %v273, %v272
      %v289 = vpack.c.bf16 %v275, %v274
      %v290 = vpack.c.bf16 %v277, %v276
      %v291 = vpack.c.bf16 %v279, %v278
      %v292 = vpack.c.bf16 %v281, %v280
      %v293 = vpack.c.bf16 %v283, %v282
      %v294 = vpack.c.bf16 %v285, %v284
      %v295 = vpack.c.bf16 %v287, %v286
      %v304 = vunpack.c.l.b16 %v288
      %v305 = vunpack.c.h.b16 %v288
      %v306 = vunpack.c.l.b16 %v289
      %v307 = vunpack.c.h.b16 %v289
      %v308 = vunpack.c.l.b16 %v290
      %v309 = vunpack.c.h.b16 %v290
      %v310 = vunpack.c.l.b16 %v291
      %v311 = vunpack.c.h.b16 %v291
      %v312 = vunpack.c.l.b16 %v292
      %v313 = vunpack.c.h.b16 %v292
      %v314 = vunpack.c.l.b16 %v293
      %v315 = vunpack.c.h.b16 %v293
      %v316 = vunpack.c.l.b16 %v294
      %v317 = vunpack.c.h.b16 %v294
      %v318 = vunpack.c.l.b16 %v295
      %v319 = vunpack.c.h.b16 %v295
      %v320 = vpack.c.b16 %v304, %v304
      %v321 = vpack.c.b16 %v305, %v305
      %v322 = vpack.c.b16 %v306, %v306
      %v323 = vpack.c.b16 %v307, %v307
      %v324 = vpack.c.b16 %v308, %v308
      %v325 = vpack.c.b16 %v309, %v309
      %v326 = vpack.c.b16 %v310, %v310
      %v327 = vpack.c.b16 %v311, %v311
      %v328 = vpack.c.b16 %v312, %v312
      %v329 = vpack.c.b16 %v313, %v313
      %v330 = vpack.c.b16 %v314, %v314
      %v331 = vpack.c.b16 %v315, %v315
      %v332 = vpack.c.b16 %v316, %v316
      %v333 = vpack.c.b16 %v317, %v317
      %v334 = vpack.c.b16 %v318, %v318
      %v335 = vpack.c.b16 %v319, %v319
      %vm352 = vcmask 125952
      %353 = vst.msk [vmem:[%s208] sm:$0xf] %vm352, %v320
      %354 = vst.msk [vmem:[%s208 + $0x4] sm:$0xf] %vm352, %v321
      %355 = vst.msk [vmem:[%s208 + $0x8] sm:$0xf] %vm352, %v322
      %356 = vst.msk [vmem:[%s208 + $0xc] sm:$0xf] %vm352, %v323
      %357 = vst.msk [vmem:[%s208 + $0x10] sm:$0xf] %vm352, %v324
      %358 = vst.msk [vmem:[%s208 + $0x14] sm:$0xf] %vm352, %v325
      %359 = vst.msk [vmem:[%s208 + $0x18] sm:$0xf] %vm352, %v326
      %360 = vst.msk [vmem:[%s208 + $0x1c] sm:$0xf] %vm352, %v327
      %361 = vst.msk [vmem:[%s208 + $0x20] sm:$0xf] %vm352, %v328
      %362 = vst.msk [vmem:[%s208 + $0x24] sm:$0xf] %vm352, %v329
      %363 = vst.msk [vmem:[%s208 + $0x28] sm:$0xf] %vm352, %v330
      %364 = vst.msk [vmem:[%s208 + $0x2c] sm:$0xf] %vm352, %v331
      %365 = vst.msk [vmem:[%s208 + $0x30] sm:$0xf] %vm352, %v332
      %366 = vst.msk [vmem:[%s208 + $0x34] sm:$0xf] %vm352, %v333
      %367 = vst.msk [vmem:[%s208 + $0x38] sm:$0xf] %vm352, %v334
      %368 = vst.msk [vmem:[%s208 + $0x3c] sm:$0xf] %vm352, %v335
      %s369 = smul.u32 16, %s19
      %p370 = scmp.lt.s32.totalorder %s18, 3
      %s371 = scalar_select %p370, %s18, 3
      %p372 = scmp.lt.s32.totalorder %s369, 15
      %s373 = scalar_select %p372, %s369, 15
      %s374 = smul.addr %s371, 16
      %s375 = sadd.s32 %s373, %s374
      %s376 = smul.addr %s375, 4
      %s377 = scalar_lea.vmem %s3, %s376
      // Predicated region
      $region33: #{stage1_generator_forward.12} parent=31 // pred_check
        %p378 = pneg %p116
      $region34: #{stage1_generator_forward.12} parent=31 // pred_check_branch
        %380 = sbr.rel (%p378) target = $region36
      $region35: #{stage1_generator_forward.12} parent=31 // pred_region
        %s381 = smul.u32 16, %s19
      $region36: #{stage1_generator_forward.12} parent=31 // pred_fallthru
        _
    $region32: #{stage1_generator_forward.12} parent=5 // pred_fallthru
      _
    %p382 = scmp.le.s32.totalorder 2, %s9
    // Predicated region
    $region37: #{stage1_generator_forward.12} parent=5 // pred_check
      %p383 = pneg %p382
    $region38: #{stage1_generator_forward.12} parent=5 // pred_check_branch
      %385 = sbr.rel (%p383) target = $region40
    $region39: #{stage1_generator_forward.12} parent=5 // pred_region
      %s386 = ssub.s32 %s9, 2
      // Predicated region
      $region41: #{stage1_generator_forward.12} parent=39 // pred_check
        %p387 = pneg %p122
      $region42: #{stage1_generator_forward.12} parent=39 // pred_check_branch
        %389 = sbr.rel (%p387) target = $region44
      $region43: #{stage1_generator_forward.12} parent=39 // pred_region
        %s390 = smul.u32 16, %s21
        %p391 = scmp.lt.s32.totalorder %s20, 3
        %s392 = scalar_select %p391, %s20, 3
        %p393 = scmp.lt.s32.totalorder %s390, 15
        %s394 = scalar_select %p393, %s390, 15
        %s395 = smul.addr %s392, 16
        %s396 = sadd.s32 %s394, %s395
        %s397 = smul.addr %s396, 4
        %s398 = scalar_lea.vmem %s3, %s397
      $region44: #{stage1_generator_forward.12} parent=39 // pred_fallthru
        _
    $region40: #{stage1_generator_forward.12} parent=5 // pred_fallthru
      _
  $region6: #{stage1_generator_forward.12} parent=0 // loop_footer
    %s13 = sadd.s32 1, %s9
  $region7: #{stage1_generator_forward.12} parent=0 // loop_footer_branch
    %8 = sbr.rel target = $region3
  $region8: #{stage1_generator_forward.12} parent=0 // loop_exit
    _

// kernel: stage1_generator_forward.13
$region0: #{stage1_generator_forward.13}
  #allocation0 [shape = 'u32[]', space=smem, size = 0x4, offset = 0x4, fixed_abs, tag = 'smem constant byte address 0x4 - core index']
  #allocation1 [shape = 'u32[144,128]{1,0:T(1,128)}', space=vmem, size = 0x12000, scoped, tag = 'internal scratch']
  %s0 = inlined_call_operand.vmem [shape: bf16[4,512,64], index: 0, kind: input, shape index: {}]
  %s1 = inlined_call_operand.vmem [shape: bf16[4,64,8], index: 1, kind: input, shape index: {}]
  %s2 = inlined_call_operand.vmem [shape: f32[4,512,8], index: 2, kind: output, shape index: {0}]
  %s3 = inlined_call_operand.vmem [shape: f32[4,1,8], index: 3, kind: output, shape index: {1}]
  %s4 = inlined_call_operand.vmem [shape: f32[4,1,8], index: 4, kind: output, shape index: {2}]
  %5 = xla_tuple %s2, %s3, %s4
  %s6 = sld [smem:[#allocation0]]
  $region61: #{stage1_generator_forward.13} parent=0
    _
  %s8 = ssub.s32 1, %s6
  %s9 = scalar_select 0, %s8, %s6
  loop: start=0, step=1, limit=6
  $region2: #{stage1_generator_forward.13} parent=0 // loop_pre_header
    _
  $region3: #{stage1_generator_forward.13} parent=0 // loop_header
    %s11 = sphi 0, %s15
    %p12 = scmp.ge.s32.totalorder %s11, 6
    %s18 = sphi 0, %s30
    %s19 = sphi 0, %s26
    %s20 = sphi 0, %s18
    %s21 = sphi 0, %s19
    %s22 = sphi 0, %s20
    %s23 = sphi 0, %s21
    %s35 = sphi 0, %s37
    %s38 = sphi 0, %s35
    %s39 = sphi 0, %s38
    %s55 = sphi 0, %s39
    %s61 = sphi 0, %s63
    %s64 = sphi 0, %s61
    %s65 = sphi 0, %s64
    %s81 = sphi 0, %s65
    %s89 = sphi 0, %s91
    %s92 = sphi 0, %s89
    %s93 = sphi 0, %s92
    %s109 = sphi 0, %s93
    %s115 = sphi 0, %s117
    %s118 = sphi 0, %s115
    %s119 = sphi 0, %s118
    %s135 = sphi 0, %s119
    %s141 = sphi 0, %s143
    %s144 = sphi 0, %s141
    %s145 = sphi 0, %s144
    %s161 = sphi 0, %s145
  $region4: #{stage1_generator_forward.13} parent=0 // loop_header_branch
    %14 = sbr.rel (%p12) target = $region8
  $region5: #{stage1_generator_forward.13} parent=0 // loop_body
    %s16 = ssub.s32 %s11, 1
    %s17 = ssub.s32 %s11, 2
    %s24 = sadd.s32 1, %s19
    %p25 = scmp.ge.s32.totalorder %s24, 1
    %s26 = scalar_select %p25, 0, %s24
    %s27 = sadd.s32 1, %s18
    %s28 = scalar_select %p25, %s27, %s18
    %p29 = scmp.ge.s32.totalorder %s28, 4
    %s30 = scalar_select %p29, 0, %s28
    %s31 = ssub.s32 %s18, %s30
    %s32 = ssub.s32 %s19, %s26
    %s33 = sor.u32 %s31, %s32
    %p34 = scmp.eq.s32.totalorder %s33, 0
    %s36 = sadd.s32 %s35, 1
    %s37 = scalar_select %p34, %s35, %s36
    %p40 = pneg %p34
    %p41 = scmp.eq.s32.totalorder %s11, 3
    %p42 = por %p40, %p41
    %p43 = scmp.ne.s32.totalorder %s35, %s38
    %p44 = scmp.eq.s32.totalorder %s11, 0
    %p45 = por %p43, %p44
    %p46 = scmp.ne.s32.totalorder %s35, %s38
    %p47 = scmp.eq.s32.totalorder %s16, 3
    %p48 = por %p46, %p47
    %p49 = scmp.ne.s32.totalorder %s38, %s39
    %p50 = scmp.eq.s32.totalorder %s16, 0
    %p51 = por %p49, %p50
    %p52 = scmp.ne.s32.totalorder %s38, %s39
    %p53 = scmp.eq.s32.totalorder %s17, 3
    %p54 = por %p52, %p53
    %p56 = scmp.ne.s32.totalorder %s39, %s55
    %p57 = scmp.eq.s32.totalorder %s17, 0
    %p58 = por %p56, %p57
    %s59 = ssub.s32 %s18, %s30
    %p60 = scmp.eq.s32.totalorder %s59, 0
    %s62 = sadd.s32 %s61, 1
    %s63 = scalar_select %p60, %s61, %s62
    %p66 = pneg %p60
    %p67 = scmp.eq.s32.totalorder %s11, 3
    %p68 = por %p66, %p67
    %p69 = scmp.ne.s32.totalorder %s61, %s64
    %p70 = scmp.eq.s32.totalorder %s11, 0
    %p71 = por %p69, %p70
    %p72 = scmp.ne.s32.totalorder %s61, %s64
    %p73 = scmp.eq.s32.totalorder %s16, 3
    %p74 = por %p72, %p73
    %p75 = scmp.ne.s32.totalorder %s64, %s65
    %p76 = scmp.eq.s32.totalorder %s16, 0
    %p77 = por %p75, %p76
    %p78 = scmp.ne.s32.totalorder %s64, %s65
    %p79 = scmp.eq.s32.totalorder %s17, 3
    %p80 = por %p78, %p79
    %p82 = scmp.ne.s32.totalorder %s65, %s81
    %p83 = scmp.eq.s32.totalorder %s17, 0
    %p84 = por %p82, %p83
    %s85 = ssub.s32 %s18, %s30
    %s86 = ssub.s32 %s19, %s26
    %s87 = sor.u32 %s85, %s86
    %p88 = scmp.eq.s32.totalorder %s87, 0
    %s90 = sadd.s32 %s89, 1
    %s91 = scalar_select %p88, %s89, %s90
    %p94 = pneg %p88
    %p95 = scmp.eq.s32.totalorder %s11, 3
    %p96 = por %p94, %p95
    %p97 = scmp.ne.s32.totalorder %s89, %s92
    %p98 = scmp.eq.s32.totalorder %s11, 0
    %p99 = por %p97, %p98
    %p100 = scmp.ne.s32.totalorder %s89, %s92
    %p101 = scmp.eq.s32.totalorder %s16, 3
    %p102 = por %p100, %p101
    %p103 = scmp.ne.s32.totalorder %s92, %s93
    %p104 = scmp.eq.s32.totalorder %s16, 0
    %p105 = por %p103, %p104
    %p106 = scmp.ne.s32.totalorder %s92, %s93
    %p107 = scmp.eq.s32.totalorder %s17, 3
    %p108 = por %p106, %p107
    %p110 = scmp.ne.s32.totalorder %s93, %s109
    %p111 = scmp.eq.s32.totalorder %s17, 0
    %p112 = por %p110, %p111
    %s113 = ssub.s32 %s18, %s30
    %p114 = scmp.eq.s32.totalorder %s113, 0
    %s116 = sadd.s32 %s115, 1
    %s117 = scalar_select %p114, %s115, %s116
    %p120 = pneg %p114
    %p121 = scmp.eq.s32.totalorder %s11, 3
    %p122 = por %p120, %p121
    %p123 = scmp.ne.s32.totalorder %s115, %s118
    %p124 = scmp.eq.s32.totalorder %s11, 0
    %p125 = por %p123, %p124
    %p126 = scmp.ne.s32.totalorder %s115, %s118
    %p127 = scmp.eq.s32.totalorder %s16, 3
    %p128 = por %p126, %p127
    %p129 = scmp.ne.s32.totalorder %s118, %s119
    %p130 = scmp.eq.s32.totalorder %s16, 0
    %p131 = por %p129, %p130
    %p132 = scmp.ne.s32.totalorder %s118, %s119
    %p133 = scmp.eq.s32.totalorder %s17, 3
    %p134 = por %p132, %p133
    %p136 = scmp.ne.s32.totalorder %s119, %s135
    %p137 = scmp.eq.s32.totalorder %s17, 0
    %p138 = por %p136, %p137
    %s139 = ssub.s32 %s18, %s30
    %p140 = scmp.eq.s32.totalorder %s139, 0
    %s142 = sadd.s32 %s141, 1
    %s143 = scalar_select %p140, %s141, %s142
    %p146 = pneg %p140
    %p147 = scmp.eq.s32.totalorder %s11, 3
    %p148 = por %p146, %p147
    %p149 = scmp.ne.s32.totalorder %s141, %s144
    %p150 = scmp.eq.s32.totalorder %s11, 0
    %p151 = por %p149, %p150
    %p152 = scmp.ne.s32.totalorder %s141, %s144
    %p153 = scmp.eq.s32.totalorder %s16, 3
    %p154 = por %p152, %p153
    %p155 = scmp.ne.s32.totalorder %s144, %s145
    %p156 = scmp.eq.s32.totalorder %s16, 0
    %p157 = por %p155, %p156
    %p158 = scmp.ne.s32.totalorder %s144, %s145
    %p159 = scmp.eq.s32.totalorder %s17, 3
    %p160 = por %p158, %p159
    %p162 = scmp.ne.s32.totalorder %s145, %s161
    %p163 = scmp.eq.s32.totalorder %s17, 0
    %p164 = por %p162, %p163
    %p165 = scmp.le.s32.totalorder 1, %s11
    %p166 = scmp.lt.s32.totalorder %s11, 5
    %p167 = pnand %p165, %p166
    %p168 = pneg %p167
    // Predicated region
    $region9: #{stage1_generator_forward.13} parent=5 // pred_check
      _
    $region10: #{stage1_generator_forward.13} parent=5 // pred_check_branch
      %170 = sbr.rel (%p167) target = $region12
    $region11: #{stage1_generator_forward.13} parent=5 // pred_region
      %s171 = ssub.s32 %s11, 1
    $region12: #{stage1_generator_forward.13} parent=5 // pred_fallthru
      _
    %p172 = scmp.lt.s32.totalorder %s11, 4
    // Predicated region
    $region13: #{stage1_generator_forward.13} parent=5 // pred_check
      %p173 = pneg %p172
    $region14: #{stage1_generator_forward.13} parent=5 // pred_check_branch
      %175 = sbr.rel (%p173) target = $region16
    $region15: #{stage1_generator_forward.13} parent=5 // pred_region
      // Predicated region
      $region17: #{stage1_generator_forward.13} parent=15 // pred_check
        %p176 = pneg %p45
      $region18: #{stage1_generator_forward.13} parent=15 // pred_check_branch
        %178 = sbr.rel (%p176) target = $region20
      $region19: #{stage1_generator_forward.13} parent=15 // pred_region
        %s179 = smul.u32 64, %s19
        %p180 = scmp.lt.s32.totalorder %s18, 3
        %s181 = scalar_select %p180, %s18, 3
        %p182 = scmp.lt.s32.totalorder %s179, 63
        %s183 = scalar_select %p182, %s179, 63
        %s184 = smul.addr %s181, 64
        %s185 = sadd.s32 %s183, %s184
        %s186 = smul.addr %s185, 4
        %s187 = scalar_lea.vmem %s0, %s186
        %s188 = smul.u32 64, %s19
      $region20: #{stage1_generator_forward.13} parent=15 // pred_fallthru
        _
      // Predicated region
      $region21: #{stage1_generator_forward.13} parent=15 // pred_check
        %p189 = pneg %p71
      $region22: #{stage1_generator_forward.13} parent=15 // pred_check_branch
        %191 = sbr.rel (%p189) target = $region24
      $region23: #{stage1_generator_forward.13} parent=15 // pred_region
        %p192 = scmp.lt.s32.totalorder %s18, 3
        %s193 = scalar_select %p192, %s18, 3
        %s194 = smul.addr %s193, 8
        %s195 = smul.addr %s194, 4
        %s196 = scalar_lea.vmem %s1, %s195
      $region24: #{stage1_generator_forward.13} parent=15 // pred_fallthru
        _
    $region16: #{stage1_generator_forward.13} parent=5 // pred_fallthru
      _
    %p197 = scmp.le.s32.totalorder 1, %s11
    %p198 = scmp.lt.s32.totalorder %s11, 5
    %p199 = pnand %p197, %p198
    %p200 = pneg %p199
    // Predicated region
    $region25: #{stage1_generator_forward.13} parent=5 // pred_check
      _
    $region26: #{stage1_generator_forward.13} parent=5 // pred_check_branch
      %202 = sbr.rel (%p199) target = $region28
    $region27: #{stage1_generator_forward.13} parent=5 // pred_region
      %s203 = ssub.s32 %s11, 1
      %s204 = smul.u32 64, %s21
      %p205 = scmp.lt.s32.totalorder %s20, 3
      %s206 = scalar_select %p205, %s20, 3
      %p207 = scmp.lt.s32.totalorder %s204, 63
      %s208 = scalar_select %p207, %s204, 63
      %s209 = smul.addr %s206, 64
      %s210 = sadd.s32 %s208, %s209
      %s211 = smul.addr %s210, 4
      %s212 = scalar_lea.vmem %s0, %s211
      %p213 = pneg %p51
      %p214 = pneg %p48
      %p215 = scmp.lt.s32.totalorder %s20, 3
      %s216 = scalar_select %p215, %s20, 3
      %s217 = smul.addr %s216, 8
      %s218 = smul.addr %s217, 4
      %s219 = scalar_lea.vmem %s1, %s218
      %p220 = pneg %p77
      %p221 = pneg %p74
      %p222 = pneg %p105
      %p223 = pneg %p102
      %s224 = smul.u32 64, %s21
      %p225 = scmp.lt.s32.totalorder %s20, 3
      %s226 = scalar_select %p225, %s20, 3
      %p227 = scmp.lt.s32.totalorder %s224, 63
      %s228 = scalar_select %p227, %s224, 63
      %s229 = smul.addr %s226, 64
      %s230 = sadd.s32 %s228, %s229
      %s231 = smul.addr %s230, 8
      %s232 = scalar_lea.vmem %s2, %s231
      %p233 = pneg %p131
      %p234 = pneg %p128
      %p235 = scmp.lt.s32.totalorder %s20, 3
      %s236 = scalar_select %p235, %s20, 3
      %s237 = scalar_lea.vmem %s3, %s236
      %p238 = pneg %p157
      %p239 = pneg %p154
      %p240 = scmp.lt.s32.totalorder %s20, 3
      %s241 = scalar_select %p240, %s20, 3
      %s242 = scalar_lea.vmem %s4, %s241
      %s243 = smul.u32 64, %s21
      %p244 = scmp.lt.s32.totalorder %s20, 3
      %s245 = scalar_select %p244, %s20, 3
      %p246 = scmp.lt.s32.totalorder %s243, 63
      %s247 = scalar_select %p246, %s243, 63
      %s248 = smul.addr %s245, 64
      %s249 = sadd.s32 %s247, %s248
      %s250 = smul.addr %s249, 4
      %s251 = scalar_lea.vmem %s0, %s250
      %s252 = smul.u32 64, %s21
      %p253 = scmp.lt.s32.totalorder %s20, 3
      %s254 = scalar_select %p253, %s20, 3
      %s255 = smul.addr %s254, 8
      %s256 = smul.addr %s255, 4
      %s257 = scalar_lea.vmem %s1, %s256
      %s258 = smul.u32 64, %s21
      %p259 = scmp.lt.s32.totalorder %s20, 3
      %s260 = scalar_select %p259, %s20, 3
      %p261 = scmp.lt.s32.totalorder %s258, 63
      %s262 = scalar_select %p261, %s258, 63
      %s263 = smul.addr %s260, 64
      %s264 = sadd.s32 %s262, %s263
      %s265 = smul.addr %s264, 8
      %s266 = scalar_lea.vmem %s2, %s265
      %s267 = smul.u32 64, %s21
      %p268 = scmp.lt.s32.totalorder %s20, 3
      %s269 = scalar_select %p268, %s20, 3
      %s270 = scalar_lea.vmem %s3, %s269
      %p271 = scmp.lt.s32.totalorder %s20, 3
      %s272 = scalar_select %p271, %s20, 3
      %s273 = scalar_lea.vmem %s4, %s272
      %p275 = scmp.eq.s32.totalorder %s21, 0
      // Predicated region
      $region29: #{stage1_generator_forward.13} parent=27 // pred_check
        %p276 = pneg %p275
      $region30: #{stage1_generator_forward.13} parent=27 // pred_check_branch
        %278 = sbr.rel (%p276) target = $region32
      $region31: #{stage1_generator_forward.13} parent=27 // pred_region
        %vm279 = vcmask 57344
        %280 = vst.msk [vmem:[%s270] sm:$0x1] %vm279, 0.0
        %281 = vst.msk [vmem:[%s273] sm:$0x1] %vm279, 0.0
      $region32: #{stage1_generator_forward.13} parent=27 // pred_fallthru
        _
      %v282 = vld [vmem:[%s251] sm:$0xf]
      %v283 = vld [vmem:[%s251 + $0x4] sm:$0xf]
      %v284 = vld [vmem:[%s251 + $0x8] sm:$0xf]
      %v285 = vld [vmem:[%s251 + $0xc] sm:$0xf]
      %v286 = vld [vmem:[%s251 + $0x10] sm:$0xf]
      %v287 = vld [vmem:[%s251 + $0x14] sm:$0xf]
      %v288 = vld [vmem:[%s251 + $0x18] sm:$0xf]
      %v289 = vld [vmem:[%s251 + $0x1c] sm:$0xf]
      %v290 = vld [vmem:[%s251 + $0x20] sm:$0xf]
      %v291 = vld [vmem:[%s251 + $0x24] sm:$0xf]
      %v292 = vld [vmem:[%s251 + $0x28] sm:$0xf]
      %v293 = vld [vmem:[%s251 + $0x2c] sm:$0xf]
      %v294 = vld [vmem:[%s251 + $0x30] sm:$0xf]
      %v295 = vld [vmem:[%s251 + $0x34] sm:$0xf]
      %v296 = vld [vmem:[%s251 + $0x38] sm:$0xf]
      %v297 = vld [vmem:[%s251 + $0x3c] sm:$0xf]
      %v298 = vld [vmem:[%s251 + $0x40] sm:$0xf]
      %v299 = vld [vmem:[%s251 + $0x44] sm:$0xf]
      %v300 = vld [vmem:[%s251 + $0x48] sm:$0xf]
      %v301 = vld [vmem:[%s251 + $0x4c] sm:$0xf]
      %v302 = vld [vmem:[%s251 + $0x50] sm:$0xf]
      %v303 = vld [vmem:[%s251 + $0x54] sm:$0xf]
      %v304 = vld [vmem:[%s251 + $0x58] sm:$0xf]
      %v305 = vld [vmem:[%s251 + $0x5c] sm:$0xf]
      %v306 = vld [vmem:[%s251 + $0x60] sm:$0xf]
      %v307 = vld [vmem:[%s251 + $0x64] sm:$0xf]
      %v308 = vld [vmem:[%s251 + $0x68] sm:$0xf]
      %v309 = vld [vmem:[%s251 + $0x6c] sm:$0xf]
      %v310 = vld [vmem:[%s251 + $0x70] sm:$0xf]
      %v311 = vld [vmem:[%s251 + $0x74] sm:$0xf]
      %v312 = vld [vmem:[%s251 + $0x78] sm:$0xf]
      %v313 = vld [vmem:[%s251 + $0x7c] sm:$0xf]
      %v314 = vld [vmem:[%s251 + $0x80] sm:$0xf]
      %v315 = vld [vmem:[%s251 + $0x84] sm:$0xf]
      %v316 = vld [vmem:[%s251 + $0x88] sm:$0xf]
      %v317 = vld [vmem:[%s251 + $0x8c] sm:$0xf]
      %v318 = vld [vmem:[%s251 + $0x90] sm:$0xf]
      %v319 = vld [vmem:[%s251 + $0x94] sm:$0xf]
      %v320 = vld [vmem:[%s251 + $0x98] sm:$0xf]
      %v321 = vld [vmem:[%s251 + $0x9c] sm:$0xf]
      %v322 = vld [vmem:[%s251 + $0xa0] sm:$0xf]
      %v323 = vld [vmem:[%s251 + $0xa4] sm:$0xf]
      %v324 = vld [vmem:[%s251 + $0xa8] sm:$0xf]
      %v325 = vld [vmem:[%s251 + $0xac] sm:$0xf]
      %v326 = vld [vmem:[%s251 + $0xb0] sm:$0xf]
      %v327 = vld [vmem:[%s251 + $0xb4] sm:$0xf]
      %v328 = vld [vmem:[%s251 + $0xb8] sm:$0xf]
      %v329 = vld [vmem:[%s251 + $0xbc] sm:$0xf]
      %v330 = vld [vmem:[%s251 + $0xc0] sm:$0xf]
      %v331 = vld [vmem:[%s251 + $0xc4] sm:$0xf]
      %v332 = vld [vmem:[%s251 + $0xc8] sm:$0xf]
      %v333 = vld [vmem:[%s251 + $0xcc] sm:$0xf]
      %v334 = vld [vmem:[%s251 + $0xd0] sm:$0xf]
      %v335 = vld [vmem:[%s251 + $0xd4] sm:$0xf]
      %v336 = vld [vmem:[%s251 + $0xd8] sm:$0xf]
      %v337 = vld [vmem:[%s251 + $0xdc] sm:$0xf]
      %v338 = vld [vmem:[%s251 + $0xe0] sm:$0xf]
      %v339 = vld [vmem:[%s251 + $0xe4] sm:$0xf]
      %v340 = vld [vmem:[%s251 + $0xe8] sm:$0xf]
      %v341 = vld [vmem:[%s251 + $0xec] sm:$0xf]
      %v342 = vld [vmem:[%s251 + $0xf0] sm:$0xf]
      %v343 = vld [vmem:[%s251 + $0xf4] sm:$0xf]
      %v344 = vld [vmem:[%s251 + $0xf8] sm:$0xf]
      %v345 = vld [vmem:[%s251 + $0xfc] sm:$0xf]
      %v346 = vld [vmem:[%s257] sm:$0xf]
      %v347 = vld [vmem:[%s257 + $0x4] sm:$0xf]
      %v348 = vld [vmem:[%s257 + $0x8] sm:$0xf]
      %v349 = vld [vmem:[%s257 + $0xc] sm:$0xf]
      %v350 = vld [vmem:[%s257 + $0x10] sm:$0xf]
      %v351 = vld [vmem:[%s257 + $0x14] sm:$0xf]
      %v352 = vld [vmem:[%s257 + $0x18] sm:$0xf]
      %v353 = vld [vmem:[%s257 + $0x1c] sm:$0xf]
      %v418 = vunpack.c.l.b16 %v282
      %v419 = vunpack.c.l.b16 %v283
      %v420 = vunpack.c.l.b16 %v284
      %v421 = vunpack.c.l.b16 %v285
      %v422 = vunpack.c.l.b16 %v286
      %v423 = vunpack.c.l.b16 %v287
      %v424 = vunpack.c.l.b16 %v288
      %v425 = vunpack.c.l.b16 %v289
      %v426 = vunpack.c.l.b16 %v290
      %v427 = vunpack.c.l.b16 %v291
      %v428 = vunpack.c.l.b16 %v292
      %v429 = vunpack.c.l.b16 %v293
      %v430 = vunpack.c.l.b16 %v294
      %v431 = vunpack.c.l.b16 %v295
      %v432 = vunpack.c.l.b16 %v296
      %v433 = vunpack.c.l.b16 %v297
      %v434 = vunpack.c.l.b16 %v298
      %v435 = vunpack.c.l.b16 %v299
      %v436 = vunpack.c.l.b16 %v300
      %v437 = vunpack.c.l.b16 %v301
      %v438 = vunpack.c.l.b16 %v302
      %v439 = vunpack.c.l.b16 %v303
      %v440 = vunpack.c.l.b16 %v304
      %v441 = vunpack.c.l.b16 %v305
      %v442 = vunpack.c.l.b16 %v306
      %v443 = vunpack.c.l.b16 %v307
      %v444 = vunpack.c.l.b16 %v308
      %v445 = vunpack.c.l.b16 %v309
      %v446 = vunpack.c.l.b16 %v310
      %v447 = vunpack.c.l.b16 %v311
      %v448 = vunpack.c.l.b16 %v312
      %v449 = vunpack.c.l.b16 %v313
      %v450 = vunpack.c.l.b16 %v314
      %v451 = vunpack.c.l.b16 %v315
      %v452 = vunpack.c.l.b16 %v316
      %v453 = vunpack.c.l.b16 %v317
      %v454 = vunpack.c.l.b16 %v318
      %v455 = vunpack.c.l.b16 %v319
      %v456 = vunpack.c.l.b16 %v320
      %v457 = vunpack.c.l.b16 %v321
      %v458 = vunpack.c.l.b16 %v322
      %v459 = vunpack.c.l.b16 %v323
      %v460 = vunpack.c.l.b16 %v324
      %v461 = vunpack.c.l.b16 %v325
      %v462 = vunpack.c.l.b16 %v326
      %v463 = vunpack.c.l.b16 %v327
      %v464 = vunpack.c.l.b16 %v328
      %v465 = vunpack.c.l.b16 %v329
      %v466 = vunpack.c.l.b16 %v330
      %v467 = vunpack.c.l.b16 %v331
      %v468 = vunpack.c.l.b16 %v332
      %v469 = vunpack.c.l.b16 %v333
      %v470 = vunpack.c.l.b16 %v334
      %v471 = vunpack.c.l.b16 %v335
      %v472 = vunpack.c.l.b16 %v336
      %v473 = vunpack.c.l.b16 %v337
      %v474 = vunpack.c.l.b16 %v338
      %v475 = vunpack.c.l.b16 %v339
      %v476 = vunpack.c.l.b16 %v340
      %v477 = vunpack.c.l.b16 %v341
      %v478 = vunpack.c.l.b16 %v342
      %v479 = vunpack.c.l.b16 %v343
      %v480 = vunpack.c.l.b16 %v344
      %v481 = vunpack.c.l.b16 %v345
      %v482 = vpack.c.b16 %v419, %v418
      %v483 = vpack.c.b16 %v421, %v420
      %v484 = vpack.c.b16 %v423, %v422
      %v485 = vpack.c.b16 %v425, %v424
      %v486 = vpack.c.b16 %v427, %v426
      %v487 = vpack.c.b16 %v429, %v428
      %v488 = vpack.c.b16 %v431, %v430
      %v489 = vpack.c.b16 %v433, %v432
      %v490 = vpack.c.b16 %v435, %v434
      %v491 = vpack.c.b16 %v437, %v436
      %v492 = vpack.c.b16 %v439, %v438
      %v493 = vpack.c.b16 %v441, %v440
      %v494 = vpack.c.b16 %v443, %v442
      %v495 = vpack.c.b16 %v445, %v444
      %v496 = vpack.c.b16 %v447, %v446
      %v497 = vpack.c.b16 %v449, %v448
      %v498 = vpack.c.b16 %v451, %v450
      %v499 = vpack.c.b16 %v453, %v452
      %v500 = vpack.c.b16 %v455, %v454
      %v501 = vpack.c.b16 %v457, %v456
      %v502 = vpack.c.b16 %v459, %v458
      %v503 = vpack.c.b16 %v461, %v460
      %v504 = vpack.c.b16 %v463, %v462
      %v505 = vpack.c.b16 %v465, %v464
      %v506 = vpack.c.b16 %v467, %v466
      %v507 = vpack.c.b16 %v469, %v468
      %v508 = vpack.c.b16 %v471, %v470
      %v509 = vpack.c.b16 %v473, %v472
      %v510 = vpack.c.b16 %v475, %v474
      %v511 = vpack.c.b16 %v477, %v476
      %v512 = vpack.c.b16 %v479, %v478
      %v513 = vpack.c.b16 %v481, %v480
      %v522 = vunpack.c.l.b16 %v346
      %v523 = vunpack.c.l.b16 %v347
      %v524 = vunpack.c.l.b16 %v348
      %v525 = vunpack.c.l.b16 %v349
      %v526 = vunpack.c.l.b16 %v350
      %v527 = vunpack.c.l.b16 %v351
      %v528 = vunpack.c.l.b16 %v352
      %v529 = vunpack.c.l.b16 %v353
      %v530 = vpack.c.b16 %v523, %v522
      %v531 = vpack.c.b16 %v525, %v524
      %v532 = vpack.c.b16 %v527, %v526
      %v533 = vpack.c.b16 %v529, %v528
      %vm538 = vcmask 523264
      %v540 = vsel %vm538, %v482, 0
      %v543 = vsel %vm538, %v483, 0
      %v546 = vsel %vm538, %v484, 0
      %v549 = vsel %vm538, %v485, 0
      %v552 = vsel %vm538, %v486, 0
      %v555 = vsel %vm538, %v487, 0
      %v558 = vsel %vm538, %v488, 0
      %v561 = vsel %vm538, %v489, 0
      %v564 = vsel %vm538, %v490, 0
      %v567 = vsel %vm538, %v491, 0
      %v570 = vsel %vm538, %v492, 0
      %v573 = vsel %vm538, %v493, 0
      %v576 = vsel %vm538, %v494, 0
      %v579 = vsel %vm538, %v495, 0
      %v582 = vsel %vm538, %v496, 0
      %v585 = vsel %vm538, %v497, 0
      %v588 = vsel %vm538, %v498, 0
      %v591 = vsel %vm538, %v499, 0
      %v594 = vsel %vm538, %v500, 0
      %v597 = vsel %vm538, %v501, 0
      %v600 = vsel %vm538, %v502, 0
      %v603 = vsel %vm538, %v503, 0
      %v606 = vsel %vm538, %v504, 0
      %v609 = vsel %vm538, %v505, 0
      %v612 = vsel %vm538, %v506, 0
      %v615 = vsel %vm538, %v507, 0
      %v618 = vsel %vm538, %v508, 0
      %v621 = vsel %vm538, %v509, 0
      %v624 = vsel %vm538, %v510, 0
      %v627 = vsel %vm538, %v511, 0
      %v630 = vsel %vm538, %v512, 0
      %v633 = vsel %vm538, %v513, 0
      %635 = vmatprep.subr.bf16.mxu0 0
      %636 = vmatpush1.bf16.msra.mxu0 0
      %637 = vmatprep.subr.bf16.mxu0 0
      %638 = vmatpush1.bf16.msra.mxu0 0
      %639 = vmatprep.subr.bf16.mxu0 0
      %640 = vmatpush1.bf16.msra.mxu0 0
      %641 = vmatprep.subr.bf16.mxu0 0
      %642 = vmatpush1.bf16.msra.mxu0 0
      %643 = vmatprep.subr.bf16.mxu0 0
      %644 = vmatpush1.bf16.msra.mxu0 %v533
      %645 = vmatprep.subr.bf16.mxu0 0
      %646 = vmatpush1.bf16.msra.mxu0 %v532
      %647 = vmatprep.subr.bf16.mxu0 0
      %648 = vmatpush1.bf16.msra.mxu0 %v531
      %649 = vmatprep.subr.bf16.mxu0 0
      %650 = vmatpush1.bf16.msra.mxu0 %v530
      %651 = vmatprep.subr.bf16.mxu0 0
      %652 = vmatpush2.bf16.msra.mxu0 0
      %653 = vmatprep.subr.bf16.mxu0 0
      %654 = vmatpush2.bf16.msra.mxu0 0
      %655 = vmatprep.subr.bf16.mxu0 0
      %656 = vmatpush2.bf16.msra.mxu0 0
      %657 = vmatprep.subr.bf16.mxu0 0
      %658 = vmatpush2.bf16.msra.mxu0 0
      %659 = vmatprep.subr.bf16.mxu0 0
      %660 = vmatpush2.bf16.msra.mxu0 0
      %661 = vmatprep.subr.bf16.mxu0 0
      %662 = vmatpush2.bf16.msra.mxu0 0
      %663 = vmatprep.subr.bf16.mxu0 0
      %664 = vmatpush2.bf16.msra.mxu0 0
      %665 = vmatprep.subr.bf16.mxu0 0
      %666 = vmatpush2.bf16.msra.mxu0 0
      %667 = vmatprep.mubr.bf16.mxu0 0
      %668 = vmatmul.mubr.bf16.gmra.mxu0 %v540
      %v669 = vpop.f32.mrf.mxu0
      %v670 = vadd.f32 0.0, %v669
      %v671 = vpop.f32.mrf.mxu0
      %v672 = vpop.f32.mrf.mxu0
      %v673 = vadd.f32 0.0, %v672
      %v674 = vpop.f32.mrf.mxu0
      %675 = vmatprep.mubr.bf16.mxu0 0
      %676 = vmatmul.mubr.bf16.gmra.mxu0 %v543
      %v677 = vpop.f32.mrf.mxu0
      %v678 = vadd.f32 0.0, %v677
      %v679 = vpop.f32.mrf.mxu0
      %v680 = vpop.f32.mrf.mxu0
      %v681 = vadd.f32 0.0, %v680
      %v682 = vpop.f32.mrf.mxu0
      %683 = vmatprep.mubr.bf16.mxu0 0
      %684 = vmatmul.mubr.bf16.gmra.mxu0 %v546
      %v685 = vpop.f32.mrf.mxu0
      %v686 = vadd.f32 0.0, %v685
      %v687 = vpop.f32.mrf.mxu0
      %v688 = vpop.f32.mrf.mxu0
      %v689 = vadd.f32 0.0, %v688
      %v690 = vpop.f32.mrf.mxu0
      %691 = vmatprep.mubr.bf16.mxu0 0
      %692 = vmatmul.mubr.bf16.gmra.mxu0 %v549
      %v693 = vpop.f32.mrf.mxu0
      %v694 = vadd.f32 0.0, %v693
      %v695 = vpop.f32.mrf.mxu0
      %v696 = vpop.f32.mrf.mxu0
      %v697 = vadd.f32 0.0, %v696
      %v698 = vpop.f32.mrf.mxu0
      %699 = vmatprep.mubr.bf16.mxu0 0
      %700 = vmatmul.mubr.bf16.gmra.mxu0 %v552
      %v701 = vpop.f32.mrf.mxu0
      %v702 = vadd.f32 0.0, %v701
      %v703 = vpop.f32.mrf.mxu0
      %v704 = vpop.f32.mrf.mxu0
      %v705 = vadd.f32 0.0, %v704
      %v706 = vpop.f32.mrf.mxu0
      %707 = vmatprep.mubr.bf16.mxu0 0
      %708 = vmatmul.mubr.bf16.gmra.mxu0 %v555
      %v709 = vpop.f32.mrf.mxu0
      %v710 = vadd.f32 0.0, %v709
      %v711 = vpop.f32.mrf.mxu0
      %v712 = vpop.f32.mrf.mxu0
      %v713 = vadd.f32 0.0, %v712
      %v714 = vpop.f32.mrf.mxu0
      %715 = vmatprep.mubr.bf16.mxu0 0
      %716 = vmatmul.mubr.bf16.gmra.mxu0 %v558
      %v717 = vpop.f32.mrf.mxu0
      %v718 = vadd.f32 0.0, %v717
      %v719 = vpop.f32.mrf.mxu0
      %v720 = vpop.f32.mrf.mxu0
      %v721 = vadd.f32 0.0, %v720
      %v722 = vpop.f32.mrf.mxu0
      %723 = vmatprep.mubr.bf16.mxu0 0
      %724 = vmatmul.mubr.bf16.gmra.mxu0 %v561
      %v725 = vpop.f32.mrf.mxu0
      %v726 = vadd.f32 0.0, %v725
      %v727 = vpop.f32.mrf.mxu0
      %v728 = vpop.f32.mrf.mxu0
      %v729 = vadd.f32 0.0, %v728
      %v730 = vpop.f32.mrf.mxu0
      %731 = vmatprep.mubr.bf16.mxu0 0
      %732 = vmatmul.mubr.bf16.gmra.mxu0 %v564
      %v733 = vpop.f32.mrf.mxu0
      %v734 = vadd.f32 0.0, %v733
      %v735 = vpop.f32.mrf.mxu0
      %v736 = vpop.f32.mrf.mxu0
      %v737 = vadd.f32 0.0, %v736
      %v738 = vpop.f32.mrf.mxu0
      %739 = vmatprep.mubr.bf16.mxu0 0
      %740 = vmatmul.mubr.bf16.gmra.mxu0 %v567
      %v741 = vpop.f32.mrf.mxu0
      %v742 = vadd.f32 0.0, %v741
      %v743 = vpop.f32.mrf.mxu0
      %v744 = vpop.f32.mrf.mxu0
      %v745 = vadd.f32 0.0, %v744
      %v746 = vpop.f32.mrf.mxu0
      %747 = vmatprep.mubr.bf16.mxu0 0
      %748 = vmatmul.mubr.bf16.gmra.mxu0 %v570
      %v749 = vpop.f32.mrf.mxu0
      %v750 = vadd.f32 0.0, %v749
      %v751 = vpop.f32.mrf.mxu0
      %v752 = vpop.f32.mrf.mxu0
      %v753 = vadd.f32 0.0, %v752
      %v754 = vpop.f32.mrf.mxu0
      %755 = vmatprep.mubr.bf16.mxu0 0
      %756 = vmatmul.mubr.bf16.gmra.mxu0 %v573
      %v757 = vpop.f32.mrf.mxu0
      %v758 = vadd.f32 0.0, %v757
      %v759 = vpop.f32.mrf.mxu0
      %v760 = vpop.f32.mrf.mxu0
      %v761 = vadd.f32 0.0, %v760
      %v762 = vpop.f32.mrf.mxu0
      %763 = vmatprep.mubr.bf16.mxu0 0
      %764 = vmatmul.mubr.bf16.gmra.mxu0 %v576
      %v765 = vpop.f32.mrf.mxu0
      %v766 = vadd.f32 0.0, %v765
      %v767 = vpop.f32.mrf.mxu0
      %v768 = vpop.f32.mrf.mxu0
      %v769 = vadd.f32 0.0, %v768
      %v770 = vpop.f32.mrf.mxu0
      %771 = vmatprep.mubr.bf16.mxu0 0
      %772 = vmatmul.mubr.bf16.gmra.mxu0 %v579
      %v773 = vpop.f32.mrf.mxu0
      %v774 = vadd.f32 0.0, %v773
      %v775 = vpop.f32.mrf.mxu0
      %v776 = vpop.f32.mrf.mxu0
      %v777 = vadd.f32 0.0, %v776
      %v778 = vpop.f32.mrf.mxu0
      %779 = vmatprep.mubr.bf16.mxu0 0
      %780 = vmatmul.mubr.bf16.gmra.mxu0 %v582
      %v781 = vpop.f32.mrf.mxu0
      %v782 = vadd.f32 0.0, %v781
      %v783 = vpop.f32.mrf.mxu0
      %v784 = vpop.f32.mrf.mxu0
      %v785 = vadd.f32 0.0, %v784
      %v786 = vpop.f32.mrf.mxu0
      %787 = vmatprep.mubr.bf16.mxu0 0
      %788 = vmatmul.mubr.bf16.gmra.mxu0 %v585
      %v789 = vpop.f32.mrf.mxu0
      %v790 = vadd.f32 0.0, %v789
      %v791 = vpop.f32.mrf.mxu0
      %v792 = vpop.f32.mrf.mxu0
      %v793 = vadd.f32 0.0, %v792
      %v794 = vpop.f32.mrf.mxu0
      %795 = vmatprep.mubr.bf16.mxu0 0
      %796 = vmatmul.mubr.bf16.gmra.mxu0 %v588
      %v797 = vpop.f32.mrf.mxu0
      %v798 = vadd.f32 0.0, %v797
      %v799 = vpop.f32.mrf.mxu0
      %v800 = vpop.f32.mrf.mxu0
      %v801 = vadd.f32 0.0, %v800
      %v802 = vpop.f32.mrf.mxu0
      %803 = vmatprep.mubr.bf16.mxu0 0
      %804 = vmatmul.mubr.bf16.gmra.mxu0 %v591
      %v805 = vpop.f32.mrf.mxu0
      %v806 = vadd.f32 0.0, %v805
      %v807 = vpop.f32.mrf.mxu0
      %v808 = vpop.f32.mrf.mxu0
      %v809 = vadd.f32 0.0, %v808
      %v810 = vpop.f32.mrf.mxu0
      %811 = vmatprep.mubr.bf16.mxu0 0
      %812 = vmatmul.mubr.bf16.gmra.mxu0 %v594
      %v813 = vpop.f32.mrf.mxu0
      %v814 = vadd.f32 0.0, %v813
      %v815 = vpop.f32.mrf.mxu0
      %v816 = vpop.f32.mrf.mxu0
      %v817 = vadd.f32 0.0, %v816
      %v818 = vpop.f32.mrf.mxu0
      %819 = vmatprep.mubr.bf16.mxu0 0
      %820 = vmatmul.mubr.bf16.gmra.mxu0 %v597
      %v821 = vpop.f32.mrf.mxu0
      %v822 = vadd.f32 0.0, %v821
      %v823 = vpop.f32.mrf.mxu0
      %v824 = vpop.f32.mrf.mxu0
      %v825 = vadd.f32 0.0, %v824
      %v826 = vpop.f32.mrf.mxu0
      %827 = vmatprep.mubr.bf16.mxu0 0
      %828 = vmatmul.mubr.bf16.gmra.mxu0 %v600
      %v829 = vpop.f32.mrf.mxu0
      %v830 = vadd.f32 0.0, %v829
      %v831 = vpop.f32.mrf.mxu0
      %v832 = vpop.f32.mrf.mxu0
      %v833 = vadd.f32 0.0, %v832
      %v834 = vpop.f32.mrf.mxu0
      %835 = vmatprep.mubr.bf16.mxu0 0
      %836 = vmatmul.mubr.bf16.gmra.mxu0 %v603
      %v837 = vpop.f32.mrf.mxu0
      %v838 = vadd.f32 0.0, %v837
      %v839 = vpop.f32.mrf.mxu0
      %v840 = vpop.f32.mrf.mxu0
      %v841 = vadd.f32 0.0, %v840
      %v842 = vpop.f32.mrf.mxu0
      %843 = vmatprep.mubr.bf16.mxu0 0
      %844 = vmatmul.mubr.bf16.gmra.mxu0 %v606
      %v845 = vpop.f32.mrf.mxu0
      %v846 = vadd.f32 0.0, %v845
      %v847 = vpop.f32.mrf.mxu0
      %v848 = vpop.f32.mrf.mxu0
      %v849 = vadd.f32 0.0, %v848
      %v850 = vpop.f32.mrf.mxu0
      %851 = vmatprep.mubr.bf16.mxu0 0
      %852 = vmatmul.mubr.bf16.gmra.mxu0 %v609
      %v853 = vpop.f32.mrf.mxu0
      %v854 = vadd.f32 0.0, %v853
      %v855 = vpop.f32.mrf.mxu0
      %v856 = vpop.f32.mrf.mxu0
      %v857 = vadd.f32 0.0, %v856
      %v858 = vpop.f32.mrf.mxu0
      %859 = vmatprep.mubr.bf16.mxu0 0
      %860 = vmatmul.mubr.bf16.gmra.mxu0 %v612
      %v861 = vpop.f32.mrf.mxu0
      %v862 = vadd.f32 0.0, %v861
      %v863 = vpop.f32.mrf.mxu0
      %v864 = vpop.f32.mrf.mxu0
      %v865 = vadd.f32 0.0, %v864
      %v866 = vpop.f32.mrf.mxu0
      %867 = vmatprep.mubr.bf16.mxu0 0
      %868 = vmatmul.mubr.bf16.gmra.mxu0 %v615
      %v869 = vpop.f32.mrf.mxu0
      %v870 = vadd.f32 0.0, %v869
      %v871 = vpop.f32.mrf.mxu0
      %v872 = vpop.f32.mrf.mxu0
      %v873 = vadd.f32 0.0, %v872
      %v874 = vpop.f32.mrf.mxu0
      %875 = vmatprep.mubr.bf16.mxu0 0
      %876 = vmatmul.mubr.bf16.gmra.mxu0 %v618
      %v877 = vpop.f32.mrf.mxu0
      %v878 = vadd.f32 0.0, %v877
      %v879 = vpop.f32.mrf.mxu0
      %v880 = vpop.f32.mrf.mxu0
      %v881 = vadd.f32 0.0, %v880
      %v882 = vpop.f32.mrf.mxu0
      %883 = vmatprep.mubr.bf16.mxu0 0
      %884 = vmatmul.mubr.bf16.gmra.mxu0 %v621
      %v885 = vpop.f32.mrf.mxu0
      %v886 = vadd.f32 0.0, %v885
      %v887 = vpop.f32.mrf.mxu0
      %v888 = vpop.f32.mrf.mxu0
      %v889 = vadd.f32 0.0, %v888
      %v890 = vpop.f32.mrf.mxu0
      %891 = vmatprep.mubr.bf16.mxu0 0
      %892 = vmatmul.mubr.bf16.gmra.mxu0 %v624
      %v893 = vpop.f32.mrf.mxu0
      %v894 = vadd.f32 0.0, %v893
      %v895 = vpop.f32.mrf.mxu0
      %v896 = vpop.f32.mrf.mxu0
      %v897 = vadd.f32 0.0, %v896
      %v898 = vpop.f32.mrf.mxu0
      %899 = vmatprep.mubr.bf16.mxu0 0
      %900 = vmatmul.mubr.bf16.gmra.mxu0 %v627
      %v901 = vpop.f32.mrf.mxu0
      %v902 = vadd.f32 0.0, %v901
      %v903 = vpop.f32.mrf.mxu0
      %v904 = vpop.f32.mrf.mxu0
      %v905 = vadd.f32 0.0, %v904
      %v906 = vpop.f32.mrf.mxu0
      %907 = vmatprep.mubr.bf16.mxu0 0
      %908 = vmatmul.mubr.bf16.gmra.mxu0 %v630
      %v909 = vpop.f32.mrf.mxu0
      %v910 = vadd.f32 0.0, %v909
      %v911 = vpop.f32.mrf.mxu0
      %v912 = vpop.f32.mrf.mxu0
      %v913 = vadd.f32 0.0, %v912
      %v914 = vpop.f32.mrf.mxu0
      %915 = vmatprep.mubr.bf16.mxu0 0
      %916 = vmatmul.mubr.bf16.gmra.mxu0 %v633
      %v917 = vpop.f32.mrf.mxu0
      %v918 = vadd.f32 0.0, %v917
      %v919 = vpop.f32.mrf.mxu0
      %v920 = vpop.f32.mrf.mxu0
      %v921 = vadd.f32 0.0, %v920
      %v922 = vpop.f32.mrf.mxu0
      %923 = vdwg.mxu0
      %vm924 = vcmask 64512
      %925 = vst.msk [vmem:[%s266] sm:$0xff] %vm924, %v670
      %926 = vst.msk [vmem:[%s266 + $0x8] sm:$0xff] %vm924, %v673
      %927 = vst.msk [vmem:[%s266 + $0x10] sm:$0xff] %vm924, %v678
      %928 = vst.msk [vmem:[%s266 + $0x18] sm:$0xff] %vm924, %v681
      %929 = vst.msk [vmem:[%s266 + $0x20] sm:$0xff] %vm924, %v686
      %930 = vst.msk [vmem:[%s266 + $0x28] sm:$0xff] %vm924, %v689
      %931 = vst.msk [vmem:[%s266 + $0x30] sm:$0xff] %vm924, %v694
      %932 = vst.msk [vmem:[%s266 + $0x38] sm:$0xff] %vm924, %v697
      %933 = vst.msk [vmem:[%s266 + $0x40] sm:$0xff] %vm924, %v702
      %934 = vst.msk [vmem:[%s266 + $0x48] sm:$0xff] %vm924, %v705
      %935 = vst.msk [vmem:[%s266 + $0x50] sm:$0xff] %vm924, %v710
      %936 = vst.msk [vmem:[%s266 + $0x58] sm:$0xff] %vm924, %v713
      %937 = vst.msk [vmem:[%s266 + $0x60] sm:$0xff] %vm924, %v718
      %938 = vst.msk [vmem:[%s266 + $0x68] sm:$0xff] %vm924, %v721
      %939 = vst.msk [vmem:[%s266 + $0x70] sm:$0xff] %vm924, %v726
      %940 = vst.msk [vmem:[%s266 + $0x78] sm:$0xff] %vm924, %v729
      %941 = vst.msk [vmem:[%s266 + $0x80] sm:$0xff] %vm924, %v734
      %942 = vst.msk [vmem:[%s266 + $0x88] sm:$0xff] %vm924, %v737
      %943 = vst.msk [vmem:[%s266 + $0x90] sm:$0xff] %vm924, %v742
      %944 = vst.msk [vmem:[%s266 + $0x98] sm:$0xff] %vm924, %v745
      %945 = vst.msk [vmem:[%s266 + $0xa0] sm:$0xff] %vm924, %v750
      %946 = vst.msk [vmem:[%s266 + $0xa8] sm:$0xff] %vm924, %v753
      %947 = vst.msk [vmem:[%s266 + $0xb0] sm:$0xff] %vm924, %v758
      %948 = vst.msk [vmem:[%s266 + $0xb8] sm:$0xff] %vm924, %v761
      %949 = vst.msk [vmem:[%s266 + $0xc0] sm:$0xff] %vm924, %v766
      %950 = vst.msk [vmem:[%s266 + $0xc8] sm:$0xff] %vm924, %v769
      %951 = vst.msk [vmem:[%s266 + $0xd0] sm:$0xff] %vm924, %v774
      %952 = vst.msk [vmem:[%s266 + $0xd8] sm:$0xff] %vm924, %v777
      %953 = vst.msk [vmem:[%s266 + $0xe0] sm:$0xff] %vm924, %v782
      %954 = vst.msk [vmem:[%s266 + $0xe8] sm:$0xff] %vm924, %v785
      %955 = vst.msk [vmem:[%s266 + $0xf0] sm:$0xff] %vm924, %v790
      %956 = vst.msk [vmem:[%s266 + $0xf8] sm:$0xff] %vm924, %v793
      %957 = vst.msk [vmem:[%s266 + $0x100] sm:$0xff] %vm924, %v798
      %958 = vst.msk [vmem:[%s266 + $0x108] sm:$0xff] %vm924, %v801
      %959 = vst.msk [vmem:[%s266 + $0x110] sm:$0xff] %vm924, %v806
      %960 = vst.msk [vmem:[%s266 + $0x118] sm:$0xff] %vm924, %v809
      %961 = vst.msk [vmem:[%s266 + $0x120] sm:$0xff] %vm924, %v814
      %962 = vst.msk [vmem:[%s266 + $0x128] sm:$0xff] %vm924, %v817
      %963 = vst.msk [vmem:[%s266 + $0x130] sm:$0xff] %vm924, %v822
      %964 = vst.msk [vmem:[%s266 + $0x138] sm:$0xff] %vm924, %v825
      %965 = vst.msk [vmem:[%s266 + $0x140] sm:$0xff] %vm924, %v830
      %966 = vst.msk [vmem:[%s266 + $0x148] sm:$0xff] %vm924, %v833
      %967 = vst.msk [vmem:[%s266 + $0x150] sm:$0xff] %vm924, %v838
      %968 = vst.msk [vmem:[%s266 + $0x158] sm:$0xff] %vm924, %v841
      %969 = vst.msk [vmem:[%s266 + $0x160] sm:$0xff] %vm924, %v846
      %970 = vst.msk [vmem:[%s266 + $0x168] sm:$0xff] %vm924, %v849
      %971 = vst.msk [vmem:[%s266 + $0x170] sm:$0xff] %vm924, %v854
      %972 = vst.msk [vmem:[%s266 + $0x178] sm:$0xff] %vm924, %v857
      %973 = vst.msk [vmem:[%s266 + $0x180] sm:$0xff] %vm924, %v862
      %974 = vst.msk [vmem:[%s266 + $0x188] sm:$0xff] %vm924, %v865
      %975 = vst.msk [vmem:[%s266 + $0x190] sm:$0xff] %vm924, %v870
      %976 = vst.msk [vmem:[%s266 + $0x198] sm:$0xff] %vm924, %v873
      %977 = vst.msk [vmem:[%s266 + $0x1a0] sm:$0xff] %vm924, %v878
      %978 = vst.msk [vmem:[%s266 + $0x1a8] sm:$0xff] %vm924, %v881
      %979 = vst.msk [vmem:[%s266 + $0x1b0] sm:$0xff] %vm924, %v886
      %980 = vst.msk [vmem:[%s266 + $0x1b8] sm:$0xff] %vm924, %v889
      %981 = vst.msk [vmem:[%s266 + $0x1c0] sm:$0xff] %vm924, %v894
      %982 = vst.msk [vmem:[%s266 + $0x1c8] sm:$0xff] %vm924, %v897
      %983 = vst.msk [vmem:[%s266 + $0x1d0] sm:$0xff] %vm924, %v902
      %984 = vst.msk [vmem:[%s266 + $0x1d8] sm:$0xff] %vm924, %v905
      %985 = vst.msk [vmem:[%s266 + $0x1e0] sm:$0xff] %vm924, %v910
      %986 = vst.msk [vmem:[%s266 + $0x1e8] sm:$0xff] %vm924, %v913
      %987 = vst.msk [vmem:[%s266 + $0x1f0] sm:$0xff] %vm924, %v918
      %988 = vst.msk [vmem:[%s266 + $0x1f8] sm:$0xff] %vm924, %v921
      %v989 = vld [vmem:[%s270] sm:$0x1]
      %v990 = vsel %vm924, %v670, 0.0
      %v991 = vsel %vm924, %v673, 0.0
      %v992 = vadd.f32 %v990, %v991
      %v993 = vsel %vm924, %v678, 0.0
      %v994 = vadd.f32 %v992, %v993
      %v995 = vsel %vm924, %v681, 0.0
      %v996 = vadd.f32 %v994, %v995
      %v997 = vsel %vm924, %v686, 0.0
      %v998 = vadd.f32 %v996, %v997
      %v999 = vsel %vm924, %v689, 0.0
      %v1000 = vadd.f32 %v998, %v999
      %v1001 = vsel %vm924, %v694, 0.0
      %v1002 = vadd.f32 %v1000, %v1001
      %v1003 = vsel %vm924, %v697, 0.0
      %v1004 = vadd.f32 %v1002, %v1003
      %v1005 = vsel %vm924, %v702, 0.0
      %v1006 = vadd.f32 %v1004, %v1005
      %v1007 = vsel %vm924, %v705, 0.0
      %v1008 = vadd.f32 %v1006, %v1007
      %v1009 = vsel %vm924, %v710, 0.0
      %v1010 = vadd.f32 %v1008, %v1009
      %v1011 = vsel %vm924, %v713, 0.0
      %v1012 = vadd.f32 %v1010, %v1011
      %v1013 = vsel %vm924, %v718, 0.0
      %v1014 = vadd.f32 %v1012, %v1013
      %v1015 = vsel %vm924, %v721, 0.0
      %v1016 = vadd.f32 %v1014, %v1015
      %v1017 = vsel %vm924, %v726, 0.0
      %v1018 = vadd.f32 %v1016, %v1017
      %v1019 = vsel %vm924, %v729, 0.0
      %v1020 = vadd.f32 %v1018, %v1019
      %v1021 = vsel %vm924, %v734, 0.0
      %v1022 = vadd.f32 %v1020, %v1021
      %v1023 = vsel %vm924, %v737, 0.0
      %v1024 = vadd.f32 %v1022, %v1023
      %v1025 = vsel %vm924, %v742, 0.0
      %v1026 = vadd.f32 %v1024, %v1025
      %v1027 = vsel %vm924, %v745, 0.0
      %v1028 = vadd.f32 %v1026, %v1027
      %v1029 = vsel %vm924, %v750, 0.0
      %v1030 = vadd.f32 %v1028, %v1029
      %v1031 = vsel %vm924, %v753, 0.0
      %v1032 = vadd.f32 %v1030, %v1031
      %v1033 = vsel %vm924, %v758, 0.0
      %v1034 = vadd.f32 %v1032, %v1033
      %v1035 = vsel %vm924, %v761, 0.0
      %v1036 = vadd.f32 %v1034, %v1035
      %v1037 = vsel %vm924, %v766, 0.0
      %v1038 = vadd.f32 %v1036, %v1037
      %v1039 = vsel %vm924, %v769, 0.0
      %v1040 = vadd.f32 %v1038, %v1039
      %v1041 = vsel %vm924, %v774, 0.0
      %v1042 = vadd.f32 %v1040, %v1041
      %v1043 = vsel %vm924, %v777, 0.0
      %v1044 = vadd.f32 %v1042, %v1043
      %v1045 = vsel %vm924, %v782, 0.0
      %v1046 = vadd.f32 %v1044, %v1045
      %v1047 = vsel %vm924, %v785, 0.0
      %v1048 = vadd.f32 %v1046, %v1047
      %v1049 = vsel %vm924, %v790, 0.0
      %v1050 = vadd.f32 %v1048, %v1049
      %v1051 = vsel %vm924, %v793, 0.0
      %v1052 = vadd.f32 %v1050, %v1051
      %v1053 = vsel %vm924, %v798, 0.0
      %v1054 = vadd.f32 %v1052, %v1053
      %v1055 = vsel %vm924, %v801, 0.0
      %v1056 = vadd.f32 %v1054, %v1055
      %v1057 = vsel %vm924, %v806, 0.0
      %v1058 = vadd.f32 %v1056, %v1057
      %v1059 = vsel %vm924, %v809, 0.0
      %v1060 = vadd.f32 %v1058, %v1059
      %v1061 = vsel %vm924, %v814, 0.0
      %v1062 = vadd.f32 %v1060, %v1061
      %v1063 = vsel %vm924, %v817, 0.0
      %v1064 = vadd.f32 %v1062, %v1063
      %v1065 = vsel %vm924, %v822, 0.0
      %v1066 = vadd.f32 %v1064, %v1065
      %v1067 = vsel %vm924, %v825, 0.0
      %v1068 = vadd.f32 %v1066, %v1067
      %v1069 = vsel %vm924, %v830, 0.0
      %v1070 = vadd.f32 %v1068, %v1069
      %v1071 = vsel %vm924, %v833, 0.0
      %v1072 = vadd.f32 %v1070, %v1071
      %v1073 = vsel %vm924, %v838, 0.0
      %v1074 = vadd.f32 %v1072, %v1073
      %v1075 = vsel %vm924, %v841, 0.0
      %v1076 = vadd.f32 %v1074, %v1075
      %v1077 = vsel %vm924, %v846, 0.0
      %v1078 = vadd.f32 %v1076, %v1077
      %v1079 = vsel %vm924, %v849, 0.0
      %v1080 = vadd.f32 %v1078, %v1079
      %v1081 = vsel %vm924, %v854, 0.0
      %v1082 = vadd.f32 %v1080, %v1081
      %v1083 = vsel %vm924, %v857, 0.0
      %v1084 = vadd.f32 %v1082, %v1083
      %v1085 = vsel %vm924, %v862, 0.0
      %v1086 = vadd.f32 %v1084, %v1085
      %v1087 = vsel %vm924, %v865, 0.0
      %v1088 = vadd.f32 %v1086, %v1087
      %v1089 = vsel %vm924, %v870, 0.0
      %v1090 = vadd.f32 %v1088, %v1089
      %v1091 = vsel %vm924, %v873, 0.0
      %v1092 = vadd.f32 %v1090, %v1091
      %v1093 = vsel %vm924, %v878, 0.0
      %v1094 = vadd.f32 %v1092, %v1093
      %v1095 = vsel %vm924, %v881, 0.0
      %v1096 = vadd.f32 %v1094, %v1095
      %v1097 = vsel %vm924, %v886, 0.0
      %v1098 = vadd.f32 %v1096, %v1097
      %v1099 = vsel %vm924, %v889, 0.0
      %v1100 = vadd.f32 %v1098, %v1099
      %v1101 = vsel %vm924, %v894, 0.0
      %v1102 = vadd.f32 %v1100, %v1101
      %v1103 = vsel %vm924, %v897, 0.0
      %v1104 = vadd.f32 %v1102, %v1103
      %v1105 = vsel %vm924, %v902, 0.0
      %v1106 = vadd.f32 %v1104, %v1105
      %v1107 = vsel %vm924, %v905, 0.0
      %v1108 = vadd.f32 %v1106, %v1107
      %v1109 = vsel %vm924, %v910, 0.0
      %v1110 = vadd.f32 %v1108, %v1109
      %v1111 = vsel %vm924, %v913, 0.0
      %v1112 = vadd.f32 %v1110, %v1111
      %v1113 = vsel %vm924, %v918, 0.0
      %v1114 = vadd.f32 %v1112, %v1113
      %v1115 = vsel %vm924, %v921, 0.0
      %v1116 = vadd.f32 %v1114, %v1115
      %v1117 = vrot.slane %v1116, 4
      %v1118 = vadd.f32 %v1116, %v1117
      %v1119 = vrot.slane %v1118, 2
      %v1120 = vadd.f32 %v1118, %v1119
      %v1121 = vrot.slane %v1120, 1
      %v1122 = vadd.f32 %v1120, %v1121
      %v1123 = vadd.f32 %v989, %v1122
      %vm1124 = vcmask 57344
      %1125 = vst.msk [vmem:[%s270] sm:$0x1] %vm1124, %v1123
      %v1126 = vld [vmem:[%s273] sm:$0x1]
      %v1127 = vmul.f32 %v670, %v670
      %v1128 = vmul.f32 %v673, %v673
      %v1129 = vmul.f32 %v678, %v678
      %v1130 = vmul.f32 %v681, %v681
      %v1131 = vmul.f32 %v686, %v686
      %v1132 = vmul.f32 %v689, %v689
      %v1133 = vmul.f32 %v694, %v694
      %v1134 = vmul.f32 %v697, %v697
      %v1135 = vmul.f32 %v702, %v702
      %v1136 = vmul.f32 %v705, %v705
      %v1137 = vmul.f32 %v710, %v710
      %v1138 = vmul.f32 %v713, %v713
      %v1139 = vmul.f32 %v718, %v718
      %v1140 = vmul.f32 %v721, %v721
      %v1141 = vmul.f32 %v726, %v726
      %v1142 = vmul.f32 %v729, %v729
      %v1143 = vmul.f32 %v734, %v734
      %v1144 = vmul.f32 %v737, %v737
      %v1145 = vmul.f32 %v742, %v742
      %v1146 = vmul.f32 %v745, %v745
      %v1147 = vmul.f32 %v750, %v750
      %v1148 = vmul.f32 %v753, %v753
      %v1149 = vmul.f32 %v758, %v758
      %v1150 = vmul.f32 %v761, %v761
      %v1151 = vmul.f32 %v766, %v766
      %v1152 = vmul.f32 %v769, %v769
      %v1153 = vmul.f32 %v774, %v774
      %v1154 = vmul.f32 %v777, %v777
      %v1155 = vmul.f32 %v782, %v782
      %v1156 = vmul.f32 %v785, %v785
      %v1157 = vmul.f32 %v790, %v790
      %v1158 = vmul.f32 %v793, %v793
      %v1159 = vmul.f32 %v798, %v798
      %v1160 = vmul.f32 %v801, %v801
      %v1161 = vmul.f32 %v806, %v806
      %v1162 = vmul.f32 %v809, %v809
      %v1163 = vmul.f32 %v814, %v814
      %v1164 = vmul.f32 %v817, %v817
      %v1165 = vmul.f32 %v822, %v822
      %v1166 = vmul.f32 %v825, %v825
      %v1167 = vmul.f32 %v830, %v830
      %v1168 = vmul.f32 %v833, %v833
      %v1169 = vmul.f32 %v838, %v838
      %v1170 = vmul.f32 %v841, %v841
      %v1171 = vmul.f32 %v846, %v846
      %v1172 = vmul.f32 %v849, %v849
      %v1173 = vmul.f32 %v854, %v854
      %v1174 = vmul.f32 %v857, %v857
      %v1175 = vmul.f32 %v862, %v862
      %v1176 = vmul.f32 %v865, %v865
      %v1177 = vmul.f32 %v870, %v870
      %v1178 = vmul.f32 %v873, %v873
      %v1179 = vmul.f32 %v878, %v878
      %v1180 = vmul.f32 %v881, %v881
      %v1181 = vmul.f32 %v886, %v886
      %v1182 = vmul.f32 %v889, %v889
      %v1183 = vmul.f32 %v894, %v894
      %v1184 = vmul.f32 %v897, %v897
      %v1185 = vmul.f32 %v902, %v902
      %v1186 = vmul.f32 %v905, %v905
      %v1187 = vmul.f32 %v910, %v910
      %v1188 = vmul.f32 %v913, %v913
      %v1189 = vmul.f32 %v918, %v918
      %v1190 = vmul.f32 %v921, %v921
      %v1191 = vsel %vm924, %v1127, 0.0
      %v1192 = vsel %vm924, %v1128, 0.0
      %v1193 = vadd.f32 %v1191, %v1192
      %v1194 = vsel %vm924, %v1129, 0.0
      %v1195 = vadd.f32 %v1193, %v1194
      %v1196 = vsel %vm924, %v1130, 0.0
      %v1197 = vadd.f32 %v1195, %v1196
      %v1198 = vsel %vm924, %v1131, 0.0
      %v1199 = vadd.f32 %v1197, %v1198
      %v1200 = vsel %vm924, %v1132, 0.0
      %v1201 = vadd.f32 %v1199, %v1200
      %v1202 = vsel %vm924, %v1133, 0.0
      %v1203 = vadd.f32 %v1201, %v1202
      %v1204 = vsel %vm924, %v1134, 0.0
      %v1205 = vadd.f32 %v1203, %v1204
      %v1206 = vsel %vm924, %v1135, 0.0
      %v1207 = vadd.f32 %v1205, %v1206
      %v1208 = vsel %vm924, %v1136, 0.0
      %v1209 = vadd.f32 %v1207, %v1208
      %v1210 = vsel %vm924, %v1137, 0.0
      %v1211 = vadd.f32 %v1209, %v1210
      %v1212 = vsel %vm924, %v1138, 0.0
      %v1213 = vadd.f32 %v1211, %v1212
      %v1214 = vsel %vm924, %v1139, 0.0
      %v1215 = vadd.f32 %v1213, %v1214
      %v1216 = vsel %vm924, %v1140, 0.0
      %v1217 = vadd.f32 %v1215, %v1216
      %v1218 = vsel %vm924, %v1141, 0.0
      %v1219 = vadd.f32 %v1217, %v1218
      %v1220 = vsel %vm924, %v1142, 0.0
      %v1221 = vadd.f32 %v1219, %v1220
      %v1222 = vsel %vm924, %v1143, 0.0
      %v1223 = vadd.f32 %v1221, %v1222
      %v1224 = vsel %vm924, %v1144, 0.0
      %v1225 = vadd.f32 %v1223, %v1224
      %v1226 = vsel %vm924, %v1145, 0.0
      %v1227 = vadd.f32 %v1225, %v1226
      %v1228 = vsel %vm924, %v1146, 0.0
      %v1229 = vadd.f32 %v1227, %v1228
      %v1230 = vsel %vm924, %v1147, 0.0
      %v1231 = vadd.f32 %v1229, %v1230
      %v1232 = vsel %vm924, %v1148, 0.0
      %v1233 = vadd.f32 %v1231, %v1232
      %v1234 = vsel %vm924, %v1149, 0.0
      %v1235 = vadd.f32 %v1233, %v1234
      %v1236 = vsel %vm924, %v1150, 0.0
      %v1237 = vadd.f32 %v1235, %v1236
      %v1238 = vsel %vm924, %v1151, 0.0
      %v1239 = vadd.f32 %v1237, %v1238
      %v1240 = vsel %vm924, %v1152, 0.0
      %v1241 = vadd.f32 %v1239, %v1240
      %v1242 = vsel %vm924, %v1153, 0.0
      %v1243 = vadd.f32 %v1241, %v1242
      %v1244 = vsel %vm924, %v1154, 0.0
      %v1245 = vadd.f32 %v1243, %v1244
      %v1246 = vsel %vm924, %v1155, 0.0
      %v1247 = vadd.f32 %v1245, %v1246
      %v1248 = vsel %vm924, %v1156, 0.0
      %v1249 = vadd.f32 %v1247, %v1248
      %v1250 = vsel %vm924, %v1157, 0.0
      %v1251 = vadd.f32 %v1249, %v1250
      %v1252 = vsel %vm924, %v1158, 0.0
      %v1253 = vadd.f32 %v1251, %v1252
      %v1254 = vsel %vm924, %v1159, 0.0
      %v1255 = vadd.f32 %v1253, %v1254
      %v1256 = vsel %vm924, %v1160, 0.0
      %v1257 = vadd.f32 %v1255, %v1256
      %v1258 = vsel %vm924, %v1161, 0.0
      %v1259 = vadd.f32 %v1257, %v1258
      %v1260 = vsel %vm924, %v1162, 0.0
      %v1261 = vadd.f32 %v1259, %v1260
      %v1262 = vsel %vm924, %v1163, 0.0
      %v1263 = vadd.f32 %v1261, %v1262
      %v1264 = vsel %vm924, %v1164, 0.0
      %v1265 = vadd.f32 %v1263, %v1264
      %v1266 = vsel %vm924, %v1165, 0.0
      %v1267 = vadd.f32 %v1265, %v1266
      %v1268 = vsel %vm924, %v1166, 0.0
      %v1269 = vadd.f32 %v1267, %v1268
      %v1270 = vsel %vm924, %v1167, 0.0
      %v1271 = vadd.f32 %v1269, %v1270
      %v1272 = vsel %vm924, %v1168, 0.0
      %v1273 = vadd.f32 %v1271, %v1272
      %v1274 = vsel %vm924, %v1169, 0.0
      %v1275 = vadd.f32 %v1273, %v1274
      %v1276 = vsel %vm924, %v1170, 0.0
      %v1277 = vadd.f32 %v1275, %v1276
      %v1278 = vsel %vm924, %v1171, 0.0
      %v1279 = vadd.f32 %v1277, %v1278
      %v1280 = vsel %vm924, %v1172, 0.0
      %v1281 = vadd.f32 %v1279, %v1280
      %v1282 = vsel %vm924, %v1173, 0.0
      %v1283 = vadd.f32 %v1281, %v1282
      %v1284 = vsel %vm924, %v1174, 0.0
      %v1285 = vadd.f32 %v1283, %v1284
      %v1286 = vsel %vm924, %v1175, 0.0
      %v1287 = vadd.f32 %v1285, %v1286
      %v1288 = vsel %vm924, %v1176, 0.0
      %v1289 = vadd.f32 %v1287, %v1288
      %v1290 = vsel %vm924, %v1177, 0.0
      %v1291 = vadd.f32 %v1289, %v1290
      %v1292 = vsel %vm924, %v1178, 0.0
      %v1293 = vadd.f32 %v1291, %v1292
      %v1294 = vsel %vm924, %v1179, 0.0
      %v1295 = vadd.f32 %v1293, %v1294
      %v1296 = vsel %vm924, %v1180, 0.0
      %v1297 = vadd.f32 %v1295, %v1296
      %v1298 = vsel %vm924, %v1181, 0.0
      %v1299 = vadd.f32 %v1297, %v1298
      %v1300 = vsel %vm924, %v1182, 0.0
      %v1301 = vadd.f32 %v1299, %v1300
      %v1302 = vsel %vm924, %v1183, 0.0
      %v1303 = vadd.f32 %v1301, %v1302
      %v1304 = vsel %vm924, %v1184, 0.0
      %v1305 = vadd.f32 %v1303, %v1304
      %v1306 = vsel %vm924, %v1185, 0.0
      %v1307 = vadd.f32 %v1305, %v1306
      %v1308 = vsel %vm924, %v1186, 0.0
      %v1309 = vadd.f32 %v1307, %v1308
      %v1310 = vsel %vm924, %v1187, 0.0
      %v1311 = vadd.f32 %v1309, %v1310
      %v1312 = vsel %vm924, %v1188, 0.0
      %v1313 = vadd.f32 %v1311, %v1312
      %v1314 = vsel %vm924, %v1189, 0.0
      %v1315 = vadd.f32 %v1313, %v1314
      %v1316 = vsel %vm924, %v1190, 0.0
      %v1317 = vadd.f32 %v1315, %v1316
      %v1318 = vrot.slane %v1317, 4
      %v1319 = vadd.f32 %v1317, %v1318
      %v1320 = vrot.slane %v1319, 2
      %v1321 = vadd.f32 %v1319, %v1320
      %v1322 = vrot.slane %v1321, 1
      %v1323 = vadd.f32 %v1321, %v1322
      %v1324 = vadd.f32 %v1126, %v1323
      %1325 = vst.msk [vmem:[%s273] sm:$0x1] %vm1124, %v1324
      %s1326 = smul.u32 64, %s21
      %p1327 = scmp.lt.s32.totalorder %s20, 3
      %s1328 = scalar_select %p1327, %s20, 3
      %p1329 = scmp.lt.s32.totalorder %s1326, 63
      %s1330 = scalar_select %p1329, %s1326, 63
      %s1331 = smul.addr %s1328, 64
      %s1332 = sadd.s32 %s1330, %s1331
      %s1333 = smul.addr %s1332, 8
      %s1334 = scalar_lea.vmem %s2, %s1333
      %p1335 = scmp.lt.s32.totalorder %s20, 3
      %s1336 = scalar_select %p1335, %s20, 3
      %s1337 = scalar_lea.vmem %s3, %s1336
      %p1338 = scmp.lt.s32.totalorder %s20, 3
      %s1339 = scalar_select %p1338, %s20, 3
      %s1340 = scalar_lea.vmem %s4, %s1339
      // Predicated region
      $region33: #{stage1_generator_forward.13} parent=27 // pred_check
        %p1341 = pneg %p102
      $region34: #{stage1_generator_forward.13} parent=27 // pred_check_branch
        %1343 = sbr.rel (%p1341) target = $region36
      $region35: #{stage1_generator_forward.13} parent=27 // pred_region
        %s1344 = smul.u32 64, %s21
      $region36: #{stage1_generator_forward.13} parent=27 // pred_fallthru
        _
      // Predicated region
      $region37: #{stage1_generator_forward.13} parent=27 // pred_check
        %p1345 = pneg %p128
      $region38: #{stage1_generator_forward.13} parent=27 // pred_check_branch
        %1347 = sbr.rel (%p1345) target = $region40
      $region39: #{stage1_generator_forward.13} parent=27 // pred_region
        _
      $region40: #{stage1_generator_forward.13} parent=27 // pred_fallthru
        _
      // Predicated region
      $region41: #{stage1_generator_forward.13} parent=27 // pred_check
        %p1348 = pneg %p154
      $region42: #{stage1_generator_forward.13} parent=27 // pred_check_branch
        %1350 = sbr.rel (%p1348) target = $region44
      $region43: #{stage1_generator_forward.13} parent=27 // pred_region
        _
      $region44: #{stage1_generator_forward.13} parent=27 // pred_fallthru
        _
    $region28: #{stage1_generator_forward.13} parent=5 // pred_fallthru
      _
    %p1351 = scmp.le.s32.totalorder 2, %s11
    // Predicated region
    $region45: #{stage1_generator_forward.13} parent=5 // pred_check
      %p1352 = pneg %p1351
    $region46: #{stage1_generator_forward.13} parent=5 // pred_check_branch
      %1354 = sbr.rel (%p1352) target = $region48
    $region47: #{stage1_generator_forward.13} parent=5 // pred_region
      %s1355 = ssub.s32 %s11, 2
      // Predicated region
      $region49: #{stage1_generator_forward.13} parent=47 // pred_check
        %p1356 = pneg %p108
      $region50: #{stage1_generator_forward.13} parent=47 // pred_check_branch
        %1358 = sbr.rel (%p1356) target = $region52
      $region51: #{stage1_generator_forward.13} parent=47 // pred_region
        %s1359 = smul.u32 64, %s23
        %p1360 = scmp.lt.s32.totalorder %s22, 3
        %s1361 = scalar_select %p1360, %s22, 3
        %p1362 = scmp.lt.s32.totalorder %s1359, 63
        %s1363 = scalar_select %p1362, %s1359, 63
        %s1364 = smul.addr %s1361, 64
        %s1365 = sadd.s32 %s1363, %s1364
        %s1366 = smul.addr %s1365, 8
        %s1367 = scalar_lea.vmem %s2, %s1366
      $region52: #{stage1_generator_forward.13} parent=47 // pred_fallthru
        _
      // Predicated region
      $region53: #{stage1_generator_forward.13} parent=47 // pred_check
        %p1368 = pneg %p134
      $region54: #{stage1_generator_forward.13} parent=47 // pred_check_branch
        %1370 = sbr.rel (%p1368) target = $region56
      $region55: #{stage1_generator_forward.13} parent=47 // pred_region
        %p1371 = scmp.lt.s32.totalorder %s22, 3
        %s1372 = scalar_select %p1371, %s22, 3
        %s1373 = scalar_lea.vmem %s3, %s1372
      $region56: #{stage1_generator_forward.13} parent=47 // pred_fallthru
        _
      // Predicated region
      $region57: #{stage1_generator_forward.13} parent=47 // pred_check
        %p1374 = pneg %p160
      $region58: #{stage1_generator_forward.13} parent=47 // pred_check_branch
        %1376 = sbr.rel (%p1374) target = $region60
      $region59: #{stage1_generator_forward.13} parent=47 // pred_region
        %p1377 = scmp.lt.s32.totalorder %s22, 3
        %s1378 = scalar_select %p1377, %s22, 3
        %s1379 = scalar_lea.vmem %s4, %s1378
      $region60: #{stage1_generator_forward.13} parent=47 // pred_fallthru
        _
    $region48: #{stage1_generator_forward.13} parent=5 // pred_fallthru
      _
  $region6: #{stage1_generator_forward.13} parent=0 // loop_footer
    %s15 = sadd.s32 1, %s11
  $region7: #{stage1_generator_forward.13} parent=0 // loop_footer_branch
    %10 = sbr.rel target = $region3
  $region8: #{stage1_generator_forward.13} parent=0 // loop_exit
    _

// kernel: stage1_generator_forward.14
$region0: #{stage1_generator_forward.14}
  #allocation0 [shape = 'u32[]', space=smem, size = 0x4, offset = 0x4, fixed_abs, tag = 'smem constant byte address 0x4 - core index']
  #allocation1 [shape = 'u32[144,128]{1,0:T(1,128)}', space=vmem, size = 0x12000, scoped, tag = 'internal scratch']
  %s0 = inlined_call_operand.vmem [shape: f32[4,512,8], index: 0, kind: input, shape index: {}]
  %s1 = inlined_call_operand.vmem [shape: f32[1,8], index: 1, kind: input, shape index: {}]
  %s2 = inlined_call_operand.vmem [shape: f32[1,8], index: 2, kind: input, shape index: {}]
  %s3 = inlined_call_operand.vmem [shape: bf16[4,512,8], index: 3, kind: output, shape index: {}]
  %s4 = sld [smem:[#allocation0]]
  $region45: #{stage1_generator_forward.14} parent=0
    _
  %s6 = ssub.s32 1, %s4
  %s7 = scalar_select 0, %s6, %s4
  loop: start=0, step=1, limit=6
  $region2: #{stage1_generator_forward.14} parent=0 // loop_pre_header
    _
  $region3: #{stage1_generator_forward.14} parent=0 // loop_header
    %s9 = sphi 0, %s13
    %p10 = scmp.ge.s32.totalorder %s9, 6
    %s16 = sphi 0, %s28
    %s17 = sphi 0, %s24
    %s18 = sphi 0, %s16
    %s19 = sphi 0, %s17
    %s20 = sphi 0, %s18
    %s21 = sphi 0, %s19
    %s33 = sphi 0, %s35
    %s36 = sphi 0, %s33
    %s37 = sphi 0, %s36
    %s53 = sphi 0, %s37
    %s57 = sphi 0, %s57
    %s59 = sphi 0, %s57
    %s60 = sphi 0, %s59
    %s74 = sphi 0, %s60
    %s78 = sphi 0, %s78
    %s80 = sphi 0, %s78
    %s81 = sphi 0, %s80
    %s95 = sphi 0, %s81
    %s103 = sphi 0, %s105
    %s106 = sphi 0, %s103
    %s107 = sphi 0, %s106
    %s123 = sphi 0, %s107
  $region4: #{stage1_generator_forward.14} parent=0 // loop_header_branch
    %12 = sbr.rel (%p10) target = $region8
  $region5: #{stage1_generator_forward.14} parent=0 // loop_body
    %s14 = ssub.s32 %s9, 1
    %s15 = ssub.s32 %s9, 2
    %s22 = sadd.s32 1, %s17
    %p23 = scmp.ge.s32.totalorder %s22, 1
    %s24 = scalar_select %p23, 0, %s22
    %s25 = sadd.s32 1, %s16
    %s26 = scalar_select %p23, %s25, %s16
    %p27 = scmp.ge.s32.totalorder %s26, 4
    %s28 = scalar_select %p27, 0, %s26
    %s29 = ssub.s32 %s16, %s28
    %s30 = ssub.s32 %s17, %s24
    %s31 = sor.u32 %s29, %s30
    %p32 = scmp.eq.s32.totalorder %s31, 0
    %s34 = sadd.s32 %s33, 1
    %s35 = scalar_select %p32, %s33, %s34
    %p38 = pneg %p32
    %p39 = scmp.eq.s32.totalorder %s9, 3
    %p40 = por %p38, %p39
    %p41 = scmp.ne.s32.totalorder %s33, %s36
    %p42 = scmp.eq.s32.totalorder %s9, 0
    %p43 = por %p41, %p42
    %p44 = scmp.ne.s32.totalorder %s33, %s36
    %p45 = scmp.eq.s32.totalorder %s14, 3
    %p46 = por %p44, %p45
    %p47 = scmp.ne.s32.totalorder %s36, %s37
    %p48 = scmp.eq.s32.totalorder %s14, 0
    %p49 = por %p47, %p48
    %p50 = scmp.ne.s32.totalorder %s36, %s37
    %p51 = scmp.eq.s32.totalorder %s15, 3
    %p52 = por %p50, %p51
    %p54 = scmp.ne.s32.totalorder %s37, %s53
    %p55 = scmp.eq.s32.totalorder %s15, 0
    %p56 = por %p54, %p55
    %s58 = sadd.s32 %s57, 1
    %p61 = scmp.eq.s32.totalorder %s9, 3
    %p62 = scmp.ne.s32.totalorder %s57, %s59
    %p63 = scmp.eq.s32.totalorder %s9, 0
    %p64 = por %p62, %p63
    %p65 = scmp.ne.s32.totalorder %s57, %s59
    %p66 = scmp.eq.s32.totalorder %s14, 3
    %p67 = por %p65, %p66
    %p68 = scmp.ne.s32.totalorder %s59, %s60
    %p69 = scmp.eq.s32.totalorder %s14, 0
    %p70 = por %p68, %p69
    %p71 = scmp.ne.s32.totalorder %s59, %s60
    %p72 = scmp.eq.s32.totalorder %s15, 3
    %p73 = por %p71, %p72
    %p75 = scmp.ne.s32.totalorder %s60, %s74
    %p76 = scmp.eq.s32.totalorder %s15, 0
    %p77 = por %p75, %p76
    %s79 = sadd.s32 %s78, 1
    %p82 = scmp.eq.s32.totalorder %s9, 3
    %p83 = scmp.ne.s32.totalorder %s78, %s80
    %p84 = scmp.eq.s32.totalorder %s9, 0
    %p85 = por %p83, %p84
    %p86 = scmp.ne.s32.totalorder %s78, %s80
    %p87 = scmp.eq.s32.totalorder %s14, 3
    %p88 = por %p86, %p87
    %p89 = scmp.ne.s32.totalorder %s80, %s81
    %p90 = scmp.eq.s32.totalorder %s14, 0
    %p91 = por %p89, %p90
    %p92 = scmp.ne.s32.totalorder %s80, %s81
    %p93 = scmp.eq.s32.totalorder %s15, 3
    %p94 = por %p92, %p93
    %p96 = scmp.ne.s32.totalorder %s81, %s95
    %p97 = scmp.eq.s32.totalorder %s15, 0
    %p98 = por %p96, %p97
    %s99 = ssub.s32 %s16, %s28
    %s100 = ssub.s32 %s17, %s24
    %s101 = sor.u32 %s99, %s100
    %p102 = scmp.eq.s32.totalorder %s101, 0
    %s104 = sadd.s32 %s103, 1
    %s105 = scalar_select %p102, %s103, %s104
    %p108 = pneg %p102
    %p109 = scmp.eq.s32.totalorder %s9, 3
    %p110 = por %p108, %p109
    %p111 = scmp.ne.s32.totalorder %s103, %s106
    %p112 = scmp.eq.s32.totalorder %s9, 0
    %p113 = por %p111, %p112
    %p114 = scmp.ne.s32.totalorder %s103, %s106
    %p115 = scmp.eq.s32.totalorder %s14, 3
    %p116 = por %p114, %p115
    %p117 = scmp.ne.s32.totalorder %s106, %s107
    %p118 = scmp.eq.s32.totalorder %s14, 0
    %p119 = por %p117, %p118
    %p120 = scmp.ne.s32.totalorder %s106, %s107
    %p121 = scmp.eq.s32.totalorder %s15, 3
    %p122 = por %p120, %p121
    %p124 = scmp.ne.s32.totalorder %s107, %s123
    %p125 = scmp.eq.s32.totalorder %s15, 0
    %p126 = por %p124, %p125
    %p127 = scmp.le.s32.totalorder 1, %s9
    %p128 = scmp.lt.s32.totalorder %s9, 5
    %p129 = pnand %p127, %p128
    %p130 = pneg %p129
    // Predicated region
    $region9: #{stage1_generator_forward.14} parent=5 // pred_check
      _
    $region10: #{stage1_generator_forward.14} parent=5 // pred_check_branch
      %132 = sbr.rel (%p129) target = $region12
    $region11: #{stage1_generator_forward.14} parent=5 // pred_region
      %s133 = ssub.s32 %s9, 1
      // Predicated region
      $region13: #{stage1_generator_forward.14} parent=11 // pred_check
        %p134 = pneg %p70
      $region14: #{stage1_generator_forward.14} parent=11 // pred_check_branch
        %136 = sbr.rel (%p134) target = $region16
      $region15: #{stage1_generator_forward.14} parent=11 // pred_region
        _
      $region16: #{stage1_generator_forward.14} parent=11 // pred_fallthru
        _
      // Predicated region
      $region17: #{stage1_generator_forward.14} parent=11 // pred_check
        %p137 = pneg %p91
      $region18: #{stage1_generator_forward.14} parent=11 // pred_check_branch
        %139 = sbr.rel (%p137) target = $region20
      $region19: #{stage1_generator_forward.14} parent=11 // pred_region
        _
      $region20: #{stage1_generator_forward.14} parent=11 // pred_fallthru
        _
    $region12: #{stage1_generator_forward.14} parent=5 // pred_fallthru
      _
    %p140 = scmp.lt.s32.totalorder %s9, 4
    // Predicated region
    $region21: #{stage1_generator_forward.14} parent=5 // pred_check
      %p141 = pneg %p140
    $region22: #{stage1_generator_forward.14} parent=5 // pred_check_branch
      %143 = sbr.rel (%p141) target = $region24
    $region23: #{stage1_generator_forward.14} parent=5 // pred_region
      // Predicated region
      $region25: #{stage1_generator_forward.14} parent=23 // pred_check
        %p144 = pneg %p43
      $region26: #{stage1_generator_forward.14} parent=23 // pred_check_branch
        %146 = sbr.rel (%p144) target = $region28
      $region27: #{stage1_generator_forward.14} parent=23 // pred_region
        %s147 = smul.u32 64, %s17
        %p148 = scmp.lt.s32.totalorder %s16, 3
        %s149 = scalar_select %p148, %s16, 3
        %p150 = scmp.lt.s32.totalorder %s147, 63
        %s151 = scalar_select %p150, %s147, 63
        %s152 = smul.addr %s149, 64
        %s153 = sadd.s32 %s151, %s152
        %s154 = smul.addr %s153, 8
        %s155 = scalar_lea.vmem %s0, %s154
        %s156 = smul.u32 64, %s17
      $region28: #{stage1_generator_forward.14} parent=23 // pred_fallthru
        _
    $region24: #{stage1_generator_forward.14} parent=5 // pred_fallthru
      _
    %p157 = scmp.le.s32.totalorder 1, %s9
    %p158 = scmp.lt.s32.totalorder %s9, 5
    %p159 = pnand %p157, %p158
    %p160 = pneg %p159
    // Predicated region
    $region29: #{stage1_generator_forward.14} parent=5 // pred_check
      _
    $region30: #{stage1_generator_forward.14} parent=5 // pred_check_branch
      %162 = sbr.rel (%p159) target = $region32
    $region31: #{stage1_generator_forward.14} parent=5 // pred_region
      %s163 = ssub.s32 %s9, 1
      %s164 = smul.u32 64, %s19
      %p165 = scmp.lt.s32.totalorder %s18, 3
      %s166 = scalar_select %p165, %s18, 3
      %p167 = scmp.lt.s32.totalorder %s164, 63
      %s168 = scalar_select %p167, %s164, 63
      %s169 = smul.addr %s166, 64
      %s170 = sadd.s32 %s168, %s169
      %s171 = smul.addr %s170, 8
      %s172 = scalar_lea.vmem %s0, %s171
      %p173 = pneg %p49
      %p174 = pneg %p46
      %p175 = pneg %p70
      %p176 = pneg %p67
      %p177 = pneg %p91
      %p178 = pneg %p88
      %p179 = pneg %p119
      %p180 = pneg %p116
      %s181 = smul.u32 64, %s19
      %p182 = scmp.lt.s32.totalorder %s18, 3
      %s183 = scalar_select %p182, %s18, 3
      %p184 = scmp.lt.s32.totalorder %s181, 63
      %s185 = scalar_select %p184, %s181, 63
      %s186 = smul.addr %s183, 64
      %s187 = sadd.s32 %s185, %s186
      %s188 = smul.addr %s187, 4
      %s189 = scalar_lea.vmem %s3, %s188
      %s190 = smul.u32 64, %s19
      %p191 = scmp.lt.s32.totalorder %s18, 3
      %s192 = scalar_select %p191, %s18, 3
      %p193 = scmp.lt.s32.totalorder %s190, 63
      %s194 = scalar_select %p193, %s190, 63
      %s195 = smul.addr %s192, 64
      %s196 = sadd.s32 %s194, %s195
      %s197 = smul.addr %s196, 8
      %s198 = scalar_lea.vmem %s0, %s197
      %s199 = smul.u32 64, %s19
      %s200 = smul.u32 64, %s19
      %p201 = scmp.lt.s32.totalorder %s18, 3
      %s202 = scalar_select %p201, %s18, 3
      %p203 = scmp.lt.s32.totalorder %s200, 63
      %s204 = scalar_select %p203, %s200, 63
      %s205 = smul.addr %s202, 64
      %s206 = sadd.s32 %s204, %s205
      %s207 = smul.addr %s206, 4
      %s208 = scalar_lea.vmem %s3, %s207
      %s209 = smul.u32 64, %s19
      %v210 = vld [vmem:[%s198] sm:$0xff]
      %v211 = vld [vmem:[%s198 + $0x8] sm:$0xff]
      %v212 = vld [vmem:[%s198 + $0x10] sm:$0xff]
      %v213 = vld [vmem:[%s198 + $0x18] sm:$0xff]
      %v214 = vld [vmem:[%s198 + $0x20] sm:$0xff]
      %v215 = vld [vmem:[%s198 + $0x28] sm:$0xff]
      %v216 = vld [vmem:[%s198 + $0x30] sm:$0xff]
      %v217 = vld [vmem:[%s198 + $0x38] sm:$0xff]
      %v218 = vld [vmem:[%s198 + $0x40] sm:$0xff]
      %v219 = vld [vmem:[%s198 + $0x48] sm:$0xff]
      %v220 = vld [vmem:[%s198 + $0x50] sm:$0xff]
      %v221 = vld [vmem:[%s198 + $0x58] sm:$0xff]
      %v222 = vld [vmem:[%s198 + $0x60] sm:$0xff]
      %v223 = vld [vmem:[%s198 + $0x68] sm:$0xff]
      %v224 = vld [vmem:[%s198 + $0x70] sm:$0xff]
      %v225 = vld [vmem:[%s198 + $0x78] sm:$0xff]
      %v226 = vld [vmem:[%s198 + $0x80] sm:$0xff]
      %v227 = vld [vmem:[%s198 + $0x88] sm:$0xff]
      %v228 = vld [vmem:[%s198 + $0x90] sm:$0xff]
      %v229 = vld [vmem:[%s198 + $0x98] sm:$0xff]
      %v230 = vld [vmem:[%s198 + $0xa0] sm:$0xff]
      %v231 = vld [vmem:[%s198 + $0xa8] sm:$0xff]
      %v232 = vld [vmem:[%s198 + $0xb0] sm:$0xff]
      %v233 = vld [vmem:[%s198 + $0xb8] sm:$0xff]
      %v234 = vld [vmem:[%s198 + $0xc0] sm:$0xff]
      %v235 = vld [vmem:[%s198 + $0xc8] sm:$0xff]
      %v236 = vld [vmem:[%s198 + $0xd0] sm:$0xff]
      %v237 = vld [vmem:[%s198 + $0xd8] sm:$0xff]
      %v238 = vld [vmem:[%s198 + $0xe0] sm:$0xff]
      %v239 = vld [vmem:[%s198 + $0xe8] sm:$0xff]
      %v240 = vld [vmem:[%s198 + $0xf0] sm:$0xff]
      %v241 = vld [vmem:[%s198 + $0xf8] sm:$0xff]
      %v242 = vld [vmem:[%s198 + $0x100] sm:$0xff]
      %v243 = vld [vmem:[%s198 + $0x108] sm:$0xff]
      %v244 = vld [vmem:[%s198 + $0x110] sm:$0xff]
      %v245 = vld [vmem:[%s198 + $0x118] sm:$0xff]
      %v246 = vld [vmem:[%s198 + $0x120] sm:$0xff]
      %v247 = vld [vmem:[%s198 + $0x128] sm:$0xff]
      %v248 = vld [vmem:[%s198 + $0x130] sm:$0xff]
      %v249 = vld [vmem:[%s198 + $0x138] sm:$0xff]
      %v250 = vld [vmem:[%s198 + $0x140] sm:$0xff]
      %v251 = vld [vmem:[%s198 + $0x148] sm:$0xff]
      %v252 = vld [vmem:[%s198 + $0x150] sm:$0xff]
      %v253 = vld [vmem:[%s198 + $0x158] sm:$0xff]
      %v254 = vld [vmem:[%s198 + $0x160] sm:$0xff]
      %v255 = vld [vmem:[%s198 + $0x168] sm:$0xff]
      %v256 = vld [vmem:[%s198 + $0x170] sm:$0xff]
      %v257 = vld [vmem:[%s198 + $0x178] sm:$0xff]
      %v258 = vld [vmem:[%s198 + $0x180] sm:$0xff]
      %v259 = vld [vmem:[%s198 + $0x188] sm:$0xff]
      %v260 = vld [vmem:[%s198 + $0x190] sm:$0xff]
      %v261 = vld [vmem:[%s198 + $0x198] sm:$0xff]
      %v262 = vld [vmem:[%s198 + $0x1a0] sm:$0xff]
      %v263 = vld [vmem:[%s198 + $0x1a8] sm:$0xff]
      %v264 = vld [vmem:[%s198 + $0x1b0] sm:$0xff]
      %v265 = vld [vmem:[%s198 + $0x1b8] sm:$0xff]
      %v266 = vld [vmem:[%s198 + $0x1c0] sm:$0xff]
      %v267 = vld [vmem:[%s198 + $0x1c8] sm:$0xff]
      %v268 = vld [vmem:[%s198 + $0x1d0] sm:$0xff]
      %v269 = vld [vmem:[%s198 + $0x1d8] sm:$0xff]
      %v270 = vld [vmem:[%s198 + $0x1e0] sm:$0xff]
      %v271 = vld [vmem:[%s198 + $0x1e8] sm:$0xff]
      %v272 = vld [vmem:[%s198 + $0x1f0] sm:$0xff]
      %v273 = vld [vmem:[%s198 + $0x1f8] sm:$0xff]
      %v274 = vld [vmem:[%s1] sm:$0x1]
      %v276 = vlaneseq
      %v277 = vshrl.u32 %v276, 7
      %v278 = vsub.s32 0, %v277
      %v279 = vrot.slane %v274, %v278
      %v281 = vmul.f32 %v210, %v279
      %v282 = vmul.f32 %v211, %v279
      %v283 = vmul.f32 %v212, %v279
      %v284 = vmul.f32 %v213, %v279
      %v285 = vmul.f32 %v214, %v279
      %v286 = vmul.f32 %v215, %v279
      %v287 = vmul.f32 %v216, %v279
      %v288 = vmul.f32 %v217, %v279
      %v289 = vmul.f32 %v218, %v279
      %v290 = vmul.f32 %v219, %v279
      %v291 = vmul.f32 %v220, %v279
      %v292 = vmul.f32 %v221, %v279
      %v293 = vmul.f32 %v222, %v279
      %v294 = vmul.f32 %v223, %v279
      %v295 = vmul.f32 %v224, %v279
      %v296 = vmul.f32 %v225, %v279
      %v297 = vmul.f32 %v226, %v279
      %v298 = vmul.f32 %v227, %v279
      %v299 = vmul.f32 %v228, %v279
      %v300 = vmul.f32 %v229, %v279
      %v301 = vmul.f32 %v230, %v279
      %v302 = vmul.f32 %v231, %v279
      %v303 = vmul.f32 %v232, %v279
      %v304 = vmul.f32 %v233, %v279
      %v305 = vmul.f32 %v234, %v279
      %v306 = vmul.f32 %v235, %v279
      %v307 = vmul.f32 %v236, %v279
      %v308 = vmul.f32 %v237, %v279
      %v309 = vmul.f32 %v238, %v279
      %v310 = vmul.f32 %v239, %v279
      %v311 = vmul.f32 %v240, %v279
      %v312 = vmul.f32 %v241, %v279
      %v313 = vmul.f32 %v242, %v279
      %v314 = vmul.f32 %v243, %v279
      %v315 = vmul.f32 %v244, %v279
      %v316 = vmul.f32 %v245, %v279
      %v317 = vmul.f32 %v246, %v279
      %v318 = vmul.f32 %v247, %v279
      %v319 = vmul.f32 %v248, %v279
      %v320 = vmul.f32 %v249, %v279
      %v321 = vmul.f32 %v250, %v279
      %v322 = vmul.f32 %v251, %v279
      %v323 = vmul.f32 %v252, %v279
      %v324 = vmul.f32 %v253, %v279
      %v325 = vmul.f32 %v254, %v279
      %v326 = vmul.f32 %v255, %v279
      %v327 = vmul.f32 %v256, %v279
      %v328 = vmul.f32 %v257, %v279
      %v329 = vmul.f32 %v258, %v279
      %v330 = vmul.f32 %v259, %v279
      %v331 = vmul.f32 %v260, %v279
      %v332 = vmul.f32 %v261, %v279
      %v333 = vmul.f32 %v262, %v279
      %v334 = vmul.f32 %v263, %v279
      %v335 = vmul.f32 %v264, %v279
      %v336 = vmul.f32 %v265, %v279
      %v337 = vmul.f32 %v266, %v279
      %v338 = vmul.f32 %v267, %v279
      %v339 = vmul.f32 %v268, %v279
      %v340 = vmul.f32 %v269, %v279
      %v341 = vmul.f32 %v270, %v279
      %v342 = vmul.f32 %v271, %v279
      %v343 = vmul.f32 %v272, %v279
      %v344 = vmul.f32 %v273, %v279
      %v345 = vld [vmem:[%s2] sm:$0x1]
      %v347 = vlaneseq
      %v348 = vshrl.u32 %v347, 7
      %v349 = vsub.s32 0, %v348
      %v350 = vrot.slane %v345, %v349
      %v352 = vadd.f32 %v281, %v350
      %v353 = vadd.f32 %v282, %v350
      %v354 = vadd.f32 %v283, %v350
      %v355 = vadd.f32 %v284, %v350
      %v356 = vadd.f32 %v285, %v350
      %v357 = vadd.f32 %v286, %v350
      %v358 = vadd.f32 %v287, %v350
      %v359 = vadd.f32 %v288, %v350
      %v360 = vadd.f32 %v289, %v350
      %v361 = vadd.f32 %v290, %v350
      %v362 = vadd.f32 %v291, %v350
      %v363 = vadd.f32 %v292, %v350
      %v364 = vadd.f32 %v293, %v350
      %v365 = vadd.f32 %v294, %v350
      %v366 = vadd.f32 %v295, %v350
      %v367 = vadd.f32 %v296, %v350
      %v368 = vadd.f32 %v297, %v350
      %v369 = vadd.f32 %v298, %v350
      %v370 = vadd.f32 %v299, %v350
      %v371 = vadd.f32 %v300, %v350
      %v372 = vadd.f32 %v301, %v350
      %v373 = vadd.f32 %v302, %v350
      %v374 = vadd.f32 %v303, %v350
      %v375 = vadd.f32 %v304, %v350
      %v376 = vadd.f32 %v305, %v350
      %v377 = vadd.f32 %v306, %v350
      %v378 = vadd.f32 %v307, %v350
      %v379 = vadd.f32 %v308, %v350
      %v380 = vadd.f32 %v309, %v350
      %v381 = vadd.f32 %v310, %v350
      %v382 = vadd.f32 %v311, %v350
      %v383 = vadd.f32 %v312, %v350
      %v384 = vadd.f32 %v313, %v350
      %v385 = vadd.f32 %v314, %v350
      %v386 = vadd.f32 %v315, %v350
      %v387 = vadd.f32 %v316, %v350
      %v388 = vadd.f32 %v317, %v350
      %v389 = vadd.f32 %v318, %v350
      %v390 = vadd.f32 %v319, %v350
      %v391 = vadd.f32 %v320, %v350
      %v392 = vadd.f32 %v321, %v350
      %v393 = vadd.f32 %v322, %v350
      %v394 = vadd.f32 %v323, %v350
      %v395 = vadd.f32 %v324, %v350
      %v396 = vadd.f32 %v325, %v350
      %v397 = vadd.f32 %v326, %v350
      %v398 = vadd.f32 %v327, %v350
      %v399 = vadd.f32 %v328, %v350
      %v400 = vadd.f32 %v329, %v350
      %v401 = vadd.f32 %v330, %v350
      %v402 = vadd.f32 %v331, %v350
      %v403 = vadd.f32 %v332, %v350
      %v404 = vadd.f32 %v333, %v350
      %v405 = vadd.f32 %v334, %v350
      %v406 = vadd.f32 %v335, %v350
      %v407 = vadd.f32 %v336, %v350
      %v408 = vadd.f32 %v337, %v350
      %v409 = vadd.f32 %v338, %v350
      %v410 = vadd.f32 %v339, %v350
      %v411 = vadd.f32 %v340, %v350
      %v412 = vadd.f32 %v341, %v350
      %v413 = vadd.f32 %v342, %v350
      %v414 = vadd.f32 %v343, %v350
      %v415 = vadd.f32 %v344, %v350
      %v416 = vmax.f32 %v352, 0.0
      %v417 = vmax.f32 %v353, 0.0
      %v418 = vmax.f32 %v354, 0.0
      %v419 = vmax.f32 %v355, 0.0
      %v420 = vmax.f32 %v356, 0.0
      %v421 = vmax.f32 %v357, 0.0
      %v422 = vmax.f32 %v358, 0.0
      %v423 = vmax.f32 %v359, 0.0
      %v424 = vmax.f32 %v360, 0.0
      %v425 = vmax.f32 %v361, 0.0
      %v426 = vmax.f32 %v362, 0.0
      %v427 = vmax.f32 %v363, 0.0
      %v428 = vmax.f32 %v364, 0.0
      %v429 = vmax.f32 %v365, 0.0
      %v430 = vmax.f32 %v366, 0.0
      %v431 = vmax.f32 %v367, 0.0
      %v432 = vmax.f32 %v368, 0.0
      %v433 = vmax.f32 %v369, 0.0
      %v434 = vmax.f32 %v370, 0.0
      %v435 = vmax.f32 %v371, 0.0
      %v436 = vmax.f32 %v372, 0.0
      %v437 = vmax.f32 %v373, 0.0
      %v438 = vmax.f32 %v374, 0.0
      %v439 = vmax.f32 %v375, 0.0
      %v440 = vmax.f32 %v376, 0.0
      %v441 = vmax.f32 %v377, 0.0
      %v442 = vmax.f32 %v378, 0.0
      %v443 = vmax.f32 %v379, 0.0
      %v444 = vmax.f32 %v380, 0.0
      %v445 = vmax.f32 %v381, 0.0
      %v446 = vmax.f32 %v382, 0.0
      %v447 = vmax.f32 %v383, 0.0
      %v448 = vmax.f32 %v384, 0.0
      %v449 = vmax.f32 %v385, 0.0
      %v450 = vmax.f32 %v386, 0.0
      %v451 = vmax.f32 %v387, 0.0
      %v452 = vmax.f32 %v388, 0.0
      %v453 = vmax.f32 %v389, 0.0
      %v454 = vmax.f32 %v390, 0.0
      %v455 = vmax.f32 %v391, 0.0
      %v456 = vmax.f32 %v392, 0.0
      %v457 = vmax.f32 %v393, 0.0
      %v458 = vmax.f32 %v394, 0.0
      %v459 = vmax.f32 %v395, 0.0
      %v460 = vmax.f32 %v396, 0.0
      %v461 = vmax.f32 %v397, 0.0
      %v462 = vmax.f32 %v398, 0.0
      %v463 = vmax.f32 %v399, 0.0
      %v464 = vmax.f32 %v400, 0.0
      %v465 = vmax.f32 %v401, 0.0
      %v466 = vmax.f32 %v402, 0.0
      %v467 = vmax.f32 %v403, 0.0
      %v468 = vmax.f32 %v404, 0.0
      %v469 = vmax.f32 %v405, 0.0
      %v470 = vmax.f32 %v406, 0.0
      %v471 = vmax.f32 %v407, 0.0
      %v472 = vmax.f32 %v408, 0.0
      %v473 = vmax.f32 %v409, 0.0
      %v474 = vmax.f32 %v410, 0.0
      %v475 = vmax.f32 %v411, 0.0
      %v476 = vmax.f32 %v412, 0.0
      %v477 = vmax.f32 %v413, 0.0
      %v478 = vmax.f32 %v414, 0.0
      %v479 = vmax.f32 %v415, 0.0
      %v480 = vpack.c.bf16 %v417, %v416
      %v481 = vpack.c.bf16 %v419, %v418
      %v482 = vpack.c.bf16 %v421, %v420
      %v483 = vpack.c.bf16 %v423, %v422
      %v484 = vpack.c.bf16 %v425, %v424
      %v485 = vpack.c.bf16 %v427, %v426
      %v486 = vpack.c.bf16 %v429, %v428
      %v487 = vpack.c.bf16 %v431, %v430
      %v488 = vpack.c.bf16 %v433, %v432
      %v489 = vpack.c.bf16 %v435, %v434
      %v490 = vpack.c.bf16 %v437, %v436
      %v491 = vpack.c.bf16 %v439, %v438
      %v492 = vpack.c.bf16 %v441, %v440
      %v493 = vpack.c.bf16 %v443, %v442
      %v494 = vpack.c.bf16 %v445, %v444
      %v495 = vpack.c.bf16 %v447, %v446
      %v496 = vpack.c.bf16 %v449, %v448
      %v497 = vpack.c.bf16 %v451, %v450
      %v498 = vpack.c.bf16 %v453, %v452
      %v499 = vpack.c.bf16 %v455, %v454
      %v500 = vpack.c.bf16 %v457, %v456
      %v501 = vpack.c.bf16 %v459, %v458
      %v502 = vpack.c.bf16 %v461, %v460
      %v503 = vpack.c.bf16 %v463, %v462
      %v504 = vpack.c.bf16 %v465, %v464
      %v505 = vpack.c.bf16 %v467, %v466
      %v506 = vpack.c.bf16 %v469, %v468
      %v507 = vpack.c.bf16 %v471, %v470
      %v508 = vpack.c.bf16 %v473, %v472
      %v509 = vpack.c.bf16 %v475, %v474
      %v510 = vpack.c.bf16 %v477, %v476
      %v511 = vpack.c.bf16 %v479, %v478
      %v544 = vunpack.c.l.b16 %v480
      %v545 = vunpack.c.h.b16 %v480
      %v546 = vunpack.c.l.b16 %v481
      %v547 = vunpack.c.h.b16 %v481
      %v548 = vunpack.c.l.b16 %v482
      %v549 = vunpack.c.h.b16 %v482
      %v550 = vunpack.c.l.b16 %v483
      %v551 = vunpack.c.h.b16 %v483
      %v552 = vunpack.c.l.b16 %v484
      %v553 = vunpack.c.h.b16 %v484
      %v554 = vunpack.c.l.b16 %v485
      %v555 = vunpack.c.h.b16 %v485
      %v556 = vunpack.c.l.b16 %v486
      %v557 = vunpack.c.h.b16 %v486
      %v558 = vunpack.c.l.b16 %v487
      %v559 = vunpack.c.h.b16 %v487
      %v560 = vunpack.c.l.b16 %v488
      %v561 = vunpack.c.h.b16 %v488
      %v562 = vunpack.c.l.b16 %v489
      %v563 = vunpack.c.h.b16 %v489
      %v564 = vunpack.c.l.b16 %v490
      %v565 = vunpack.c.h.b16 %v490
      %v566 = vunpack.c.l.b16 %v491
      %v567 = vunpack.c.h.b16 %v491
      %v568 = vunpack.c.l.b16 %v492
      %v569 = vunpack.c.h.b16 %v492
      %v570 = vunpack.c.l.b16 %v493
      %v571 = vunpack.c.h.b16 %v493
      %v572 = vunpack.c.l.b16 %v494
      %v573 = vunpack.c.h.b16 %v494
      %v574 = vunpack.c.l.b16 %v495
      %v575 = vunpack.c.h.b16 %v495
      %v576 = vunpack.c.l.b16 %v496
      %v577 = vunpack.c.h.b16 %v496
      %v578 = vunpack.c.l.b16 %v497
      %v579 = vunpack.c.h.b16 %v497
      %v580 = vunpack.c.l.b16 %v498
      %v581 = vunpack.c.h.b16 %v498
      %v582 = vunpack.c.l.b16 %v499
      %v583 = vunpack.c.h.b16 %v499
      %v584 = vunpack.c.l.b16 %v500
      %v585 = vunpack.c.h.b16 %v500
      %v586 = vunpack.c.l.b16 %v501
      %v587 = vunpack.c.h.b16 %v501
      %v588 = vunpack.c.l.b16 %v502
      %v589 = vunpack.c.h.b16 %v502
      %v590 = vunpack.c.l.b16 %v503
      %v591 = vunpack.c.h.b16 %v503
      %v592 = vunpack.c.l.b16 %v504
      %v593 = vunpack.c.h.b16 %v504
      %v594 = vunpack.c.l.b16 %v505
      %v595 = vunpack.c.h.b16 %v505
      %v596 = vunpack.c.l.b16 %v506
      %v597 = vunpack.c.h.b16 %v506
      %v598 = vunpack.c.l.b16 %v507
      %v599 = vunpack.c.h.b16 %v507
      %v600 = vunpack.c.l.b16 %v508
      %v601 = vunpack.c.h.b16 %v508
      %v602 = vunpack.c.l.b16 %v509
      %v603 = vunpack.c.h.b16 %v509
      %v604 = vunpack.c.l.b16 %v510
      %v605 = vunpack.c.h.b16 %v510
      %v606 = vunpack.c.l.b16 %v511
      %v607 = vunpack.c.h.b16 %v511
      %v608 = vpack.c.b16 %v544, %v544
      %v609 = vpack.c.b16 %v545, %v545
      %v610 = vpack.c.b16 %v546, %v546
      %v611 = vpack.c.b16 %v547, %v547
      %v612 = vpack.c.b16 %v548, %v548
      %v613 = vpack.c.b16 %v549, %v549
      %v614 = vpack.c.b16 %v550, %v550
      %v615 = vpack.c.b16 %v551, %v551
      %v616 = vpack.c.b16 %v552, %v552
      %v617 = vpack.c.b16 %v553, %v553
      %v618 = vpack.c.b16 %v554, %v554
      %v619 = vpack.c.b16 %v555, %v555
      %v620 = vpack.c.b16 %v556, %v556
      %v621 = vpack.c.b16 %v557, %v557
      %v622 = vpack.c.b16 %v558, %v558
      %v623 = vpack.c.b16 %v559, %v559
      %v624 = vpack.c.b16 %v560, %v560
      %v625 = vpack.c.b16 %v561, %v561
      %v626 = vpack.c.b16 %v562, %v562
      %v627 = vpack.c.b16 %v563, %v563
      %v628 = vpack.c.b16 %v564, %v564
      %v629 = vpack.c.b16 %v565, %v565
      %v630 = vpack.c.b16 %v566, %v566
      %v631 = vpack.c.b16 %v567, %v567
      %v632 = vpack.c.b16 %v568, %v568
      %v633 = vpack.c.b16 %v569, %v569
      %v634 = vpack.c.b16 %v570, %v570
      %v635 = vpack.c.b16 %v571, %v571
      %v636 = vpack.c.b16 %v572, %v572
      %v637 = vpack.c.b16 %v573, %v573
      %v638 = vpack.c.b16 %v574, %v574
      %v639 = vpack.c.b16 %v575, %v575
      %v640 = vpack.c.b16 %v576, %v576
      %v641 = vpack.c.b16 %v577, %v577
      %v642 = vpack.c.b16 %v578, %v578
      %v643 = vpack.c.b16 %v579, %v579
      %v644 = vpack.c.b16 %v580, %v580
      %v645 = vpack.c.b16 %v581, %v581
      %v646 = vpack.c.b16 %v582, %v582
      %v647 = vpack.c.b16 %v583, %v583
      %v648 = vpack.c.b16 %v584, %v584
      %v649 = vpack.c.b16 %v585, %v585
      %v650 = vpack.c.b16 %v586, %v586
      %v651 = vpack.c.b16 %v587, %v587
      %v652 = vpack.c.b16 %v588, %v588
      %v653 = vpack.c.b16 %v589, %v589
      %v654 = vpack.c.b16 %v590, %v590
      %v655 = vpack.c.b16 %v591, %v591
      %v656 = vpack.c.b16 %v592, %v592
      %v657 = vpack.c.b16 %v593, %v593
      %v658 = vpack.c.b16 %v594, %v594
      %v659 = vpack.c.b16 %v595, %v595
      %v660 = vpack.c.b16 %v596, %v596
      %v661 = vpack.c.b16 %v597, %v597
      %v662 = vpack.c.b16 %v598, %v598
      %v663 = vpack.c.b16 %v599, %v599
      %v664 = vpack.c.b16 %v600, %v600
      %v665 = vpack.c.b16 %v601, %v601
      %v666 = vpack.c.b16 %v602, %v602
      %v667 = vpack.c.b16 %v603, %v603
      %v668 = vpack.c.b16 %v604, %v604
      %v669 = vpack.c.b16 %v605, %v605
      %v670 = vpack.c.b16 %v606, %v606
      %v671 = vpack.c.b16 %v607, %v607
      %vm736 = vcmask 60416
      %737 = vst.msk [vmem:[%s208] sm:$0xf] %vm736, %v608
      %738 = vst.msk [vmem:[%s208 + $0x4] sm:$0xf] %vm736, %v609
      %739 = vst.msk [vmem:[%s208 + $0x8] sm:$0xf] %vm736, %v610
      %740 = vst.msk [vmem:[%s208 + $0xc] sm:$0xf] %vm736, %v611
      %741 = vst.msk [vmem:[%s208 + $0x10] sm:$0xf] %vm736, %v612
      %742 = vst.msk [vmem:[%s208 + $0x14] sm:$0xf] %vm736, %v613
      %743 = vst.msk [vmem:[%s208 + $0x18] sm:$0xf] %vm736, %v614
      %744 = vst.msk [vmem:[%s208 + $0x1c] sm:$0xf] %vm736, %v615
      %745 = vst.msk [vmem:[%s208 + $0x20] sm:$0xf] %vm736, %v616
      %746 = vst.msk [vmem:[%s208 + $0x24] sm:$0xf] %vm736, %v617
      %747 = vst.msk [vmem:[%s208 + $0x28] sm:$0xf] %vm736, %v618
      %748 = vst.msk [vmem:[%s208 + $0x2c] sm:$0xf] %vm736, %v619
      %749 = vst.msk [vmem:[%s208 + $0x30] sm:$0xf] %vm736, %v620
      %750 = vst.msk [vmem:[%s208 + $0x34] sm:$0xf] %vm736, %v621
      %751 = vst.msk [vmem:[%s208 + $0x38] sm:$0xf] %vm736, %v622
      %752 = vst.msk [vmem:[%s208 + $0x3c] sm:$0xf] %vm736, %v623
      %753 = vst.msk [vmem:[%s208 + $0x40] sm:$0xf] %vm736, %v624
      %754 = vst.msk [vmem:[%s208 + $0x44] sm:$0xf] %vm736, %v625
      %755 = vst.msk [vmem:[%s208 + $0x48] sm:$0xf] %vm736, %v626
      %756 = vst.msk [vmem:[%s208 + $0x4c] sm:$0xf] %vm736, %v627
      %757 = vst.msk [vmem:[%s208 + $0x50] sm:$0xf] %vm736, %v628
      %758 = vst.msk [vmem:[%s208 + $0x54] sm:$0xf] %vm736, %v629
      %759 = vst.msk [vmem:[%s208 + $0x58] sm:$0xf] %vm736, %v630
      %760 = vst.msk [vmem:[%s208 + $0x5c] sm:$0xf] %vm736, %v631
      %761 = vst.msk [vmem:[%s208 + $0x60] sm:$0xf] %vm736, %v632
      %762 = vst.msk [vmem:[%s208 + $0x64] sm:$0xf] %vm736, %v633
      %763 = vst.msk [vmem:[%s208 + $0x68] sm:$0xf] %vm736, %v634
      %764 = vst.msk [vmem:[%s208 + $0x6c] sm:$0xf] %vm736, %v635
      %765 = vst.msk [vmem:[%s208 + $0x70] sm:$0xf] %vm736, %v636
      %766 = vst.msk [vmem:[%s208 + $0x74] sm:$0xf] %vm736, %v637
      %767 = vst.msk [vmem:[%s208 + $0x78] sm:$0xf] %vm736, %v638
      %768 = vst.msk [vmem:[%s208 + $0x7c] sm:$0xf] %vm736, %v639
      %769 = vst.msk [vmem:[%s208 + $0x80] sm:$0xf] %vm736, %v640
      %770 = vst.msk [vmem:[%s208 + $0x84] sm:$0xf] %vm736, %v641
      %771 = vst.msk [vmem:[%s208 + $0x88] sm:$0xf] %vm736, %v642
      %772 = vst.msk [vmem:[%s208 + $0x8c] sm:$0xf] %vm736, %v643
      %773 = vst.msk [vmem:[%s208 + $0x90] sm:$0xf] %vm736, %v644
      %774 = vst.msk [vmem:[%s208 + $0x94] sm:$0xf] %vm736, %v645
      %775 = vst.msk [vmem:[%s208 + $0x98] sm:$0xf] %vm736, %v646
      %776 = vst.msk [vmem:[%s208 + $0x9c] sm:$0xf] %vm736, %v647
      %777 = vst.msk [vmem:[%s208 + $0xa0] sm:$0xf] %vm736, %v648
      %778 = vst.msk [vmem:[%s208 + $0xa4] sm:$0xf] %vm736, %v649
      %779 = vst.msk [vmem:[%s208 + $0xa8] sm:$0xf] %vm736, %v650
      %780 = vst.msk [vmem:[%s208 + $0xac] sm:$0xf] %vm736, %v651
      %781 = vst.msk [vmem:[%s208 + $0xb0] sm:$0xf] %vm736, %v652
      %782 = vst.msk [vmem:[%s208 + $0xb4] sm:$0xf] %vm736, %v653
      %783 = vst.msk [vmem:[%s208 + $0xb8] sm:$0xf] %vm736, %v654
      %784 = vst.msk [vmem:[%s208 + $0xbc] sm:$0xf] %vm736, %v655
      %785 = vst.msk [vmem:[%s208 + $0xc0] sm:$0xf] %vm736, %v656
      %786 = vst.msk [vmem:[%s208 + $0xc4] sm:$0xf] %vm736, %v657
      %787 = vst.msk [vmem:[%s208 + $0xc8] sm:$0xf] %vm736, %v658
      %788 = vst.msk [vmem:[%s208 + $0xcc] sm:$0xf] %vm736, %v659
      %789 = vst.msk [vmem:[%s208 + $0xd0] sm:$0xf] %vm736, %v660
      %790 = vst.msk [vmem:[%s208 + $0xd4] sm:$0xf] %vm736, %v661
      %791 = vst.msk [vmem:[%s208 + $0xd8] sm:$0xf] %vm736, %v662
      %792 = vst.msk [vmem:[%s208 + $0xdc] sm:$0xf] %vm736, %v663
      %793 = vst.msk [vmem:[%s208 + $0xe0] sm:$0xf] %vm736, %v664
      %794 = vst.msk [vmem:[%s208 + $0xe4] sm:$0xf] %vm736, %v665
      %795 = vst.msk [vmem:[%s208 + $0xe8] sm:$0xf] %vm736, %v666
      %796 = vst.msk [vmem:[%s208 + $0xec] sm:$0xf] %vm736, %v667
      %797 = vst.msk [vmem:[%s208 + $0xf0] sm:$0xf] %vm736, %v668
      %798 = vst.msk [vmem:[%s208 + $0xf4] sm:$0xf] %vm736, %v669
      %799 = vst.msk [vmem:[%s208 + $0xf8] sm:$0xf] %vm736, %v670
      %800 = vst.msk [vmem:[%s208 + $0xfc] sm:$0xf] %vm736, %v671
      %s801 = smul.u32 64, %s19
      %p802 = scmp.lt.s32.totalorder %s18, 3
      %s803 = scalar_select %p802, %s18, 3
      %p804 = scmp.lt.s32.totalorder %s801, 63
      %s805 = scalar_select %p804, %s801, 63
      %s806 = smul.addr %s803, 64
      %s807 = sadd.s32 %s805, %s806
      %s808 = smul.addr %s807, 4
      %s809 = scalar_lea.vmem %s3, %s808
      // Predicated region
      $region33: #{stage1_generator_forward.14} parent=31 // pred_check
        %p810 = pneg %p116
      $region34: #{stage1_generator_forward.14} parent=31 // pred_check_branch
        %812 = sbr.rel (%p810) target = $region36
      $region35: #{stage1_generator_forward.14} parent=31 // pred_region
        %s813 = smul.u32 64, %s19
      $region36: #{stage1_generator_forward.14} parent=31 // pred_fallthru
        _
    $region32: #{stage1_generator_forward.14} parent=5 // pred_fallthru
      _
    %p814 = scmp.le.s32.totalorder 2, %s9
    // Predicated region
    $region37: #{stage1_generator_forward.14} parent=5 // pred_check
      %p815 = pneg %p814
    $region38: #{stage1_generator_forward.14} parent=5 // pred_check_branch
      %817 = sbr.rel (%p815) target = $region40
    $region39: #{stage1_generator_forward.14} parent=5 // pred_region
      %s818 = ssub.s32 %s9, 2
      // Predicated region
      $region41: #{stage1_generator_forward.14} parent=39 // pred_check
        %p819 = pneg %p122
      $region42: #{stage1_generator_forward.14} parent=39 // pred_check_branch
        %821 = sbr.rel (%p819) target = $region44
      $region43: #{stage1_generator_forward.14} parent=39 // pred_region
        %s822 = smul.u32 64, %s21
        %p823 = scmp.lt.s32.totalorder %s20, 3
        %s824 = scalar_select %p823, %s20, 3
        %p825 = scmp.lt.s32.totalorder %s822, 63
        %s826 = scalar_select %p825, %s822, 63
        %s827 = smul.addr %s824, 64
        %s828 = sadd.s32 %s826, %s827
        %s829 = smul.addr %s828, 4
        %s830 = scalar_lea.vmem %s3, %s829
      $region44: #{stage1_generator_forward.14} parent=39 // pred_fallthru
        _
    $region40: #{stage1_generator_forward.14} parent=5 // pred_fallthru
      _
  $region6: #{stage1_generator_forward.14} parent=0 // loop_footer
    %s13 = sadd.s32 1, %s9
  $region7: #{stage1_generator_forward.14} parent=0 // loop_footer_branch
    %8 = sbr.rel target = $region3
  $region8: #{stage1_generator_forward.14} parent=0 // loop_exit
    _

// kernel: stage1_generator_forward.15
$region0: #{stage1_generator_forward.15}
  #allocation0 [shape = 'u32[]', space=smem, size = 0x4, offset = 0x4, fixed_abs, tag = 'smem constant byte address 0x4 - core index']
  #allocation1 [shape = 'u32[144,128]{1,0:T(1,128)}', space=vmem, size = 0x12000, scoped, tag = 'internal scratch']
  %s0 = inlined_call_operand.vmem [shape: bf16[2048,72], index: 0, kind: input, shape index: {}]
  %s1 = inlined_call_operand.vmem [shape: bf16[72,12], index: 1, kind: input, shape index: {}]
  %s2 = inlined_call_operand.vmem [shape: f32[1,12], index: 2, kind: input, shape index: {}]
  %s3 = inlined_call_operand.vmem [shape: f32[2048,12], index: 3, kind: output, shape index: {}]
  %s4 = sld [smem:[#allocation0]]
  $region45: #{stage1_generator_forward.15} parent=0
    _
  %s6 = ssub.s32 1, %s4
  %s7 = scalar_select 0, %s6, %s4
  loop: start=0, step=1, limit=6
  $region2: #{stage1_generator_forward.15} parent=0 // loop_pre_header
    _
  $region3: #{stage1_generator_forward.15} parent=0 // loop_header
    %s9 = sphi 0, %s13
    %p10 = scmp.ge.s32.totalorder %s9, 6
    %s19 = sphi 0, %s21
    %s22 = sphi 0, %s19
    %s23 = sphi 0, %s22
    %s39 = sphi 0, %s23
    %s43 = sphi 0, %s43
    %s45 = sphi 0, %s43
    %s46 = sphi 0, %s45
    %s60 = sphi 0, %s46
    %s64 = sphi 0, %s64
    %s66 = sphi 0, %s64
    %s67 = sphi 0, %s66
    %s81 = sphi 0, %s67
    %s87 = sphi 0, %s89
    %s90 = sphi 0, %s87
    %s91 = sphi 0, %s90
    %s107 = sphi 0, %s91
  $region4: #{stage1_generator_forward.15} parent=0 // loop_header_branch
    %12 = sbr.rel (%p10) target = $region8
  $region5: #{stage1_generator_forward.15} parent=0 // loop_body
    %s14 = ssub.s32 %s9, 1
    %s15 = ssub.s32 %s9, 2
    %s16 = sadd.s32 %s9, 1
    %s17 = ssub.s32 %s9, %s16
    %p18 = scmp.eq.s32.totalorder %s17, 0
    %s20 = sadd.s32 %s19, 1
    %s21 = scalar_select %p18, %s19, %s20
    %p24 = pneg %p18
    %p25 = scmp.eq.s32.totalorder %s9, 3
    %p26 = por %p24, %p25
    %p27 = scmp.ne.s32.totalorder %s19, %s22
    %p28 = scmp.eq.s32.totalorder %s9, 0
    %p29 = por %p27, %p28
    %p30 = scmp.ne.s32.totalorder %s19, %s22
    %p31 = scmp.eq.s32.totalorder %s14, 3
    %p32 = por %p30, %p31
    %p33 = scmp.ne.s32.totalorder %s22, %s23
    %p34 = scmp.eq.s32.totalorder %s14, 0
    %p35 = por %p33, %p34
    %p36 = scmp.ne.s32.totalorder %s22, %s23
    %p37 = scmp.eq.s32.totalorder %s15, 3
    %p38 = por %p36, %p37
    %p40 = scmp.ne.s32.totalorder %s23, %s39
    %p41 = scmp.eq.s32.totalorder %s15, 0
    %p42 = por %p40, %p41
    %s44 = sadd.s32 %s43, 1
    %p47 = scmp.eq.s32.totalorder %s9, 3
    %p48 = scmp.ne.s32.totalorder %s43, %s45
    %p49 = scmp.eq.s32.totalorder %s9, 0
    %p50 = por %p48, %p49
    %p51 = scmp.ne.s32.totalorder %s43, %s45
    %p52 = scmp.eq.s32.totalorder %s14, 3
    %p53 = por %p51, %p52
    %p54 = scmp.ne.s32.totalorder %s45, %s46
    %p55 = scmp.eq.s32.totalorder %s14, 0
    %p56 = por %p54, %p55
    %p57 = scmp.ne.s32.totalorder %s45, %s46
    %p58 = scmp.eq.s32.totalorder %s15, 3
    %p59 = por %p57, %p58
    %p61 = scmp.ne.s32.totalorder %s46, %s60
    %p62 = scmp.eq.s32.totalorder %s15, 0
    %p63 = por %p61, %p62
    %s65 = sadd.s32 %s64, 1
    %p68 = scmp.eq.s32.totalorder %s9, 3
    %p69 = scmp.ne.s32.totalorder %s64, %s66
    %p70 = scmp.eq.s32.totalorder %s9, 0
    %p71 = por %p69, %p70
    %p72 = scmp.ne.s32.totalorder %s64, %s66
    %p73 = scmp.eq.s32.totalorder %s14, 3
    %p74 = por %p72, %p73
    %p75 = scmp.ne.s32.totalorder %s66, %s67
    %p76 = scmp.eq.s32.totalorder %s14, 0
    %p77 = por %p75, %p76
    %p78 = scmp.ne.s32.totalorder %s66, %s67
    %p79 = scmp.eq.s32.totalorder %s15, 3
    %p80 = por %p78, %p79
    %p82 = scmp.ne.s32.totalorder %s67, %s81
    %p83 = scmp.eq.s32.totalorder %s15, 0
    %p84 = por %p82, %p83
    %s85 = ssub.s32 %s9, %s16
    %p86 = scmp.eq.s32.totalorder %s85, 0
    %s88 = sadd.s32 %s87, 1
    %s89 = scalar_select %p86, %s87, %s88
    %p92 = pneg %p86
    %p93 = scmp.eq.s32.totalorder %s9, 3
    %p94 = por %p92, %p93
    %p95 = scmp.ne.s32.totalorder %s87, %s90
    %p96 = scmp.eq.s32.totalorder %s9, 0
    %p97 = por %p95, %p96
    %p98 = scmp.ne.s32.totalorder %s87, %s90
    %p99 = scmp.eq.s32.totalorder %s14, 3
    %p100 = por %p98, %p99
    %p101 = scmp.ne.s32.totalorder %s90, %s91
    %p102 = scmp.eq.s32.totalorder %s14, 0
    %p103 = por %p101, %p102
    %p104 = scmp.ne.s32.totalorder %s90, %s91
    %p105 = scmp.eq.s32.totalorder %s15, 3
    %p106 = por %p104, %p105
    %p108 = scmp.ne.s32.totalorder %s91, %s107
    %p109 = scmp.eq.s32.totalorder %s15, 0
    %p110 = por %p108, %p109
    %p111 = scmp.le.s32.totalorder 1, %s9
    %p112 = scmp.lt.s32.totalorder %s9, 5
    %p113 = pnand %p111, %p112
    %p114 = pneg %p113
    // Predicated region
    $region9: #{stage1_generator_forward.15} parent=5 // pred_check
      _
    $region10: #{stage1_generator_forward.15} parent=5 // pred_check_branch
      %116 = sbr.rel (%p113) target = $region12
    $region11: #{stage1_generator_forward.15} parent=5 // pred_region
      %s117 = ssub.s32 %s9, 1
      // Predicated region
      $region13: #{stage1_generator_forward.15} parent=11 // pred_check
        %p118 = pneg %p56
      $region14: #{stage1_generator_forward.15} parent=11 // pred_check_branch
        %120 = sbr.rel (%p118) target = $region16
      $region15: #{stage1_generator_forward.15} parent=11 // pred_region
        _
      $region16: #{stage1_generator_forward.15} parent=11 // pred_fallthru
        _
      // Predicated region
      $region17: #{stage1_generator_forward.15} parent=11 // pred_check
        %p121 = pneg %p77
      $region18: #{stage1_generator_forward.15} parent=11 // pred_check_branch
        %123 = sbr.rel (%p121) target = $region20
      $region19: #{stage1_generator_forward.15} parent=11 // pred_region
        _
      $region20: #{stage1_generator_forward.15} parent=11 // pred_fallthru
        _
    $region12: #{stage1_generator_forward.15} parent=5 // pred_fallthru
      _
    %p124 = scmp.lt.s32.totalorder %s9, 4
    // Predicated region
    $region21: #{stage1_generator_forward.15} parent=5 // pred_check
      %p125 = pneg %p124
    $region22: #{stage1_generator_forward.15} parent=5 // pred_check_branch
      %127 = sbr.rel (%p125) target = $region24
    $region23: #{stage1_generator_forward.15} parent=5 // pred_region
      // Predicated region
      $region25: #{stage1_generator_forward.15} parent=23 // pred_check
        %p128 = pneg %p29
      $region26: #{stage1_generator_forward.15} parent=23 // pred_check_branch
        %130 = sbr.rel (%p128) target = $region28
      $region27: #{stage1_generator_forward.15} parent=23 // pred_region
        %s131 = smul.u32 64, %s9
        %p132 = scmp.lt.s32.totalorder %s131, 255
        %s133 = scalar_select %p132, %s131, 255
        %s134 = smul.addr %s133, 4
        %s135 = scalar_lea.vmem %s0, %s134
        %s136 = smul.u32 64, %s9
      $region28: #{stage1_generator_forward.15} parent=23 // pred_fallthru
        _
    $region24: #{stage1_generator_forward.15} parent=5 // pred_fallthru
      _
    %p137 = scmp.le.s32.totalorder 1, %s9
    %p138 = scmp.lt.s32.totalorder %s9, 5
    %p139 = pnand %p137, %p138
    %p140 = pneg %p139
    // Predicated region
    $region29: #{stage1_generator_forward.15} parent=5 // pred_check
      _
    $region30: #{stage1_generator_forward.15} parent=5 // pred_check_branch
      %142 = sbr.rel (%p139) target = $region32
    $region31: #{stage1_generator_forward.15} parent=5 // pred_region
      %s143 = ssub.s32 %s9, 1
      %s144 = smul.u32 64, %s14
      %p145 = scmp.lt.s32.totalorder %s144, 255
      %s146 = scalar_select %p145, %s144, 255
      %s147 = smul.addr %s146, 4
      %s148 = scalar_lea.vmem %s0, %s147
      %p149 = pneg %p35
      %p150 = pneg %p32
      %p151 = pneg %p56
      %p152 = pneg %p53
      %p153 = pneg %p77
      %p154 = pneg %p74
      %p155 = pneg %p103
      %p156 = pneg %p100
      %s157 = smul.u32 64, %s14
      %p158 = scmp.lt.s32.totalorder %s157, 255
      %s159 = scalar_select %p158, %s157, 255
      %s160 = smul.addr %s159, 8
      %s161 = scalar_lea.vmem %s3, %s160
      %s162 = smul.u32 64, %s14
      %p163 = scmp.lt.s32.totalorder %s162, 255
      %s164 = scalar_select %p163, %s162, 255
      %s165 = smul.addr %s164, 4
      %s166 = scalar_lea.vmem %s0, %s165
      %s167 = smul.u32 64, %s14
      %s168 = smul.u32 64, %s14
      %p169 = scmp.lt.s32.totalorder %s168, 255
      %s170 = scalar_select %p169, %s168, 255
      %s171 = smul.addr %s170, 8
      %s172 = scalar_lea.vmem %s3, %s171
      %s173 = smul.u32 64, %s14
      %v175 = vld [vmem:[%s166] sm:$0xf]
      %v176 = vld [vmem:[%s166 + $0x4] sm:$0xf]
      %v177 = vld [vmem:[%s166 + $0x8] sm:$0xf]
      %v178 = vld [vmem:[%s166 + $0xc] sm:$0xf]
      %v179 = vld [vmem:[%s166 + $0x10] sm:$0xf]
      %v180 = vld [vmem:[%s166 + $0x14] sm:$0xf]
      %v181 = vld [vmem:[%s166 + $0x18] sm:$0xf]
      %v182 = vld [vmem:[%s166 + $0x1c] sm:$0xf]
      %v183 = vld [vmem:[%s166 + $0x20] sm:$0xf]
      %v184 = vld [vmem:[%s166 + $0x24] sm:$0xf]
      %v185 = vld [vmem:[%s166 + $0x28] sm:$0xf]
      %v186 = vld [vmem:[%s166 + $0x2c] sm:$0xf]
      %v187 = vld [vmem:[%s166 + $0x30] sm:$0xf]
      %v188 = vld [vmem:[%s166 + $0x34] sm:$0xf]
      %v189 = vld [vmem:[%s166 + $0x38] sm:$0xf]
      %v190 = vld [vmem:[%s166 + $0x3c] sm:$0xf]
      %v191 = vld [vmem:[%s166 + $0x40] sm:$0xf]
      %v192 = vld [vmem:[%s166 + $0x44] sm:$0xf]
      %v193 = vld [vmem:[%s166 + $0x48] sm:$0xf]
      %v194 = vld [vmem:[%s166 + $0x4c] sm:$0xf]
      %v195 = vld [vmem:[%s166 + $0x50] sm:$0xf]
      %v196 = vld [vmem:[%s166 + $0x54] sm:$0xf]
      %v197 = vld [vmem:[%s166 + $0x58] sm:$0xf]
      %v198 = vld [vmem:[%s166 + $0x5c] sm:$0xf]
      %v199 = vld [vmem:[%s166 + $0x60] sm:$0xf]
      %v200 = vld [vmem:[%s166 + $0x64] sm:$0xf]
      %v201 = vld [vmem:[%s166 + $0x68] sm:$0xf]
      %v202 = vld [vmem:[%s166 + $0x6c] sm:$0xf]
      %v203 = vld [vmem:[%s166 + $0x70] sm:$0xf]
      %v204 = vld [vmem:[%s166 + $0x74] sm:$0xf]
      %v205 = vld [vmem:[%s166 + $0x78] sm:$0xf]
      %v206 = vld [vmem:[%s166 + $0x7c] sm:$0xf]
      %v207 = vld [vmem:[%s166 + $0x80] sm:$0xf]
      %v208 = vld [vmem:[%s166 + $0x84] sm:$0xf]
      %v209 = vld [vmem:[%s166 + $0x88] sm:$0xf]
      %v210 = vld [vmem:[%s166 + $0x8c] sm:$0xf]
      %v211 = vld [vmem:[%s166 + $0x90] sm:$0xf]
      %v212 = vld [vmem:[%s166 + $0x94] sm:$0xf]
      %v213 = vld [vmem:[%s166 + $0x98] sm:$0xf]
      %v214 = vld [vmem:[%s166 + $0x9c] sm:$0xf]
      %v215 = vld [vmem:[%s166 + $0xa0] sm:$0xf]
      %v216 = vld [vmem:[%s166 + $0xa4] sm:$0xf]
      %v217 = vld [vmem:[%s166 + $0xa8] sm:$0xf]
      %v218 = vld [vmem:[%s166 + $0xac] sm:$0xf]
      %v219 = vld [vmem:[%s166 + $0xb0] sm:$0xf]
      %v220 = vld [vmem:[%s166 + $0xb4] sm:$0xf]
      %v221 = vld [vmem:[%s166 + $0xb8] sm:$0xf]
      %v222 = vld [vmem:[%s166 + $0xbc] sm:$0xf]
      %v223 = vld [vmem:[%s166 + $0xc0] sm:$0xf]
      %v224 = vld [vmem:[%s166 + $0xc4] sm:$0xf]
      %v225 = vld [vmem:[%s166 + $0xc8] sm:$0xf]
      %v226 = vld [vmem:[%s166 + $0xcc] sm:$0xf]
      %v227 = vld [vmem:[%s166 + $0xd0] sm:$0xf]
      %v228 = vld [vmem:[%s166 + $0xd4] sm:$0xf]
      %v229 = vld [vmem:[%s166 + $0xd8] sm:$0xf]
      %v230 = vld [vmem:[%s166 + $0xdc] sm:$0xf]
      %v231 = vld [vmem:[%s166 + $0xe0] sm:$0xf]
      %v232 = vld [vmem:[%s166 + $0xe4] sm:$0xf]
      %v233 = vld [vmem:[%s166 + $0xe8] sm:$0xf]
      %v234 = vld [vmem:[%s166 + $0xec] sm:$0xf]
      %v235 = vld [vmem:[%s166 + $0xf0] sm:$0xf]
      %v236 = vld [vmem:[%s166 + $0xf4] sm:$0xf]
      %v237 = vld [vmem:[%s166 + $0xf8] sm:$0xf]
      %v238 = vld [vmem:[%s166 + $0xfc] sm:$0xf]
      %v239 = vld [vmem:[%s1] sm:$0xf]
      %v240 = vld [vmem:[%s1 + $0x4] sm:$0xf]
      %v241 = vld [vmem:[%s1 + $0x8] sm:$0xf]
      %v242 = vld [vmem:[%s1 + $0xc] sm:$0xf]
      %v243 = vld [vmem:[%s1 + $0x10] sm:$0xf]
      %v244 = vld [vmem:[%s1 + $0x14] sm:$0xf]
      %v245 = vld [vmem:[%s1 + $0x18] sm:$0xf]
      %v246 = vld [vmem:[%s1 + $0x1c] sm:$0xf]
      %v247 = vld [vmem:[%s1 + $0x20] sm:$0xf]
      %v248 = vld [vmem:[%s2] sm:$0x1]
      %v250 = vlaneseq
      %v251 = vshrl.u32 %v250, 7
      %v252 = vsub.s32 0, %v251
      %v253 = vrot.slane %v248, %v252
      %v319 = vunpack.c.l.b16 %v175
      %v320 = vunpack.c.l.b16 %v176
      %v321 = vunpack.c.l.b16 %v177
      %v322 = vunpack.c.l.b16 %v178
      %v323 = vunpack.c.l.b16 %v179
      %v324 = vunpack.c.l.b16 %v180
      %v325 = vunpack.c.l.b16 %v181
      %v326 = vunpack.c.l.b16 %v182
      %v327 = vunpack.c.l.b16 %v183
      %v328 = vunpack.c.l.b16 %v184
      %v329 = vunpack.c.l.b16 %v185
      %v330 = vunpack.c.l.b16 %v186
      %v331 = vunpack.c.l.b16 %v187
      %v332 = vunpack.c.l.b16 %v188
      %v333 = vunpack.c.l.b16 %v189
      %v334 = vunpack.c.l.b16 %v190
      %v335 = vunpack.c.l.b16 %v191
      %v336 = vunpack.c.l.b16 %v192
      %v337 = vunpack.c.l.b16 %v193
      %v338 = vunpack.c.l.b16 %v194
      %v339 = vunpack.c.l.b16 %v195
      %v340 = vunpack.c.l.b16 %v196
      %v341 = vunpack.c.l.b16 %v197
      %v342 = vunpack.c.l.b16 %v198
      %v343 = vunpack.c.l.b16 %v199
      %v344 = vunpack.c.l.b16 %v200
      %v345 = vunpack.c.l.b16 %v201
      %v346 = vunpack.c.l.b16 %v202
      %v347 = vunpack.c.l.b16 %v203
      %v348 = vunpack.c.l.b16 %v204
      %v349 = vunpack.c.l.b16 %v205
      %v350 = vunpack.c.l.b16 %v206
      %v351 = vunpack.c.l.b16 %v207
      %v352 = vunpack.c.l.b16 %v208
      %v353 = vunpack.c.l.b16 %v209
      %v354 = vunpack.c.l.b16 %v210
      %v355 = vunpack.c.l.b16 %v211
      %v356 = vunpack.c.l.b16 %v212
      %v357 = vunpack.c.l.b16 %v213
      %v358 = vunpack.c.l.b16 %v214
      %v359 = vunpack.c.l.b16 %v215
      %v360 = vunpack.c.l.b16 %v216
      %v361 = vunpack.c.l.b16 %v217
      %v362 = vunpack.c.l.b16 %v218
      %v363 = vunpack.c.l.b16 %v219
      %v364 = vunpack.c.l.b16 %v220
      %v365 = vunpack.c.l.b16 %v221
      %v366 = vunpack.c.l.b16 %v222
      %v367 = vunpack.c.l.b16 %v223
      %v368 = vunpack.c.l.b16 %v224
      %v369 = vunpack.c.l.b16 %v225
      %v370 = vunpack.c.l.b16 %v226
      %v371 = vunpack.c.l.b16 %v227
      %v372 = vunpack.c.l.b16 %v228
      %v373 = vunpack.c.l.b16 %v229
      %v374 = vunpack.c.l.b16 %v230
      %v375 = vunpack.c.l.b16 %v231
      %v376 = vunpack.c.l.b16 %v232
      %v377 = vunpack.c.l.b16 %v233
      %v378 = vunpack.c.l.b16 %v234
      %v379 = vunpack.c.l.b16 %v235
      %v380 = vunpack.c.l.b16 %v236
      %v381 = vunpack.c.l.b16 %v237
      %v382 = vunpack.c.l.b16 %v238
      %v383 = vpack.c.b16 %v320, %v319
      %v384 = vpack.c.b16 %v322, %v321
      %v385 = vpack.c.b16 %v324, %v323
      %v386 = vpack.c.b16 %v326, %v325
      %v387 = vpack.c.b16 %v328, %v327
      %v388 = vpack.c.b16 %v330, %v329
      %v389 = vpack.c.b16 %v332, %v331
      %v390 = vpack.c.b16 %v334, %v333
      %v391 = vpack.c.b16 %v336, %v335
      %v392 = vpack.c.b16 %v338, %v337
      %v393 = vpack.c.b16 %v340, %v339
      %v394 = vpack.c.b16 %v342, %v341
      %v395 = vpack.c.b16 %v344, %v343
      %v396 = vpack.c.b16 %v346, %v345
      %v397 = vpack.c.b16 %v348, %v347
      %v398 = vpack.c.b16 %v350, %v349
      %v399 = vpack.c.b16 %v352, %v351
      %v400 = vpack.c.b16 %v354, %v353
      %v401 = vpack.c.b16 %v356, %v355
      %v402 = vpack.c.b16 %v358, %v357
      %v403 = vpack.c.b16 %v360, %v359
      %v404 = vpack.c.b16 %v362, %v361
      %v405 = vpack.c.b16 %v364, %v363
      %v406 = vpack.c.b16 %v366, %v365
      %v407 = vpack.c.b16 %v368, %v367
      %v408 = vpack.c.b16 %v370, %v369
      %v409 = vpack.c.b16 %v372, %v371
      %v410 = vpack.c.b16 %v374, %v373
      %v411 = vpack.c.b16 %v376, %v375
      %v412 = vpack.c.b16 %v378, %v377
      %v413 = vpack.c.b16 %v380, %v379
      %v414 = vpack.c.b16 %v382, %v381
      %v424 = vunpack.c.l.b16 %v239
      %v425 = vunpack.c.l.b16 %v240
      %v426 = vunpack.c.l.b16 %v241
      %v427 = vunpack.c.l.b16 %v242
      %v428 = vunpack.c.l.b16 %v243
      %v429 = vunpack.c.l.b16 %v244
      %v430 = vunpack.c.l.b16 %v245
      %v431 = vunpack.c.l.b16 %v246
      %v432 = vunpack.c.l.b16 %v247
      %v433 = vpack.c.b16 %v425, %v424
      %v434 = vpack.c.b16 %v427, %v426
      %v435 = vpack.c.b16 %v429, %v428
      %v436 = vpack.c.b16 %v431, %v430
      %v437 = vpack.c.b16 %v432, %v432
      %vm442 = vcmask 588800
      %v444 = vsel %vm442, %v383, 0
      %v447 = vsel %vm442, %v384, 0
      %v450 = vsel %vm442, %v385, 0
      %v453 = vsel %vm442, %v386, 0
      %v456 = vsel %vm442, %v387, 0
      %v459 = vsel %vm442, %v388, 0
      %v462 = vsel %vm442, %v389, 0
      %v465 = vsel %vm442, %v390, 0
      %v468 = vsel %vm442, %v391, 0
      %v471 = vsel %vm442, %v392, 0
      %v474 = vsel %vm442, %v393, 0
      %v477 = vsel %vm442, %v394, 0
      %v480 = vsel %vm442, %v395, 0
      %v483 = vsel %vm442, %v396, 0
      %v486 = vsel %vm442, %v397, 0
      %v489 = vsel %vm442, %v398, 0
      %v492 = vsel %vm442, %v399, 0
      %v495 = vsel %vm442, %v400, 0
      %v498 = vsel %vm442, %v401, 0
      %v501 = vsel %vm442, %v402, 0
      %v504 = vsel %vm442, %v403, 0
      %v507 = vsel %vm442, %v404, 0
      %v510 = vsel %vm442, %v405, 0
      %v513 = vsel %vm442, %v406, 0
      %v516 = vsel %vm442, %v407, 0
      %v519 = vsel %vm442, %v408, 0
      %v522 = vsel %vm442, %v409, 0
      %v525 = vsel %vm442, %v410, 0
      %v528 = vsel %vm442, %v411, 0
      %v531 = vsel %vm442, %v412, 0
      %v534 = vsel %vm442, %v413, 0
      %v537 = vsel %vm442, %v414, 0
      %vm539 = vcmask 1043456
      %v541 = vsel %vm539, %v437, 0
      %543 = vmatprep.subr.bf16.mxu0 0
      %544 = vmatpush1.bf16.msra.mxu0 0
      %545 = vmatprep.subr.bf16.mxu0 0
      %546 = vmatpush1.bf16.msra.mxu0 0
      %547 = vmatprep.subr.bf16.mxu0 0
      %548 = vmatpush1.bf16.msra.mxu0 0
      %549 = vmatprep.subr.bf16.mxu0 0
      %550 = vmatpush1.bf16.msra.mxu0 %v541
      %551 = vmatprep.subr.bf16.mxu0 0
      %552 = vmatpush1.bf16.msra.mxu0 %v436
      %553 = vmatprep.subr.bf16.mxu0 0
      %554 = vmatpush1.bf16.msra.mxu0 %v435
      %555 = vmatprep.subr.bf16.mxu0 0
      %556 = vmatpush1.bf16.msra.mxu0 %v434
      %557 = vmatprep.subr.bf16.mxu0 0
      %558 = vmatpush1.bf16.msra.mxu0 %v433
      %559 = vmatprep.subr.bf16.mxu0 0
      %560 = vmatpush2.bf16.msra.mxu0 0
      %561 = vmatprep.subr.bf16.mxu0 0
      %562 = vmatpush2.bf16.msra.mxu0 0
      %563 = vmatprep.subr.bf16.mxu0 0
      %564 = vmatpush2.bf16.msra.mxu0 0
      %565 = vmatprep.subr.bf16.mxu0 0
      %566 = vmatpush2.bf16.msra.mxu0 0
      %567 = vmatprep.subr.bf16.mxu0 0
      %568 = vmatpush2.bf16.msra.mxu0 0
      %569 = vmatprep.subr.bf16.mxu0 0
      %570 = vmatpush2.bf16.msra.mxu0 0
      %571 = vmatprep.subr.bf16.mxu0 0
      %572 = vmatpush2.bf16.msra.mxu0 0
      %573 = vmatprep.subr.bf16.mxu0 0
      %574 = vmatpush2.bf16.msra.mxu0 0
      %575 = vmatprep.mubr.bf16.mxu0 0
      %576 = vmatmul.mubr.bf16.gmra.mxu0 %v444
      %v577 = vpop.f32.mrf.mxu0
      %v578 = vadd.f32 %v253, %v577
      %v579 = vpop.f32.mrf.mxu0
      %v580 = vpop.f32.mrf.mxu0
      %v581 = vadd.f32 %v253, %v580
      %v582 = vpop.f32.mrf.mxu0
      %583 = vmatprep.mubr.bf16.mxu0 0
      %584 = vmatmul.mubr.bf16.gmra.mxu0 %v447
      %v585 = vpop.f32.mrf.mxu0
      %v586 = vadd.f32 %v253, %v585
      %v587 = vpop.f32.mrf.mxu0
      %v588 = vpop.f32.mrf.mxu0
      %v589 = vadd.f32 %v253, %v588
      %v590 = vpop.f32.mrf.mxu0
      %591 = vmatprep.mubr.bf16.mxu0 0
      %592 = vmatmul.mubr.bf16.gmra.mxu0 %v450
      %v593 = vpop.f32.mrf.mxu0
      %v594 = vadd.f32 %v253, %v593
      %v595 = vpop.f32.mrf.mxu0
      %v596 = vpop.f32.mrf.mxu0
      %v597 = vadd.f32 %v253, %v596
      %v598 = vpop.f32.mrf.mxu0
      %599 = vmatprep.mubr.bf16.mxu0 0
      %600 = vmatmul.mubr.bf16.gmra.mxu0 %v453
      %v601 = vpop.f32.mrf.mxu0
      %v602 = vadd.f32 %v253, %v601
      %v603 = vpop.f32.mrf.mxu0
      %v604 = vpop.f32.mrf.mxu0
      %v605 = vadd.f32 %v253, %v604
      %v606 = vpop.f32.mrf.mxu0
      %607 = vmatprep.mubr.bf16.mxu0 0
      %608 = vmatmul.mubr.bf16.gmra.mxu0 %v456
      %v609 = vpop.f32.mrf.mxu0
      %v610 = vadd.f32 %v253, %v609
      %v611 = vpop.f32.mrf.mxu0
      %v612 = vpop.f32.mrf.mxu0
      %v613 = vadd.f32 %v253, %v612
      %v614 = vpop.f32.mrf.mxu0
      %615 = vmatprep.mubr.bf16.mxu0 0
      %616 = vmatmul.mubr.bf16.gmra.mxu0 %v459
      %v617 = vpop.f32.mrf.mxu0
      %v618 = vadd.f32 %v253, %v617
      %v619 = vpop.f32.mrf.mxu0
      %v620 = vpop.f32.mrf.mxu0
      %v621 = vadd.f32 %v253, %v620
      %v622 = vpop.f32.mrf.mxu0
      %623 = vmatprep.mubr.bf16.mxu0 0
      %624 = vmatmul.mubr.bf16.gmra.mxu0 %v462
      %v625 = vpop.f32.mrf.mxu0
      %v626 = vadd.f32 %v253, %v625
      %v627 = vpop.f32.mrf.mxu0
      %v628 = vpop.f32.mrf.mxu0
      %v629 = vadd.f32 %v253, %v628
      %v630 = vpop.f32.mrf.mxu0
      %631 = vmatprep.mubr.bf16.mxu0 0
      %632 = vmatmul.mubr.bf16.gmra.mxu0 %v465
      %v633 = vpop.f32.mrf.mxu0
      %v634 = vadd.f32 %v253, %v633
      %v635 = vpop.f32.mrf.mxu0
      %v636 = vpop.f32.mrf.mxu0
      %v637 = vadd.f32 %v253, %v636
      %v638 = vpop.f32.mrf.mxu0
      %639 = vmatprep.mubr.bf16.mxu0 0
      %640 = vmatmul.mubr.bf16.gmra.mxu0 %v468
      %v641 = vpop.f32.mrf.mxu0
      %v642 = vadd.f32 %v253, %v641
      %v643 = vpop.f32.mrf.mxu0
      %v644 = vpop.f32.mrf.mxu0
      %v645 = vadd.f32 %v253, %v644
      %v646 = vpop.f32.mrf.mxu0
      %647 = vmatprep.mubr.bf16.mxu0 0
      %648 = vmatmul.mubr.bf16.gmra.mxu0 %v471
      %v649 = vpop.f32.mrf.mxu0
      %v650 = vadd.f32 %v253, %v649
      %v651 = vpop.f32.mrf.mxu0
      %v652 = vpop.f32.mrf.mxu0
      %v653 = vadd.f32 %v253, %v652
      %v654 = vpop.f32.mrf.mxu0
      %655 = vmatprep.mubr.bf16.mxu0 0
      %656 = vmatmul.mubr.bf16.gmra.mxu0 %v474
      %v657 = vpop.f32.mrf.mxu0
      %v658 = vadd.f32 %v253, %v657
      %v659 = vpop.f32.mrf.mxu0
      %v660 = vpop.f32.mrf.mxu0
      %v661 = vadd.f32 %v253, %v660
      %v662 = vpop.f32.mrf.mxu0
      %663 = vmatprep.mubr.bf16.mxu0 0
      %664 = vmatmul.mubr.bf16.gmra.mxu0 %v477
      %v665 = vpop.f32.mrf.mxu0
      %v666 = vadd.f32 %v253, %v665
      %v667 = vpop.f32.mrf.mxu0
      %v668 = vpop.f32.mrf.mxu0
      %v669 = vadd.f32 %v253, %v668
      %v670 = vpop.f32.mrf.mxu0
      %671 = vmatprep.mubr.bf16.mxu0 0
      %672 = vmatmul.mubr.bf16.gmra.mxu0 %v480
      %v673 = vpop.f32.mrf.mxu0
      %v674 = vadd.f32 %v253, %v673
      %v675 = vpop.f32.mrf.mxu0
      %v676 = vpop.f32.mrf.mxu0
      %v677 = vadd.f32 %v253, %v676
      %v678 = vpop.f32.mrf.mxu0
      %679 = vmatprep.mubr.bf16.mxu0 0
      %680 = vmatmul.mubr.bf16.gmra.mxu0 %v483
      %v681 = vpop.f32.mrf.mxu0
      %v682 = vadd.f32 %v253, %v681
      %v683 = vpop.f32.mrf.mxu0
      %v684 = vpop.f32.mrf.mxu0
      %v685 = vadd.f32 %v253, %v684
      %v686 = vpop.f32.mrf.mxu0
      %687 = vmatprep.mubr.bf16.mxu0 0
      %688 = vmatmul.mubr.bf16.gmra.mxu0 %v486
      %v689 = vpop.f32.mrf.mxu0
      %v690 = vadd.f32 %v253, %v689
      %v691 = vpop.f32.mrf.mxu0
      %v692 = vpop.f32.mrf.mxu0
      %v693 = vadd.f32 %v253, %v692
      %v694 = vpop.f32.mrf.mxu0
      %695 = vmatprep.mubr.bf16.mxu0 0
      %696 = vmatmul.mubr.bf16.gmra.mxu0 %v489
      %v697 = vpop.f32.mrf.mxu0
      %v698 = vadd.f32 %v253, %v697
      %v699 = vpop.f32.mrf.mxu0
      %v700 = vpop.f32.mrf.mxu0
      %v701 = vadd.f32 %v253, %v700
      %v702 = vpop.f32.mrf.mxu0
      %703 = vmatprep.mubr.bf16.mxu0 0
      %704 = vmatmul.mubr.bf16.gmra.mxu0 %v492
      %v705 = vpop.f32.mrf.mxu0
      %v706 = vadd.f32 %v253, %v705
      %v707 = vpop.f32.mrf.mxu0
      %v708 = vpop.f32.mrf.mxu0
      %v709 = vadd.f32 %v253, %v708
      %v710 = vpop.f32.mrf.mxu0
      %711 = vmatprep.mubr.bf16.mxu0 0
      %712 = vmatmul.mubr.bf16.gmra.mxu0 %v495
      %v713 = vpop.f32.mrf.mxu0
      %v714 = vadd.f32 %v253, %v713
      %v715 = vpop.f32.mrf.mxu0
      %v716 = vpop.f32.mrf.mxu0
      %v717 = vadd.f32 %v253, %v716
      %v718 = vpop.f32.mrf.mxu0
      %719 = vmatprep.mubr.bf16.mxu0 0
      %720 = vmatmul.mubr.bf16.gmra.mxu0 %v498
      %v721 = vpop.f32.mrf.mxu0
      %v722 = vadd.f32 %v253, %v721
      %v723 = vpop.f32.mrf.mxu0
      %v724 = vpop.f32.mrf.mxu0
      %v725 = vadd.f32 %v253, %v724
      %v726 = vpop.f32.mrf.mxu0
      %727 = vmatprep.mubr.bf16.mxu0 0
      %728 = vmatmul.mubr.bf16.gmra.mxu0 %v501
      %v729 = vpop.f32.mrf.mxu0
      %v730 = vadd.f32 %v253, %v729
      %v731 = vpop.f32.mrf.mxu0
      %v732 = vpop.f32.mrf.mxu0
      %v733 = vadd.f32 %v253, %v732
      %v734 = vpop.f32.mrf.mxu0
      %735 = vmatprep.mubr.bf16.mxu0 0
      %736 = vmatmul.mubr.bf16.gmra.mxu0 %v504
      %v737 = vpop.f32.mrf.mxu0
      %v738 = vadd.f32 %v253, %v737
      %v739 = vpop.f32.mrf.mxu0
      %v740 = vpop.f32.mrf.mxu0
      %v741 = vadd.f32 %v253, %v740
      %v742 = vpop.f32.mrf.mxu0
      %743 = vmatprep.mubr.bf16.mxu0 0
      %744 = vmatmul.mubr.bf16.gmra.mxu0 %v507
      %v745 = vpop.f32.mrf.mxu0
      %v746 = vadd.f32 %v253, %v745
      %v747 = vpop.f32.mrf.mxu0
      %v748 = vpop.f32.mrf.mxu0
      %v749 = vadd.f32 %v253, %v748
      %v750 = vpop.f32.mrf.mxu0
      %751 = vmatprep.mubr.bf16.mxu0 0
      %752 = vmatmul.mubr.bf16.gmra.mxu0 %v510
      %v753 = vpop.f32.mrf.mxu0
      %v754 = vadd.f32 %v253, %v753
      %v755 = vpop.f32.mrf.mxu0
      %v756 = vpop.f32.mrf.mxu0
      %v757 = vadd.f32 %v253, %v756
      %v758 = vpop.f32.mrf.mxu0
      %759 = vmatprep.mubr.bf16.mxu0 0
      %760 = vmatmul.mubr.bf16.gmra.mxu0 %v513
      %v761 = vpop.f32.mrf.mxu0
      %v762 = vadd.f32 %v253, %v761
      %v763 = vpop.f32.mrf.mxu0
      %v764 = vpop.f32.mrf.mxu0
      %v765 = vadd.f32 %v253, %v764
      %v766 = vpop.f32.mrf.mxu0
      %767 = vmatprep.mubr.bf16.mxu0 0
      %768 = vmatmul.mubr.bf16.gmra.mxu0 %v516
      %v769 = vpop.f32.mrf.mxu0
      %v770 = vadd.f32 %v253, %v769
      %v771 = vpop.f32.mrf.mxu0
      %v772 = vpop.f32.mrf.mxu0
      %v773 = vadd.f32 %v253, %v772
      %v774 = vpop.f32.mrf.mxu0
      %775 = vmatprep.mubr.bf16.mxu0 0
      %776 = vmatmul.mubr.bf16.gmra.mxu0 %v519
      %v777 = vpop.f32.mrf.mxu0
      %v778 = vadd.f32 %v253, %v777
      %v779 = vpop.f32.mrf.mxu0
      %v780 = vpop.f32.mrf.mxu0
      %v781 = vadd.f32 %v253, %v780
      %v782 = vpop.f32.mrf.mxu0
      %783 = vmatprep.mubr.bf16.mxu0 0
      %784 = vmatmul.mubr.bf16.gmra.mxu0 %v522
      %v785 = vpop.f32.mrf.mxu0
      %v786 = vadd.f32 %v253, %v785
      %v787 = vpop.f32.mrf.mxu0
      %v788 = vpop.f32.mrf.mxu0
      %v789 = vadd.f32 %v253, %v788
      %v790 = vpop.f32.mrf.mxu0
      %791 = vmatprep.mubr.bf16.mxu0 0
      %792 = vmatmul.mubr.bf16.gmra.mxu0 %v525
      %v793 = vpop.f32.mrf.mxu0
      %v794 = vadd.f32 %v253, %v793
      %v795 = vpop.f32.mrf.mxu0
      %v796 = vpop.f32.mrf.mxu0
      %v797 = vadd.f32 %v253, %v796
      %v798 = vpop.f32.mrf.mxu0
      %799 = vmatprep.mubr.bf16.mxu0 0
      %800 = vmatmul.mubr.bf16.gmra.mxu0 %v528
      %v801 = vpop.f32.mrf.mxu0
      %v802 = vadd.f32 %v253, %v801
      %v803 = vpop.f32.mrf.mxu0
      %v804 = vpop.f32.mrf.mxu0
      %v805 = vadd.f32 %v253, %v804
      %v806 = vpop.f32.mrf.mxu0
      %807 = vmatprep.mubr.bf16.mxu0 0
      %808 = vmatmul.mubr.bf16.gmra.mxu0 %v531
      %v809 = vpop.f32.mrf.mxu0
      %v810 = vadd.f32 %v253, %v809
      %v811 = vpop.f32.mrf.mxu0
      %v812 = vpop.f32.mrf.mxu0
      %v813 = vadd.f32 %v253, %v812
      %v814 = vpop.f32.mrf.mxu0
      %815 = vmatprep.mubr.bf16.mxu0 0
      %816 = vmatmul.mubr.bf16.gmra.mxu0 %v534
      %v817 = vpop.f32.mrf.mxu0
      %v818 = vadd.f32 %v253, %v817
      %v819 = vpop.f32.mrf.mxu0
      %v820 = vpop.f32.mrf.mxu0
      %v821 = vadd.f32 %v253, %v820
      %v822 = vpop.f32.mrf.mxu0
      %823 = vmatprep.mubr.bf16.mxu0 0
      %824 = vmatmul.mubr.bf16.gmra.mxu0 %v537
      %v825 = vpop.f32.mrf.mxu0
      %v826 = vadd.f32 %v253, %v825
      %v827 = vpop.f32.mrf.mxu0
      %v828 = vpop.f32.mrf.mxu0
      %v829 = vadd.f32 %v253, %v828
      %v830 = vpop.f32.mrf.mxu0
      %831 = vdwg.mxu0
      %v832 = vtanh.pop %v578
      %v833 = vtanh.pop %v581
      %v834 = vtanh.pop %v586
      %v835 = vtanh.pop %v589
      %v836 = vtanh.pop %v594
      %v837 = vtanh.pop %v597
      %v838 = vtanh.pop %v602
      %v839 = vtanh.pop %v605
      %v840 = vtanh.pop %v610
      %v841 = vtanh.pop %v613
      %v842 = vtanh.pop %v618
      %v843 = vtanh.pop %v621
      %v844 = vtanh.pop %v626
      %v845 = vtanh.pop %v629
      %v846 = vtanh.pop %v634
      %v847 = vtanh.pop %v637
      %v848 = vtanh.pop %v642
      %v849 = vtanh.pop %v645
      %v850 = vtanh.pop %v650
      %v851 = vtanh.pop %v653
      %v852 = vtanh.pop %v658
      %v853 = vtanh.pop %v661
      %v854 = vtanh.pop %v666
      %v855 = vtanh.pop %v669
      %v856 = vtanh.pop %v674
      %v857 = vtanh.pop %v677
      %v858 = vtanh.pop %v682
      %v859 = vtanh.pop %v685
      %v860 = vtanh.pop %v690
      %v861 = vtanh.pop %v693
      %v862 = vtanh.pop %v698
      %v863 = vtanh.pop %v701
      %v864 = vtanh.pop %v706
      %v865 = vtanh.pop %v709
      %v866 = vtanh.pop %v714
      %v867 = vtanh.pop %v717
      %v868 = vtanh.pop %v722
      %v869 = vtanh.pop %v725
      %v870 = vtanh.pop %v730
      %v871 = vtanh.pop %v733
      %v872 = vtanh.pop %v738
      %v873 = vtanh.pop %v741
      %v874 = vtanh.pop %v746
      %v875 = vtanh.pop %v749
      %v876 = vtanh.pop %v754
      %v877 = vtanh.pop %v757
      %v878 = vtanh.pop %v762
      %v879 = vtanh.pop %v765
      %v880 = vtanh.pop %v770
      %v881 = vtanh.pop %v773
      %v882 = vtanh.pop %v778
      %v883 = vtanh.pop %v781
      %v884 = vtanh.pop %v786
      %v885 = vtanh.pop %v789
      %v886 = vtanh.pop %v794
      %v887 = vtanh.pop %v797
      %v888 = vtanh.pop %v802
      %v889 = vtanh.pop %v805
      %v890 = vtanh.pop %v810
      %v891 = vtanh.pop %v813
      %v892 = vtanh.pop %v818
      %v893 = vtanh.pop %v821
      %v894 = vtanh.pop %v826
      %v895 = vtanh.pop %v829
      %vm896 = vcmask 97280
      %897 = vst.msk [vmem:[%s172] sm:$0xff] %vm896, %v832
      %898 = vst.msk [vmem:[%s172 + $0x8] sm:$0xff] %vm896, %v833
      %899 = vst.msk [vmem:[%s172 + $0x10] sm:$0xff] %vm896, %v834
      %900 = vst.msk [vmem:[%s172 + $0x18] sm:$0xff] %vm896, %v835
      %901 = vst.msk [vmem:[%s172 + $0x20] sm:$0xff] %vm896, %v836
      %902 = vst.msk [vmem:[%s172 + $0x28] sm:$0xff] %vm896, %v837
      %903 = vst.msk [vmem:[%s172 + $0x30] sm:$0xff] %vm896, %v838
      %904 = vst.msk [vmem:[%s172 + $0x38] sm:$0xff] %vm896, %v839
      %905 = vst.msk [vmem:[%s172 + $0x40] sm:$0xff] %vm896, %v840
      %906 = vst.msk [vmem:[%s172 + $0x48] sm:$0xff] %vm896, %v841
      %907 = vst.msk [vmem:[%s172 + $0x50] sm:$0xff] %vm896, %v842
      %908 = vst.msk [vmem:[%s172 + $0x58] sm:$0xff] %vm896, %v843
      %909 = vst.msk [vmem:[%s172 + $0x60] sm:$0xff] %vm896, %v844
      %910 = vst.msk [vmem:[%s172 + $0x68] sm:$0xff] %vm896, %v845
      %911 = vst.msk [vmem:[%s172 + $0x70] sm:$0xff] %vm896, %v846
      %912 = vst.msk [vmem:[%s172 + $0x78] sm:$0xff] %vm896, %v847
      %913 = vst.msk [vmem:[%s172 + $0x80] sm:$0xff] %vm896, %v848
      %914 = vst.msk [vmem:[%s172 + $0x88] sm:$0xff] %vm896, %v849
      %915 = vst.msk [vmem:[%s172 + $0x90] sm:$0xff] %vm896, %v850
      %916 = vst.msk [vmem:[%s172 + $0x98] sm:$0xff] %vm896, %v851
      %917 = vst.msk [vmem:[%s172 + $0xa0] sm:$0xff] %vm896, %v852
      %918 = vst.msk [vmem:[%s172 + $0xa8] sm:$0xff] %vm896, %v853
      %919 = vst.msk [vmem:[%s172 + $0xb0] sm:$0xff] %vm896, %v854
      %920 = vst.msk [vmem:[%s172 + $0xb8] sm:$0xff] %vm896, %v855
      %921 = vst.msk [vmem:[%s172 + $0xc0] sm:$0xff] %vm896, %v856
      %922 = vst.msk [vmem:[%s172 + $0xc8] sm:$0xff] %vm896, %v857
      %923 = vst.msk [vmem:[%s172 + $0xd0] sm:$0xff] %vm896, %v858
      %924 = vst.msk [vmem:[%s172 + $0xd8] sm:$0xff] %vm896, %v859
      %925 = vst.msk [vmem:[%s172 + $0xe0] sm:$0xff] %vm896, %v860
      %926 = vst.msk [vmem:[%s172 + $0xe8] sm:$0xff] %vm896, %v861
      %927 = vst.msk [vmem:[%s172 + $0xf0] sm:$0xff] %vm896, %v862
      %928 = vst.msk [vmem:[%s172 + $0xf8] sm:$0xff] %vm896, %v863
      %929 = vst.msk [vmem:[%s172 + $0x100] sm:$0xff] %vm896, %v864
      %930 = vst.msk [vmem:[%s172 + $0x108] sm:$0xff] %vm896, %v865
      %931 = vst.msk [vmem:[%s172 + $0x110] sm:$0xff] %vm896, %v866
      %932 = vst.msk [vmem:[%s172 + $0x118] sm:$0xff] %vm896, %v867
      %933 = vst.msk [vmem:[%s172 + $0x120] sm:$0xff] %vm896, %v868
      %934 = vst.msk [vmem:[%s172 + $0x128] sm:$0xff] %vm896, %v869
      %935 = vst.msk [vmem:[%s172 + $0x130] sm:$0xff] %vm896, %v870
      %936 = vst.msk [vmem:[%s172 + $0x138] sm:$0xff] %vm896, %v871
      %937 = vst.msk [vmem:[%s172 + $0x140] sm:$0xff] %vm896, %v872
      %938 = vst.msk [vmem:[%s172 + $0x148] sm:$0xff] %vm896, %v873
      %939 = vst.msk [vmem:[%s172 + $0x150] sm:$0xff] %vm896, %v874
      %940 = vst.msk [vmem:[%s172 + $0x158] sm:$0xff] %vm896, %v875
      %941 = vst.msk [vmem:[%s172 + $0x160] sm:$0xff] %vm896, %v876
      %942 = vst.msk [vmem:[%s172 + $0x168] sm:$0xff] %vm896, %v877
      %943 = vst.msk [vmem:[%s172 + $0x170] sm:$0xff] %vm896, %v878
      %944 = vst.msk [vmem:[%s172 + $0x178] sm:$0xff] %vm896, %v879
      %945 = vst.msk [vmem:[%s172 + $0x180] sm:$0xff] %vm896, %v880
      %946 = vst.msk [vmem:[%s172 + $0x188] sm:$0xff] %vm896, %v881
      %947 = vst.msk [vmem:[%s172 + $0x190] sm:$0xff] %vm896, %v882
      %948 = vst.msk [vmem:[%s172 + $0x198] sm:$0xff] %vm896, %v883
      %949 = vst.msk [vmem:[%s172 + $0x1a0] sm:$0xff] %vm896, %v884
      %950 = vst.msk [vmem:[%s172 + $0x1a8] sm:$0xff] %vm896, %v885
      %951 = vst.msk [vmem:[%s172 + $0x1b0] sm:$0xff] %vm896, %v886
      %952 = vst.msk [vmem:[%s172 + $0x1b8] sm:$0xff] %vm896, %v887
      %953 = vst.msk [vmem:[%s172 + $0x1c0] sm:$0xff] %vm896, %v888
      %954 = vst.msk [vmem:[%s172 + $0x1c8] sm:$0xff] %vm896, %v889
      %955 = vst.msk [vmem:[%s172 + $0x1d0] sm:$0xff] %vm896, %v890
      %956 = vst.msk [vmem:[%s172 + $0x1d8] sm:$0xff] %vm896, %v891
      %957 = vst.msk [vmem:[%s172 + $0x1e0] sm:$0xff] %vm896, %v892
      %958 = vst.msk [vmem:[%s172 + $0x1e8] sm:$0xff] %vm896, %v893
      %959 = vst.msk [vmem:[%s172 + $0x1f0] sm:$0xff] %vm896, %v894
      %960 = vst.msk [vmem:[%s172 + $0x1f8] sm:$0xff] %vm896, %v895
      %s961 = smul.u32 64, %s14
      %p962 = scmp.lt.s32.totalorder %s961, 255
      %s963 = scalar_select %p962, %s961, 255
      %s964 = smul.addr %s963, 8
      %s965 = scalar_lea.vmem %s3, %s964
      // Predicated region
      $region33: #{stage1_generator_forward.15} parent=31 // pred_check
        %p966 = pneg %p100
      $region34: #{stage1_generator_forward.15} parent=31 // pred_check_branch
        %968 = sbr.rel (%p966) target = $region36
      $region35: #{stage1_generator_forward.15} parent=31 // pred_region
        %s969 = smul.u32 64, %s14
      $region36: #{stage1_generator_forward.15} parent=31 // pred_fallthru
        _
    $region32: #{stage1_generator_forward.15} parent=5 // pred_fallthru
      _
    %p970 = scmp.le.s32.totalorder 2, %s9
    // Predicated region
    $region37: #{stage1_generator_forward.15} parent=5 // pred_check
      %p971 = pneg %p970
    $region38: #{stage1_generator_forward.15} parent=5 // pred_check_branch
      %973 = sbr.rel (%p971) target = $region40
    $region39: #{stage1_generator_forward.15} parent=5 // pred_region
      %s974 = ssub.s32 %s9, 2
      // Predicated region
      $region41: #{stage1_generator_forward.15} parent=39 // pred_check
        %p975 = pneg %p106
      $region42: #{stage1_generator_forward.15} parent=39 // pred_check_branch
        %977 = sbr.rel (%p975) target = $region44
      $region43: #{stage1_generator_forward.15} parent=39 // pred_region
        %s978 = smul.u32 64, %s15
        %p979 = scmp.lt.s32.totalorder %s978, 255
        %s980 = scalar_select %p979, %s978, 255
        %s981 = smul.addr %s980, 8
        %s982 = scalar_lea.vmem %s3, %s981
      $region44: #{stage1_generator_forward.15} parent=39 // pred_fallthru
        _
    $region40: #{stage1_generator_forward.15} parent=5 // pred_fallthru
      _
  $region6: #{stage1_generator_forward.15} parent=0 // loop_footer
    %s13 = sadd.s32 1, %s9
  $region7: #{stage1_generator_forward.15} parent=0 // loop_footer_branch
    %8 = sbr.rel target = $region3
  $region8: #{stage1_generator_forward.15} parent=0 // loop_exit
    _

</llo_original>
